<compile_context>
chip_gen: v6e
topology: v6e:2x2x1
jax: 0.10.0
libtpu: 0.0.40
codegen_flags: <defaults>
</compile_context>

<pallas_src>
import jax
import jax.numpy as jnp
from jax import lax
from jax.experimental import pallas as pl
from jax.experimental.pallas import tpu as pltpu

BN_EPS = 1e-5
C_PAD = 128      # padded channel width (real 80)
F1_PAD = 256     # padded fc1 width (real 250)
NCLS = 25        # real number of classes (logits padded to 128 lanes)
NEG = -1e30


# -------------------- fused kernel --------------------

def _bn_relu(y, gamma, beta):
    # Training-mode BatchNorm over rows (N*H*W), single pass, biased variance.
    m = y.shape[0]
    inv_m = 1.0 / m
    s1 = jnp.sum(y, axis=0, keepdims=True)
    s2 = jnp.sum(y * y, axis=0, keepdims=True)
    mean = s1 * inv_m
    var = s2 * inv_m - mean * mean
    y = (y - mean) * lax.rsqrt(var + BN_EPS)
    return jnp.maximum(y * gamma + beta, 0.0)


def _pool2x2(x):
    # x: (N, H, W, C) -> (N, H/2, W/2, C), 2x2 window, stride 2, done in VMEM.
    n, h, w, c = x.shape
    x = x.reshape(n, h // 2, 2, w, c)
    x = jnp.max(x, axis=2)                      # pool H (non-minor axis: cheap)
    x = x.reshape(n, h // 2, w // 2, 2, c)
    x = jnp.max(x, axis=3)                      # pool W (sublane-pair reduce)
    return x


def fused_net_kernel(p1_ref, w1_ref, g1_ref, bt1_ref,
                     w2_ref, g2_ref, bt2_ref,
                     w3_ref, b3_ref, w4_ref, b4_ref, o_ref):
    n = o_ref.shape[0]

    # ---- conv1 (im2col matmul) + BN1 + ReLU + 2x2 pool ----
    # (conv1 bias omitted: cancelled exactly by the BN mean subtraction)
    y1 = jnp.dot(p1_ref[...], w1_ref[...], preferred_element_type=jnp.float32)
    y1 = _bn_relu(y1, g1_ref[...], bt1_ref[...])                 # (N*576, 128)
    y1 = _pool2x2(y1.reshape(n, 24, 24, C_PAD))                  # (N, 12, 12, 128)
    y1 = y1.astype(jnp.bfloat16)                                 # single cast

    # ---- conv2: single long-K matmul over an in-VMEM im2col slab ----
    # slab column index = tap*128 + c_in, matching w2's prepacked (3200,128) rows.
    m2 = n * 8 * 8
    slab = jnp.concatenate(
        [y1[:, di:di + 8, dj:dj + 8, :].reshape(m2, C_PAD)
         for di in range(5) for dj in range(5)], axis=-1)        # (m2, 3200) bf16
    y2 = jnp.dot(slab, w2_ref[...], preferred_element_type=jnp.float32)
    y2 = _bn_relu(y2, g2_ref[...], bt2_ref[...])                 # (N*64, 128)
    y2 = _pool2x2(y2.reshape(n, 8, 8, C_PAD))                    # (N, 4, 4, 128)

    # ---- fc1 + ReLU: one (N, 2048) x (2048, 256) matmul; the NCHW-flatten
    #      permutation is folded into the prepacked w3 layout ----
    zin = y2.reshape(n, 16 * C_PAD).astype(jnp.bfloat16)         # (N, 2048)
    z = jnp.dot(zin, w3_ref[...], preferred_element_type=jnp.float32) + b3_ref[...]
    z = jnp.maximum(z, 0.0)                                      # (N, 256) f32

    # ---- fc2 + log_softmax over the 25 real classes (padded lanes masked) ----
    logits = jnp.dot(z.astype(jnp.bfloat16), w4_ref[...],
                     preferred_element_type=jnp.float32) + b4_ref[...]
    col = lax.broadcasted_iota(jnp.int32, logits.shape, 1)
    logits = jnp.where(col < NCLS, logits, NEG)
    mx = jnp.max(logits, axis=1, keepdims=True)
    lse = mx + jnp.log(jnp.sum(jnp.exp(logits - mx), axis=1, keepdims=True))
    o_ref[...] = logits - lse


# -------------------- pallas_call plumbing --------------------

def _full_spec(shape):
    nd = len(shape)
    return pl.BlockSpec(shape, lambda i, _nd=nd: (0,) * _nd)


def _conv1_patches(x):
    # x: (N, 28, 28) f32 -> (N*576, 25) bf16 im2col patches, tap order di*5+dj.
    n = x.shape[0]
    cols = [x[:, di:di + 24, dj:dj + 24] for di in range(5) for dj in range(5)]
    p = jnp.stack(cols, axis=-1)                # (N, 24, 24, 25)
    return p.reshape(n * 576, 25).astype(jnp.bfloat16)


@jax.jit
def net_forward(prep, x_nchw):
    n = x_nchw.shape[0]
    x = x_nchw.reshape(n, 28, 28).astype(jnp.float32)   # single input channel
    patches = _conv1_patches(x)

    args = (patches,
            prep["w1"], prep["g1"], prep["bt1"],
            prep["w2"], prep["g2"], prep["bt2"],
            prep["w3"], prep["b3"], prep["w4"], prep["b4"])

    flops = 2 * (n * 576 * 25 * C_PAD                     # conv1
                 + n * 64 * (25 * C_PAD) * C_PAD          # conv2 (long K)
                 + n * (16 * C_PAD) * F1_PAD              # fc1
                 + n * F1_PAD * C_PAD)                    # fc2
    bytes_accessed = int(sum(a.size * a.dtype.itemsize for a in args)
                         + n * C_PAD * 4)
    cost = pl.CostEstimate(flops=flops,
                           transcendentals=2 * C_PAD + n * (C_PAD + 1),
                           bytes_accessed=bytes_accessed)

    out = pl.pallas_call(
        fused_net_kernel,
        out_shape=jax.ShapeDtypeStruct((n, C_PAD), jnp.float32),
        grid=(1,),
        in_specs=[_full_spec(a.shape) for a in args],
        out_specs=_full_spec((n, C_PAD)),
        compiler_params=pltpu.CompilerParams(
            dimension_semantics=("arbitrary",),
            vmem_limit_bytes=32 * 1024 * 1024,
        ),
        cost_estimate=cost,
    )(*args)
    return out[:, :NCLS]


# -------------------- parameters --------------------

def init_params(key):
    # Deterministic synthetic params in native PyTorch layouts (OIHW / (out,in)).
    ks = jax.random.split(key, 12)
    p = {}
    p["conv1_w"] = jax.random.normal(ks[0], (80, 1, 5, 5), jnp.float32) * 0.10
    p["conv1_b"] = jax.random.normal(ks[1], (80,), jnp.float32) * 0.10
    p["bn1_gamma"] = 1.0 + 0.1 * jax.random.normal(ks[2], (80,), jnp.float32)
    p["bn1_beta"] = 0.1 * jax.random.normal(ks[3], (80,), jnp.float32)
    p["conv2_w"] = jax.random.normal(ks[4], (80, 80, 5, 5), jnp.float32) * 0.05
    p["conv2_b"] = jax.random.normal(ks[5], (80,), jnp.float32) * 0.10
    p["bn2_gamma"] = 1.0 + 0.1 * jax.random.normal(ks[6], (80,), jnp.float32)
    p["bn2_beta"] = 0.1 * jax.random.normal(ks[7], (80,), jnp.float32)
    p["fc1_w"] = jax.random.normal(ks[8], (250, 1280), jnp.float32) * 0.03
    p["fc1_b"] = jax.random.normal(ks[9], (250,), jnp.float32) * 0.10
    p["fc2_w"] = jax.random.normal(ks[10], (25, 250), jnp.float32) * 0.05
    p["fc2_b"] = jax.random.normal(ks[11], (25,), jnp.float32) * 0.10
    return p


def prepare_params(p):
    """One-time layout prep (outside the jitted forward): transpose to matmul
    layouts, zero-pad 80->128 / 250->256 / 25->128, cast matmul weights to bf16.
    Padded weight columns/rows and gamma/beta are zero, so padded lanes stay
    exactly zero through BN/ReLU and contribute nothing downstream.
    conv biases are dropped: they are cancelled exactly by the training-mode
    BatchNorm mean subtraction that immediately follows each conv."""
    cpad = C_PAD - 80

    def row(v, pad):                                   # (k,) -> (1, k+pad) f32
        return jnp.pad(v.astype(jnp.float32), (0, pad)).reshape(1, -1)

    # conv1: OIHW (80,1,5,5) -> (5,5,1,80) -> (25, 80) -> (25, 128) bf16
    w1 = jnp.transpose(p["conv1_w"], (2, 3, 1, 0)).reshape(25, 80)
    w1 = jnp.pad(w1, ((0, 0), (0, cpad))).astype(jnp.bfloat16)
    # conv2: OIHW (80,80,5,5) -> (5,5,80,80) -> (25,80,80) -> (25,128,128)
    #        -> (3200, 128): row index = tap*128 + c_in (matches the kernel slab).
    w2 = jnp.transpose(p["conv2_w"], (2, 3, 1, 0)).reshape(25, 80, 80)
    w2 = jnp.pad(w2, ((0, 0), (0, cpad), (0, cpad)))
    w2 = w2.reshape(25 * C_PAD, C_PAD).astype(jnp.bfloat16)
    # fc1: (250, 1280) with input index c*16 + h*4 + w
    #      -> (h, w, c, o) -> pad -> (2048, 256): row index = (h*4+w)*128 + c,
    #      which matches the kernel's (N,4,4,128)->(N,2048) reshape order.
    w3 = jnp.transpose(p["fc1_w"].reshape(250, 80, 4, 4), (2, 3, 1, 0))
    w3 = jnp.pad(w3, ((0, 0), (0, 0), (0, cpad), (0, F1_PAD - 250)))
    w3 = w3.reshape(16 * C_PAD, F1_PAD).astype(jnp.bfloat16)
    # fc2: (25, 250) -> (250, 25) -> (256, 128)
    w4 = jnp.pad(p["fc2_w"].T, ((0, F1_PAD - 250), (0, C_PAD - NCLS)))
    w4 = w4.astype(jnp.bfloat16)

    return dict(
        w1=w1, g1=row(p["bn1_gamma"], cpad), bt1=row(p["bn1_beta"], cpad),
        w2=w2, g2=row(p["bn2_gamma"], cpad), bt2=row(p["bn2_beta"], cpad),
        w3=w3, b3=row(p["fc1_b"], F1_PAD - 250),
        w4=w4, b4=row(p["fc2_b"], C_PAD - NCLS),
    )


if __name__ == "__main__":
    key = jax.random.PRNGKey(0)
    pkey, xkey = jax.random.split(key)
    params = init_params(pkey)
    prep = prepare_params(params)          # one-time, outside the jitted forward
    # The module's fc1 (1280 = 80*4*4) forces 28x28 spatial input with 1 channel.
    x = jax.random.normal(xkey, (2, 1, 28, 28), jnp.float32)
    out = jax.block_until_ready(net_forward(prep, x))
    assert out.shape == (2, 25), out.shape
    assert bool(jnp.all(jnp.isfinite(out)))
    # log_softmax rows must exponentiate-sum to ~1
    assert bool(jnp.allclose(jnp.sum(jnp.exp(out), axis=1), 1.0, atol=1e-4))
    print("KERNEL_OK")
</pallas_src>

<mosaic_0001>
module attributes {stable_mosaic.version = 11 : i64} {
  func.func @fused_net_kernel(%arg0: i32, %arg1: memref<1152x25xbf16, #tpu.memory_space<vmem>>, %arg2: memref<25x128xbf16, #tpu.memory_space<vmem>>, %arg3: memref<1x128xf32, #tpu.memory_space<vmem>>, %arg4: memref<1x128xf32, #tpu.memory_space<vmem>>, %arg5: memref<3200x128xbf16, #tpu.memory_space<vmem>>, %arg6: memref<1x128xf32, #tpu.memory_space<vmem>>, %arg7: memref<1x128xf32, #tpu.memory_space<vmem>>, %arg8: memref<2048x256xbf16, #tpu.memory_space<vmem>>, %arg9: memref<1x256xf32, #tpu.memory_space<vmem>>, %arg10: memref<256x128xbf16, #tpu.memory_space<vmem>>, %arg11: memref<1x128xf32, #tpu.memory_space<vmem>>, %arg12: memref<2x128xf32, #tpu.memory_space<vmem>>) attributes {dimension_semantics = [#tpu.dimension_semantics<arbitrary>], iteration_bounds = array<i64: 1>, scalar_prefetch = 0 : i64, scratch_operands = 0 : i64, tpu.core_type = #tpu.core_type<tc>, window_params = [{pipeline_mode = #tpu.pipeline_mode<synchronous>, transform_indices = @transform_0, window_bounds = array<i64: 1152, 25>}, {pipeline_mode = #tpu.pipeline_mode<synchronous>, transform_indices = @transform_1, window_bounds = array<i64: 25, 128>}, {pipeline_mode = #tpu.pipeline_mode<synchronous>, transform_indices = @transform_2, window_bounds = array<i64: 1, 128>}, {pipeline_mode = #tpu.pipeline_mode<synchronous>, transform_indices = @transform_3, window_bounds = array<i64: 1, 128>}, {pipeline_mode = #tpu.pipeline_mode<synchronous>, transform_indices = @transform_4, window_bounds = array<i64: 3200, 128>}, {pipeline_mode = #tpu.pipeline_mode<synchronous>, transform_indices = @transform_5, window_bounds = array<i64: 1, 128>}, {pipeline_mode = #tpu.pipeline_mode<synchronous>, transform_indices = @transform_6, window_bounds = array<i64: 1, 128>}, {pipeline_mode = #tpu.pipeline_mode<synchronous>, transform_indices = @transform_7, window_bounds = array<i64: 2048, 256>}, {pipeline_mode = #tpu.pipeline_mode<synchronous>, transform_indices = @transform_8, window_bounds = array<i64: 1, 256>}, {pipeline_mode = #tpu.pipeline_mode<synchronous>, transform_indices = @transform_9, window_bounds = array<i64: 256, 128>}, {pipeline_mode = #tpu.pipeline_mode<synchronous>, transform_indices = @transform_10, window_bounds = array<i64: 1, 128>}, {pipeline_mode = #tpu.pipeline_mode<synchronous>, transform_indices = @transform_11, window_bounds = array<i64: 2, 128>}]} {
    %c0 = arith.constant 0 : index
    %c0_0 = arith.constant 0 : index
    %0 = vector.load %arg1[%c0, %c0_0] : memref<1152x25xbf16, #tpu.memory_space<vmem>>, vector<1152x25xbf16>
    %c0_1 = arith.constant 0 : index
    %c0_2 = arith.constant 0 : index
    %1 = vector.load %arg2[%c0_1, %c0_2] : memref<25x128xbf16, #tpu.memory_space<vmem>>, vector<25x128xbf16>
    %cst = arith.constant dense<0.000000e+00> : vector<1152x128xf32>
    %2 = tpu.matmul %0, %1, %cst {dimension_numbers = #tpu.dot_dimension_numbers<[1], [0], [0], [1], [0, 0, 1, 1], [], []>} : vector<1152x25xbf16>, vector<25x128xbf16>, vector<1152x128xf32> -> vector<1152x128xf32>
    %c0_3 = arith.constant 0 : index
    %c0_4 = arith.constant 0 : index
    %3 = vector.load %arg3[%c0_3, %c0_4] : memref<1x128xf32, #tpu.memory_space<vmem>>, vector<1x128xf32>
    %c0_5 = arith.constant 0 : index
    %c0_6 = arith.constant 0 : index
    %4 = vector.load %arg4[%c0_5, %c0_6] : memref<1x128xf32, #tpu.memory_space<vmem>>, vector<1x128xf32>
    %cst_7 = arith.constant dense<0.000000e+00> : vector<128xf32>
    %5 = vector.multi_reduction <add>, %2, %cst_7 [0] : vector<1152x128xf32> to vector<128xf32>
    %6 = vector.shape_cast %5 : vector<128xf32> to vector<1x128xf32>
    %7 = arith.mulf %2, %2 : vector<1152x128xf32>
    %cst_8 = arith.constant dense<0.000000e+00> : vector<128xf32>
    %8 = vector.multi_reduction <add>, %7, %cst_8 [0] : vector<1152x128xf32> to vector<128xf32>
    %9 = vector.shape_cast %8 : vector<128xf32> to vector<1x128xf32>
    %cst_9 = arith.constant 8.68055562E-4 : f32
    %10 = vector.broadcast %cst_9 : f32 to vector<1x128xf32>
    %11 = arith.mulf %6, %10 : vector<1x128xf32>
    %cst_10 = arith.constant 8.68055562E-4 : f32
    %12 = vector.broadcast %cst_10 : f32 to vector<1x128xf32>
    %13 = arith.mulf %9, %12 : vector<1x128xf32>
    %14 = arith.mulf %11, %11 : vector<1x128xf32>
    %15 = arith.subf %13, %14 : vector<1x128xf32>
    %16 = vector.broadcast %11 : vector<1x128xf32> to vector<1152x128xf32>
    %17 = arith.subf %2, %16 : vector<1152x128xf32>
    %cst_11 = arith.constant 9.99999974E-6 : f32
    %18 = vector.broadcast %cst_11 : f32 to vector<1x128xf32>
    %19 = arith.addf %15, %18 : vector<1x128xf32>
    %20 = math.rsqrt %19 : vector<1x128xf32>
    %21 = vector.broadcast %20 : vector<1x128xf32> to vector<1152x128xf32>
    %22 = arith.mulf %17, %21 : vector<1152x128xf32>
    %23 = vector.broadcast %3 : vector<1x128xf32> to vector<1152x128xf32>
    %24 = arith.mulf %22, %23 : vector<1152x128xf32>
    %25 = vector.broadcast %4 : vector<1x128xf32> to vector<1152x128xf32>
    %26 = arith.addf %24, %25 : vector<1152x128xf32>
    %cst_12 = arith.constant 0.000000e+00 : f32
    %27 = vector.broadcast %cst_12 : f32 to vector<1152x128xf32>
    %28 = arith.maximumf %26, %27 : vector<1152x128xf32>
    %29 = vector.shape_cast %28 : vector<1152x128xf32> to vector<2x24x24x128xf32>
    %30 = vector.shape_cast %29 : vector<2x24x24x128xf32> to vector<2x12x2x24x128xf32>
    %cst_13 = arith.constant dense<0xFF800000> : vector<2x12x24x128xf32>
    %31 = vector.multi_reduction <maximumf>, %30, %cst_13 [2] : vector<2x12x2x24x128xf32> to vector<2x12x24x128xf32>
    %32 = vector.shape_cast %31 : vector<2x12x24x128xf32> to vector<2x12x12x2x128xf32>
    %cst_14 = arith.constant dense<0xFF800000> : vector<2x12x12x128xf32>
    %33 = vector.multi_reduction <maximumf>, %32, %cst_14 [3] : vector<2x12x12x2x128xf32> to vector<2x12x12x128xf32>
    %34 = arith.truncf %33 : vector<2x12x12x128xf32> to vector<2x12x12x128xbf16>
    %35 = vector.extract_strided_slice %34 {offsets = [0, 0, 0, 0], sizes = [2, 8, 8, 128], strides = [1, 1, 1, 1]} : vector<2x12x12x128xbf16> to vector<2x8x8x128xbf16>
    %36 = vector.shape_cast %35 : vector<2x8x8x128xbf16> to vector<128x128xbf16>
    %37 = vector.extract_strided_slice %34 {offsets = [0, 0, 1, 0], sizes = [2, 8, 8, 128], strides = [1, 1, 1, 1]} : vector<2x12x12x128xbf16> to vector<2x8x8x128xbf16>
    %38 = vector.shape_cast %37 : vector<2x8x8x128xbf16> to vector<128x128xbf16>
    %39 = vector.extract_strided_slice %34 {offsets = [0, 0, 2, 0], sizes = [2, 8, 8, 128], strides = [1, 1, 1, 1]} : vector<2x12x12x128xbf16> to vector<2x8x8x128xbf16>
    %40 = vector.shape_cast %39 : vector<2x8x8x128xbf16> to vector<128x128xbf16>
    %41 = vector.extract_strided_slice %34 {offsets = [0, 0, 3, 0], sizes = [2, 8, 8, 128], strides = [1, 1, 1, 1]} : vector<2x12x12x128xbf16> to vector<2x8x8x128xbf16>
    %42 = vector.shape_cast %41 : vector<2x8x8x128xbf16> to vector<128x128xbf16>
    %43 = vector.extract_strided_slice %34 {offsets = [0, 0, 4, 0], sizes = [2, 8, 8, 128], strides = [1, 1, 1, 1]} : vector<2x12x12x128xbf16> to vector<2x8x8x128xbf16>
    %44 = vector.shape_cast %43 : vector<2x8x8x128xbf16> to vector<128x128xbf16>
    %45 = vector.extract_strided_slice %34 {offsets = [0, 1, 0, 0], sizes = [2, 8, 8, 128], strides = [1, 1, 1, 1]} : vector<2x12x12x128xbf16> to vector<2x8x8x128xbf16>
    %46 = vector.shape_cast %45 : vector<2x8x8x128xbf16> to vector<128x128xbf16>
    %47 = vector.extract_strided_slice %34 {offsets = [0, 1, 1, 0], sizes = [2, 8, 8, 128], strides = [1, 1, 1, 1]} : vector<2x12x12x128xbf16> to vector<2x8x8x128xbf16>
    %48 = vector.shape_cast %47 : vector<2x8x8x128xbf16> to vector<128x128xbf16>
    %49 = vector.extract_strided_slice %34 {offsets = [0, 1, 2, 0], sizes = [2, 8, 8, 128], strides = [1, 1, 1, 1]} : vector<2x12x12x128xbf16> to vector<2x8x8x128xbf16>
    %50 = vector.shape_cast %49 : vector<2x8x8x128xbf16> to vector<128x128xbf16>
    %51 = vector.extract_strided_slice %34 {offsets = [0, 1, 3, 0], sizes = [2, 8, 8, 128], strides = [1, 1, 1, 1]} : vector<2x12x12x128xbf16> to vector<2x8x8x128xbf16>
    %52 = vector.shape_cast %51 : vector<2x8x8x128xbf16> to vector<128x128xbf16>
    %53 = vector.extract_strided_slice %34 {offsets = [0, 1, 4, 0], sizes = [2, 8, 8, 128], strides = [1, 1, 1, 1]} : vector<2x12x12x128xbf16> to vector<2x8x8x128xbf16>
    %54 = vector.shape_cast %53 : vector<2x8x8x128xbf16> to vector<128x128xbf16>
    %55 = vector.extract_strided_slice %34 {offsets = [0, 2, 0, 0], sizes = [2, 8, 8, 128], strides = [1, 1, 1, 1]} : vector<2x12x12x128xbf16> to vector<2x8x8x128xbf16>
    %56 = vector.shape_cast %55 : vector<2x8x8x128xbf16> to vector<128x128xbf16>
    %57 = vector.extract_strided_slice %34 {offsets = [0, 2, 1, 0], sizes = [2, 8, 8, 128], strides = [1, 1, 1, 1]} : vector<2x12x12x128xbf16> to vector<2x8x8x128xbf16>
    %58 = vector.shape_cast %57 : vector<2x8x8x128xbf16> to vector<128x128xbf16>
    %59 = vector.extract_strided_slice %34 {offsets = [0, 2, 2, 0], sizes = [2, 8, 8, 128], strides = [1, 1, 1, 1]} : vector<2x12x12x128xbf16> to vector<2x8x8x128xbf16>
    %60 = vector.shape_cast %59 : vector<2x8x8x128xbf16> to vector<128x128xbf16>
    %61 = vector.extract_strided_slice %34 {offsets = [0, 2, 3, 0], sizes = [2, 8, 8, 128], strides = [1, 1, 1, 1]} : vector<2x12x12x128xbf16> to vector<2x8x8x128xbf16>
    %62 = vector.shape_cast %61 : vector<2x8x8x128xbf16> to vector<128x128xbf16>
    %63 = vector.extract_strided_slice %34 {offsets = [0, 2, 4, 0], sizes = [2, 8, 8, 128], strides = [1, 1, 1, 1]} : vector<2x12x12x128xbf16> to vector<2x8x8x128xbf16>
    %64 = vector.shape_cast %63 : vector<2x8x8x128xbf16> to vector<128x128xbf16>
    %65 = vector.extract_strided_slice %34 {offsets = [0, 3, 0, 0], sizes = [2, 8, 8, 128], strides = [1, 1, 1, 1]} : vector<2x12x12x128xbf16> to vector<2x8x8x128xbf16>
    %66 = vector.shape_cast %65 : vector<2x8x8x128xbf16> to vector<128x128xbf16>
    %67 = vector.extract_strided_slice %34 {offsets = [0, 3, 1, 0], sizes = [2, 8, 8, 128], strides = [1, 1, 1, 1]} : vector<2x12x12x128xbf16> to vector<2x8x8x128xbf16>
    %68 = vector.shape_cast %67 : vector<2x8x8x128xbf16> to vector<128x128xbf16>
    %69 = vector.extract_strided_slice %34 {offsets = [0, 3, 2, 0], sizes = [2, 8, 8, 128], strides = [1, 1, 1, 1]} : vector<2x12x12x128xbf16> to vector<2x8x8x128xbf16>
    %70 = vector.shape_cast %69 : vector<2x8x8x128xbf16> to vector<128x128xbf16>
    %71 = vector.extract_strided_slice %34 {offsets = [0, 3, 3, 0], sizes = [2, 8, 8, 128], strides = [1, 1, 1, 1]} : vector<2x12x12x128xbf16> to vector<2x8x8x128xbf16>
    %72 = vector.shape_cast %71 : vector<2x8x8x128xbf16> to vector<128x128xbf16>
    %73 = vector.extract_strided_slice %34 {offsets = [0, 3, 4, 0], sizes = [2, 8, 8, 128], strides = [1, 1, 1, 1]} : vector<2x12x12x128xbf16> to vector<2x8x8x128xbf16>
    %74 = vector.shape_cast %73 : vector<2x8x8x128xbf16> to vector<128x128xbf16>
    %75 = vector.extract_strided_slice %34 {offsets = [0, 4, 0, 0], sizes = [2, 8, 8, 128], strides = [1, 1, 1, 1]} : vector<2x12x12x128xbf16> to vector<2x8x8x128xbf16>
    %76 = vector.shape_cast %75 : vector<2x8x8x128xbf16> to vector<128x128xbf16>
    %77 = vector.extract_strided_slice %34 {offsets = [0, 4, 1, 0], sizes = [2, 8, 8, 128], strides = [1, 1, 1, 1]} : vector<2x12x12x128xbf16> to vector<2x8x8x128xbf16>
    %78 = vector.shape_cast %77 : vector<2x8x8x128xbf16> to vector<128x128xbf16>
    %79 = vector.extract_strided_slice %34 {offsets = [0, 4, 2, 0], sizes = [2, 8, 8, 128], strides = [1, 1, 1, 1]} : vector<2x12x12x128xbf16> to vector<2x8x8x128xbf16>
    %80 = vector.shape_cast %79 : vector<2x8x8x128xbf16> to vector<128x128xbf16>
    %81 = vector.extract_strided_slice %34 {offsets = [0, 4, 3, 0], sizes = [2, 8, 8, 128], strides = [1, 1, 1, 1]} : vector<2x12x12x128xbf16> to vector<2x8x8x128xbf16>
    %82 = vector.shape_cast %81 : vector<2x8x8x128xbf16> to vector<128x128xbf16>
    %83 = vector.extract_strided_slice %34 {offsets = [0, 4, 4, 0], sizes = [2, 8, 8, 128], strides = [1, 1, 1, 1]} : vector<2x12x12x128xbf16> to vector<2x8x8x128xbf16>
    %84 = vector.shape_cast %83 : vector<2x8x8x128xbf16> to vector<128x128xbf16>
    %85 = tpu.concatenate %36, %38, %40, %42, %44, %46, %48, %50, %52, %54, %56, %58, %60, %62, %64, %66 in 1 : vector<128x128xbf16>, vector<128x128xbf16>, vector<128x128xbf16>, vector<128x128xbf16>, vector<128x128xbf16>, vector<128x128xbf16>, vector<128x128xbf16>, vector<128x128xbf16>, vector<128x128xbf16>, vector<128x128xbf16>, vector<128x128xbf16>, vector<128x128xbf16>, vector<128x128xbf16>, vector<128x128xbf16>, vector<128x128xbf16>, vector<128x128xbf16> -> vector<128x2048xbf16>
    %86 = tpu.concatenate %68, %70, %72, %74, %76, %78, %80, %82, %84 in 1 : vector<128x128xbf16>, vector<128x128xbf16>, vector<128x128xbf16>, vector<128x128xbf16>, vector<128x128xbf16>, vector<128x128xbf16>, vector<128x128xbf16>, vector<128x128xbf16>, vector<128x128xbf16> -> vector<128x1152xbf16>
    %87 = tpu.concatenate %85, %86 in 1 : vector<128x2048xbf16>, vector<128x1152xbf16> -> vector<128x3200xbf16>
    %c0_15 = arith.constant 0 : index
    %c0_16 = arith.constant 0 : index
    %88 = vector.load %arg5[%c0_15, %c0_16] : memref<3200x128xbf16, #tpu.memory_space<vmem>>, vector<3200x128xbf16>
    %cst_17 = arith.constant dense<0.000000e+00> : vector<128x128xf32>
    %89 = tpu.matmul %87, %88, %cst_17 {dimension_numbers = #tpu.dot_dimension_numbers<[1], [0], [0], [1], [0, 0, 1, 1], [], []>} : vector<128x3200xbf16>, vector<3200x128xbf16>, vector<128x128xf32> -> vector<128x128xf32>
    %c0_18 = arith.constant 0 : index
    %c0_19 = arith.constant 0 : index
    %90 = vector.load %arg6[%c0_18, %c0_19] : memref<1x128xf32, #tpu.memory_space<vmem>>, vector<1x128xf32>
    %c0_20 = arith.constant 0 : index
    %c0_21 = arith.constant 0 : index
    %91 = vector.load %arg7[%c0_20, %c0_21] : memref<1x128xf32, #tpu.memory_space<vmem>>, vector<1x128xf32>
    %cst_22 = arith.constant dense<0.000000e+00> : vector<128xf32>
    %92 = vector.multi_reduction <add>, %89, %cst_22 [0] : vector<128x128xf32> to vector<128xf32>
    %93 = vector.shape_cast %92 : vector<128xf32> to vector<1x128xf32>
    %94 = arith.mulf %89, %89 : vector<128x128xf32>
    %cst_23 = arith.constant dense<0.000000e+00> : vector<128xf32>
    %95 = vector.multi_reduction <add>, %94, %cst_23 [0] : vector<128x128xf32> to vector<128xf32>
    %96 = vector.shape_cast %95 : vector<128xf32> to vector<1x128xf32>
    %cst_24 = arith.constant 7.812500e-03 : f32
    %97 = vector.broadcast %cst_24 : f32 to vector<1x128xf32>
    %98 = arith.mulf %93, %97 : vector<1x128xf32>
    %cst_25 = arith.constant 7.812500e-03 : f32
    %99 = vector.broadcast %cst_25 : f32 to vector<1x128xf32>
    %100 = arith.mulf %96, %99 : vector<1x128xf32>
    %101 = arith.mulf %98, %98 : vector<1x128xf32>
    %102 = arith.subf %100, %101 : vector<1x128xf32>
    %103 = vector.broadcast %98 : vector<1x128xf32> to vector<128x128xf32>
    %104 = arith.subf %89, %103 : vector<128x128xf32>
    %cst_26 = arith.constant 9.99999974E-6 : f32
    %105 = vector.broadcast %cst_26 : f32 to vector<1x128xf32>
    %106 = arith.addf %102, %105 : vector<1x128xf32>
    %107 = math.rsqrt %106 : vector<1x128xf32>
    %108 = vector.broadcast %107 : vector<1x128xf32> to vector<128x128xf32>
    %109 = arith.mulf %104, %108 : vector<128x128xf32>
    %110 = vector.broadcast %90 : vector<1x128xf32> to vector<128x128xf32>
    %111 = arith.mulf %109, %110 : vector<128x128xf32>
    %112 = vector.broadcast %91 : vector<1x128xf32> to vector<128x128xf32>
    %113 = arith.addf %111, %112 : vector<128x128xf32>
    %cst_27 = arith.constant 0.000000e+00 : f32
    %114 = vector.broadcast %cst_27 : f32 to vector<128x128xf32>
    %115 = arith.maximumf %113, %114 : vector<128x128xf32>
    %116 = vector.shape_cast %115 : vector<128x128xf32> to vector<2x8x8x128xf32>
    %117 = vector.shape_cast %116 : vector<2x8x8x128xf32> to vector<2x4x2x8x128xf32>
    %cst_28 = arith.constant dense<0xFF800000> : vector<2x4x8x128xf32>
    %118 = vector.multi_reduction <maximumf>, %117, %cst_28 [2] : vector<2x4x2x8x128xf32> to vector<2x4x8x128xf32>
    %119 = vector.shape_cast %118 : vector<2x4x8x128xf32> to vector<2x4x4x2x128xf32>
    %cst_29 = arith.constant dense<0xFF800000> : vector<2x4x4x128xf32>
    %120 = vector.multi_reduction <maximumf>, %119, %cst_29 [3] : vector<2x4x4x2x128xf32> to vector<2x4x4x128xf32>
    %121 = vector.shape_cast %120 : vector<2x4x4x128xf32> to vector<2x2048xf32>
    %122 = arith.truncf %121 : vector<2x2048xf32> to vector<2x2048xbf16>
    %c0_30 = arith.constant 0 : index
    %c0_31 = arith.constant 0 : index
    %123 = vector.load %arg8[%c0_30, %c0_31] : memref<2048x256xbf16, #tpu.memory_space<vmem>>, vector<2048x256xbf16>
    %cst_32 = arith.constant dense<0.000000e+00> : vector<2x256xf32>
    %124 = tpu.matmul %122, %123, %cst_32 {dimension_numbers = #tpu.dot_dimension_numbers<[1], [0], [0], [1], [0, 0, 1, 1], [], []>} : vector<2x2048xbf16>, vector<2048x256xbf16>, vector<2x256xf32> -> vector<2x256xf32>
    %c0_33 = arith.constant 0 : index
    %c0_34 = arith.constant 0 : index
    %125 = vector.load %arg9[%c0_33, %c0_34] : memref<1x256xf32, #tpu.memory_space<vmem>>, vector<1x256xf32>
    %126 = vector.broadcast %125 : vector<1x256xf32> to vector<2x256xf32>
    %127 = arith.addf %124, %126 : vector<2x256xf32>
    %cst_35 = arith.constant 0.000000e+00 : f32
    %128 = vector.broadcast %cst_35 : f32 to vector<2x256xf32>
    %129 = arith.maximumf %127, %128 : vector<2x256xf32>
    %130 = arith.truncf %129 : vector<2x256xf32> to vector<2x256xbf16>
    %c0_36 = arith.constant 0 : index
    %c0_37 = arith.constant 0 : index
    %131 = vector.load %arg10[%c0_36, %c0_37] : memref<256x128xbf16, #tpu.memory_space<vmem>>, vector<256x128xbf16>
    %cst_38 = arith.constant dense<0.000000e+00> : vector<2x128xf32>
    %132 = tpu.matmul %130, %131, %cst_38 {dimension_numbers = #tpu.dot_dimension_numbers<[1], [0], [0], [1], [0, 0, 1, 1], [], []>} : vector<2x256xbf16>, vector<256x128xbf16>, vector<2x128xf32> -> vector<2x128xf32>
    %c0_39 = arith.constant 0 : index
    %c0_40 = arith.constant 0 : index
    %133 = vector.load %arg11[%c0_39, %c0_40] : memref<1x128xf32, #tpu.memory_space<vmem>>, vector<1x128xf32>
    %134 = vector.broadcast %133 : vector<1x128xf32> to vector<2x128xf32>
    %135 = arith.addf %132, %134 : vector<2x128xf32>
    %136 = tpu.iota {dimensions = array<i32: 1>} : vector<2x128xi32>
    %c25_i32 = arith.constant 25 : i32
    %137 = vector.broadcast %c25_i32 : i32 to vector<2x128xi32>
    %138 = arith.cmpi slt, %136, %137 : vector<2x128xi32>
    %cst_41 = arith.constant -1.000000e+30 : f32
    %139 = vector.broadcast %cst_41 : f32 to vector<2x128xf32>
    %140 = arith.select %138, %135, %139 : vector<2x128xi1>, vector<2x128xf32>
    %cst_42 = arith.constant dense<0xFF800000> : vector<2xf32>
    %141 = vector.multi_reduction <maximumf>, %140, %cst_42 [1] : vector<2x128xf32> to vector<2xf32>
    %142 = vector.shape_cast %141 : vector<2xf32> to vector<2x1xf32>
    %143 = vector.broadcast %142 : vector<2x1xf32> to vector<2x128xf32>
    %144 = arith.subf %140, %143 : vector<2x128xf32>
    %145 = math.exp %144 : vector<2x128xf32>
    %cst_43 = arith.constant dense<0.000000e+00> : vector<2xf32>
    %146 = vector.multi_reduction <add>, %145, %cst_43 [1] : vector<2x128xf32> to vector<2xf32>
    %147 = vector.shape_cast %146 : vector<2xf32> to vector<2x1xf32>
    %148 = math.log %147 : vector<2x1xf32>
    %149 = arith.addf %142, %148 : vector<2x1xf32>
    %150 = vector.broadcast %149 : vector<2x1xf32> to vector<2x128xf32>
    %151 = arith.subf %140, %150 : vector<2x128xf32>
    %c0_44 = arith.constant 0 : index
    %c0_45 = arith.constant 0 : index
    %152 = vector.load %arg12[%c0_44, %c0_45] : memref<2x128xf32, #tpu.memory_space<vmem>>, vector<2x128xf32>
    tpu.vector_store %arg12[%c0_44, %c0_45], %151 {strides = array<i32>} : memref<2x128xf32, #tpu.memory_space<vmem>>, vector<2x128xf32>,
    return
  }
  func.func @transform_0(%arg0: i32) -> (i32, i32) {
    %c0_i32 = arith.constant 0 : i32
    %c0_i32_0 = arith.constant 0 : i32
    %c0_i32_1 = arith.constant 0 : i32
    return %c0_i32, %c0_i32_0 : i32, i32
  }
  func.func @transform_1(%arg0: i32) -> (i32, i32) {
    %c0_i32 = arith.constant 0 : i32
    %c0_i32_0 = arith.constant 0 : i32
    %c0_i32_1 = arith.constant 0 : i32
    return %c0_i32, %c0_i32_0 : i32, i32
  }
  func.func @transform_2(%arg0: i32) -> (i32, i32) {
    %c0_i32 = arith.constant 0 : i32
    %c0_i32_0 = arith.constant 0 : i32
    %c0_i32_1 = arith.constant 0 : i32
    return %c0_i32, %c0_i32_0 : i32, i32
  }
  func.func @transform_3(%arg0: i32) -> (i32, i32) {
    %c0_i32 = arith.constant 0 : i32
    %c0_i32_0 = arith.constant 0 : i32
    %c0_i32_1 = arith.constant 0 : i32
    return %c0_i32, %c0_i32_0 : i32, i32
  }
  func.func @transform_4(%arg0: i32) -> (i32, i32) {
    %c0_i32 = arith.constant 0 : i32
    %c0_i32_0 = arith.constant 0 : i32
    %c0_i32_1 = arith.constant 0 : i32
    return %c0_i32, %c0_i32_0 : i32, i32
  }
  func.func @transform_5(%arg0: i32) -> (i32, i32) {
    %c0_i32 = arith.constant 0 : i32
    %c0_i32_0 = arith.constant 0 : i32
    %c0_i32_1 = arith.constant 0 : i32
    return %c0_i32, %c0_i32_0 : i32, i32
  }
  func.func @transform_6(%arg0: i32) -> (i32, i32) {
    %c0_i32 = arith.constant 0 : i32
    %c0_i32_0 = arith.constant 0 : i32
    %c0_i32_1 = arith.constant 0 : i32
    return %c0_i32, %c0_i32_0 : i32, i32
  }
  func.func @transform_7(%arg0: i32) -> (i32, i32) {
    %c0_i32 = arith.constant 0 : i32
    %c0_i32_0 = arith.constant 0 : i32
    %c0_i32_1 = arith.constant 0 : i32
    return %c0_i32, %c0_i32_0 : i32, i32
  }
  func.func @transform_8(%arg0: i32) -> (i32, i32) {
    %c0_i32 = arith.constant 0 : i32
    %c0_i32_0 = arith.constant 0 : i32
    %c0_i32_1 = arith.constant 0 : i32
    return %c0_i32, %c0_i32_0 : i32, i32
  }
  func.func @transform_9(%arg0: i32) -> (i32, i32) {
    %c0_i32 = arith.constant 0 : i32
    %c0_i32_0 = arith.constant 0 : i32
    %c0_i32_1 = arith.constant 0 : i32
    return %c0_i32, %c0_i32_0 : i32, i32
  }
  func.func @transform_10(%arg0: i32) -> (i32, i32) {
    %c0_i32 = arith.constant 0 : i32
    %c0_i32_0 = arith.constant 0 : i32
    %c0_i32_1 = arith.constant 0 : i32
    return %c0_i32, %c0_i32_0 : i32, i32
  }
  func.func @transform_11(%arg0: i32) -> (i32, i32) {
    %c0_i32 = arith.constant 0 : i32
    %c0_i32_0 = arith.constant 0 : i32
    %c0_i32_1 = arith.constant 0 : i32
    return %c0_i32, %c0_i32_0 : i32, i32
  }
}

</mosaic_0001>

<llo_original>
// kernel: net_forward.1
$region0: #{net_forward.1}
  #allocation0 [shape = 'u32[]', space=smem, size = 0x4, offset = 0x4, fixed_abs, tag = 'smem constant byte address 0x4 - core index']
  #allocation1 [shape = 'u32[144,128]{1,0:T(1,128)}', space=vmem, size = 0x12000, scoped, tag = 'internal scratch']
  %s0 = inlined_call_operand.vmem [shape: bf16[1152,25], index: 0, kind: input, shape index: {}]
  %s1 = inlined_call_operand.vmem [shape: bf16[25,128], index: 1, kind: input, shape index: {}]
  %s2 = inlined_call_operand.vmem [shape: f32[1,128], index: 2, kind: input, shape index: {}]
  %s3 = inlined_call_operand.vmem [shape: f32[1,128], index: 3, kind: input, shape index: {}]
  %s4 = inlined_call_operand.vmem [shape: bf16[3200,128], index: 4, kind: input, shape index: {}]
  %s5 = inlined_call_operand.vmem [shape: f32[1,128], index: 5, kind: input, shape index: {}]
  %s6 = inlined_call_operand.vmem [shape: f32[1,128], index: 6, kind: input, shape index: {}]
  %s7 = inlined_call_operand.vmem [shape: bf16[2048,256], index: 7, kind: input, shape index: {}]
  %s8 = inlined_call_operand.vmem [shape: f32[1,256], index: 8, kind: input, shape index: {}]
  %s9 = inlined_call_operand.vmem [shape: bf16[256,128], index: 9, kind: input, shape index: {}]
  %s10 = inlined_call_operand.vmem [shape: f32[1,128], index: 10, kind: input, shape index: {}]
  %s11 = inlined_call_operand.hbm [shape: f32[2,128], index: 11, kind: output, shape index: {}]
  %s12 = sld [smem:[#allocation0]]
  $region54: #{net_forward.1} parent=0
    _
  %s14 = ssub.s32 1, %s12
  %s15 = scalar_select 0, %s14, %s12
  $region1: #{net_forward.1} parent=0
    #allocation2 [shape = 'u8[1024]{0}', space=vmem, size = 0x400, scoped, tag = 'output window, operand 0, single buffered']
    #allocation3 [shape = 's32[1]{0}', space=sflag, size = 0x4, scoped, tag = 'scoped memory for net_forward.1']
    %16 = vsyncpa [#allocation3], 0
    // Predicated region
    $region2: #{net_forward.1} parent=1 // pred_check
      _
    $region3: #{net_forward.1} parent=1 // pred_check_branch
      %18 = sbr.rel (0) target = $region5
    $region4: #{net_forward.1} parent=1 // pred_region
      _
    $region5: #{net_forward.1} parent=1 // pred_fallthru
      _
    // Predicated region
    $region6: #{net_forward.1} parent=1 // pred_check
      _
    $region7: #{net_forward.1} parent=1 // pred_check_branch
      %20 = sbr.rel (0) target = $region9
    $region8: #{net_forward.1} parent=1 // pred_region
      _
    $region9: #{net_forward.1} parent=1 // pred_fallthru
      _
    // Predicated region
    $region10: #{net_forward.1} parent=1 // pred_check
      _
    $region11: #{net_forward.1} parent=1 // pred_check_branch
      %22 = sbr.rel (0) target = $region13
    $region12: #{net_forward.1} parent=1 // pred_region
      _
    $region13: #{net_forward.1} parent=1 // pred_fallthru
      _
    // Predicated region
    $region14: #{net_forward.1} parent=1 // pred_check
      _
    $region15: #{net_forward.1} parent=1 // pred_check_branch
      %24 = sbr.rel (0) target = $region17
    $region16: #{net_forward.1} parent=1 // pred_region
      _
    $region17: #{net_forward.1} parent=1 // pred_fallthru
      _
    // Predicated region
    $region18: #{net_forward.1} parent=1 // pred_check
      _
    $region19: #{net_forward.1} parent=1 // pred_check_branch
      %26 = sbr.rel (0) target = $region21
    $region20: #{net_forward.1} parent=1 // pred_region
      _
    $region21: #{net_forward.1} parent=1 // pred_fallthru
      _
    // Predicated region
    $region22: #{net_forward.1} parent=1 // pred_check
      _
    $region23: #{net_forward.1} parent=1 // pred_check_branch
      %28 = sbr.rel (0) target = $region25
    $region24: #{net_forward.1} parent=1 // pred_region
      _
    $region25: #{net_forward.1} parent=1 // pred_fallthru
      _
    // Predicated region
    $region26: #{net_forward.1} parent=1 // pred_check
      _
    $region27: #{net_forward.1} parent=1 // pred_check_branch
      %30 = sbr.rel (0) target = $region29
    $region28: #{net_forward.1} parent=1 // pred_region
      _
    $region29: #{net_forward.1} parent=1 // pred_fallthru
      _
    // Predicated region
    $region30: #{net_forward.1} parent=1 // pred_check
      _
    $region31: #{net_forward.1} parent=1 // pred_check_branch
      %32 = sbr.rel (0) target = $region33
    $region32: #{net_forward.1} parent=1 // pred_region
      _
    $region33: #{net_forward.1} parent=1 // pred_fallthru
      _
    // Predicated region
    $region34: #{net_forward.1} parent=1 // pred_check
      _
    $region35: #{net_forward.1} parent=1 // pred_check_branch
      %34 = sbr.rel (0) target = $region37
    $region36: #{net_forward.1} parent=1 // pred_region
      _
    $region37: #{net_forward.1} parent=1 // pred_fallthru
      _
    // Predicated region
    $region38: #{net_forward.1} parent=1 // pred_check
      _
    $region39: #{net_forward.1} parent=1 // pred_check_branch
      %36 = sbr.rel (0) target = $region41
    $region40: #{net_forward.1} parent=1 // pred_region
      _
    $region41: #{net_forward.1} parent=1 // pred_fallthru
      _
    // Predicated region
    $region42: #{net_forward.1} parent=1 // pred_check
      _
    $region43: #{net_forward.1} parent=1 // pred_check_branch
      %38 = sbr.rel (0) target = $region45
    $region44: #{net_forward.1} parent=1 // pred_region
      _
    $region45: #{net_forward.1} parent=1 // pred_fallthru
      _
    %v40 = vld [vmem:[%s0] sm:$0xf]
    %v41 = vld [vmem:[%s0 + $0x4] sm:$0xf]
    %v42 = vld [vmem:[%s0 + $0x8] sm:$0xf]
    %v43 = vld [vmem:[%s0 + $0xc] sm:$0xf]
    %v44 = vld [vmem:[%s0 + $0x10] sm:$0xf]
    %v45 = vld [vmem:[%s0 + $0x14] sm:$0xf]
    %v46 = vld [vmem:[%s0 + $0x18] sm:$0xf]
    %v47 = vld [vmem:[%s0 + $0x1c] sm:$0xf]
    %v48 = vld [vmem:[%s0 + $0x20] sm:$0xf]
    %v49 = vld [vmem:[%s0 + $0x24] sm:$0xf]
    %v50 = vld [vmem:[%s0 + $0x28] sm:$0xf]
    %v51 = vld [vmem:[%s0 + $0x2c] sm:$0xf]
    %v52 = vld [vmem:[%s0 + $0x30] sm:$0xf]
    %v53 = vld [vmem:[%s0 + $0x34] sm:$0xf]
    %v54 = vld [vmem:[%s0 + $0x38] sm:$0xf]
    %v55 = vld [vmem:[%s0 + $0x3c] sm:$0xf]
    %v56 = vld [vmem:[%s0 + $0x40] sm:$0xf]
    %v57 = vld [vmem:[%s0 + $0x44] sm:$0xf]
    %v58 = vld [vmem:[%s0 + $0x48] sm:$0xf]
    %v59 = vld [vmem:[%s0 + $0x4c] sm:$0xf]
    %v60 = vld [vmem:[%s0 + $0x50] sm:$0xf]
    %v61 = vld [vmem:[%s0 + $0x54] sm:$0xf]
    %v62 = vld [vmem:[%s0 + $0x58] sm:$0xf]
    %v63 = vld [vmem:[%s0 + $0x5c] sm:$0xf]
    %v64 = vld [vmem:[%s0 + $0x60] sm:$0xf]
    %v65 = vld [vmem:[%s0 + $0x64] sm:$0xf]
    %v66 = vld [vmem:[%s0 + $0x68] sm:$0xf]
    %v67 = vld [vmem:[%s0 + $0x6c] sm:$0xf]
    %v68 = vld [vmem:[%s0 + $0x70] sm:$0xf]
    %v69 = vld [vmem:[%s0 + $0x74] sm:$0xf]
    %v70 = vld [vmem:[%s0 + $0x78] sm:$0xf]
    %v71 = vld [vmem:[%s0 + $0x7c] sm:$0xf]
    %v72 = vld [vmem:[%s0 + $0x80] sm:$0xf]
    %v73 = vld [vmem:[%s0 + $0x84] sm:$0xf]
    %v74 = vld [vmem:[%s0 + $0x88] sm:$0xf]
    %v75 = vld [vmem:[%s0 + $0x8c] sm:$0xf]
    %v76 = vld [vmem:[%s0 + $0x90] sm:$0xf]
    %v77 = vld [vmem:[%s0 + $0x94] sm:$0xf]
    %v78 = vld [vmem:[%s0 + $0x98] sm:$0xf]
    %v79 = vld [vmem:[%s0 + $0x9c] sm:$0xf]
    %v80 = vld [vmem:[%s0 + $0xa0] sm:$0xf]
    %v81 = vld [vmem:[%s0 + $0xa4] sm:$0xf]
    %v82 = vld [vmem:[%s0 + $0xa8] sm:$0xf]
    %v83 = vld [vmem:[%s0 + $0xac] sm:$0xf]
    %v84 = vld [vmem:[%s0 + $0xb0] sm:$0xf]
    %v85 = vld [vmem:[%s0 + $0xb4] sm:$0xf]
    %v86 = vld [vmem:[%s0 + $0xb8] sm:$0xf]
    %v87 = vld [vmem:[%s0 + $0xbc] sm:$0xf]
    %v88 = vld [vmem:[%s0 + $0xc0] sm:$0xf]
    %v89 = vld [vmem:[%s0 + $0xc4] sm:$0xf]
    %v90 = vld [vmem:[%s0 + $0xc8] sm:$0xf]
    %v91 = vld [vmem:[%s0 + $0xcc] sm:$0xf]
    %v92 = vld [vmem:[%s0 + $0xd0] sm:$0xf]
    %v93 = vld [vmem:[%s0 + $0xd4] sm:$0xf]
    %v94 = vld [vmem:[%s0 + $0xd8] sm:$0xf]
    %v95 = vld [vmem:[%s0 + $0xdc] sm:$0xf]
    %v96 = vld [vmem:[%s0 + $0xe0] sm:$0xf]
    %v97 = vld [vmem:[%s0 + $0xe4] sm:$0xf]
    %v98 = vld [vmem:[%s0 + $0xe8] sm:$0xf]
    %v99 = vld [vmem:[%s0 + $0xec] sm:$0xf]
    %v100 = vld [vmem:[%s0 + $0xf0] sm:$0xf]
    %v101 = vld [vmem:[%s0 + $0xf4] sm:$0xf]
    %v102 = vld [vmem:[%s0 + $0xf8] sm:$0xf]
    %v103 = vld [vmem:[%s0 + $0xfc] sm:$0xf]
    %v104 = vld [vmem:[%s0 + $0x100] sm:$0xf]
    %v105 = vld [vmem:[%s0 + $0x104] sm:$0xf]
    %v106 = vld [vmem:[%s0 + $0x108] sm:$0xf]
    %v107 = vld [vmem:[%s0 + $0x10c] sm:$0xf]
    %v108 = vld [vmem:[%s0 + $0x110] sm:$0xf]
    %v109 = vld [vmem:[%s0 + $0x114] sm:$0xf]
    %v110 = vld [vmem:[%s0 + $0x118] sm:$0xf]
    %v111 = vld [vmem:[%s0 + $0x11c] sm:$0xf]
    %v112 = vld [vmem:[%s0 + $0x120] sm:$0xf]
    %v113 = vld [vmem:[%s0 + $0x124] sm:$0xf]
    %v114 = vld [vmem:[%s0 + $0x128] sm:$0xf]
    %v115 = vld [vmem:[%s0 + $0x12c] sm:$0xf]
    %v116 = vld [vmem:[%s0 + $0x130] sm:$0xf]
    %v117 = vld [vmem:[%s0 + $0x134] sm:$0xf]
    %v118 = vld [vmem:[%s0 + $0x138] sm:$0xf]
    %v119 = vld [vmem:[%s0 + $0x13c] sm:$0xf]
    %v120 = vld [vmem:[%s0 + $0x140] sm:$0xf]
    %v121 = vld [vmem:[%s0 + $0x144] sm:$0xf]
    %v122 = vld [vmem:[%s0 + $0x148] sm:$0xf]
    %v123 = vld [vmem:[%s0 + $0x14c] sm:$0xf]
    %v124 = vld [vmem:[%s0 + $0x150] sm:$0xf]
    %v125 = vld [vmem:[%s0 + $0x154] sm:$0xf]
    %v126 = vld [vmem:[%s0 + $0x158] sm:$0xf]
    %v127 = vld [vmem:[%s0 + $0x15c] sm:$0xf]
    %v128 = vld [vmem:[%s0 + $0x160] sm:$0xf]
    %v129 = vld [vmem:[%s0 + $0x164] sm:$0xf]
    %v130 = vld [vmem:[%s0 + $0x168] sm:$0xf]
    %v131 = vld [vmem:[%s0 + $0x16c] sm:$0xf]
    %v132 = vld [vmem:[%s0 + $0x170] sm:$0xf]
    %v133 = vld [vmem:[%s0 + $0x174] sm:$0xf]
    %v134 = vld [vmem:[%s0 + $0x178] sm:$0xf]
    %v135 = vld [vmem:[%s0 + $0x17c] sm:$0xf]
    %v136 = vld [vmem:[%s0 + $0x180] sm:$0xf]
    %v137 = vld [vmem:[%s0 + $0x184] sm:$0xf]
    %v138 = vld [vmem:[%s0 + $0x188] sm:$0xf]
    %v139 = vld [vmem:[%s0 + $0x18c] sm:$0xf]
    %v140 = vld [vmem:[%s0 + $0x190] sm:$0xf]
    %v141 = vld [vmem:[%s0 + $0x194] sm:$0xf]
    %v142 = vld [vmem:[%s0 + $0x198] sm:$0xf]
    %v143 = vld [vmem:[%s0 + $0x19c] sm:$0xf]
    %v144 = vld [vmem:[%s0 + $0x1a0] sm:$0xf]
    %v145 = vld [vmem:[%s0 + $0x1a4] sm:$0xf]
    %v146 = vld [vmem:[%s0 + $0x1a8] sm:$0xf]
    %v147 = vld [vmem:[%s0 + $0x1ac] sm:$0xf]
    %v148 = vld [vmem:[%s0 + $0x1b0] sm:$0xf]
    %v149 = vld [vmem:[%s0 + $0x1b4] sm:$0xf]
    %v150 = vld [vmem:[%s0 + $0x1b8] sm:$0xf]
    %v151 = vld [vmem:[%s0 + $0x1bc] sm:$0xf]
    %v152 = vld [vmem:[%s0 + $0x1c0] sm:$0xf]
    %v153 = vld [vmem:[%s0 + $0x1c4] sm:$0xf]
    %v154 = vld [vmem:[%s0 + $0x1c8] sm:$0xf]
    %v155 = vld [vmem:[%s0 + $0x1cc] sm:$0xf]
    %v156 = vld [vmem:[%s0 + $0x1d0] sm:$0xf]
    %v157 = vld [vmem:[%s0 + $0x1d4] sm:$0xf]
    %v158 = vld [vmem:[%s0 + $0x1d8] sm:$0xf]
    %v159 = vld [vmem:[%s0 + $0x1dc] sm:$0xf]
    %v160 = vld [vmem:[%s0 + $0x1e0] sm:$0xf]
    %v161 = vld [vmem:[%s0 + $0x1e4] sm:$0xf]
    %v162 = vld [vmem:[%s0 + $0x1e8] sm:$0xf]
    %v163 = vld [vmem:[%s0 + $0x1ec] sm:$0xf]
    %v164 = vld [vmem:[%s0 + $0x1f0] sm:$0xf]
    %v165 = vld [vmem:[%s0 + $0x1f4] sm:$0xf]
    %v166 = vld [vmem:[%s0 + $0x1f8] sm:$0xf]
    %v167 = vld [vmem:[%s0 + $0x1fc] sm:$0xf]
    %v168 = vld [vmem:[%s0 + $0x200] sm:$0xf]
    %v169 = vld [vmem:[%s0 + $0x204] sm:$0xf]
    %v170 = vld [vmem:[%s0 + $0x208] sm:$0xf]
    %v171 = vld [vmem:[%s0 + $0x20c] sm:$0xf]
    %v172 = vld [vmem:[%s0 + $0x210] sm:$0xf]
    %v173 = vld [vmem:[%s0 + $0x214] sm:$0xf]
    %v174 = vld [vmem:[%s0 + $0x218] sm:$0xf]
    %v175 = vld [vmem:[%s0 + $0x21c] sm:$0xf]
    %v176 = vld [vmem:[%s0 + $0x220] sm:$0xf]
    %v177 = vld [vmem:[%s0 + $0x224] sm:$0xf]
    %v178 = vld [vmem:[%s0 + $0x228] sm:$0xf]
    %v179 = vld [vmem:[%s0 + $0x22c] sm:$0xf]
    %v180 = vld [vmem:[%s0 + $0x230] sm:$0xf]
    %v181 = vld [vmem:[%s0 + $0x234] sm:$0xf]
    %v182 = vld [vmem:[%s0 + $0x238] sm:$0xf]
    %v183 = vld [vmem:[%s0 + $0x23c] sm:$0xf]
    %v184 = vld [vmem:[%s1] sm:$0xf]
    %v185 = vld [vmem:[%s1 + $0x4] sm:$0xf]
    %v186 = vld [vmem:[%s1 + $0x8] sm:$0xf]
    %v187 = vld [vmem:[%s1 + $0xc] sm:$0x1]
    %v332 = vunpack.c.l.b16 %v40
    %v333 = vunpack.c.l.b16 %v41
    %v334 = vunpack.c.l.b16 %v42
    %v335 = vunpack.c.l.b16 %v43
    %v336 = vunpack.c.l.b16 %v44
    %v337 = vunpack.c.l.b16 %v45
    %v338 = vunpack.c.l.b16 %v46
    %v339 = vunpack.c.l.b16 %v47
    %v340 = vunpack.c.l.b16 %v48
    %v341 = vunpack.c.l.b16 %v49
    %v342 = vunpack.c.l.b16 %v50
    %v343 = vunpack.c.l.b16 %v51
    %v344 = vunpack.c.l.b16 %v52
    %v345 = vunpack.c.l.b16 %v53
    %v346 = vunpack.c.l.b16 %v54
    %v347 = vunpack.c.l.b16 %v55
    %v348 = vunpack.c.l.b16 %v56
    %v349 = vunpack.c.l.b16 %v57
    %v350 = vunpack.c.l.b16 %v58
    %v351 = vunpack.c.l.b16 %v59
    %v352 = vunpack.c.l.b16 %v60
    %v353 = vunpack.c.l.b16 %v61
    %v354 = vunpack.c.l.b16 %v62
    %v355 = vunpack.c.l.b16 %v63
    %v356 = vunpack.c.l.b16 %v64
    %v357 = vunpack.c.l.b16 %v65
    %v358 = vunpack.c.l.b16 %v66
    %v359 = vunpack.c.l.b16 %v67
    %v360 = vunpack.c.l.b16 %v68
    %v361 = vunpack.c.l.b16 %v69
    %v362 = vunpack.c.l.b16 %v70
    %v363 = vunpack.c.l.b16 %v71
    %v364 = vunpack.c.l.b16 %v72
    %v365 = vunpack.c.l.b16 %v73
    %v366 = vunpack.c.l.b16 %v74
    %v367 = vunpack.c.l.b16 %v75
    %v368 = vunpack.c.l.b16 %v76
    %v369 = vunpack.c.l.b16 %v77
    %v370 = vunpack.c.l.b16 %v78
    %v371 = vunpack.c.l.b16 %v79
    %v372 = vunpack.c.l.b16 %v80
    %v373 = vunpack.c.l.b16 %v81
    %v374 = vunpack.c.l.b16 %v82
    %v375 = vunpack.c.l.b16 %v83
    %v376 = vunpack.c.l.b16 %v84
    %v377 = vunpack.c.l.b16 %v85
    %v378 = vunpack.c.l.b16 %v86
    %v379 = vunpack.c.l.b16 %v87
    %v380 = vunpack.c.l.b16 %v88
    %v381 = vunpack.c.l.b16 %v89
    %v382 = vunpack.c.l.b16 %v90
    %v383 = vunpack.c.l.b16 %v91
    %v384 = vunpack.c.l.b16 %v92
    %v385 = vunpack.c.l.b16 %v93
    %v386 = vunpack.c.l.b16 %v94
    %v387 = vunpack.c.l.b16 %v95
    %v388 = vunpack.c.l.b16 %v96
    %v389 = vunpack.c.l.b16 %v97
    %v390 = vunpack.c.l.b16 %v98
    %v391 = vunpack.c.l.b16 %v99
    %v392 = vunpack.c.l.b16 %v100
    %v393 = vunpack.c.l.b16 %v101
    %v394 = vunpack.c.l.b16 %v102
    %v395 = vunpack.c.l.b16 %v103
    %v396 = vunpack.c.l.b16 %v104
    %v397 = vunpack.c.l.b16 %v105
    %v398 = vunpack.c.l.b16 %v106
    %v399 = vunpack.c.l.b16 %v107
    %v400 = vunpack.c.l.b16 %v108
    %v401 = vunpack.c.l.b16 %v109
    %v402 = vunpack.c.l.b16 %v110
    %v403 = vunpack.c.l.b16 %v111
    %v404 = vunpack.c.l.b16 %v112
    %v405 = vunpack.c.l.b16 %v113
    %v406 = vunpack.c.l.b16 %v114
    %v407 = vunpack.c.l.b16 %v115
    %v408 = vunpack.c.l.b16 %v116
    %v409 = vunpack.c.l.b16 %v117
    %v410 = vunpack.c.l.b16 %v118
    %v411 = vunpack.c.l.b16 %v119
    %v412 = vunpack.c.l.b16 %v120
    %v413 = vunpack.c.l.b16 %v121
    %v414 = vunpack.c.l.b16 %v122
    %v415 = vunpack.c.l.b16 %v123
    %v416 = vunpack.c.l.b16 %v124
    %v417 = vunpack.c.l.b16 %v125
    %v418 = vunpack.c.l.b16 %v126
    %v419 = vunpack.c.l.b16 %v127
    %v420 = vunpack.c.l.b16 %v128
    %v421 = vunpack.c.l.b16 %v129
    %v422 = vunpack.c.l.b16 %v130
    %v423 = vunpack.c.l.b16 %v131
    %v424 = vunpack.c.l.b16 %v132
    %v425 = vunpack.c.l.b16 %v133
    %v426 = vunpack.c.l.b16 %v134
    %v427 = vunpack.c.l.b16 %v135
    %v428 = vunpack.c.l.b16 %v136
    %v429 = vunpack.c.l.b16 %v137
    %v430 = vunpack.c.l.b16 %v138
    %v431 = vunpack.c.l.b16 %v139
    %v432 = vunpack.c.l.b16 %v140
    %v433 = vunpack.c.l.b16 %v141
    %v434 = vunpack.c.l.b16 %v142
    %v435 = vunpack.c.l.b16 %v143
    %v436 = vunpack.c.l.b16 %v144
    %v437 = vunpack.c.l.b16 %v145
    %v438 = vunpack.c.l.b16 %v146
    %v439 = vunpack.c.l.b16 %v147
    %v440 = vunpack.c.l.b16 %v148
    %v441 = vunpack.c.l.b16 %v149
    %v442 = vunpack.c.l.b16 %v150
    %v443 = vunpack.c.l.b16 %v151
    %v444 = vunpack.c.l.b16 %v152
    %v445 = vunpack.c.l.b16 %v153
    %v446 = vunpack.c.l.b16 %v154
    %v447 = vunpack.c.l.b16 %v155
    %v448 = vunpack.c.l.b16 %v156
    %v449 = vunpack.c.l.b16 %v157
    %v450 = vunpack.c.l.b16 %v158
    %v451 = vunpack.c.l.b16 %v159
    %v452 = vunpack.c.l.b16 %v160
    %v453 = vunpack.c.l.b16 %v161
    %v454 = vunpack.c.l.b16 %v162
    %v455 = vunpack.c.l.b16 %v163
    %v456 = vunpack.c.l.b16 %v164
    %v457 = vunpack.c.l.b16 %v165
    %v458 = vunpack.c.l.b16 %v166
    %v459 = vunpack.c.l.b16 %v167
    %v460 = vunpack.c.l.b16 %v168
    %v461 = vunpack.c.l.b16 %v169
    %v462 = vunpack.c.l.b16 %v170
    %v463 = vunpack.c.l.b16 %v171
    %v464 = vunpack.c.l.b16 %v172
    %v465 = vunpack.c.l.b16 %v173
    %v466 = vunpack.c.l.b16 %v174
    %v467 = vunpack.c.l.b16 %v175
    %v468 = vunpack.c.l.b16 %v176
    %v469 = vunpack.c.l.b16 %v177
    %v470 = vunpack.c.l.b16 %v178
    %v471 = vunpack.c.l.b16 %v179
    %v472 = vunpack.c.l.b16 %v180
    %v473 = vunpack.c.l.b16 %v181
    %v474 = vunpack.c.l.b16 %v182
    %v475 = vunpack.c.l.b16 %v183
    %v476 = vpack.c.b16 %v333, %v332
    %v477 = vpack.c.b16 %v335, %v334
    %v478 = vpack.c.b16 %v337, %v336
    %v479 = vpack.c.b16 %v339, %v338
    %v480 = vpack.c.b16 %v341, %v340
    %v481 = vpack.c.b16 %v343, %v342
    %v482 = vpack.c.b16 %v345, %v344
    %v483 = vpack.c.b16 %v347, %v346
    %v484 = vpack.c.b16 %v349, %v348
    %v485 = vpack.c.b16 %v351, %v350
    %v486 = vpack.c.b16 %v353, %v352
    %v487 = vpack.c.b16 %v355, %v354
    %v488 = vpack.c.b16 %v357, %v356
    %v489 = vpack.c.b16 %v359, %v358
    %v490 = vpack.c.b16 %v361, %v360
    %v491 = vpack.c.b16 %v363, %v362
    %v492 = vpack.c.b16 %v365, %v364
    %v493 = vpack.c.b16 %v367, %v366
    %v494 = vpack.c.b16 %v369, %v368
    %v495 = vpack.c.b16 %v371, %v370
    %v496 = vpack.c.b16 %v373, %v372
    %v497 = vpack.c.b16 %v375, %v374
    %v498 = vpack.c.b16 %v377, %v376
    %v499 = vpack.c.b16 %v379, %v378
    %v500 = vpack.c.b16 %v381, %v380
    %v501 = vpack.c.b16 %v383, %v382
    %v502 = vpack.c.b16 %v385, %v384
    %v503 = vpack.c.b16 %v387, %v386
    %v504 = vpack.c.b16 %v389, %v388
    %v505 = vpack.c.b16 %v391, %v390
    %v506 = vpack.c.b16 %v393, %v392
    %v507 = vpack.c.b16 %v395, %v394
    %v508 = vpack.c.b16 %v397, %v396
    %v509 = vpack.c.b16 %v399, %v398
    %v510 = vpack.c.b16 %v401, %v400
    %v511 = vpack.c.b16 %v403, %v402
    %v512 = vpack.c.b16 %v405, %v404
    %v513 = vpack.c.b16 %v407, %v406
    %v514 = vpack.c.b16 %v409, %v408
    %v515 = vpack.c.b16 %v411, %v410
    %v516 = vpack.c.b16 %v413, %v412
    %v517 = vpack.c.b16 %v415, %v414
    %v518 = vpack.c.b16 %v417, %v416
    %v519 = vpack.c.b16 %v419, %v418
    %v520 = vpack.c.b16 %v421, %v420
    %v521 = vpack.c.b16 %v423, %v422
    %v522 = vpack.c.b16 %v425, %v424
    %v523 = vpack.c.b16 %v427, %v426
    %v524 = vpack.c.b16 %v429, %v428
    %v525 = vpack.c.b16 %v431, %v430
    %v526 = vpack.c.b16 %v433, %v432
    %v527 = vpack.c.b16 %v435, %v434
    %v528 = vpack.c.b16 %v437, %v436
    %v529 = vpack.c.b16 %v439, %v438
    %v530 = vpack.c.b16 %v441, %v440
    %v531 = vpack.c.b16 %v443, %v442
    %v532 = vpack.c.b16 %v445, %v444
    %v533 = vpack.c.b16 %v447, %v446
    %v534 = vpack.c.b16 %v449, %v448
    %v535 = vpack.c.b16 %v451, %v450
    %v536 = vpack.c.b16 %v453, %v452
    %v537 = vpack.c.b16 %v455, %v454
    %v538 = vpack.c.b16 %v457, %v456
    %v539 = vpack.c.b16 %v459, %v458
    %v540 = vpack.c.b16 %v461, %v460
    %v541 = vpack.c.b16 %v463, %v462
    %v542 = vpack.c.b16 %v465, %v464
    %v543 = vpack.c.b16 %v467, %v466
    %v544 = vpack.c.b16 %v469, %v468
    %v545 = vpack.c.b16 %v471, %v470
    %v546 = vpack.c.b16 %v473, %v472
    %v547 = vpack.c.b16 %v475, %v474
    %v552 = vunpack.c.l.b16 %v184
    %v553 = vunpack.c.l.b16 %v185
    %v554 = vunpack.c.l.b16 %v186
    %v555 = vunpack.c.l.b16 %v187
    %v556 = vpack.c.b16 %v553, %v552
    %v557 = vpack.c.b16 %v555, %v554
    %vm559 = vcmask 203776
    %v561 = vsel %vm559, %v476, 0
    %v564 = vsel %vm559, %v477, 0
    %v567 = vsel %vm559, %v478, 0
    %v570 = vsel %vm559, %v479, 0
    %v573 = vsel %vm559, %v480, 0
    %v576 = vsel %vm559, %v481, 0
    %v579 = vsel %vm559, %v482, 0
    %v582 = vsel %vm559, %v483, 0
    %v585 = vsel %vm559, %v484, 0
    %v588 = vsel %vm559, %v485, 0
    %v591 = vsel %vm559, %v486, 0
    %v594 = vsel %vm559, %v487, 0
    %v597 = vsel %vm559, %v488, 0
    %v600 = vsel %vm559, %v489, 0
    %v603 = vsel %vm559, %v490, 0
    %v606 = vsel %vm559, %v491, 0
    %v609 = vsel %vm559, %v492, 0
    %v612 = vsel %vm559, %v493, 0
    %v615 = vsel %vm559, %v494, 0
    %v618 = vsel %vm559, %v495, 0
    %v621 = vsel %vm559, %v496, 0
    %v624 = vsel %vm559, %v497, 0
    %v627 = vsel %vm559, %v498, 0
    %v630 = vsel %vm559, %v499, 0
    %v633 = vsel %vm559, %v500, 0
    %v636 = vsel %vm559, %v501, 0
    %v639 = vsel %vm559, %v502, 0
    %v642 = vsel %vm559, %v503, 0
    %v645 = vsel %vm559, %v504, 0
    %v648 = vsel %vm559, %v505, 0
    %v651 = vsel %vm559, %v506, 0
    %v654 = vsel %vm559, %v507, 0
    %v657 = vsel %vm559, %v508, 0
    %v660 = vsel %vm559, %v509, 0
    %v663 = vsel %vm559, %v510, 0
    %v666 = vsel %vm559, %v511, 0
    %v669 = vsel %vm559, %v512, 0
    %v672 = vsel %vm559, %v513, 0
    %v675 = vsel %vm559, %v514, 0
    %v678 = vsel %vm559, %v515, 0
    %v681 = vsel %vm559, %v516, 0
    %v684 = vsel %vm559, %v517, 0
    %v687 = vsel %vm559, %v518, 0
    %v690 = vsel %vm559, %v519, 0
    %v693 = vsel %vm559, %v520, 0
    %v696 = vsel %vm559, %v521, 0
    %v699 = vsel %vm559, %v522, 0
    %v702 = vsel %vm559, %v523, 0
    %v705 = vsel %vm559, %v524, 0
    %v708 = vsel %vm559, %v525, 0
    %v711 = vsel %vm559, %v526, 0
    %v714 = vsel %vm559, %v527, 0
    %v717 = vsel %vm559, %v528, 0
    %v720 = vsel %vm559, %v529, 0
    %v723 = vsel %vm559, %v530, 0
    %v726 = vsel %vm559, %v531, 0
    %v729 = vsel %vm559, %v532, 0
    %v732 = vsel %vm559, %v533, 0
    %v735 = vsel %vm559, %v534, 0
    %v738 = vsel %vm559, %v535, 0
    %v741 = vsel %vm559, %v536, 0
    %v744 = vsel %vm559, %v537, 0
    %v747 = vsel %vm559, %v538, 0
    %v750 = vsel %vm559, %v539, 0
    %v753 = vsel %vm559, %v540, 0
    %v756 = vsel %vm559, %v541, 0
    %v759 = vsel %vm559, %v542, 0
    %v762 = vsel %vm559, %v543, 0
    %v765 = vsel %vm559, %v544, 0
    %v768 = vsel %vm559, %v545, 0
    %v771 = vsel %vm559, %v546, 0
    %v774 = vsel %vm559, %v547, 0
    %vm776 = vcmask 1043456
    %vm777 = vcmask 1044480
    %v778 = vsel %vm776, 4294967295, 65535
    %v779 = vsel %vm777, %v778, 0
    %v781 = vand.u32 %v557, %v779
    %783 = vmatprep.subr.bf16.mxu0 0
    %784 = vmatpush1.bf16.msra.mxu0 0
    %785 = vmatprep.subr.bf16.mxu0 0
    %786 = vmatpush1.bf16.msra.mxu0 0
    %787 = vmatprep.subr.bf16.mxu0 0
    %788 = vmatpush1.bf16.msra.mxu0 0
    %789 = vmatprep.subr.bf16.mxu0 0
    %790 = vmatpush1.bf16.msra.mxu0 0
    %791 = vmatprep.subr.bf16.mxu0 0
    %792 = vmatpush1.bf16.msra.mxu0 0
    %793 = vmatprep.subr.bf16.mxu0 0
    %794 = vmatpush1.bf16.msra.mxu0 0
    %795 = vmatprep.subr.bf16.mxu0 0
    %796 = vmatpush1.bf16.msra.mxu0 %v781
    %797 = vmatprep.subr.bf16.mxu0 0
    %798 = vmatpush1.bf16.msra.mxu0 %v556
    %799 = vmatprep.subr.bf16.mxu0 0
    %800 = vmatpush2.bf16.msra.mxu0 0
    %801 = vmatprep.subr.bf16.mxu0 0
    %802 = vmatpush2.bf16.msra.mxu0 0
    %803 = vmatprep.subr.bf16.mxu0 0
    %804 = vmatpush2.bf16.msra.mxu0 0
    %805 = vmatprep.subr.bf16.mxu0 0
    %806 = vmatpush2.bf16.msra.mxu0 0
    %807 = vmatprep.subr.bf16.mxu0 0
    %808 = vmatpush2.bf16.msra.mxu0 0
    %809 = vmatprep.subr.bf16.mxu0 0
    %810 = vmatpush2.bf16.msra.mxu0 0
    %811 = vmatprep.subr.bf16.mxu0 0
    %812 = vmatpush2.bf16.msra.mxu0 0
    %813 = vmatprep.subr.bf16.mxu0 0
    %814 = vmatpush2.bf16.msra.mxu0 0
    %815 = vmatprep.mubr.bf16.mxu0 0
    %816 = vmatmul.mubr.bf16.gmra.mxu0 %v561
    %v817 = vpop.f32.mrf.mxu0
    %v818 = vadd.f32 0.0, %v817
    %v819 = vpop.f32.mrf.mxu0
    %v820 = vpop.f32.mrf.mxu0
    %v821 = vadd.f32 0.0, %v820
    %v822 = vpop.f32.mrf.mxu0
    %823 = vmatprep.mubr.bf16.mxu0 0
    %824 = vmatmul.mubr.bf16.gmra.mxu0 %v564
    %v825 = vpop.f32.mrf.mxu0
    %v826 = vadd.f32 0.0, %v825
    %v827 = vpop.f32.mrf.mxu0
    %v828 = vpop.f32.mrf.mxu0
    %v829 = vadd.f32 0.0, %v828
    %v830 = vpop.f32.mrf.mxu0
    %831 = vmatprep.mubr.bf16.mxu0 0
    %832 = vmatmul.mubr.bf16.gmra.mxu0 %v567
    %v833 = vpop.f32.mrf.mxu0
    %v834 = vadd.f32 0.0, %v833
    %v835 = vpop.f32.mrf.mxu0
    %v836 = vpop.f32.mrf.mxu0
    %v837 = vadd.f32 0.0, %v836
    %v838 = vpop.f32.mrf.mxu0
    %839 = vmatprep.mubr.bf16.mxu0 0
    %840 = vmatmul.mubr.bf16.gmra.mxu0 %v570
    %v841 = vpop.f32.mrf.mxu0
    %v842 = vadd.f32 0.0, %v841
    %v843 = vpop.f32.mrf.mxu0
    %v844 = vpop.f32.mrf.mxu0
    %v845 = vadd.f32 0.0, %v844
    %v846 = vpop.f32.mrf.mxu0
    %847 = vmatprep.mubr.bf16.mxu0 0
    %848 = vmatmul.mubr.bf16.gmra.mxu0 %v573
    %v849 = vpop.f32.mrf.mxu0
    %v850 = vadd.f32 0.0, %v849
    %v851 = vpop.f32.mrf.mxu0
    %v852 = vpop.f32.mrf.mxu0
    %v853 = vadd.f32 0.0, %v852
    %v854 = vpop.f32.mrf.mxu0
    %855 = vmatprep.mubr.bf16.mxu0 0
    %856 = vmatmul.mubr.bf16.gmra.mxu0 %v576
    %v857 = vpop.f32.mrf.mxu0
    %v858 = vadd.f32 0.0, %v857
    %v859 = vpop.f32.mrf.mxu0
    %v860 = vpop.f32.mrf.mxu0
    %v861 = vadd.f32 0.0, %v860
    %v862 = vpop.f32.mrf.mxu0
    %863 = vmatprep.mubr.bf16.mxu0 0
    %864 = vmatmul.mubr.bf16.gmra.mxu0 %v579
    %v865 = vpop.f32.mrf.mxu0
    %v866 = vadd.f32 0.0, %v865
    %v867 = vpop.f32.mrf.mxu0
    %v868 = vpop.f32.mrf.mxu0
    %v869 = vadd.f32 0.0, %v868
    %v870 = vpop.f32.mrf.mxu0
    %871 = vmatprep.mubr.bf16.mxu0 0
    %872 = vmatmul.mubr.bf16.gmra.mxu0 %v582
    %v873 = vpop.f32.mrf.mxu0
    %v874 = vadd.f32 0.0, %v873
    %v875 = vpop.f32.mrf.mxu0
    %v876 = vpop.f32.mrf.mxu0
    %v877 = vadd.f32 0.0, %v876
    %v878 = vpop.f32.mrf.mxu0
    %879 = vmatprep.mubr.bf16.mxu0 0
    %880 = vmatmul.mubr.bf16.gmra.mxu0 %v585
    %v881 = vpop.f32.mrf.mxu0
    %v882 = vadd.f32 0.0, %v881
    %v883 = vpop.f32.mrf.mxu0
    %v884 = vpop.f32.mrf.mxu0
    %v885 = vadd.f32 0.0, %v884
    %v886 = vpop.f32.mrf.mxu0
    %887 = vmatprep.mubr.bf16.mxu0 0
    %888 = vmatmul.mubr.bf16.gmra.mxu0 %v588
    %v889 = vpop.f32.mrf.mxu0
    %v890 = vadd.f32 0.0, %v889
    %v891 = vpop.f32.mrf.mxu0
    %v892 = vpop.f32.mrf.mxu0
    %v893 = vadd.f32 0.0, %v892
    %v894 = vpop.f32.mrf.mxu0
    %895 = vmatprep.mubr.bf16.mxu0 0
    %896 = vmatmul.mubr.bf16.gmra.mxu0 %v591
    %v897 = vpop.f32.mrf.mxu0
    %v898 = vadd.f32 0.0, %v897
    %v899 = vpop.f32.mrf.mxu0
    %v900 = vpop.f32.mrf.mxu0
    %v901 = vadd.f32 0.0, %v900
    %v902 = vpop.f32.mrf.mxu0
    %903 = vmatprep.mubr.bf16.mxu0 0
    %904 = vmatmul.mubr.bf16.gmra.mxu0 %v594
    %v905 = vpop.f32.mrf.mxu0
    %v906 = vadd.f32 0.0, %v905
    %v907 = vpop.f32.mrf.mxu0
    %v908 = vpop.f32.mrf.mxu0
    %v909 = vadd.f32 0.0, %v908
    %v910 = vpop.f32.mrf.mxu0
    %911 = vmatprep.mubr.bf16.mxu0 0
    %912 = vmatmul.mubr.bf16.gmra.mxu0 %v597
    %v913 = vpop.f32.mrf.mxu0
    %v914 = vadd.f32 0.0, %v913
    %v915 = vpop.f32.mrf.mxu0
    %v916 = vpop.f32.mrf.mxu0
    %v917 = vadd.f32 0.0, %v916
    %v918 = vpop.f32.mrf.mxu0
    %919 = vmatprep.mubr.bf16.mxu0 0
    %920 = vmatmul.mubr.bf16.gmra.mxu0 %v600
    %v921 = vpop.f32.mrf.mxu0
    %v922 = vadd.f32 0.0, %v921
    %v923 = vpop.f32.mrf.mxu0
    %v924 = vpop.f32.mrf.mxu0
    %v925 = vadd.f32 0.0, %v924
    %v926 = vpop.f32.mrf.mxu0
    %927 = vmatprep.mubr.bf16.mxu0 0
    %928 = vmatmul.mubr.bf16.gmra.mxu0 %v603
    %v929 = vpop.f32.mrf.mxu0
    %v930 = vadd.f32 0.0, %v929
    %v931 = vpop.f32.mrf.mxu0
    %v932 = vpop.f32.mrf.mxu0
    %v933 = vadd.f32 0.0, %v932
    %v934 = vpop.f32.mrf.mxu0
    %935 = vmatprep.mubr.bf16.mxu0 0
    %936 = vmatmul.mubr.bf16.gmra.mxu0 %v606
    %v937 = vpop.f32.mrf.mxu0
    %v938 = vadd.f32 0.0, %v937
    %v939 = vpop.f32.mrf.mxu0
    %v940 = vpop.f32.mrf.mxu0
    %v941 = vadd.f32 0.0, %v940
    %v942 = vpop.f32.mrf.mxu0
    %943 = vmatprep.mubr.bf16.mxu0 0
    %944 = vmatmul.mubr.bf16.gmra.mxu0 %v609
    %v945 = vpop.f32.mrf.mxu0
    %v946 = vadd.f32 0.0, %v945
    %v947 = vpop.f32.mrf.mxu0
    %v948 = vpop.f32.mrf.mxu0
    %v949 = vadd.f32 0.0, %v948
    %v950 = vpop.f32.mrf.mxu0
    %951 = vmatprep.mubr.bf16.mxu0 0
    %952 = vmatmul.mubr.bf16.gmra.mxu0 %v612
    %v953 = vpop.f32.mrf.mxu0
    %v954 = vadd.f32 0.0, %v953
    %v955 = vpop.f32.mrf.mxu0
    %v956 = vpop.f32.mrf.mxu0
    %v957 = vadd.f32 0.0, %v956
    %v958 = vpop.f32.mrf.mxu0
    %959 = vmatprep.mubr.bf16.mxu0 0
    %960 = vmatmul.mubr.bf16.gmra.mxu0 %v615
    %v961 = vpop.f32.mrf.mxu0
    %v962 = vadd.f32 0.0, %v961
    %v963 = vpop.f32.mrf.mxu0
    %v964 = vpop.f32.mrf.mxu0
    %v965 = vadd.f32 0.0, %v964
    %v966 = vpop.f32.mrf.mxu0
    %967 = vmatprep.mubr.bf16.mxu0 0
    %968 = vmatmul.mubr.bf16.gmra.mxu0 %v618
    %v969 = vpop.f32.mrf.mxu0
    %v970 = vadd.f32 0.0, %v969
    %v971 = vpop.f32.mrf.mxu0
    %v972 = vpop.f32.mrf.mxu0
    %v973 = vadd.f32 0.0, %v972
    %v974 = vpop.f32.mrf.mxu0
    %975 = vmatprep.mubr.bf16.mxu0 0
    %976 = vmatmul.mubr.bf16.gmra.mxu0 %v621
    %v977 = vpop.f32.mrf.mxu0
    %v978 = vadd.f32 0.0, %v977
    %v979 = vpop.f32.mrf.mxu0
    %v980 = vpop.f32.mrf.mxu0
    %v981 = vadd.f32 0.0, %v980
    %v982 = vpop.f32.mrf.mxu0
    %983 = vmatprep.mubr.bf16.mxu0 0
    %984 = vmatmul.mubr.bf16.gmra.mxu0 %v624
    %v985 = vpop.f32.mrf.mxu0
    %v986 = vadd.f32 0.0, %v985
    %v987 = vpop.f32.mrf.mxu0
    %v988 = vpop.f32.mrf.mxu0
    %v989 = vadd.f32 0.0, %v988
    %v990 = vpop.f32.mrf.mxu0
    %991 = vmatprep.mubr.bf16.mxu0 0
    %992 = vmatmul.mubr.bf16.gmra.mxu0 %v627
    %v993 = vpop.f32.mrf.mxu0
    %v994 = vadd.f32 0.0, %v993
    %v995 = vpop.f32.mrf.mxu0
    %v996 = vpop.f32.mrf.mxu0
    %v997 = vadd.f32 0.0, %v996
    %v998 = vpop.f32.mrf.mxu0
    %999 = vmatprep.mubr.bf16.mxu0 0
    %1000 = vmatmul.mubr.bf16.gmra.mxu0 %v630
    %v1001 = vpop.f32.mrf.mxu0
    %v1002 = vadd.f32 0.0, %v1001
    %v1003 = vpop.f32.mrf.mxu0
    %v1004 = vpop.f32.mrf.mxu0
    %v1005 = vadd.f32 0.0, %v1004
    %v1006 = vpop.f32.mrf.mxu0
    %1007 = vmatprep.mubr.bf16.mxu0 0
    %1008 = vmatmul.mubr.bf16.gmra.mxu0 %v633
    %v1009 = vpop.f32.mrf.mxu0
    %v1010 = vadd.f32 0.0, %v1009
    %v1011 = vpop.f32.mrf.mxu0
    %v1012 = vpop.f32.mrf.mxu0
    %v1013 = vadd.f32 0.0, %v1012
    %v1014 = vpop.f32.mrf.mxu0
    %1015 = vmatprep.mubr.bf16.mxu0 0
    %1016 = vmatmul.mubr.bf16.gmra.mxu0 %v636
    %v1017 = vpop.f32.mrf.mxu0
    %v1018 = vadd.f32 0.0, %v1017
    %v1019 = vpop.f32.mrf.mxu0
    %v1020 = vpop.f32.mrf.mxu0
    %v1021 = vadd.f32 0.0, %v1020
    %v1022 = vpop.f32.mrf.mxu0
    %1023 = vmatprep.mubr.bf16.mxu0 0
    %1024 = vmatmul.mubr.bf16.gmra.mxu0 %v639
    %v1025 = vpop.f32.mrf.mxu0
    %v1026 = vadd.f32 0.0, %v1025
    %v1027 = vpop.f32.mrf.mxu0
    %v1028 = vpop.f32.mrf.mxu0
    %v1029 = vadd.f32 0.0, %v1028
    %v1030 = vpop.f32.mrf.mxu0
    %1031 = vmatprep.mubr.bf16.mxu0 0
    %1032 = vmatmul.mubr.bf16.gmra.mxu0 %v642
    %v1033 = vpop.f32.mrf.mxu0
    %v1034 = vadd.f32 0.0, %v1033
    %v1035 = vpop.f32.mrf.mxu0
    %v1036 = vpop.f32.mrf.mxu0
    %v1037 = vadd.f32 0.0, %v1036
    %v1038 = vpop.f32.mrf.mxu0
    %1039 = vmatprep.mubr.bf16.mxu0 0
    %1040 = vmatmul.mubr.bf16.gmra.mxu0 %v645
    %v1041 = vpop.f32.mrf.mxu0
    %v1042 = vadd.f32 0.0, %v1041
    %v1043 = vpop.f32.mrf.mxu0
    %v1044 = vpop.f32.mrf.mxu0
    %v1045 = vadd.f32 0.0, %v1044
    %v1046 = vpop.f32.mrf.mxu0
    %1047 = vmatprep.mubr.bf16.mxu0 0
    %1048 = vmatmul.mubr.bf16.gmra.mxu0 %v648
    %v1049 = vpop.f32.mrf.mxu0
    %v1050 = vadd.f32 0.0, %v1049
    %v1051 = vpop.f32.mrf.mxu0
    %v1052 = vpop.f32.mrf.mxu0
    %v1053 = vadd.f32 0.0, %v1052
    %v1054 = vpop.f32.mrf.mxu0
    %1055 = vmatprep.mubr.bf16.mxu0 0
    %1056 = vmatmul.mubr.bf16.gmra.mxu0 %v651
    %v1057 = vpop.f32.mrf.mxu0
    %v1058 = vadd.f32 0.0, %v1057
    %v1059 = vpop.f32.mrf.mxu0
    %v1060 = vpop.f32.mrf.mxu0
    %v1061 = vadd.f32 0.0, %v1060
    %v1062 = vpop.f32.mrf.mxu0
    %1063 = vmatprep.mubr.bf16.mxu0 0
    %1064 = vmatmul.mubr.bf16.gmra.mxu0 %v654
    %v1065 = vpop.f32.mrf.mxu0
    %v1066 = vadd.f32 0.0, %v1065
    %v1067 = vpop.f32.mrf.mxu0
    %v1068 = vpop.f32.mrf.mxu0
    %v1069 = vadd.f32 0.0, %v1068
    %v1070 = vpop.f32.mrf.mxu0
    %1071 = vmatprep.mubr.bf16.mxu0 0
    %1072 = vmatmul.mubr.bf16.gmra.mxu0 %v657
    %v1073 = vpop.f32.mrf.mxu0
    %v1074 = vadd.f32 0.0, %v1073
    %v1075 = vpop.f32.mrf.mxu0
    %v1076 = vpop.f32.mrf.mxu0
    %v1077 = vadd.f32 0.0, %v1076
    %v1078 = vpop.f32.mrf.mxu0
    %1079 = vmatprep.mubr.bf16.mxu0 0
    %1080 = vmatmul.mubr.bf16.gmra.mxu0 %v660
    %v1081 = vpop.f32.mrf.mxu0
    %v1082 = vadd.f32 0.0, %v1081
    %v1083 = vpop.f32.mrf.mxu0
    %v1084 = vpop.f32.mrf.mxu0
    %v1085 = vadd.f32 0.0, %v1084
    %v1086 = vpop.f32.mrf.mxu0
    %1087 = vmatprep.mubr.bf16.mxu0 0
    %1088 = vmatmul.mubr.bf16.gmra.mxu0 %v663
    %v1089 = vpop.f32.mrf.mxu0
    %v1090 = vadd.f32 0.0, %v1089
    %v1091 = vpop.f32.mrf.mxu0
    %v1092 = vpop.f32.mrf.mxu0
    %v1093 = vadd.f32 0.0, %v1092
    %v1094 = vpop.f32.mrf.mxu0
    %1095 = vmatprep.mubr.bf16.mxu0 0
    %1096 = vmatmul.mubr.bf16.gmra.mxu0 %v666
    %v1097 = vpop.f32.mrf.mxu0
    %v1098 = vadd.f32 0.0, %v1097
    %v1099 = vpop.f32.mrf.mxu0
    %v1100 = vpop.f32.mrf.mxu0
    %v1101 = vadd.f32 0.0, %v1100
    %v1102 = vpop.f32.mrf.mxu0
    %1103 = vmatprep.mubr.bf16.mxu0 0
    %1104 = vmatmul.mubr.bf16.gmra.mxu0 %v669
    %v1105 = vpop.f32.mrf.mxu0
    %v1106 = vadd.f32 0.0, %v1105
    %v1107 = vpop.f32.mrf.mxu0
    %v1108 = vpop.f32.mrf.mxu0
    %v1109 = vadd.f32 0.0, %v1108
    %v1110 = vpop.f32.mrf.mxu0
    %1111 = vmatprep.mubr.bf16.mxu0 0
    %1112 = vmatmul.mubr.bf16.gmra.mxu0 %v672
    %v1113 = vpop.f32.mrf.mxu0
    %v1114 = vadd.f32 0.0, %v1113
    %v1115 = vpop.f32.mrf.mxu0
    %v1116 = vpop.f32.mrf.mxu0
    %v1117 = vadd.f32 0.0, %v1116
    %v1118 = vpop.f32.mrf.mxu0
    %1119 = vmatprep.mubr.bf16.mxu0 0
    %1120 = vmatmul.mubr.bf16.gmra.mxu0 %v675
    %v1121 = vpop.f32.mrf.mxu0
    %v1122 = vadd.f32 0.0, %v1121
    %v1123 = vpop.f32.mrf.mxu0
    %v1124 = vpop.f32.mrf.mxu0
    %v1125 = vadd.f32 0.0, %v1124
    %v1126 = vpop.f32.mrf.mxu0
    %1127 = vmatprep.mubr.bf16.mxu0 0
    %1128 = vmatmul.mubr.bf16.gmra.mxu0 %v678
    %v1129 = vpop.f32.mrf.mxu0
    %v1130 = vadd.f32 0.0, %v1129
    %v1131 = vpop.f32.mrf.mxu0
    %v1132 = vpop.f32.mrf.mxu0
    %v1133 = vadd.f32 0.0, %v1132
    %v1134 = vpop.f32.mrf.mxu0
    %1135 = vmatprep.mubr.bf16.mxu0 0
    %1136 = vmatmul.mubr.bf16.gmra.mxu0 %v681
    %v1137 = vpop.f32.mrf.mxu0
    %v1138 = vadd.f32 0.0, %v1137
    %v1139 = vpop.f32.mrf.mxu0
    %v1140 = vpop.f32.mrf.mxu0
    %v1141 = vadd.f32 0.0, %v1140
    %v1142 = vpop.f32.mrf.mxu0
    %1143 = vmatprep.mubr.bf16.mxu0 0
    %1144 = vmatmul.mubr.bf16.gmra.mxu0 %v684
    %v1145 = vpop.f32.mrf.mxu0
    %v1146 = vadd.f32 0.0, %v1145
    %v1147 = vpop.f32.mrf.mxu0
    %v1148 = vpop.f32.mrf.mxu0
    %v1149 = vadd.f32 0.0, %v1148
    %v1150 = vpop.f32.mrf.mxu0
    %1151 = vmatprep.mubr.bf16.mxu0 0
    %1152 = vmatmul.mubr.bf16.gmra.mxu0 %v687
    %v1153 = vpop.f32.mrf.mxu0
    %v1154 = vadd.f32 0.0, %v1153
    %v1155 = vpop.f32.mrf.mxu0
    %v1156 = vpop.f32.mrf.mxu0
    %v1157 = vadd.f32 0.0, %v1156
    %v1158 = vpop.f32.mrf.mxu0
    %1159 = vmatprep.mubr.bf16.mxu0 0
    %1160 = vmatmul.mubr.bf16.gmra.mxu0 %v690
    %v1161 = vpop.f32.mrf.mxu0
    %v1162 = vadd.f32 0.0, %v1161
    %v1163 = vpop.f32.mrf.mxu0
    %v1164 = vpop.f32.mrf.mxu0
    %v1165 = vadd.f32 0.0, %v1164
    %v1166 = vpop.f32.mrf.mxu0
    %1167 = vmatprep.mubr.bf16.mxu0 0
    %1168 = vmatmul.mubr.bf16.gmra.mxu0 %v693
    %v1169 = vpop.f32.mrf.mxu0
    %v1170 = vadd.f32 0.0, %v1169
    %v1171 = vpop.f32.mrf.mxu0
    %v1172 = vpop.f32.mrf.mxu0
    %v1173 = vadd.f32 0.0, %v1172
    %v1174 = vpop.f32.mrf.mxu0
    %1175 = vmatprep.mubr.bf16.mxu0 0
    %1176 = vmatmul.mubr.bf16.gmra.mxu0 %v696
    %v1177 = vpop.f32.mrf.mxu0
    %v1178 = vadd.f32 0.0, %v1177
    %v1179 = vpop.f32.mrf.mxu0
    %v1180 = vpop.f32.mrf.mxu0
    %v1181 = vadd.f32 0.0, %v1180
    %v1182 = vpop.f32.mrf.mxu0
    %1183 = vmatprep.mubr.bf16.mxu0 0
    %1184 = vmatmul.mubr.bf16.gmra.mxu0 %v699
    %v1185 = vpop.f32.mrf.mxu0
    %v1186 = vadd.f32 0.0, %v1185
    %v1187 = vpop.f32.mrf.mxu0
    %v1188 = vpop.f32.mrf.mxu0
    %v1189 = vadd.f32 0.0, %v1188
    %v1190 = vpop.f32.mrf.mxu0
    %1191 = vmatprep.mubr.bf16.mxu0 0
    %1192 = vmatmul.mubr.bf16.gmra.mxu0 %v702
    %v1193 = vpop.f32.mrf.mxu0
    %v1194 = vadd.f32 0.0, %v1193
    %v1195 = vpop.f32.mrf.mxu0
    %v1196 = vpop.f32.mrf.mxu0
    %v1197 = vadd.f32 0.0, %v1196
    %v1198 = vpop.f32.mrf.mxu0
    %1199 = vmatprep.mubr.bf16.mxu0 0
    %1200 = vmatmul.mubr.bf16.gmra.mxu0 %v705
    %v1201 = vpop.f32.mrf.mxu0
    %v1202 = vadd.f32 0.0, %v1201
    %v1203 = vpop.f32.mrf.mxu0
    %v1204 = vpop.f32.mrf.mxu0
    %v1205 = vadd.f32 0.0, %v1204
    %v1206 = vpop.f32.mrf.mxu0
    %1207 = vmatprep.mubr.bf16.mxu0 0
    %1208 = vmatmul.mubr.bf16.gmra.mxu0 %v708
    %v1209 = vpop.f32.mrf.mxu0
    %v1210 = vadd.f32 0.0, %v1209
    %v1211 = vpop.f32.mrf.mxu0
    %v1212 = vpop.f32.mrf.mxu0
    %v1213 = vadd.f32 0.0, %v1212
    %v1214 = vpop.f32.mrf.mxu0
    %1215 = vmatprep.mubr.bf16.mxu0 0
    %1216 = vmatmul.mubr.bf16.gmra.mxu0 %v711
    %v1217 = vpop.f32.mrf.mxu0
    %v1218 = vadd.f32 0.0, %v1217
    %v1219 = vpop.f32.mrf.mxu0
    %v1220 = vpop.f32.mrf.mxu0
    %v1221 = vadd.f32 0.0, %v1220
    %v1222 = vpop.f32.mrf.mxu0
    %1223 = vmatprep.mubr.bf16.mxu0 0
    %1224 = vmatmul.mubr.bf16.gmra.mxu0 %v714
    %v1225 = vpop.f32.mrf.mxu0
    %v1226 = vadd.f32 0.0, %v1225
    %v1227 = vpop.f32.mrf.mxu0
    %v1228 = vpop.f32.mrf.mxu0
    %v1229 = vadd.f32 0.0, %v1228
    %v1230 = vpop.f32.mrf.mxu0
    %1231 = vmatprep.mubr.bf16.mxu0 0
    %1232 = vmatmul.mubr.bf16.gmra.mxu0 %v717
    %v1233 = vpop.f32.mrf.mxu0
    %v1234 = vadd.f32 0.0, %v1233
    %v1235 = vpop.f32.mrf.mxu0
    %v1236 = vpop.f32.mrf.mxu0
    %v1237 = vadd.f32 0.0, %v1236
    %v1238 = vpop.f32.mrf.mxu0
    %1239 = vmatprep.mubr.bf16.mxu0 0
    %1240 = vmatmul.mubr.bf16.gmra.mxu0 %v720
    %v1241 = vpop.f32.mrf.mxu0
    %v1242 = vadd.f32 0.0, %v1241
    %v1243 = vpop.f32.mrf.mxu0
    %v1244 = vpop.f32.mrf.mxu0
    %v1245 = vadd.f32 0.0, %v1244
    %v1246 = vpop.f32.mrf.mxu0
    %1247 = vmatprep.mubr.bf16.mxu0 0
    %1248 = vmatmul.mubr.bf16.gmra.mxu0 %v723
    %v1249 = vpop.f32.mrf.mxu0
    %v1250 = vadd.f32 0.0, %v1249
    %v1251 = vpop.f32.mrf.mxu0
    %v1252 = vpop.f32.mrf.mxu0
    %v1253 = vadd.f32 0.0, %v1252
    %v1254 = vpop.f32.mrf.mxu0
    %1255 = vmatprep.mubr.bf16.mxu0 0
    %1256 = vmatmul.mubr.bf16.gmra.mxu0 %v726
    %v1257 = vpop.f32.mrf.mxu0
    %v1258 = vadd.f32 0.0, %v1257
    %v1259 = vpop.f32.mrf.mxu0
    %v1260 = vpop.f32.mrf.mxu0
    %v1261 = vadd.f32 0.0, %v1260
    %v1262 = vpop.f32.mrf.mxu0
    %1263 = vmatprep.mubr.bf16.mxu0 0
    %1264 = vmatmul.mubr.bf16.gmra.mxu0 %v729
    %v1265 = vpop.f32.mrf.mxu0
    %v1266 = vadd.f32 0.0, %v1265
    %v1267 = vpop.f32.mrf.mxu0
    %v1268 = vpop.f32.mrf.mxu0
    %v1269 = vadd.f32 0.0, %v1268
    %v1270 = vpop.f32.mrf.mxu0
    %1271 = vmatprep.mubr.bf16.mxu0 0
    %1272 = vmatmul.mubr.bf16.gmra.mxu0 %v732
    %v1273 = vpop.f32.mrf.mxu0
    %v1274 = vadd.f32 0.0, %v1273
    %v1275 = vpop.f32.mrf.mxu0
    %v1276 = vpop.f32.mrf.mxu0
    %v1277 = vadd.f32 0.0, %v1276
    %v1278 = vpop.f32.mrf.mxu0
    %1279 = vmatprep.mubr.bf16.mxu0 0
    %1280 = vmatmul.mubr.bf16.gmra.mxu0 %v735
    %v1281 = vpop.f32.mrf.mxu0
    %v1282 = vadd.f32 0.0, %v1281
    %v1283 = vpop.f32.mrf.mxu0
    %v1284 = vpop.f32.mrf.mxu0
    %v1285 = vadd.f32 0.0, %v1284
    %v1286 = vpop.f32.mrf.mxu0
    %1287 = vmatprep.mubr.bf16.mxu0 0
    %1288 = vmatmul.mubr.bf16.gmra.mxu0 %v738
    %v1289 = vpop.f32.mrf.mxu0
    %v1290 = vadd.f32 0.0, %v1289
    %v1291 = vpop.f32.mrf.mxu0
    %v1292 = vpop.f32.mrf.mxu0
    %v1293 = vadd.f32 0.0, %v1292
    %v1294 = vpop.f32.mrf.mxu0
    %1295 = vmatprep.mubr.bf16.mxu0 0
    %1296 = vmatmul.mubr.bf16.gmra.mxu0 %v741
    %v1297 = vpop.f32.mrf.mxu0
    %v1298 = vadd.f32 0.0, %v1297
    %v1299 = vpop.f32.mrf.mxu0
    %v1300 = vpop.f32.mrf.mxu0
    %v1301 = vadd.f32 0.0, %v1300
    %v1302 = vpop.f32.mrf.mxu0
    %1303 = vmatprep.mubr.bf16.mxu0 0
    %1304 = vmatmul.mubr.bf16.gmra.mxu0 %v744
    %v1305 = vpop.f32.mrf.mxu0
    %v1306 = vadd.f32 0.0, %v1305
    %v1307 = vpop.f32.mrf.mxu0
    %v1308 = vpop.f32.mrf.mxu0
    %v1309 = vadd.f32 0.0, %v1308
    %v1310 = vpop.f32.mrf.mxu0
    %1311 = vmatprep.mubr.bf16.mxu0 0
    %1312 = vmatmul.mubr.bf16.gmra.mxu0 %v747
    %v1313 = vpop.f32.mrf.mxu0
    %v1314 = vadd.f32 0.0, %v1313
    %v1315 = vpop.f32.mrf.mxu0
    %v1316 = vpop.f32.mrf.mxu0
    %v1317 = vadd.f32 0.0, %v1316
    %v1318 = vpop.f32.mrf.mxu0
    %1319 = vmatprep.mubr.bf16.mxu0 0
    %1320 = vmatmul.mubr.bf16.gmra.mxu0 %v750
    %v1321 = vpop.f32.mrf.mxu0
    %v1322 = vadd.f32 0.0, %v1321
    %v1323 = vpop.f32.mrf.mxu0
    %v1324 = vpop.f32.mrf.mxu0
    %v1325 = vadd.f32 0.0, %v1324
    %v1326 = vpop.f32.mrf.mxu0
    %1327 = vmatprep.mubr.bf16.mxu0 0
    %1328 = vmatmul.mubr.bf16.gmra.mxu0 %v753
    %v1329 = vpop.f32.mrf.mxu0
    %v1330 = vadd.f32 0.0, %v1329
    %v1331 = vpop.f32.mrf.mxu0
    %v1332 = vpop.f32.mrf.mxu0
    %v1333 = vadd.f32 0.0, %v1332
    %v1334 = vpop.f32.mrf.mxu0
    %1335 = vmatprep.mubr.bf16.mxu0 0
    %1336 = vmatmul.mubr.bf16.gmra.mxu0 %v756
    %v1337 = vpop.f32.mrf.mxu0
    %v1338 = vadd.f32 0.0, %v1337
    %v1339 = vpop.f32.mrf.mxu0
    %v1340 = vpop.f32.mrf.mxu0
    %v1341 = vadd.f32 0.0, %v1340
    %v1342 = vpop.f32.mrf.mxu0
    %1343 = vmatprep.mubr.bf16.mxu0 0
    %1344 = vmatmul.mubr.bf16.gmra.mxu0 %v759
    %v1345 = vpop.f32.mrf.mxu0
    %v1346 = vadd.f32 0.0, %v1345
    %v1347 = vpop.f32.mrf.mxu0
    %v1348 = vpop.f32.mrf.mxu0
    %v1349 = vadd.f32 0.0, %v1348
    %v1350 = vpop.f32.mrf.mxu0
    %1351 = vmatprep.mubr.bf16.mxu0 0
    %1352 = vmatmul.mubr.bf16.gmra.mxu0 %v762
    %v1353 = vpop.f32.mrf.mxu0
    %v1354 = vadd.f32 0.0, %v1353
    %v1355 = vpop.f32.mrf.mxu0
    %v1356 = vpop.f32.mrf.mxu0
    %v1357 = vadd.f32 0.0, %v1356
    %v1358 = vpop.f32.mrf.mxu0
    %1359 = vmatprep.mubr.bf16.mxu0 0
    %1360 = vmatmul.mubr.bf16.gmra.mxu0 %v765
    %v1361 = vpop.f32.mrf.mxu0
    %v1362 = vadd.f32 0.0, %v1361
    %v1363 = vpop.f32.mrf.mxu0
    %v1364 = vpop.f32.mrf.mxu0
    %v1365 = vadd.f32 0.0, %v1364
    %v1366 = vpop.f32.mrf.mxu0
    %1367 = vmatprep.mubr.bf16.mxu0 0
    %1368 = vmatmul.mubr.bf16.gmra.mxu0 %v768
    %v1369 = vpop.f32.mrf.mxu0
    %v1370 = vadd.f32 0.0, %v1369
    %v1371 = vpop.f32.mrf.mxu0
    %v1372 = vpop.f32.mrf.mxu0
    %v1373 = vadd.f32 0.0, %v1372
    %v1374 = vpop.f32.mrf.mxu0
    %1375 = vmatprep.mubr.bf16.mxu0 0
    %1376 = vmatmul.mubr.bf16.gmra.mxu0 %v771
    %v1377 = vpop.f32.mrf.mxu0
    %v1378 = vadd.f32 0.0, %v1377
    %v1379 = vpop.f32.mrf.mxu0
    %v1380 = vpop.f32.mrf.mxu0
    %v1381 = vadd.f32 0.0, %v1380
    %v1382 = vpop.f32.mrf.mxu0
    %1383 = vmatprep.mubr.bf16.mxu0 0
    %1384 = vmatmul.mubr.bf16.gmra.mxu0 %v774
    %v1385 = vpop.f32.mrf.mxu0
    %v1386 = vadd.f32 0.0, %v1385
    %v1387 = vpop.f32.mrf.mxu0
    %v1388 = vpop.f32.mrf.mxu0
    %v1389 = vadd.f32 0.0, %v1388
    %v1390 = vpop.f32.mrf.mxu0
    %1391 = vdwg.mxu0
    %v1392 = vld [vmem:[%s2] sm:$0x1]
    %v1393 = vld [vmem:[%s3] sm:$0x1]
    %v1394 = vadd.f32 %v818, %v821
    %v1395 = vadd.f32 %v1394, %v826
    %v1396 = vadd.f32 %v1395, %v829
    %v1397 = vadd.f32 %v1396, %v834
    %v1398 = vadd.f32 %v1397, %v837
    %v1399 = vadd.f32 %v1398, %v842
    %v1400 = vadd.f32 %v1399, %v845
    %v1401 = vadd.f32 %v1400, %v850
    %v1402 = vadd.f32 %v1401, %v853
    %v1403 = vadd.f32 %v1402, %v858
    %v1404 = vadd.f32 %v1403, %v861
    %v1405 = vadd.f32 %v1404, %v866
    %v1406 = vadd.f32 %v1405, %v869
    %v1407 = vadd.f32 %v1406, %v874
    %v1408 = vadd.f32 %v1407, %v877
    %v1409 = vadd.f32 %v1408, %v882
    %v1410 = vadd.f32 %v1409, %v885
    %v1411 = vadd.f32 %v1410, %v890
    %v1412 = vadd.f32 %v1411, %v893
    %v1413 = vadd.f32 %v1412, %v898
    %v1414 = vadd.f32 %v1413, %v901
    %v1415 = vadd.f32 %v1414, %v906
    %v1416 = vadd.f32 %v1415, %v909
    %v1417 = vadd.f32 %v1416, %v914
    %v1418 = vadd.f32 %v1417, %v917
    %v1419 = vadd.f32 %v1418, %v922
    %v1420 = vadd.f32 %v1419, %v925
    %v1421 = vadd.f32 %v1420, %v930
    %v1422 = vadd.f32 %v1421, %v933
    %v1423 = vadd.f32 %v1422, %v938
    %v1424 = vadd.f32 %v1423, %v941
    %v1425 = vadd.f32 %v1424, %v946
    %v1426 = vadd.f32 %v1425, %v949
    %v1427 = vadd.f32 %v1426, %v954
    %v1428 = vadd.f32 %v1427, %v957
    %v1429 = vadd.f32 %v1428, %v962
    %v1430 = vadd.f32 %v1429, %v965
    %v1431 = vadd.f32 %v1430, %v970
    %v1432 = vadd.f32 %v1431, %v973
    %v1433 = vadd.f32 %v1432, %v978
    %v1434 = vadd.f32 %v1433, %v981
    %v1435 = vadd.f32 %v1434, %v986
    %v1436 = vadd.f32 %v1435, %v989
    %v1437 = vadd.f32 %v1436, %v994
    %v1438 = vadd.f32 %v1437, %v997
    %v1439 = vadd.f32 %v1438, %v1002
    %v1440 = vadd.f32 %v1439, %v1005
    %v1441 = vadd.f32 %v1440, %v1010
    %v1442 = vadd.f32 %v1441, %v1013
    %v1443 = vadd.f32 %v1442, %v1018
    %v1444 = vadd.f32 %v1443, %v1021
    %v1445 = vadd.f32 %v1444, %v1026
    %v1446 = vadd.f32 %v1445, %v1029
    %v1447 = vadd.f32 %v1446, %v1034
    %v1448 = vadd.f32 %v1447, %v1037
    %v1449 = vadd.f32 %v1448, %v1042
    %v1450 = vadd.f32 %v1449, %v1045
    %v1451 = vadd.f32 %v1450, %v1050
    %v1452 = vadd.f32 %v1451, %v1053
    %v1453 = vadd.f32 %v1452, %v1058
    %v1454 = vadd.f32 %v1453, %v1061
    %v1455 = vadd.f32 %v1454, %v1066
    %v1456 = vadd.f32 %v1455, %v1069
    %v1457 = vadd.f32 %v1456, %v1074
    %v1458 = vadd.f32 %v1457, %v1077
    %v1459 = vadd.f32 %v1458, %v1082
    %v1460 = vadd.f32 %v1459, %v1085
    %v1461 = vadd.f32 %v1460, %v1090
    %v1462 = vadd.f32 %v1461, %v1093
    %v1463 = vadd.f32 %v1462, %v1098
    %v1464 = vadd.f32 %v1463, %v1101
    %v1465 = vadd.f32 %v1464, %v1106
    %v1466 = vadd.f32 %v1465, %v1109
    %v1467 = vadd.f32 %v1466, %v1114
    %v1468 = vadd.f32 %v1467, %v1117
    %v1469 = vadd.f32 %v1468, %v1122
    %v1470 = vadd.f32 %v1469, %v1125
    %v1471 = vadd.f32 %v1470, %v1130
    %v1472 = vadd.f32 %v1471, %v1133
    %v1473 = vadd.f32 %v1472, %v1138
    %v1474 = vadd.f32 %v1473, %v1141
    %v1475 = vadd.f32 %v1474, %v1146
    %v1476 = vadd.f32 %v1475, %v1149
    %v1477 = vadd.f32 %v1476, %v1154
    %v1478 = vadd.f32 %v1477, %v1157
    %v1479 = vadd.f32 %v1478, %v1162
    %v1480 = vadd.f32 %v1479, %v1165
    %v1481 = vadd.f32 %v1480, %v1170
    %v1482 = vadd.f32 %v1481, %v1173
    %v1483 = vadd.f32 %v1482, %v1178
    %v1484 = vadd.f32 %v1483, %v1181
    %v1485 = vadd.f32 %v1484, %v1186
    %v1486 = vadd.f32 %v1485, %v1189
    %v1487 = vadd.f32 %v1486, %v1194
    %v1488 = vadd.f32 %v1487, %v1197
    %v1489 = vadd.f32 %v1488, %v1202
    %v1490 = vadd.f32 %v1489, %v1205
    %v1491 = vadd.f32 %v1490, %v1210
    %v1492 = vadd.f32 %v1491, %v1213
    %v1493 = vadd.f32 %v1492, %v1218
    %v1494 = vadd.f32 %v1493, %v1221
    %v1495 = vadd.f32 %v1494, %v1226
    %v1496 = vadd.f32 %v1495, %v1229
    %v1497 = vadd.f32 %v1496, %v1234
    %v1498 = vadd.f32 %v1497, %v1237
    %v1499 = vadd.f32 %v1498, %v1242
    %v1500 = vadd.f32 %v1499, %v1245
    %v1501 = vadd.f32 %v1500, %v1250
    %v1502 = vadd.f32 %v1501, %v1253
    %v1503 = vadd.f32 %v1502, %v1258
    %v1504 = vadd.f32 %v1503, %v1261
    %v1505 = vadd.f32 %v1504, %v1266
    %v1506 = vadd.f32 %v1505, %v1269
    %v1507 = vadd.f32 %v1506, %v1274
    %v1508 = vadd.f32 %v1507, %v1277
    %v1509 = vadd.f32 %v1508, %v1282
    %v1510 = vadd.f32 %v1509, %v1285
    %v1511 = vadd.f32 %v1510, %v1290
    %v1512 = vadd.f32 %v1511, %v1293
    %v1513 = vadd.f32 %v1512, %v1298
    %v1514 = vadd.f32 %v1513, %v1301
    %v1515 = vadd.f32 %v1514, %v1306
    %v1516 = vadd.f32 %v1515, %v1309
    %v1517 = vadd.f32 %v1516, %v1314
    %v1518 = vadd.f32 %v1517, %v1317
    %v1519 = vadd.f32 %v1518, %v1322
    %v1520 = vadd.f32 %v1519, %v1325
    %v1521 = vadd.f32 %v1520, %v1330
    %v1522 = vadd.f32 %v1521, %v1333
    %v1523 = vadd.f32 %v1522, %v1338
    %v1524 = vadd.f32 %v1523, %v1341
    %v1525 = vadd.f32 %v1524, %v1346
    %v1526 = vadd.f32 %v1525, %v1349
    %v1527 = vadd.f32 %v1526, %v1354
    %v1528 = vadd.f32 %v1527, %v1357
    %v1529 = vadd.f32 %v1528, %v1362
    %v1530 = vadd.f32 %v1529, %v1365
    %v1531 = vadd.f32 %v1530, %v1370
    %v1532 = vadd.f32 %v1531, %v1373
    %v1533 = vadd.f32 %v1532, %v1378
    %v1534 = vadd.f32 %v1533, %v1381
    %v1535 = vadd.f32 %v1534, %v1386
    %v1536 = vadd.f32 %v1535, %v1389
    %v1537 = vrot.slane %v1536, 4
    %v1538 = vadd.f32 %v1536, %v1537
    %v1539 = vrot.slane %v1538, 2
    %v1540 = vadd.f32 %v1538, %v1539
    %v1541 = vrot.slane %v1540, 1
    %v1542 = vadd.f32 %v1540, %v1541
    %v1543 = vmul.f32 %v818, %v818
    %v1544 = vmul.f32 %v821, %v821
    %v1545 = vmul.f32 %v826, %v826
    %v1546 = vmul.f32 %v829, %v829
    %v1547 = vmul.f32 %v834, %v834
    %v1548 = vmul.f32 %v837, %v837
    %v1549 = vmul.f32 %v842, %v842
    %v1550 = vmul.f32 %v845, %v845
    %v1551 = vmul.f32 %v850, %v850
    %v1552 = vmul.f32 %v853, %v853
    %v1553 = vmul.f32 %v858, %v858
    %v1554 = vmul.f32 %v861, %v861
    %v1555 = vmul.f32 %v866, %v866
    %v1556 = vmul.f32 %v869, %v869
    %v1557 = vmul.f32 %v874, %v874
    %v1558 = vmul.f32 %v877, %v877
    %v1559 = vmul.f32 %v882, %v882
    %v1560 = vmul.f32 %v885, %v885
    %v1561 = vmul.f32 %v890, %v890
    %v1562 = vmul.f32 %v893, %v893
    %v1563 = vmul.f32 %v898, %v898
    %v1564 = vmul.f32 %v901, %v901
    %v1565 = vmul.f32 %v906, %v906
    %v1566 = vmul.f32 %v909, %v909
    %v1567 = vmul.f32 %v914, %v914
    %v1568 = vmul.f32 %v917, %v917
    %v1569 = vmul.f32 %v922, %v922
    %v1570 = vmul.f32 %v925, %v925
    %v1571 = vmul.f32 %v930, %v930
    %v1572 = vmul.f32 %v933, %v933
    %v1573 = vmul.f32 %v938, %v938
    %v1574 = vmul.f32 %v941, %v941
    %v1575 = vmul.f32 %v946, %v946
    %v1576 = vmul.f32 %v949, %v949
    %v1577 = vmul.f32 %v954, %v954
    %v1578 = vmul.f32 %v957, %v957
    %v1579 = vmul.f32 %v962, %v962
    %v1580 = vmul.f32 %v965, %v965
    %v1581 = vmul.f32 %v970, %v970
    %v1582 = vmul.f32 %v973, %v973
    %v1583 = vmul.f32 %v978, %v978
    %v1584 = vmul.f32 %v981, %v981
    %v1585 = vmul.f32 %v986, %v986
    %v1586 = vmul.f32 %v989, %v989
    %v1587 = vmul.f32 %v994, %v994
    %v1588 = vmul.f32 %v997, %v997
    %v1589 = vmul.f32 %v1002, %v1002
    %v1590 = vmul.f32 %v1005, %v1005
    %v1591 = vmul.f32 %v1010, %v1010
    %v1592 = vmul.f32 %v1013, %v1013
    %v1593 = vmul.f32 %v1018, %v1018
    %v1594 = vmul.f32 %v1021, %v1021
    %v1595 = vmul.f32 %v1026, %v1026
    %v1596 = vmul.f32 %v1029, %v1029
    %v1597 = vmul.f32 %v1034, %v1034
    %v1598 = vmul.f32 %v1037, %v1037
    %v1599 = vmul.f32 %v1042, %v1042
    %v1600 = vmul.f32 %v1045, %v1045
    %v1601 = vmul.f32 %v1050, %v1050
    %v1602 = vmul.f32 %v1053, %v1053
    %v1603 = vmul.f32 %v1058, %v1058
    %v1604 = vmul.f32 %v1061, %v1061
    %v1605 = vmul.f32 %v1066, %v1066
    %v1606 = vmul.f32 %v1069, %v1069
    %v1607 = vmul.f32 %v1074, %v1074
    %v1608 = vmul.f32 %v1077, %v1077
    %v1609 = vmul.f32 %v1082, %v1082
    %v1610 = vmul.f32 %v1085, %v1085
    %v1611 = vmul.f32 %v1090, %v1090
    %v1612 = vmul.f32 %v1093, %v1093
    %v1613 = vmul.f32 %v1098, %v1098
    %v1614 = vmul.f32 %v1101, %v1101
    %v1615 = vmul.f32 %v1106, %v1106
    %v1616 = vmul.f32 %v1109, %v1109
    %v1617 = vmul.f32 %v1114, %v1114
    %v1618 = vmul.f32 %v1117, %v1117
    %v1619 = vmul.f32 %v1122, %v1122
    %v1620 = vmul.f32 %v1125, %v1125
    %v1621 = vmul.f32 %v1130, %v1130
    %v1622 = vmul.f32 %v1133, %v1133
    %v1623 = vmul.f32 %v1138, %v1138
    %v1624 = vmul.f32 %v1141, %v1141
    %v1625 = vmul.f32 %v1146, %v1146
    %v1626 = vmul.f32 %v1149, %v1149
    %v1627 = vmul.f32 %v1154, %v1154
    %v1628 = vmul.f32 %v1157, %v1157
    %v1629 = vmul.f32 %v1162, %v1162
    %v1630 = vmul.f32 %v1165, %v1165
    %v1631 = vmul.f32 %v1170, %v1170
    %v1632 = vmul.f32 %v1173, %v1173
    %v1633 = vmul.f32 %v1178, %v1178
    %v1634 = vmul.f32 %v1181, %v1181
    %v1635 = vmul.f32 %v1186, %v1186
    %v1636 = vmul.f32 %v1189, %v1189
    %v1637 = vmul.f32 %v1194, %v1194
    %v1638 = vmul.f32 %v1197, %v1197
    %v1639 = vmul.f32 %v1202, %v1202
    %v1640 = vmul.f32 %v1205, %v1205
    %v1641 = vmul.f32 %v1210, %v1210
    %v1642 = vmul.f32 %v1213, %v1213
    %v1643 = vmul.f32 %v1218, %v1218
    %v1644 = vmul.f32 %v1221, %v1221
    %v1645 = vmul.f32 %v1226, %v1226
    %v1646 = vmul.f32 %v1229, %v1229
    %v1647 = vmul.f32 %v1234, %v1234
    %v1648 = vmul.f32 %v1237, %v1237
    %v1649 = vmul.f32 %v1242, %v1242
    %v1650 = vmul.f32 %v1245, %v1245
    %v1651 = vmul.f32 %v1250, %v1250
    %v1652 = vmul.f32 %v1253, %v1253
    %v1653 = vmul.f32 %v1258, %v1258
    %v1654 = vmul.f32 %v1261, %v1261
    %v1655 = vmul.f32 %v1266, %v1266
    %v1656 = vmul.f32 %v1269, %v1269
    %v1657 = vmul.f32 %v1274, %v1274
    %v1658 = vmul.f32 %v1277, %v1277
    %v1659 = vmul.f32 %v1282, %v1282
    %v1660 = vmul.f32 %v1285, %v1285
    %v1661 = vmul.f32 %v1290, %v1290
    %v1662 = vmul.f32 %v1293, %v1293
    %v1663 = vmul.f32 %v1298, %v1298
    %v1664 = vmul.f32 %v1301, %v1301
    %v1665 = vmul.f32 %v1306, %v1306
    %v1666 = vmul.f32 %v1309, %v1309
    %v1667 = vmul.f32 %v1314, %v1314
    %v1668 = vmul.f32 %v1317, %v1317
    %v1669 = vmul.f32 %v1322, %v1322
    %v1670 = vmul.f32 %v1325, %v1325
    %v1671 = vmul.f32 %v1330, %v1330
    %v1672 = vmul.f32 %v1333, %v1333
    %v1673 = vmul.f32 %v1338, %v1338
    %v1674 = vmul.f32 %v1341, %v1341
    %v1675 = vmul.f32 %v1346, %v1346
    %v1676 = vmul.f32 %v1349, %v1349
    %v1677 = vmul.f32 %v1354, %v1354
    %v1678 = vmul.f32 %v1357, %v1357
    %v1679 = vmul.f32 %v1362, %v1362
    %v1680 = vmul.f32 %v1365, %v1365
    %v1681 = vmul.f32 %v1370, %v1370
    %v1682 = vmul.f32 %v1373, %v1373
    %v1683 = vmul.f32 %v1378, %v1378
    %v1684 = vmul.f32 %v1381, %v1381
    %v1685 = vmul.f32 %v1386, %v1386
    %v1686 = vmul.f32 %v1389, %v1389
    %v1687 = vadd.f32 %v1543, %v1544
    %v1688 = vadd.f32 %v1687, %v1545
    %v1689 = vadd.f32 %v1688, %v1546
    %v1690 = vadd.f32 %v1689, %v1547
    %v1691 = vadd.f32 %v1690, %v1548
    %v1692 = vadd.f32 %v1691, %v1549
    %v1693 = vadd.f32 %v1692, %v1550
    %v1694 = vadd.f32 %v1693, %v1551
    %v1695 = vadd.f32 %v1694, %v1552
    %v1696 = vadd.f32 %v1695, %v1553
    %v1697 = vadd.f32 %v1696, %v1554
    %v1698 = vadd.f32 %v1697, %v1555
    %v1699 = vadd.f32 %v1698, %v1556
    %v1700 = vadd.f32 %v1699, %v1557
    %v1701 = vadd.f32 %v1700, %v1558
    %v1702 = vadd.f32 %v1701, %v1559
    %v1703 = vadd.f32 %v1702, %v1560
    %v1704 = vadd.f32 %v1703, %v1561
    %v1705 = vadd.f32 %v1704, %v1562
    %v1706 = vadd.f32 %v1705, %v1563
    %v1707 = vadd.f32 %v1706, %v1564
    %v1708 = vadd.f32 %v1707, %v1565
    %v1709 = vadd.f32 %v1708, %v1566
    %v1710 = vadd.f32 %v1709, %v1567
    %v1711 = vadd.f32 %v1710, %v1568
    %v1712 = vadd.f32 %v1711, %v1569
    %v1713 = vadd.f32 %v1712, %v1570
    %v1714 = vadd.f32 %v1713, %v1571
    %v1715 = vadd.f32 %v1714, %v1572
    %v1716 = vadd.f32 %v1715, %v1573
    %v1717 = vadd.f32 %v1716, %v1574
    %v1718 = vadd.f32 %v1717, %v1575
    %v1719 = vadd.f32 %v1718, %v1576
    %v1720 = vadd.f32 %v1719, %v1577
    %v1721 = vadd.f32 %v1720, %v1578
    %v1722 = vadd.f32 %v1721, %v1579
    %v1723 = vadd.f32 %v1722, %v1580
    %v1724 = vadd.f32 %v1723, %v1581
    %v1725 = vadd.f32 %v1724, %v1582
    %v1726 = vadd.f32 %v1725, %v1583
    %v1727 = vadd.f32 %v1726, %v1584
    %v1728 = vadd.f32 %v1727, %v1585
    %v1729 = vadd.f32 %v1728, %v1586
    %v1730 = vadd.f32 %v1729, %v1587
    %v1731 = vadd.f32 %v1730, %v1588
    %v1732 = vadd.f32 %v1731, %v1589
    %v1733 = vadd.f32 %v1732, %v1590
    %v1734 = vadd.f32 %v1733, %v1591
    %v1735 = vadd.f32 %v1734, %v1592
    %v1736 = vadd.f32 %v1735, %v1593
    %v1737 = vadd.f32 %v1736, %v1594
    %v1738 = vadd.f32 %v1737, %v1595
    %v1739 = vadd.f32 %v1738, %v1596
    %v1740 = vadd.f32 %v1739, %v1597
    %v1741 = vadd.f32 %v1740, %v1598
    %v1742 = vadd.f32 %v1741, %v1599
    %v1743 = vadd.f32 %v1742, %v1600
    %v1744 = vadd.f32 %v1743, %v1601
    %v1745 = vadd.f32 %v1744, %v1602
    %v1746 = vadd.f32 %v1745, %v1603
    %v1747 = vadd.f32 %v1746, %v1604
    %v1748 = vadd.f32 %v1747, %v1605
    %v1749 = vadd.f32 %v1748, %v1606
    %v1750 = vadd.f32 %v1749, %v1607
    %v1751 = vadd.f32 %v1750, %v1608
    %v1752 = vadd.f32 %v1751, %v1609
    %v1753 = vadd.f32 %v1752, %v1610
    %v1754 = vadd.f32 %v1753, %v1611
    %v1755 = vadd.f32 %v1754, %v1612
    %v1756 = vadd.f32 %v1755, %v1613
    %v1757 = vadd.f32 %v1756, %v1614
    %v1758 = vadd.f32 %v1757, %v1615
    %v1759 = vadd.f32 %v1758, %v1616
    %v1760 = vadd.f32 %v1759, %v1617
    %v1761 = vadd.f32 %v1760, %v1618
    %v1762 = vadd.f32 %v1761, %v1619
    %v1763 = vadd.f32 %v1762, %v1620
    %v1764 = vadd.f32 %v1763, %v1621
    %v1765 = vadd.f32 %v1764, %v1622
    %v1766 = vadd.f32 %v1765, %v1623
    %v1767 = vadd.f32 %v1766, %v1624
    %v1768 = vadd.f32 %v1767, %v1625
    %v1769 = vadd.f32 %v1768, %v1626
    %v1770 = vadd.f32 %v1769, %v1627
    %v1771 = vadd.f32 %v1770, %v1628
    %v1772 = vadd.f32 %v1771, %v1629
    %v1773 = vadd.f32 %v1772, %v1630
    %v1774 = vadd.f32 %v1773, %v1631
    %v1775 = vadd.f32 %v1774, %v1632
    %v1776 = vadd.f32 %v1775, %v1633
    %v1777 = vadd.f32 %v1776, %v1634
    %v1778 = vadd.f32 %v1777, %v1635
    %v1779 = vadd.f32 %v1778, %v1636
    %v1780 = vadd.f32 %v1779, %v1637
    %v1781 = vadd.f32 %v1780, %v1638
    %v1782 = vadd.f32 %v1781, %v1639
    %v1783 = vadd.f32 %v1782, %v1640
    %v1784 = vadd.f32 %v1783, %v1641
    %v1785 = vadd.f32 %v1784, %v1642
    %v1786 = vadd.f32 %v1785, %v1643
    %v1787 = vadd.f32 %v1786, %v1644
    %v1788 = vadd.f32 %v1787, %v1645
    %v1789 = vadd.f32 %v1788, %v1646
    %v1790 = vadd.f32 %v1789, %v1647
    %v1791 = vadd.f32 %v1790, %v1648
    %v1792 = vadd.f32 %v1791, %v1649
    %v1793 = vadd.f32 %v1792, %v1650
    %v1794 = vadd.f32 %v1793, %v1651
    %v1795 = vadd.f32 %v1794, %v1652
    %v1796 = vadd.f32 %v1795, %v1653
    %v1797 = vadd.f32 %v1796, %v1654
    %v1798 = vadd.f32 %v1797, %v1655
    %v1799 = vadd.f32 %v1798, %v1656
    %v1800 = vadd.f32 %v1799, %v1657
    %v1801 = vadd.f32 %v1800, %v1658
    %v1802 = vadd.f32 %v1801, %v1659
    %v1803 = vadd.f32 %v1802, %v1660
    %v1804 = vadd.f32 %v1803, %v1661
    %v1805 = vadd.f32 %v1804, %v1662
    %v1806 = vadd.f32 %v1805, %v1663
    %v1807 = vadd.f32 %v1806, %v1664
    %v1808 = vadd.f32 %v1807, %v1665
    %v1809 = vadd.f32 %v1808, %v1666
    %v1810 = vadd.f32 %v1809, %v1667
    %v1811 = vadd.f32 %v1810, %v1668
    %v1812 = vadd.f32 %v1811, %v1669
    %v1813 = vadd.f32 %v1812, %v1670
    %v1814 = vadd.f32 %v1813, %v1671
    %v1815 = vadd.f32 %v1814, %v1672
    %v1816 = vadd.f32 %v1815, %v1673
    %v1817 = vadd.f32 %v1816, %v1674
    %v1818 = vadd.f32 %v1817, %v1675
    %v1819 = vadd.f32 %v1818, %v1676
    %v1820 = vadd.f32 %v1819, %v1677
    %v1821 = vadd.f32 %v1820, %v1678
    %v1822 = vadd.f32 %v1821, %v1679
    %v1823 = vadd.f32 %v1822, %v1680
    %v1824 = vadd.f32 %v1823, %v1681
    %v1825 = vadd.f32 %v1824, %v1682
    %v1826 = vadd.f32 %v1825, %v1683
    %v1827 = vadd.f32 %v1826, %v1684
    %v1828 = vadd.f32 %v1827, %v1685
    %v1829 = vadd.f32 %v1828, %v1686
    %v1830 = vrot.slane %v1829, 4
    %v1831 = vadd.f32 %v1829, %v1830
    %v1832 = vrot.slane %v1831, 2
    %v1833 = vadd.f32 %v1831, %v1832
    %v1834 = vrot.slane %v1833, 1
    %v1835 = vadd.f32 %v1833, %v1834
    %v1836 = vmul.f32 %v1542, 0.00086805556
    %v1837 = vmul.f32 %v1835, 0.00086805556
    %v1838 = vmul.f32 %v1836, %v1836
    %v1839 = vsub.f32 %v1837, %v1838
    %v1840 = vsub.f32 %v818, %v1836
    %v1841 = vsub.f32 %v821, %v1836
    %v1842 = vsub.f32 %v826, %v1836
    %v1843 = vsub.f32 %v829, %v1836
    %v1844 = vsub.f32 %v834, %v1836
    %v1845 = vsub.f32 %v837, %v1836
    %v1846 = vsub.f32 %v842, %v1836
    %v1847 = vsub.f32 %v845, %v1836
    %v1848 = vsub.f32 %v850, %v1836
    %v1849 = vsub.f32 %v853, %v1836
    %v1850 = vsub.f32 %v858, %v1836
    %v1851 = vsub.f32 %v861, %v1836
    %v1852 = vsub.f32 %v866, %v1836
    %v1853 = vsub.f32 %v869, %v1836
    %v1854 = vsub.f32 %v874, %v1836
    %v1855 = vsub.f32 %v877, %v1836
    %v1856 = vsub.f32 %v882, %v1836
    %v1857 = vsub.f32 %v885, %v1836
    %v1858 = vsub.f32 %v890, %v1836
    %v1859 = vsub.f32 %v893, %v1836
    %v1860 = vsub.f32 %v898, %v1836
    %v1861 = vsub.f32 %v901, %v1836
    %v1862 = vsub.f32 %v906, %v1836
    %v1863 = vsub.f32 %v909, %v1836
    %v1864 = vsub.f32 %v914, %v1836
    %v1865 = vsub.f32 %v917, %v1836
    %v1866 = vsub.f32 %v922, %v1836
    %v1867 = vsub.f32 %v925, %v1836
    %v1868 = vsub.f32 %v930, %v1836
    %v1869 = vsub.f32 %v933, %v1836
    %v1870 = vsub.f32 %v938, %v1836
    %v1871 = vsub.f32 %v941, %v1836
    %v1872 = vsub.f32 %v946, %v1836
    %v1873 = vsub.f32 %v949, %v1836
    %v1874 = vsub.f32 %v954, %v1836
    %v1875 = vsub.f32 %v957, %v1836
    %v1876 = vsub.f32 %v962, %v1836
    %v1877 = vsub.f32 %v965, %v1836
    %v1878 = vsub.f32 %v970, %v1836
    %v1879 = vsub.f32 %v973, %v1836
    %v1880 = vsub.f32 %v978, %v1836
    %v1881 = vsub.f32 %v981, %v1836
    %v1882 = vsub.f32 %v986, %v1836
    %v1883 = vsub.f32 %v989, %v1836
    %v1884 = vsub.f32 %v994, %v1836
    %v1885 = vsub.f32 %v997, %v1836
    %v1886 = vsub.f32 %v1002, %v1836
    %v1887 = vsub.f32 %v1005, %v1836
    %v1888 = vsub.f32 %v1010, %v1836
    %v1889 = vsub.f32 %v1013, %v1836
    %v1890 = vsub.f32 %v1018, %v1836
    %v1891 = vsub.f32 %v1021, %v1836
    %v1892 = vsub.f32 %v1026, %v1836
    %v1893 = vsub.f32 %v1029, %v1836
    %v1894 = vsub.f32 %v1034, %v1836
    %v1895 = vsub.f32 %v1037, %v1836
    %v1896 = vsub.f32 %v1042, %v1836
    %v1897 = vsub.f32 %v1045, %v1836
    %v1898 = vsub.f32 %v1050, %v1836
    %v1899 = vsub.f32 %v1053, %v1836
    %v1900 = vsub.f32 %v1058, %v1836
    %v1901 = vsub.f32 %v1061, %v1836
    %v1902 = vsub.f32 %v1066, %v1836
    %v1903 = vsub.f32 %v1069, %v1836
    %v1904 = vsub.f32 %v1074, %v1836
    %v1905 = vsub.f32 %v1077, %v1836
    %v1906 = vsub.f32 %v1082, %v1836
    %v1907 = vsub.f32 %v1085, %v1836
    %v1908 = vsub.f32 %v1090, %v1836
    %v1909 = vsub.f32 %v1093, %v1836
    %v1910 = vsub.f32 %v1098, %v1836
    %v1911 = vsub.f32 %v1101, %v1836
    %v1912 = vsub.f32 %v1106, %v1836
    %v1913 = vsub.f32 %v1109, %v1836
    %v1914 = vsub.f32 %v1114, %v1836
    %v1915 = vsub.f32 %v1117, %v1836
    %v1916 = vsub.f32 %v1122, %v1836
    %v1917 = vsub.f32 %v1125, %v1836
    %v1918 = vsub.f32 %v1130, %v1836
    %v1919 = vsub.f32 %v1133, %v1836
    %v1920 = vsub.f32 %v1138, %v1836
    %v1921 = vsub.f32 %v1141, %v1836
    %v1922 = vsub.f32 %v1146, %v1836
    %v1923 = vsub.f32 %v1149, %v1836
    %v1924 = vsub.f32 %v1154, %v1836
    %v1925 = vsub.f32 %v1157, %v1836
    %v1926 = vsub.f32 %v1162, %v1836
    %v1927 = vsub.f32 %v1165, %v1836
    %v1928 = vsub.f32 %v1170, %v1836
    %v1929 = vsub.f32 %v1173, %v1836
    %v1930 = vsub.f32 %v1178, %v1836
    %v1931 = vsub.f32 %v1181, %v1836
    %v1932 = vsub.f32 %v1186, %v1836
    %v1933 = vsub.f32 %v1189, %v1836
    %v1934 = vsub.f32 %v1194, %v1836
    %v1935 = vsub.f32 %v1197, %v1836
    %v1936 = vsub.f32 %v1202, %v1836
    %v1937 = vsub.f32 %v1205, %v1836
    %v1938 = vsub.f32 %v1210, %v1836
    %v1939 = vsub.f32 %v1213, %v1836
    %v1940 = vsub.f32 %v1218, %v1836
    %v1941 = vsub.f32 %v1221, %v1836
    %v1942 = vsub.f32 %v1226, %v1836
    %v1943 = vsub.f32 %v1229, %v1836
    %v1944 = vsub.f32 %v1234, %v1836
    %v1945 = vsub.f32 %v1237, %v1836
    %v1946 = vsub.f32 %v1242, %v1836
    %v1947 = vsub.f32 %v1245, %v1836
    %v1948 = vsub.f32 %v1250, %v1836
    %v1949 = vsub.f32 %v1253, %v1836
    %v1950 = vsub.f32 %v1258, %v1836
    %v1951 = vsub.f32 %v1261, %v1836
    %v1952 = vsub.f32 %v1266, %v1836
    %v1953 = vsub.f32 %v1269, %v1836
    %v1954 = vsub.f32 %v1274, %v1836
    %v1955 = vsub.f32 %v1277, %v1836
    %v1956 = vsub.f32 %v1282, %v1836
    %v1957 = vsub.f32 %v1285, %v1836
    %v1958 = vsub.f32 %v1290, %v1836
    %v1959 = vsub.f32 %v1293, %v1836
    %v1960 = vsub.f32 %v1298, %v1836
    %v1961 = vsub.f32 %v1301, %v1836
    %v1962 = vsub.f32 %v1306, %v1836
    %v1963 = vsub.f32 %v1309, %v1836
    %v1964 = vsub.f32 %v1314, %v1836
    %v1965 = vsub.f32 %v1317, %v1836
    %v1966 = vsub.f32 %v1322, %v1836
    %v1967 = vsub.f32 %v1325, %v1836
    %v1968 = vsub.f32 %v1330, %v1836
    %v1969 = vsub.f32 %v1333, %v1836
    %v1970 = vsub.f32 %v1338, %v1836
    %v1971 = vsub.f32 %v1341, %v1836
    %v1972 = vsub.f32 %v1346, %v1836
    %v1973 = vsub.f32 %v1349, %v1836
    %v1974 = vsub.f32 %v1354, %v1836
    %v1975 = vsub.f32 %v1357, %v1836
    %v1976 = vsub.f32 %v1362, %v1836
    %v1977 = vsub.f32 %v1365, %v1836
    %v1978 = vsub.f32 %v1370, %v1836
    %v1979 = vsub.f32 %v1373, %v1836
    %v1980 = vsub.f32 %v1378, %v1836
    %v1981 = vsub.f32 %v1381, %v1836
    %v1982 = vsub.f32 %v1386, %v1836
    %v1983 = vsub.f32 %v1389, %v1836
    %v1984 = vadd.f32 %v1839, 1e-05
    %v1985 = vrsqrt.pop %v1984
    %v1986 = vmul.f32 %v1840, %v1985
    %v1987 = vmul.f32 %v1841, %v1985
    %v1988 = vmul.f32 %v1842, %v1985
    %v1989 = vmul.f32 %v1843, %v1985
    %v1990 = vmul.f32 %v1844, %v1985
    %v1991 = vmul.f32 %v1845, %v1985
    %v1992 = vmul.f32 %v1846, %v1985
    %v1993 = vmul.f32 %v1847, %v1985
    %v1994 = vmul.f32 %v1848, %v1985
    %v1995 = vmul.f32 %v1849, %v1985
    %v1996 = vmul.f32 %v1850, %v1985
    %v1997 = vmul.f32 %v1851, %v1985
    %v1998 = vmul.f32 %v1852, %v1985
    %v1999 = vmul.f32 %v1853, %v1985
    %v2000 = vmul.f32 %v1854, %v1985
    %v2001 = vmul.f32 %v1855, %v1985
    %v2002 = vmul.f32 %v1856, %v1985
    %v2003 = vmul.f32 %v1857, %v1985
    %v2004 = vmul.f32 %v1858, %v1985
    %v2005 = vmul.f32 %v1859, %v1985
    %v2006 = vmul.f32 %v1860, %v1985
    %v2007 = vmul.f32 %v1861, %v1985
    %v2008 = vmul.f32 %v1862, %v1985
    %v2009 = vmul.f32 %v1863, %v1985
    %v2010 = vmul.f32 %v1864, %v1985
    %v2011 = vmul.f32 %v1865, %v1985
    %v2012 = vmul.f32 %v1866, %v1985
    %v2013 = vmul.f32 %v1867, %v1985
    %v2014 = vmul.f32 %v1868, %v1985
    %v2015 = vmul.f32 %v1869, %v1985
    %v2016 = vmul.f32 %v1870, %v1985
    %v2017 = vmul.f32 %v1871, %v1985
    %v2018 = vmul.f32 %v1872, %v1985
    %v2019 = vmul.f32 %v1873, %v1985
    %v2020 = vmul.f32 %v1874, %v1985
    %v2021 = vmul.f32 %v1875, %v1985
    %v2022 = vmul.f32 %v1876, %v1985
    %v2023 = vmul.f32 %v1877, %v1985
    %v2024 = vmul.f32 %v1878, %v1985
    %v2025 = vmul.f32 %v1879, %v1985
    %v2026 = vmul.f32 %v1880, %v1985
    %v2027 = vmul.f32 %v1881, %v1985
    %v2028 = vmul.f32 %v1882, %v1985
    %v2029 = vmul.f32 %v1883, %v1985
    %v2030 = vmul.f32 %v1884, %v1985
    %v2031 = vmul.f32 %v1885, %v1985
    %v2032 = vmul.f32 %v1886, %v1985
    %v2033 = vmul.f32 %v1887, %v1985
    %v2034 = vmul.f32 %v1888, %v1985
    %v2035 = vmul.f32 %v1889, %v1985
    %v2036 = vmul.f32 %v1890, %v1985
    %v2037 = vmul.f32 %v1891, %v1985
    %v2038 = vmul.f32 %v1892, %v1985
    %v2039 = vmul.f32 %v1893, %v1985
    %v2040 = vmul.f32 %v1894, %v1985
    %v2041 = vmul.f32 %v1895, %v1985
    %v2042 = vmul.f32 %v1896, %v1985
    %v2043 = vmul.f32 %v1897, %v1985
    %v2044 = vmul.f32 %v1898, %v1985
    %v2045 = vmul.f32 %v1899, %v1985
    %v2046 = vmul.f32 %v1900, %v1985
    %v2047 = vmul.f32 %v1901, %v1985
    %v2048 = vmul.f32 %v1902, %v1985
    %v2049 = vmul.f32 %v1903, %v1985
    %v2050 = vmul.f32 %v1904, %v1985
    %v2051 = vmul.f32 %v1905, %v1985
    %v2052 = vmul.f32 %v1906, %v1985
    %v2053 = vmul.f32 %v1907, %v1985
    %v2054 = vmul.f32 %v1908, %v1985
    %v2055 = vmul.f32 %v1909, %v1985
    %v2056 = vmul.f32 %v1910, %v1985
    %v2057 = vmul.f32 %v1911, %v1985
    %v2058 = vmul.f32 %v1912, %v1985
    %v2059 = vmul.f32 %v1913, %v1985
    %v2060 = vmul.f32 %v1914, %v1985
    %v2061 = vmul.f32 %v1915, %v1985
    %v2062 = vmul.f32 %v1916, %v1985
    %v2063 = vmul.f32 %v1917, %v1985
    %v2064 = vmul.f32 %v1918, %v1985
    %v2065 = vmul.f32 %v1919, %v1985
    %v2066 = vmul.f32 %v1920, %v1985
    %v2067 = vmul.f32 %v1921, %v1985
    %v2068 = vmul.f32 %v1922, %v1985
    %v2069 = vmul.f32 %v1923, %v1985
    %v2070 = vmul.f32 %v1924, %v1985
    %v2071 = vmul.f32 %v1925, %v1985
    %v2072 = vmul.f32 %v1926, %v1985
    %v2073 = vmul.f32 %v1927, %v1985
    %v2074 = vmul.f32 %v1928, %v1985
    %v2075 = vmul.f32 %v1929, %v1985
    %v2076 = vmul.f32 %v1930, %v1985
    %v2077 = vmul.f32 %v1931, %v1985
    %v2078 = vmul.f32 %v1932, %v1985
    %v2079 = vmul.f32 %v1933, %v1985
    %v2080 = vmul.f32 %v1934, %v1985
    %v2081 = vmul.f32 %v1935, %v1985
    %v2082 = vmul.f32 %v1936, %v1985
    %v2083 = vmul.f32 %v1937, %v1985
    %v2084 = vmul.f32 %v1938, %v1985
    %v2085 = vmul.f32 %v1939, %v1985
    %v2086 = vmul.f32 %v1940, %v1985
    %v2087 = vmul.f32 %v1941, %v1985
    %v2088 = vmul.f32 %v1942, %v1985
    %v2089 = vmul.f32 %v1943, %v1985
    %v2090 = vmul.f32 %v1944, %v1985
    %v2091 = vmul.f32 %v1945, %v1985
    %v2092 = vmul.f32 %v1946, %v1985
    %v2093 = vmul.f32 %v1947, %v1985
    %v2094 = vmul.f32 %v1948, %v1985
    %v2095 = vmul.f32 %v1949, %v1985
    %v2096 = vmul.f32 %v1950, %v1985
    %v2097 = vmul.f32 %v1951, %v1985
    %v2098 = vmul.f32 %v1952, %v1985
    %v2099 = vmul.f32 %v1953, %v1985
    %v2100 = vmul.f32 %v1954, %v1985
    %v2101 = vmul.f32 %v1955, %v1985
    %v2102 = vmul.f32 %v1956, %v1985
    %v2103 = vmul.f32 %v1957, %v1985
    %v2104 = vmul.f32 %v1958, %v1985
    %v2105 = vmul.f32 %v1959, %v1985
    %v2106 = vmul.f32 %v1960, %v1985
    %v2107 = vmul.f32 %v1961, %v1985
    %v2108 = vmul.f32 %v1962, %v1985
    %v2109 = vmul.f32 %v1963, %v1985
    %v2110 = vmul.f32 %v1964, %v1985
    %v2111 = vmul.f32 %v1965, %v1985
    %v2112 = vmul.f32 %v1966, %v1985
    %v2113 = vmul.f32 %v1967, %v1985
    %v2114 = vmul.f32 %v1968, %v1985
    %v2115 = vmul.f32 %v1969, %v1985
    %v2116 = vmul.f32 %v1970, %v1985
    %v2117 = vmul.f32 %v1971, %v1985
    %v2118 = vmul.f32 %v1972, %v1985
    %v2119 = vmul.f32 %v1973, %v1985
    %v2120 = vmul.f32 %v1974, %v1985
    %v2121 = vmul.f32 %v1975, %v1985
    %v2122 = vmul.f32 %v1976, %v1985
    %v2123 = vmul.f32 %v1977, %v1985
    %v2124 = vmul.f32 %v1978, %v1985
    %v2125 = vmul.f32 %v1979, %v1985
    %v2126 = vmul.f32 %v1980, %v1985
    %v2127 = vmul.f32 %v1981, %v1985
    %v2128 = vmul.f32 %v1982, %v1985
    %v2129 = vmul.f32 %v1983, %v1985
    %v2131 = vlaneseq
    %v2132 = vshrl.u32 %v2131, 7
    %v2133 = vsub.s32 0, %v2132
    %v2134 = vrot.slane %v1392, %v2133
    %v2136 = vmul.f32 %v1986, %v2134
    %v2137 = vmul.f32 %v1987, %v2134
    %v2138 = vmul.f32 %v1988, %v2134
    %v2139 = vmul.f32 %v1989, %v2134
    %v2140 = vmul.f32 %v1990, %v2134
    %v2141 = vmul.f32 %v1991, %v2134
    %v2142 = vmul.f32 %v1992, %v2134
    %v2143 = vmul.f32 %v1993, %v2134
    %v2144 = vmul.f32 %v1994, %v2134
    %v2145 = vmul.f32 %v1995, %v2134
    %v2146 = vmul.f32 %v1996, %v2134
    %v2147 = vmul.f32 %v1997, %v2134
    %v2148 = vmul.f32 %v1998, %v2134
    %v2149 = vmul.f32 %v1999, %v2134
    %v2150 = vmul.f32 %v2000, %v2134
    %v2151 = vmul.f32 %v2001, %v2134
    %v2152 = vmul.f32 %v2002, %v2134
    %v2153 = vmul.f32 %v2003, %v2134
    %v2154 = vmul.f32 %v2004, %v2134
    %v2155 = vmul.f32 %v2005, %v2134
    %v2156 = vmul.f32 %v2006, %v2134
    %v2157 = vmul.f32 %v2007, %v2134
    %v2158 = vmul.f32 %v2008, %v2134
    %v2159 = vmul.f32 %v2009, %v2134
    %v2160 = vmul.f32 %v2010, %v2134
    %v2161 = vmul.f32 %v2011, %v2134
    %v2162 = vmul.f32 %v2012, %v2134
    %v2163 = vmul.f32 %v2013, %v2134
    %v2164 = vmul.f32 %v2014, %v2134
    %v2165 = vmul.f32 %v2015, %v2134
    %v2166 = vmul.f32 %v2016, %v2134
    %v2167 = vmul.f32 %v2017, %v2134
    %v2168 = vmul.f32 %v2018, %v2134
    %v2169 = vmul.f32 %v2019, %v2134
    %v2170 = vmul.f32 %v2020, %v2134
    %v2171 = vmul.f32 %v2021, %v2134
    %v2172 = vmul.f32 %v2022, %v2134
    %v2173 = vmul.f32 %v2023, %v2134
    %v2174 = vmul.f32 %v2024, %v2134
    %v2175 = vmul.f32 %v2025, %v2134
    %v2176 = vmul.f32 %v2026, %v2134
    %v2177 = vmul.f32 %v2027, %v2134
    %v2178 = vmul.f32 %v2028, %v2134
    %v2179 = vmul.f32 %v2029, %v2134
    %v2180 = vmul.f32 %v2030, %v2134
    %v2181 = vmul.f32 %v2031, %v2134
    %v2182 = vmul.f32 %v2032, %v2134
    %v2183 = vmul.f32 %v2033, %v2134
    %v2184 = vmul.f32 %v2034, %v2134
    %v2185 = vmul.f32 %v2035, %v2134
    %v2186 = vmul.f32 %v2036, %v2134
    %v2187 = vmul.f32 %v2037, %v2134
    %v2188 = vmul.f32 %v2038, %v2134
    %v2189 = vmul.f32 %v2039, %v2134
    %v2190 = vmul.f32 %v2040, %v2134
    %v2191 = vmul.f32 %v2041, %v2134
    %v2192 = vmul.f32 %v2042, %v2134
    %v2193 = vmul.f32 %v2043, %v2134
    %v2194 = vmul.f32 %v2044, %v2134
    %v2195 = vmul.f32 %v2045, %v2134
    %v2196 = vmul.f32 %v2046, %v2134
    %v2197 = vmul.f32 %v2047, %v2134
    %v2198 = vmul.f32 %v2048, %v2134
    %v2199 = vmul.f32 %v2049, %v2134
    %v2200 = vmul.f32 %v2050, %v2134
    %v2201 = vmul.f32 %v2051, %v2134
    %v2202 = vmul.f32 %v2052, %v2134
    %v2203 = vmul.f32 %v2053, %v2134
    %v2204 = vmul.f32 %v2054, %v2134
    %v2205 = vmul.f32 %v2055, %v2134
    %v2206 = vmul.f32 %v2056, %v2134
    %v2207 = vmul.f32 %v2057, %v2134
    %v2208 = vmul.f32 %v2058, %v2134
    %v2209 = vmul.f32 %v2059, %v2134
    %v2210 = vmul.f32 %v2060, %v2134
    %v2211 = vmul.f32 %v2061, %v2134
    %v2212 = vmul.f32 %v2062, %v2134
    %v2213 = vmul.f32 %v2063, %v2134
    %v2214 = vmul.f32 %v2064, %v2134
    %v2215 = vmul.f32 %v2065, %v2134
    %v2216 = vmul.f32 %v2066, %v2134
    %v2217 = vmul.f32 %v2067, %v2134
    %v2218 = vmul.f32 %v2068, %v2134
    %v2219 = vmul.f32 %v2069, %v2134
    %v2220 = vmul.f32 %v2070, %v2134
    %v2221 = vmul.f32 %v2071, %v2134
    %v2222 = vmul.f32 %v2072, %v2134
    %v2223 = vmul.f32 %v2073, %v2134
    %v2224 = vmul.f32 %v2074, %v2134
    %v2225 = vmul.f32 %v2075, %v2134
    %v2226 = vmul.f32 %v2076, %v2134
    %v2227 = vmul.f32 %v2077, %v2134
    %v2228 = vmul.f32 %v2078, %v2134
    %v2229 = vmul.f32 %v2079, %v2134
    %v2230 = vmul.f32 %v2080, %v2134
    %v2231 = vmul.f32 %v2081, %v2134
    %v2232 = vmul.f32 %v2082, %v2134
    %v2233 = vmul.f32 %v2083, %v2134
    %v2234 = vmul.f32 %v2084, %v2134
    %v2235 = vmul.f32 %v2085, %v2134
    %v2236 = vmul.f32 %v2086, %v2134
    %v2237 = vmul.f32 %v2087, %v2134
    %v2238 = vmul.f32 %v2088, %v2134
    %v2239 = vmul.f32 %v2089, %v2134
    %v2240 = vmul.f32 %v2090, %v2134
    %v2241 = vmul.f32 %v2091, %v2134
    %v2242 = vmul.f32 %v2092, %v2134
    %v2243 = vmul.f32 %v2093, %v2134
    %v2244 = vmul.f32 %v2094, %v2134
    %v2245 = vmul.f32 %v2095, %v2134
    %v2246 = vmul.f32 %v2096, %v2134
    %v2247 = vmul.f32 %v2097, %v2134
    %v2248 = vmul.f32 %v2098, %v2134
    %v2249 = vmul.f32 %v2099, %v2134
    %v2250 = vmul.f32 %v2100, %v2134
    %v2251 = vmul.f32 %v2101, %v2134
    %v2252 = vmul.f32 %v2102, %v2134
    %v2253 = vmul.f32 %v2103, %v2134
    %v2254 = vmul.f32 %v2104, %v2134
    %v2255 = vmul.f32 %v2105, %v2134
    %v2256 = vmul.f32 %v2106, %v2134
    %v2257 = vmul.f32 %v2107, %v2134
    %v2258 = vmul.f32 %v2108, %v2134
    %v2259 = vmul.f32 %v2109, %v2134
    %v2260 = vmul.f32 %v2110, %v2134
    %v2261 = vmul.f32 %v2111, %v2134
    %v2262 = vmul.f32 %v2112, %v2134
    %v2263 = vmul.f32 %v2113, %v2134
    %v2264 = vmul.f32 %v2114, %v2134
    %v2265 = vmul.f32 %v2115, %v2134
    %v2266 = vmul.f32 %v2116, %v2134
    %v2267 = vmul.f32 %v2117, %v2134
    %v2268 = vmul.f32 %v2118, %v2134
    %v2269 = vmul.f32 %v2119, %v2134
    %v2270 = vmul.f32 %v2120, %v2134
    %v2271 = vmul.f32 %v2121, %v2134
    %v2272 = vmul.f32 %v2122, %v2134
    %v2273 = vmul.f32 %v2123, %v2134
    %v2274 = vmul.f32 %v2124, %v2134
    %v2275 = vmul.f32 %v2125, %v2134
    %v2276 = vmul.f32 %v2126, %v2134
    %v2277 = vmul.f32 %v2127, %v2134
    %v2278 = vmul.f32 %v2128, %v2134
    %v2279 = vmul.f32 %v2129, %v2134
    %v2281 = vlaneseq
    %v2282 = vshrl.u32 %v2281, 7
    %v2283 = vsub.s32 0, %v2282
    %v2284 = vrot.slane %v1393, %v2283
    %v2286 = vadd.f32 %v2136, %v2284
    %v2287 = vadd.f32 %v2137, %v2284
    %v2288 = vadd.f32 %v2138, %v2284
    %v2289 = vadd.f32 %v2139, %v2284
    %v2290 = vadd.f32 %v2140, %v2284
    %v2291 = vadd.f32 %v2141, %v2284
    %v2292 = vadd.f32 %v2142, %v2284
    %v2293 = vadd.f32 %v2143, %v2284
    %v2294 = vadd.f32 %v2144, %v2284
    %v2295 = vadd.f32 %v2145, %v2284
    %v2296 = vadd.f32 %v2146, %v2284
    %v2297 = vadd.f32 %v2147, %v2284
    %v2298 = vadd.f32 %v2148, %v2284
    %v2299 = vadd.f32 %v2149, %v2284
    %v2300 = vadd.f32 %v2150, %v2284
    %v2301 = vadd.f32 %v2151, %v2284
    %v2302 = vadd.f32 %v2152, %v2284
    %v2303 = vadd.f32 %v2153, %v2284
    %v2304 = vadd.f32 %v2154, %v2284
    %v2305 = vadd.f32 %v2155, %v2284
    %v2306 = vadd.f32 %v2156, %v2284
    %v2307 = vadd.f32 %v2157, %v2284
    %v2308 = vadd.f32 %v2158, %v2284
    %v2309 = vadd.f32 %v2159, %v2284
    %v2310 = vadd.f32 %v2160, %v2284
    %v2311 = vadd.f32 %v2161, %v2284
    %v2312 = vadd.f32 %v2162, %v2284
    %v2313 = vadd.f32 %v2163, %v2284
    %v2314 = vadd.f32 %v2164, %v2284
    %v2315 = vadd.f32 %v2165, %v2284
    %v2316 = vadd.f32 %v2166, %v2284
    %v2317 = vadd.f32 %v2167, %v2284
    %v2318 = vadd.f32 %v2168, %v2284
    %v2319 = vadd.f32 %v2169, %v2284
    %v2320 = vadd.f32 %v2170, %v2284
    %v2321 = vadd.f32 %v2171, %v2284
    %v2322 = vadd.f32 %v2172, %v2284
    %v2323 = vadd.f32 %v2173, %v2284
    %v2324 = vadd.f32 %v2174, %v2284
    %v2325 = vadd.f32 %v2175, %v2284
    %v2326 = vadd.f32 %v2176, %v2284
    %v2327 = vadd.f32 %v2177, %v2284
    %v2328 = vadd.f32 %v2178, %v2284
    %v2329 = vadd.f32 %v2179, %v2284
    %v2330 = vadd.f32 %v2180, %v2284
    %v2331 = vadd.f32 %v2181, %v2284
    %v2332 = vadd.f32 %v2182, %v2284
    %v2333 = vadd.f32 %v2183, %v2284
    %v2334 = vadd.f32 %v2184, %v2284
    %v2335 = vadd.f32 %v2185, %v2284
    %v2336 = vadd.f32 %v2186, %v2284
    %v2337 = vadd.f32 %v2187, %v2284
    %v2338 = vadd.f32 %v2188, %v2284
    %v2339 = vadd.f32 %v2189, %v2284
    %v2340 = vadd.f32 %v2190, %v2284
    %v2341 = vadd.f32 %v2191, %v2284
    %v2342 = vadd.f32 %v2192, %v2284
    %v2343 = vadd.f32 %v2193, %v2284
    %v2344 = vadd.f32 %v2194, %v2284
    %v2345 = vadd.f32 %v2195, %v2284
    %v2346 = vadd.f32 %v2196, %v2284
    %v2347 = vadd.f32 %v2197, %v2284
    %v2348 = vadd.f32 %v2198, %v2284
    %v2349 = vadd.f32 %v2199, %v2284
    %v2350 = vadd.f32 %v2200, %v2284
    %v2351 = vadd.f32 %v2201, %v2284
    %v2352 = vadd.f32 %v2202, %v2284
    %v2353 = vadd.f32 %v2203, %v2284
    %v2354 = vadd.f32 %v2204, %v2284
    %v2355 = vadd.f32 %v2205, %v2284
    %v2356 = vadd.f32 %v2206, %v2284
    %v2357 = vadd.f32 %v2207, %v2284
    %v2358 = vadd.f32 %v2208, %v2284
    %v2359 = vadd.f32 %v2209, %v2284
    %v2360 = vadd.f32 %v2210, %v2284
    %v2361 = vadd.f32 %v2211, %v2284
    %v2362 = vadd.f32 %v2212, %v2284
    %v2363 = vadd.f32 %v2213, %v2284
    %v2364 = vadd.f32 %v2214, %v2284
    %v2365 = vadd.f32 %v2215, %v2284
    %v2366 = vadd.f32 %v2216, %v2284
    %v2367 = vadd.f32 %v2217, %v2284
    %v2368 = vadd.f32 %v2218, %v2284
    %v2369 = vadd.f32 %v2219, %v2284
    %v2370 = vadd.f32 %v2220, %v2284
    %v2371 = vadd.f32 %v2221, %v2284
    %v2372 = vadd.f32 %v2222, %v2284
    %v2373 = vadd.f32 %v2223, %v2284
    %v2374 = vadd.f32 %v2224, %v2284
    %v2375 = vadd.f32 %v2225, %v2284
    %v2376 = vadd.f32 %v2226, %v2284
    %v2377 = vadd.f32 %v2227, %v2284
    %v2378 = vadd.f32 %v2228, %v2284
    %v2379 = vadd.f32 %v2229, %v2284
    %v2380 = vadd.f32 %v2230, %v2284
    %v2381 = vadd.f32 %v2231, %v2284
    %v2382 = vadd.f32 %v2232, %v2284
    %v2383 = vadd.f32 %v2233, %v2284
    %v2384 = vadd.f32 %v2234, %v2284
    %v2385 = vadd.f32 %v2235, %v2284
    %v2386 = vadd.f32 %v2236, %v2284
    %v2387 = vadd.f32 %v2237, %v2284
    %v2388 = vadd.f32 %v2238, %v2284
    %v2389 = vadd.f32 %v2239, %v2284
    %v2390 = vadd.f32 %v2240, %v2284
    %v2391 = vadd.f32 %v2241, %v2284
    %v2392 = vadd.f32 %v2242, %v2284
    %v2393 = vadd.f32 %v2243, %v2284
    %v2394 = vadd.f32 %v2244, %v2284
    %v2395 = vadd.f32 %v2245, %v2284
    %v2396 = vadd.f32 %v2246, %v2284
    %v2397 = vadd.f32 %v2247, %v2284
    %v2398 = vadd.f32 %v2248, %v2284
    %v2399 = vadd.f32 %v2249, %v2284
    %v2400 = vadd.f32 %v2250, %v2284
    %v2401 = vadd.f32 %v2251, %v2284
    %v2402 = vadd.f32 %v2252, %v2284
    %v2403 = vadd.f32 %v2253, %v2284
    %v2404 = vadd.f32 %v2254, %v2284
    %v2405 = vadd.f32 %v2255, %v2284
    %v2406 = vadd.f32 %v2256, %v2284
    %v2407 = vadd.f32 %v2257, %v2284
    %v2408 = vadd.f32 %v2258, %v2284
    %v2409 = vadd.f32 %v2259, %v2284
    %v2410 = vadd.f32 %v2260, %v2284
    %v2411 = vadd.f32 %v2261, %v2284
    %v2412 = vadd.f32 %v2262, %v2284
    %v2413 = vadd.f32 %v2263, %v2284
    %v2414 = vadd.f32 %v2264, %v2284
    %v2415 = vadd.f32 %v2265, %v2284
    %v2416 = vadd.f32 %v2266, %v2284
    %v2417 = vadd.f32 %v2267, %v2284
    %v2418 = vadd.f32 %v2268, %v2284
    %v2419 = vadd.f32 %v2269, %v2284
    %v2420 = vadd.f32 %v2270, %v2284
    %v2421 = vadd.f32 %v2271, %v2284
    %v2422 = vadd.f32 %v2272, %v2284
    %v2423 = vadd.f32 %v2273, %v2284
    %v2424 = vadd.f32 %v2274, %v2284
    %v2425 = vadd.f32 %v2275, %v2284
    %v2426 = vadd.f32 %v2276, %v2284
    %v2427 = vadd.f32 %v2277, %v2284
    %v2428 = vadd.f32 %v2278, %v2284
    %v2429 = vadd.f32 %v2279, %v2284
    %v2430 = vmax.f32 %v2286, 0.0
    %v2431 = vmax.f32 %v2287, 0.0
    %v2432 = vmax.f32 %v2288, 0.0
    %v2433 = vmax.f32 %v2289, 0.0
    %v2434 = vmax.f32 %v2290, 0.0
    %v2435 = vmax.f32 %v2291, 0.0
    %v2436 = vmax.f32 %v2292, 0.0
    %v2437 = vmax.f32 %v2293, 0.0
    %v2438 = vmax.f32 %v2294, 0.0
    %v2439 = vmax.f32 %v2295, 0.0
    %v2440 = vmax.f32 %v2296, 0.0
    %v2441 = vmax.f32 %v2297, 0.0
    %v2442 = vmax.f32 %v2298, 0.0
    %v2443 = vmax.f32 %v2299, 0.0
    %v2444 = vmax.f32 %v2300, 0.0
    %v2445 = vmax.f32 %v2301, 0.0
    %v2446 = vmax.f32 %v2302, 0.0
    %v2447 = vmax.f32 %v2303, 0.0
    %v2448 = vmax.f32 %v2304, 0.0
    %v2449 = vmax.f32 %v2305, 0.0
    %v2450 = vmax.f32 %v2306, 0.0
    %v2451 = vmax.f32 %v2307, 0.0
    %v2452 = vmax.f32 %v2308, 0.0
    %v2453 = vmax.f32 %v2309, 0.0
    %v2454 = vmax.f32 %v2310, 0.0
    %v2455 = vmax.f32 %v2311, 0.0
    %v2456 = vmax.f32 %v2312, 0.0
    %v2457 = vmax.f32 %v2313, 0.0
    %v2458 = vmax.f32 %v2314, 0.0
    %v2459 = vmax.f32 %v2315, 0.0
    %v2460 = vmax.f32 %v2316, 0.0
    %v2461 = vmax.f32 %v2317, 0.0
    %v2462 = vmax.f32 %v2318, 0.0
    %v2463 = vmax.f32 %v2319, 0.0
    %v2464 = vmax.f32 %v2320, 0.0
    %v2465 = vmax.f32 %v2321, 0.0
    %v2466 = vmax.f32 %v2322, 0.0
    %v2467 = vmax.f32 %v2323, 0.0
    %v2468 = vmax.f32 %v2324, 0.0
    %v2469 = vmax.f32 %v2325, 0.0
    %v2470 = vmax.f32 %v2326, 0.0
    %v2471 = vmax.f32 %v2327, 0.0
    %v2472 = vmax.f32 %v2328, 0.0
    %v2473 = vmax.f32 %v2329, 0.0
    %v2474 = vmax.f32 %v2330, 0.0
    %v2475 = vmax.f32 %v2331, 0.0
    %v2476 = vmax.f32 %v2332, 0.0
    %v2477 = vmax.f32 %v2333, 0.0
    %v2478 = vmax.f32 %v2334, 0.0
    %v2479 = vmax.f32 %v2335, 0.0
    %v2480 = vmax.f32 %v2336, 0.0
    %v2481 = vmax.f32 %v2337, 0.0
    %v2482 = vmax.f32 %v2338, 0.0
    %v2483 = vmax.f32 %v2339, 0.0
    %v2484 = vmax.f32 %v2340, 0.0
    %v2485 = vmax.f32 %v2341, 0.0
    %v2486 = vmax.f32 %v2342, 0.0
    %v2487 = vmax.f32 %v2343, 0.0
    %v2488 = vmax.f32 %v2344, 0.0
    %v2489 = vmax.f32 %v2345, 0.0
    %v2490 = vmax.f32 %v2346, 0.0
    %v2491 = vmax.f32 %v2347, 0.0
    %v2492 = vmax.f32 %v2348, 0.0
    %v2493 = vmax.f32 %v2349, 0.0
    %v2494 = vmax.f32 %v2350, 0.0
    %v2495 = vmax.f32 %v2351, 0.0
    %v2496 = vmax.f32 %v2352, 0.0
    %v2497 = vmax.f32 %v2353, 0.0
    %v2498 = vmax.f32 %v2354, 0.0
    %v2499 = vmax.f32 %v2355, 0.0
    %v2500 = vmax.f32 %v2356, 0.0
    %v2501 = vmax.f32 %v2357, 0.0
    %v2502 = vmax.f32 %v2358, 0.0
    %v2503 = vmax.f32 %v2359, 0.0
    %v2504 = vmax.f32 %v2360, 0.0
    %v2505 = vmax.f32 %v2361, 0.0
    %v2506 = vmax.f32 %v2362, 0.0
    %v2507 = vmax.f32 %v2363, 0.0
    %v2508 = vmax.f32 %v2364, 0.0
    %v2509 = vmax.f32 %v2365, 0.0
    %v2510 = vmax.f32 %v2366, 0.0
    %v2511 = vmax.f32 %v2367, 0.0
    %v2512 = vmax.f32 %v2368, 0.0
    %v2513 = vmax.f32 %v2369, 0.0
    %v2514 = vmax.f32 %v2370, 0.0
    %v2515 = vmax.f32 %v2371, 0.0
    %v2516 = vmax.f32 %v2372, 0.0
    %v2517 = vmax.f32 %v2373, 0.0
    %v2518 = vmax.f32 %v2374, 0.0
    %v2519 = vmax.f32 %v2375, 0.0
    %v2520 = vmax.f32 %v2376, 0.0
    %v2521 = vmax.f32 %v2377, 0.0
    %v2522 = vmax.f32 %v2378, 0.0
    %v2523 = vmax.f32 %v2379, 0.0
    %v2524 = vmax.f32 %v2380, 0.0
    %v2525 = vmax.f32 %v2381, 0.0
    %v2526 = vmax.f32 %v2382, 0.0
    %v2527 = vmax.f32 %v2383, 0.0
    %v2528 = vmax.f32 %v2384, 0.0
    %v2529 = vmax.f32 %v2385, 0.0
    %v2530 = vmax.f32 %v2386, 0.0
    %v2531 = vmax.f32 %v2387, 0.0
    %v2532 = vmax.f32 %v2388, 0.0
    %v2533 = vmax.f32 %v2389, 0.0
    %v2534 = vmax.f32 %v2390, 0.0
    %v2535 = vmax.f32 %v2391, 0.0
    %v2536 = vmax.f32 %v2392, 0.0
    %v2537 = vmax.f32 %v2393, 0.0
    %v2538 = vmax.f32 %v2394, 0.0
    %v2539 = vmax.f32 %v2395, 0.0
    %v2540 = vmax.f32 %v2396, 0.0
    %v2541 = vmax.f32 %v2397, 0.0
    %v2542 = vmax.f32 %v2398, 0.0
    %v2543 = vmax.f32 %v2399, 0.0
    %v2544 = vmax.f32 %v2400, 0.0
    %v2545 = vmax.f32 %v2401, 0.0
    %v2546 = vmax.f32 %v2402, 0.0
    %v2547 = vmax.f32 %v2403, 0.0
    %v2548 = vmax.f32 %v2404, 0.0
    %v2549 = vmax.f32 %v2405, 0.0
    %v2550 = vmax.f32 %v2406, 0.0
    %v2551 = vmax.f32 %v2407, 0.0
    %v2552 = vmax.f32 %v2408, 0.0
    %v2553 = vmax.f32 %v2409, 0.0
    %v2554 = vmax.f32 %v2410, 0.0
    %v2555 = vmax.f32 %v2411, 0.0
    %v2556 = vmax.f32 %v2412, 0.0
    %v2557 = vmax.f32 %v2413, 0.0
    %v2558 = vmax.f32 %v2414, 0.0
    %v2559 = vmax.f32 %v2415, 0.0
    %v2560 = vmax.f32 %v2416, 0.0
    %v2561 = vmax.f32 %v2417, 0.0
    %v2562 = vmax.f32 %v2418, 0.0
    %v2563 = vmax.f32 %v2419, 0.0
    %v2564 = vmax.f32 %v2420, 0.0
    %v2565 = vmax.f32 %v2421, 0.0
    %v2566 = vmax.f32 %v2422, 0.0
    %v2567 = vmax.f32 %v2423, 0.0
    %v2568 = vmax.f32 %v2424, 0.0
    %v2569 = vmax.f32 %v2425, 0.0
    %v2570 = vmax.f32 %v2426, 0.0
    %v2571 = vmax.f32 %v2427, 0.0
    %v2572 = vmax.f32 %v2428, 0.0
    %v2573 = vmax.f32 %v2429, 0.0
    %v2574 = vmax.f32 %v2430, %v2433
    %v2575 = vmax.f32 %v2431, %v2434
    %v2576 = vmax.f32 %v2432, %v2435
    %v2577 = vmax.f32 %v2436, %v2439
    %v2578 = vmax.f32 %v2437, %v2440
    %v2579 = vmax.f32 %v2438, %v2441
    %v2580 = vmax.f32 %v2442, %v2445
    %v2581 = vmax.f32 %v2443, %v2446
    %v2582 = vmax.f32 %v2444, %v2447
    %v2583 = vmax.f32 %v2448, %v2451
    %v2584 = vmax.f32 %v2449, %v2452
    %v2585 = vmax.f32 %v2450, %v2453
    %v2586 = vmax.f32 %v2454, %v2457
    %v2587 = vmax.f32 %v2455, %v2458
    %v2588 = vmax.f32 %v2456, %v2459
    %v2589 = vmax.f32 %v2460, %v2463
    %v2590 = vmax.f32 %v2461, %v2464
    %v2591 = vmax.f32 %v2462, %v2465
    %v2592 = vmax.f32 %v2466, %v2469
    %v2593 = vmax.f32 %v2467, %v2470
    %v2594 = vmax.f32 %v2468, %v2471
    %v2595 = vmax.f32 %v2472, %v2475
    %v2596 = vmax.f32 %v2473, %v2476
    %v2597 = vmax.f32 %v2474, %v2477
    %v2598 = vmax.f32 %v2478, %v2481
    %v2599 = vmax.f32 %v2479, %v2482
    %v2600 = vmax.f32 %v2480, %v2483
    %v2601 = vmax.f32 %v2484, %v2487
    %v2602 = vmax.f32 %v2485, %v2488
    %v2603 = vmax.f32 %v2486, %v2489
    %v2604 = vmax.f32 %v2490, %v2493
    %v2605 = vmax.f32 %v2491, %v2494
    %v2606 = vmax.f32 %v2492, %v2495
    %v2607 = vmax.f32 %v2496, %v2499
    %v2608 = vmax.f32 %v2497, %v2500
    %v2609 = vmax.f32 %v2498, %v2501
    %v2610 = vmax.f32 %v2502, %v2505
    %v2611 = vmax.f32 %v2503, %v2506
    %v2612 = vmax.f32 %v2504, %v2507
    %v2613 = vmax.f32 %v2508, %v2511
    %v2614 = vmax.f32 %v2509, %v2512
    %v2615 = vmax.f32 %v2510, %v2513
    %v2616 = vmax.f32 %v2514, %v2517
    %v2617 = vmax.f32 %v2515, %v2518
    %v2618 = vmax.f32 %v2516, %v2519
    %v2619 = vmax.f32 %v2520, %v2523
    %v2620 = vmax.f32 %v2521, %v2524
    %v2621 = vmax.f32 %v2522, %v2525
    %v2622 = vmax.f32 %v2526, %v2529
    %v2623 = vmax.f32 %v2527, %v2530
    %v2624 = vmax.f32 %v2528, %v2531
    %v2625 = vmax.f32 %v2532, %v2535
    %v2626 = vmax.f32 %v2533, %v2536
    %v2627 = vmax.f32 %v2534, %v2537
    %v2628 = vmax.f32 %v2538, %v2541
    %v2629 = vmax.f32 %v2539, %v2542
    %v2630 = vmax.f32 %v2540, %v2543
    %v2631 = vmax.f32 %v2544, %v2547
    %v2632 = vmax.f32 %v2545, %v2548
    %v2633 = vmax.f32 %v2546, %v2549
    %v2634 = vmax.f32 %v2550, %v2553
    %v2635 = vmax.f32 %v2551, %v2554
    %v2636 = vmax.f32 %v2552, %v2555
    %v2637 = vmax.f32 %v2556, %v2559
    %v2638 = vmax.f32 %v2557, %v2560
    %v2639 = vmax.f32 %v2558, %v2561
    %v2640 = vmax.f32 %v2562, %v2565
    %v2641 = vmax.f32 %v2563, %v2566
    %v2642 = vmax.f32 %v2564, %v2567
    %v2643 = vmax.f32 %v2568, %v2571
    %v2644 = vmax.f32 %v2569, %v2572
    %v2645 = vmax.f32 %v2570, %v2573
    %v2718 = vcombine.high %v2574, %v2574
    %v2720 = vunpack.c.l.s4 1983009808
    %v2721 = vunpack.c.0.s8 %v2720
    %v2722 = vlaneseq
    %v2723 = vshrl.u32 %v2722, 7
    %v2724 = vsub.s32 %v2721, %v2723
    %v2725 = vrot.slane %v2574, %v2724
    %v2727 = vunpack.c.l.s4 1983009808
    %v2728 = vunpack.c.0.s8 %v2727
    %v2729 = vlaneseq
    %v2730 = vshrl.u32 %v2729, 7
    %v2731 = vsub.s32 %v2728, %v2730
    %v2732 = vrot.slane %v2718, %v2731
    %v2733 = vcombine.high %v2725, %v2725
    %v2734 = vcombine.high %v2732, %v2732
    %v2735 = vcombine.high %v2575, %v2575
    %v2737 = vunpack.c.l.s4 1983009808
    %v2738 = vunpack.c.0.s8 %v2737
    %v2739 = vlaneseq
    %v2740 = vshrl.u32 %v2739, 7
    %v2741 = vsub.s32 %v2738, %v2740
    %v2742 = vrot.slane %v2575, %v2741
    %v2744 = vunpack.c.l.s4 1983009808
    %v2745 = vunpack.c.0.s8 %v2744
    %v2746 = vlaneseq
    %v2747 = vshrl.u32 %v2746, 7
    %v2748 = vsub.s32 %v2745, %v2747
    %v2749 = vrot.slane %v2735, %v2748
    %v2750 = vcombine.high %v2742, %v2742
    %v2751 = vcombine.high %v2749, %v2749
    %v2752 = vcombine.high %v2576, %v2576
    %v2754 = vunpack.c.l.s4 1983009808
    %v2755 = vunpack.c.0.s8 %v2754
    %v2756 = vlaneseq
    %v2757 = vshrl.u32 %v2756, 7
    %v2758 = vsub.s32 %v2755, %v2757
    %v2759 = vrot.slane %v2576, %v2758
    %v2761 = vunpack.c.l.s4 1983009808
    %v2762 = vunpack.c.0.s8 %v2761
    %v2763 = vlaneseq
    %v2764 = vshrl.u32 %v2763, 7
    %v2765 = vsub.s32 %v2762, %v2764
    %v2766 = vrot.slane %v2752, %v2765
    %v2767 = vcombine.high %v2759, %v2759
    %v2768 = vcombine.high %v2766, %v2766
    %v2769 = vcombine.high %v2577, %v2577
    %v2771 = vunpack.c.l.s4 1983009808
    %v2772 = vunpack.c.0.s8 %v2771
    %v2773 = vlaneseq
    %v2774 = vshrl.u32 %v2773, 7
    %v2775 = vsub.s32 %v2772, %v2774
    %v2776 = vrot.slane %v2577, %v2775
    %v2778 = vunpack.c.l.s4 1983009808
    %v2779 = vunpack.c.0.s8 %v2778
    %v2780 = vlaneseq
    %v2781 = vshrl.u32 %v2780, 7
    %v2782 = vsub.s32 %v2779, %v2781
    %v2783 = vrot.slane %v2769, %v2782
    %v2784 = vcombine.high %v2776, %v2776
    %v2785 = vcombine.high %v2783, %v2783
    %v2786 = vcombine.high %v2578, %v2578
    %v2788 = vunpack.c.l.s4 1983009808
    %v2789 = vunpack.c.0.s8 %v2788
    %v2790 = vlaneseq
    %v2791 = vshrl.u32 %v2790, 7
    %v2792 = vsub.s32 %v2789, %v2791
    %v2793 = vrot.slane %v2578, %v2792
    %v2795 = vunpack.c.l.s4 1983009808
    %v2796 = vunpack.c.0.s8 %v2795
    %v2797 = vlaneseq
    %v2798 = vshrl.u32 %v2797, 7
    %v2799 = vsub.s32 %v2796, %v2798
    %v2800 = vrot.slane %v2786, %v2799
    %v2801 = vcombine.high %v2793, %v2793
    %v2802 = vcombine.high %v2800, %v2800
    %v2803 = vcombine.high %v2579, %v2579
    %v2805 = vunpack.c.l.s4 1983009808
    %v2806 = vunpack.c.0.s8 %v2805
    %v2807 = vlaneseq
    %v2808 = vshrl.u32 %v2807, 7
    %v2809 = vsub.s32 %v2806, %v2808
    %v2810 = vrot.slane %v2579, %v2809
    %v2812 = vunpack.c.l.s4 1983009808
    %v2813 = vunpack.c.0.s8 %v2812
    %v2814 = vlaneseq
    %v2815 = vshrl.u32 %v2814, 7
    %v2816 = vsub.s32 %v2813, %v2815
    %v2817 = vrot.slane %v2803, %v2816
    %v2818 = vcombine.high %v2810, %v2810
    %v2819 = vcombine.high %v2817, %v2817
    %v2820 = vcombine.high %v2580, %v2580
    %v2822 = vunpack.c.l.s4 1983009808
    %v2823 = vunpack.c.0.s8 %v2822
    %v2824 = vlaneseq
    %v2825 = vshrl.u32 %v2824, 7
    %v2826 = vsub.s32 %v2823, %v2825
    %v2827 = vrot.slane %v2580, %v2826
    %v2829 = vunpack.c.l.s4 1983009808
    %v2830 = vunpack.c.0.s8 %v2829
    %v2831 = vlaneseq
    %v2832 = vshrl.u32 %v2831, 7
    %v2833 = vsub.s32 %v2830, %v2832
    %v2834 = vrot.slane %v2820, %v2833
    %v2835 = vcombine.high %v2827, %v2827
    %v2836 = vcombine.high %v2834, %v2834
    %v2837 = vcombine.high %v2581, %v2581
    %v2839 = vunpack.c.l.s4 1983009808
    %v2840 = vunpack.c.0.s8 %v2839
    %v2841 = vlaneseq
    %v2842 = vshrl.u32 %v2841, 7
    %v2843 = vsub.s32 %v2840, %v2842
    %v2844 = vrot.slane %v2581, %v2843
    %v2846 = vunpack.c.l.s4 1983009808
    %v2847 = vunpack.c.0.s8 %v2846
    %v2848 = vlaneseq
    %v2849 = vshrl.u32 %v2848, 7
    %v2850 = vsub.s32 %v2847, %v2849
    %v2851 = vrot.slane %v2837, %v2850
    %v2852 = vcombine.high %v2844, %v2844
    %v2853 = vcombine.high %v2851, %v2851
    %v2854 = vcombine.high %v2582, %v2582
    %v2856 = vunpack.c.l.s4 1983009808
    %v2857 = vunpack.c.0.s8 %v2856
    %v2858 = vlaneseq
    %v2859 = vshrl.u32 %v2858, 7
    %v2860 = vsub.s32 %v2857, %v2859
    %v2861 = vrot.slane %v2582, %v2860
    %v2863 = vunpack.c.l.s4 1983009808
    %v2864 = vunpack.c.0.s8 %v2863
    %v2865 = vlaneseq
    %v2866 = vshrl.u32 %v2865, 7
    %v2867 = vsub.s32 %v2864, %v2866
    %v2868 = vrot.slane %v2854, %v2867
    %v2869 = vcombine.high %v2861, %v2861
    %v2870 = vcombine.high %v2868, %v2868
    %v2871 = vcombine.high %v2583, %v2583
    %v2873 = vunpack.c.l.s4 1983009808
    %v2874 = vunpack.c.0.s8 %v2873
    %v2875 = vlaneseq
    %v2876 = vshrl.u32 %v2875, 7
    %v2877 = vsub.s32 %v2874, %v2876
    %v2878 = vrot.slane %v2583, %v2877
    %v2880 = vunpack.c.l.s4 1983009808
    %v2881 = vunpack.c.0.s8 %v2880
    %v2882 = vlaneseq
    %v2883 = vshrl.u32 %v2882, 7
    %v2884 = vsub.s32 %v2881, %v2883
    %v2885 = vrot.slane %v2871, %v2884
    %v2886 = vcombine.high %v2878, %v2878
    %v2887 = vcombine.high %v2885, %v2885
    %v2888 = vcombine.high %v2584, %v2584
    %v2890 = vunpack.c.l.s4 1983009808
    %v2891 = vunpack.c.0.s8 %v2890
    %v2892 = vlaneseq
    %v2893 = vshrl.u32 %v2892, 7
    %v2894 = vsub.s32 %v2891, %v2893
    %v2895 = vrot.slane %v2584, %v2894
    %v2897 = vunpack.c.l.s4 1983009808
    %v2898 = vunpack.c.0.s8 %v2897
    %v2899 = vlaneseq
    %v2900 = vshrl.u32 %v2899, 7
    %v2901 = vsub.s32 %v2898, %v2900
    %v2902 = vrot.slane %v2888, %v2901
    %v2903 = vcombine.high %v2895, %v2895
    %v2904 = vcombine.high %v2902, %v2902
    %v2905 = vcombine.high %v2585, %v2585
    %v2907 = vunpack.c.l.s4 1983009808
    %v2908 = vunpack.c.0.s8 %v2907
    %v2909 = vlaneseq
    %v2910 = vshrl.u32 %v2909, 7
    %v2911 = vsub.s32 %v2908, %v2910
    %v2912 = vrot.slane %v2585, %v2911
    %v2914 = vunpack.c.l.s4 1983009808
    %v2915 = vunpack.c.0.s8 %v2914
    %v2916 = vlaneseq
    %v2917 = vshrl.u32 %v2916, 7
    %v2918 = vsub.s32 %v2915, %v2917
    %v2919 = vrot.slane %v2905, %v2918
    %v2920 = vcombine.high %v2912, %v2912
    %v2921 = vcombine.high %v2919, %v2919
    %v2922 = vcombine.high %v2586, %v2586
    %v2924 = vunpack.c.l.s4 1983009808
    %v2925 = vunpack.c.0.s8 %v2924
    %v2926 = vlaneseq
    %v2927 = vshrl.u32 %v2926, 7
    %v2928 = vsub.s32 %v2925, %v2927
    %v2929 = vrot.slane %v2586, %v2928
    %v2931 = vunpack.c.l.s4 1983009808
    %v2932 = vunpack.c.0.s8 %v2931
    %v2933 = vlaneseq
    %v2934 = vshrl.u32 %v2933, 7
    %v2935 = vsub.s32 %v2932, %v2934
    %v2936 = vrot.slane %v2922, %v2935
    %v2937 = vcombine.high %v2929, %v2929
    %v2938 = vcombine.high %v2936, %v2936
    %v2939 = vcombine.high %v2587, %v2587
    %v2941 = vunpack.c.l.s4 1983009808
    %v2942 = vunpack.c.0.s8 %v2941
    %v2943 = vlaneseq
    %v2944 = vshrl.u32 %v2943, 7
    %v2945 = vsub.s32 %v2942, %v2944
    %v2946 = vrot.slane %v2587, %v2945
    %v2948 = vunpack.c.l.s4 1983009808
    %v2949 = vunpack.c.0.s8 %v2948
    %v2950 = vlaneseq
    %v2951 = vshrl.u32 %v2950, 7
    %v2952 = vsub.s32 %v2949, %v2951
    %v2953 = vrot.slane %v2939, %v2952
    %v2954 = vcombine.high %v2946, %v2946
    %v2955 = vcombine.high %v2953, %v2953
    %v2956 = vcombine.high %v2588, %v2588
    %v2958 = vunpack.c.l.s4 1983009808
    %v2959 = vunpack.c.0.s8 %v2958
    %v2960 = vlaneseq
    %v2961 = vshrl.u32 %v2960, 7
    %v2962 = vsub.s32 %v2959, %v2961
    %v2963 = vrot.slane %v2588, %v2962
    %v2965 = vunpack.c.l.s4 1983009808
    %v2966 = vunpack.c.0.s8 %v2965
    %v2967 = vlaneseq
    %v2968 = vshrl.u32 %v2967, 7
    %v2969 = vsub.s32 %v2966, %v2968
    %v2970 = vrot.slane %v2956, %v2969
    %v2971 = vcombine.high %v2963, %v2963
    %v2972 = vcombine.high %v2970, %v2970
    %v2973 = vcombine.high %v2589, %v2589
    %v2975 = vunpack.c.l.s4 1983009808
    %v2976 = vunpack.c.0.s8 %v2975
    %v2977 = vlaneseq
    %v2978 = vshrl.u32 %v2977, 7
    %v2979 = vsub.s32 %v2976, %v2978
    %v2980 = vrot.slane %v2589, %v2979
    %v2982 = vunpack.c.l.s4 1983009808
    %v2983 = vunpack.c.0.s8 %v2982
    %v2984 = vlaneseq
    %v2985 = vshrl.u32 %v2984, 7
    %v2986 = vsub.s32 %v2983, %v2985
    %v2987 = vrot.slane %v2973, %v2986
    %v2988 = vcombine.high %v2980, %v2980
    %v2989 = vcombine.high %v2987, %v2987
    %v2990 = vcombine.high %v2590, %v2590
    %v2992 = vunpack.c.l.s4 1983009808
    %v2993 = vunpack.c.0.s8 %v2992
    %v2994 = vlaneseq
    %v2995 = vshrl.u32 %v2994, 7
    %v2996 = vsub.s32 %v2993, %v2995
    %v2997 = vrot.slane %v2590, %v2996
    %v2999 = vunpack.c.l.s4 1983009808
    %v3000 = vunpack.c.0.s8 %v2999
    %v3001 = vlaneseq
    %v3002 = vshrl.u32 %v3001, 7
    %v3003 = vsub.s32 %v3000, %v3002
    %v3004 = vrot.slane %v2990, %v3003
    %v3005 = vcombine.high %v2997, %v2997
    %v3006 = vcombine.high %v3004, %v3004
    %v3007 = vcombine.high %v2591, %v2591
    %v3009 = vunpack.c.l.s4 1983009808
    %v3010 = vunpack.c.0.s8 %v3009
    %v3011 = vlaneseq
    %v3012 = vshrl.u32 %v3011, 7
    %v3013 = vsub.s32 %v3010, %v3012
    %v3014 = vrot.slane %v2591, %v3013
    %v3016 = vunpack.c.l.s4 1983009808
    %v3017 = vunpack.c.0.s8 %v3016
    %v3018 = vlaneseq
    %v3019 = vshrl.u32 %v3018, 7
    %v3020 = vsub.s32 %v3017, %v3019
    %v3021 = vrot.slane %v3007, %v3020
    %v3022 = vcombine.high %v3014, %v3014
    %v3023 = vcombine.high %v3021, %v3021
    %v3024 = vcombine.high %v2592, %v2592
    %v3026 = vunpack.c.l.s4 1983009808
    %v3027 = vunpack.c.0.s8 %v3026
    %v3028 = vlaneseq
    %v3029 = vshrl.u32 %v3028, 7
    %v3030 = vsub.s32 %v3027, %v3029
    %v3031 = vrot.slane %v2592, %v3030
    %v3033 = vunpack.c.l.s4 1983009808
    %v3034 = vunpack.c.0.s8 %v3033
    %v3035 = vlaneseq
    %v3036 = vshrl.u32 %v3035, 7
    %v3037 = vsub.s32 %v3034, %v3036
    %v3038 = vrot.slane %v3024, %v3037
    %v3039 = vcombine.high %v3031, %v3031
    %v3040 = vcombine.high %v3038, %v3038
    %v3041 = vcombine.high %v2593, %v2593
    %v3043 = vunpack.c.l.s4 1983009808
    %v3044 = vunpack.c.0.s8 %v3043
    %v3045 = vlaneseq
    %v3046 = vshrl.u32 %v3045, 7
    %v3047 = vsub.s32 %v3044, %v3046
    %v3048 = vrot.slane %v2593, %v3047
    %v3050 = vunpack.c.l.s4 1983009808
    %v3051 = vunpack.c.0.s8 %v3050
    %v3052 = vlaneseq
    %v3053 = vshrl.u32 %v3052, 7
    %v3054 = vsub.s32 %v3051, %v3053
    %v3055 = vrot.slane %v3041, %v3054
    %v3056 = vcombine.high %v3048, %v3048
    %v3057 = vcombine.high %v3055, %v3055
    %v3058 = vcombine.high %v2594, %v2594
    %v3060 = vunpack.c.l.s4 1983009808
    %v3061 = vunpack.c.0.s8 %v3060
    %v3062 = vlaneseq
    %v3063 = vshrl.u32 %v3062, 7
    %v3064 = vsub.s32 %v3061, %v3063
    %v3065 = vrot.slane %v2594, %v3064
    %v3067 = vunpack.c.l.s4 1983009808
    %v3068 = vunpack.c.0.s8 %v3067
    %v3069 = vlaneseq
    %v3070 = vshrl.u32 %v3069, 7
    %v3071 = vsub.s32 %v3068, %v3070
    %v3072 = vrot.slane %v3058, %v3071
    %v3073 = vcombine.high %v3065, %v3065
    %v3074 = vcombine.high %v3072, %v3072
    %v3075 = vcombine.high %v2595, %v2595
    %v3077 = vunpack.c.l.s4 1983009808
    %v3078 = vunpack.c.0.s8 %v3077
    %v3079 = vlaneseq
    %v3080 = vshrl.u32 %v3079, 7
    %v3081 = vsub.s32 %v3078, %v3080
    %v3082 = vrot.slane %v2595, %v3081
    %v3084 = vunpack.c.l.s4 1983009808
    %v3085 = vunpack.c.0.s8 %v3084
    %v3086 = vlaneseq
    %v3087 = vshrl.u32 %v3086, 7
    %v3088 = vsub.s32 %v3085, %v3087
    %v3089 = vrot.slane %v3075, %v3088
    %v3090 = vcombine.high %v3082, %v3082
    %v3091 = vcombine.high %v3089, %v3089
    %v3092 = vcombine.high %v2596, %v2596
    %v3094 = vunpack.c.l.s4 1983009808
    %v3095 = vunpack.c.0.s8 %v3094
    %v3096 = vlaneseq
    %v3097 = vshrl.u32 %v3096, 7
    %v3098 = vsub.s32 %v3095, %v3097
    %v3099 = vrot.slane %v2596, %v3098
    %v3101 = vunpack.c.l.s4 1983009808
    %v3102 = vunpack.c.0.s8 %v3101
    %v3103 = vlaneseq
    %v3104 = vshrl.u32 %v3103, 7
    %v3105 = vsub.s32 %v3102, %v3104
    %v3106 = vrot.slane %v3092, %v3105
    %v3107 = vcombine.high %v3099, %v3099
    %v3108 = vcombine.high %v3106, %v3106
    %v3109 = vcombine.high %v2597, %v2597
    %v3111 = vunpack.c.l.s4 1983009808
    %v3112 = vunpack.c.0.s8 %v3111
    %v3113 = vlaneseq
    %v3114 = vshrl.u32 %v3113, 7
    %v3115 = vsub.s32 %v3112, %v3114
    %v3116 = vrot.slane %v2597, %v3115
    %v3118 = vunpack.c.l.s4 1983009808
    %v3119 = vunpack.c.0.s8 %v3118
    %v3120 = vlaneseq
    %v3121 = vshrl.u32 %v3120, 7
    %v3122 = vsub.s32 %v3119, %v3121
    %v3123 = vrot.slane %v3109, %v3122
    %v3124 = vcombine.high %v3116, %v3116
    %v3125 = vcombine.high %v3123, %v3123
    %v3126 = vcombine.high %v2598, %v2598
    %v3128 = vunpack.c.l.s4 1983009808
    %v3129 = vunpack.c.0.s8 %v3128
    %v3130 = vlaneseq
    %v3131 = vshrl.u32 %v3130, 7
    %v3132 = vsub.s32 %v3129, %v3131
    %v3133 = vrot.slane %v2598, %v3132
    %v3135 = vunpack.c.l.s4 1983009808
    %v3136 = vunpack.c.0.s8 %v3135
    %v3137 = vlaneseq
    %v3138 = vshrl.u32 %v3137, 7
    %v3139 = vsub.s32 %v3136, %v3138
    %v3140 = vrot.slane %v3126, %v3139
    %v3141 = vcombine.high %v3133, %v3133
    %v3142 = vcombine.high %v3140, %v3140
    %v3143 = vcombine.high %v2599, %v2599
    %v3145 = vunpack.c.l.s4 1983009808
    %v3146 = vunpack.c.0.s8 %v3145
    %v3147 = vlaneseq
    %v3148 = vshrl.u32 %v3147, 7
    %v3149 = vsub.s32 %v3146, %v3148
    %v3150 = vrot.slane %v2599, %v3149
    %v3152 = vunpack.c.l.s4 1983009808
    %v3153 = vunpack.c.0.s8 %v3152
    %v3154 = vlaneseq
    %v3155 = vshrl.u32 %v3154, 7
    %v3156 = vsub.s32 %v3153, %v3155
    %v3157 = vrot.slane %v3143, %v3156
    %v3158 = vcombine.high %v3150, %v3150
    %v3159 = vcombine.high %v3157, %v3157
    %v3160 = vcombine.high %v2600, %v2600
    %v3162 = vunpack.c.l.s4 1983009808
    %v3163 = vunpack.c.0.s8 %v3162
    %v3164 = vlaneseq
    %v3165 = vshrl.u32 %v3164, 7
    %v3166 = vsub.s32 %v3163, %v3165
    %v3167 = vrot.slane %v2600, %v3166
    %v3169 = vunpack.c.l.s4 1983009808
    %v3170 = vunpack.c.0.s8 %v3169
    %v3171 = vlaneseq
    %v3172 = vshrl.u32 %v3171, 7
    %v3173 = vsub.s32 %v3170, %v3172
    %v3174 = vrot.slane %v3160, %v3173
    %v3175 = vcombine.high %v3167, %v3167
    %v3176 = vcombine.high %v3174, %v3174
    %v3177 = vcombine.high %v2601, %v2601
    %v3179 = vunpack.c.l.s4 1983009808
    %v3180 = vunpack.c.0.s8 %v3179
    %v3181 = vlaneseq
    %v3182 = vshrl.u32 %v3181, 7
    %v3183 = vsub.s32 %v3180, %v3182
    %v3184 = vrot.slane %v2601, %v3183
    %v3186 = vunpack.c.l.s4 1983009808
    %v3187 = vunpack.c.0.s8 %v3186
    %v3188 = vlaneseq
    %v3189 = vshrl.u32 %v3188, 7
    %v3190 = vsub.s32 %v3187, %v3189
    %v3191 = vrot.slane %v3177, %v3190
    %v3192 = vcombine.high %v3184, %v3184
    %v3193 = vcombine.high %v3191, %v3191
    %v3194 = vcombine.high %v2602, %v2602
    %v3196 = vunpack.c.l.s4 1983009808
    %v3197 = vunpack.c.0.s8 %v3196
    %v3198 = vlaneseq
    %v3199 = vshrl.u32 %v3198, 7
    %v3200 = vsub.s32 %v3197, %v3199
    %v3201 = vrot.slane %v2602, %v3200
    %v3203 = vunpack.c.l.s4 1983009808
    %v3204 = vunpack.c.0.s8 %v3203
    %v3205 = vlaneseq
    %v3206 = vshrl.u32 %v3205, 7
    %v3207 = vsub.s32 %v3204, %v3206
    %v3208 = vrot.slane %v3194, %v3207
    %v3209 = vcombine.high %v3201, %v3201
    %v3210 = vcombine.high %v3208, %v3208
    %v3211 = vcombine.high %v2603, %v2603
    %v3213 = vunpack.c.l.s4 1983009808
    %v3214 = vunpack.c.0.s8 %v3213
    %v3215 = vlaneseq
    %v3216 = vshrl.u32 %v3215, 7
    %v3217 = vsub.s32 %v3214, %v3216
    %v3218 = vrot.slane %v2603, %v3217
    %v3220 = vunpack.c.l.s4 1983009808
    %v3221 = vunpack.c.0.s8 %v3220
    %v3222 = vlaneseq
    %v3223 = vshrl.u32 %v3222, 7
    %v3224 = vsub.s32 %v3221, %v3223
    %v3225 = vrot.slane %v3211, %v3224
    %v3226 = vcombine.high %v3218, %v3218
    %v3227 = vcombine.high %v3225, %v3225
    %v3228 = vcombine.high %v2604, %v2604
    %v3230 = vunpack.c.l.s4 1983009808
    %v3231 = vunpack.c.0.s8 %v3230
    %v3232 = vlaneseq
    %v3233 = vshrl.u32 %v3232, 7
    %v3234 = vsub.s32 %v3231, %v3233
    %v3235 = vrot.slane %v2604, %v3234
    %v3237 = vunpack.c.l.s4 1983009808
    %v3238 = vunpack.c.0.s8 %v3237
    %v3239 = vlaneseq
    %v3240 = vshrl.u32 %v3239, 7
    %v3241 = vsub.s32 %v3238, %v3240
    %v3242 = vrot.slane %v3228, %v3241
    %v3243 = vcombine.high %v3235, %v3235
    %v3244 = vcombine.high %v3242, %v3242
    %v3245 = vcombine.high %v2605, %v2605
    %v3247 = vunpack.c.l.s4 1983009808
    %v3248 = vunpack.c.0.s8 %v3247
    %v3249 = vlaneseq
    %v3250 = vshrl.u32 %v3249, 7
    %v3251 = vsub.s32 %v3248, %v3250
    %v3252 = vrot.slane %v2605, %v3251
    %v3254 = vunpack.c.l.s4 1983009808
    %v3255 = vunpack.c.0.s8 %v3254
    %v3256 = vlaneseq
    %v3257 = vshrl.u32 %v3256, 7
    %v3258 = vsub.s32 %v3255, %v3257
    %v3259 = vrot.slane %v3245, %v3258
    %v3260 = vcombine.high %v3252, %v3252
    %v3261 = vcombine.high %v3259, %v3259
    %v3262 = vcombine.high %v2606, %v2606
    %v3264 = vunpack.c.l.s4 1983009808
    %v3265 = vunpack.c.0.s8 %v3264
    %v3266 = vlaneseq
    %v3267 = vshrl.u32 %v3266, 7
    %v3268 = vsub.s32 %v3265, %v3267
    %v3269 = vrot.slane %v2606, %v3268
    %v3271 = vunpack.c.l.s4 1983009808
    %v3272 = vunpack.c.0.s8 %v3271
    %v3273 = vlaneseq
    %v3274 = vshrl.u32 %v3273, 7
    %v3275 = vsub.s32 %v3272, %v3274
    %v3276 = vrot.slane %v3262, %v3275
    %v3277 = vcombine.high %v3269, %v3269
    %v3278 = vcombine.high %v3276, %v3276
    %v3279 = vcombine.high %v2607, %v2607
    %v3281 = vunpack.c.l.s4 1983009808
    %v3282 = vunpack.c.0.s8 %v3281
    %v3283 = vlaneseq
    %v3284 = vshrl.u32 %v3283, 7
    %v3285 = vsub.s32 %v3282, %v3284
    %v3286 = vrot.slane %v2607, %v3285
    %v3288 = vunpack.c.l.s4 1983009808
    %v3289 = vunpack.c.0.s8 %v3288
    %v3290 = vlaneseq
    %v3291 = vshrl.u32 %v3290, 7
    %v3292 = vsub.s32 %v3289, %v3291
    %v3293 = vrot.slane %v3279, %v3292
    %v3294 = vcombine.high %v3286, %v3286
    %v3295 = vcombine.high %v3293, %v3293
    %v3296 = vcombine.high %v2608, %v2608
    %v3298 = vunpack.c.l.s4 1983009808
    %v3299 = vunpack.c.0.s8 %v3298
    %v3300 = vlaneseq
    %v3301 = vshrl.u32 %v3300, 7
    %v3302 = vsub.s32 %v3299, %v3301
    %v3303 = vrot.slane %v2608, %v3302
    %v3305 = vunpack.c.l.s4 1983009808
    %v3306 = vunpack.c.0.s8 %v3305
    %v3307 = vlaneseq
    %v3308 = vshrl.u32 %v3307, 7
    %v3309 = vsub.s32 %v3306, %v3308
    %v3310 = vrot.slane %v3296, %v3309
    %v3311 = vcombine.high %v3303, %v3303
    %v3312 = vcombine.high %v3310, %v3310
    %v3313 = vcombine.high %v2609, %v2609
    %v3315 = vunpack.c.l.s4 1983009808
    %v3316 = vunpack.c.0.s8 %v3315
    %v3317 = vlaneseq
    %v3318 = vshrl.u32 %v3317, 7
    %v3319 = vsub.s32 %v3316, %v3318
    %v3320 = vrot.slane %v2609, %v3319
    %v3322 = vunpack.c.l.s4 1983009808
    %v3323 = vunpack.c.0.s8 %v3322
    %v3324 = vlaneseq
    %v3325 = vshrl.u32 %v3324, 7
    %v3326 = vsub.s32 %v3323, %v3325
    %v3327 = vrot.slane %v3313, %v3326
    %v3328 = vcombine.high %v3320, %v3320
    %v3329 = vcombine.high %v3327, %v3327
    %v3330 = vcombine.high %v2610, %v2610
    %v3332 = vunpack.c.l.s4 1983009808
    %v3333 = vunpack.c.0.s8 %v3332
    %v3334 = vlaneseq
    %v3335 = vshrl.u32 %v3334, 7
    %v3336 = vsub.s32 %v3333, %v3335
    %v3337 = vrot.slane %v2610, %v3336
    %v3339 = vunpack.c.l.s4 1983009808
    %v3340 = vunpack.c.0.s8 %v3339
    %v3341 = vlaneseq
    %v3342 = vshrl.u32 %v3341, 7
    %v3343 = vsub.s32 %v3340, %v3342
    %v3344 = vrot.slane %v3330, %v3343
    %v3345 = vcombine.high %v3337, %v3337
    %v3346 = vcombine.high %v3344, %v3344
    %v3347 = vcombine.high %v2611, %v2611
    %v3349 = vunpack.c.l.s4 1983009808
    %v3350 = vunpack.c.0.s8 %v3349
    %v3351 = vlaneseq
    %v3352 = vshrl.u32 %v3351, 7
    %v3353 = vsub.s32 %v3350, %v3352
    %v3354 = vrot.slane %v2611, %v3353
    %v3356 = vunpack.c.l.s4 1983009808
    %v3357 = vunpack.c.0.s8 %v3356
    %v3358 = vlaneseq
    %v3359 = vshrl.u32 %v3358, 7
    %v3360 = vsub.s32 %v3357, %v3359
    %v3361 = vrot.slane %v3347, %v3360
    %v3362 = vcombine.high %v3354, %v3354
    %v3363 = vcombine.high %v3361, %v3361
    %v3364 = vcombine.high %v2612, %v2612
    %v3366 = vunpack.c.l.s4 1983009808
    %v3367 = vunpack.c.0.s8 %v3366
    %v3368 = vlaneseq
    %v3369 = vshrl.u32 %v3368, 7
    %v3370 = vsub.s32 %v3367, %v3369
    %v3371 = vrot.slane %v2612, %v3370
    %v3373 = vunpack.c.l.s4 1983009808
    %v3374 = vunpack.c.0.s8 %v3373
    %v3375 = vlaneseq
    %v3376 = vshrl.u32 %v3375, 7
    %v3377 = vsub.s32 %v3374, %v3376
    %v3378 = vrot.slane %v3364, %v3377
    %v3379 = vcombine.high %v3371, %v3371
    %v3380 = vcombine.high %v3378, %v3378
    %v3381 = vcombine.high %v2613, %v2613
    %v3383 = vunpack.c.l.s4 1983009808
    %v3384 = vunpack.c.0.s8 %v3383
    %v3385 = vlaneseq
    %v3386 = vshrl.u32 %v3385, 7
    %v3387 = vsub.s32 %v3384, %v3386
    %v3388 = vrot.slane %v2613, %v3387
    %v3390 = vunpack.c.l.s4 1983009808
    %v3391 = vunpack.c.0.s8 %v3390
    %v3392 = vlaneseq
    %v3393 = vshrl.u32 %v3392, 7
    %v3394 = vsub.s32 %v3391, %v3393
    %v3395 = vrot.slane %v3381, %v3394
    %v3396 = vcombine.high %v3388, %v3388
    %v3397 = vcombine.high %v3395, %v3395
    %v3398 = vcombine.high %v2614, %v2614
    %v3400 = vunpack.c.l.s4 1983009808
    %v3401 = vunpack.c.0.s8 %v3400
    %v3402 = vlaneseq
    %v3403 = vshrl.u32 %v3402, 7
    %v3404 = vsub.s32 %v3401, %v3403
    %v3405 = vrot.slane %v2614, %v3404
    %v3407 = vunpack.c.l.s4 1983009808
    %v3408 = vunpack.c.0.s8 %v3407
    %v3409 = vlaneseq
    %v3410 = vshrl.u32 %v3409, 7
    %v3411 = vsub.s32 %v3408, %v3410
    %v3412 = vrot.slane %v3398, %v3411
    %v3413 = vcombine.high %v3405, %v3405
    %v3414 = vcombine.high %v3412, %v3412
    %v3415 = vcombine.high %v2615, %v2615
    %v3417 = vunpack.c.l.s4 1983009808
    %v3418 = vunpack.c.0.s8 %v3417
    %v3419 = vlaneseq
    %v3420 = vshrl.u32 %v3419, 7
    %v3421 = vsub.s32 %v3418, %v3420
    %v3422 = vrot.slane %v2615, %v3421
    %v3424 = vunpack.c.l.s4 1983009808
    %v3425 = vunpack.c.0.s8 %v3424
    %v3426 = vlaneseq
    %v3427 = vshrl.u32 %v3426, 7
    %v3428 = vsub.s32 %v3425, %v3427
    %v3429 = vrot.slane %v3415, %v3428
    %v3430 = vcombine.high %v3422, %v3422
    %v3431 = vcombine.high %v3429, %v3429
    %v3432 = vcombine.high %v2616, %v2616
    %v3434 = vunpack.c.l.s4 1983009808
    %v3435 = vunpack.c.0.s8 %v3434
    %v3436 = vlaneseq
    %v3437 = vshrl.u32 %v3436, 7
    %v3438 = vsub.s32 %v3435, %v3437
    %v3439 = vrot.slane %v2616, %v3438
    %v3441 = vunpack.c.l.s4 1983009808
    %v3442 = vunpack.c.0.s8 %v3441
    %v3443 = vlaneseq
    %v3444 = vshrl.u32 %v3443, 7
    %v3445 = vsub.s32 %v3442, %v3444
    %v3446 = vrot.slane %v3432, %v3445
    %v3447 = vcombine.high %v3439, %v3439
    %v3448 = vcombine.high %v3446, %v3446
    %v3449 = vcombine.high %v2617, %v2617
    %v3451 = vunpack.c.l.s4 1983009808
    %v3452 = vunpack.c.0.s8 %v3451
    %v3453 = vlaneseq
    %v3454 = vshrl.u32 %v3453, 7
    %v3455 = vsub.s32 %v3452, %v3454
    %v3456 = vrot.slane %v2617, %v3455
    %v3458 = vunpack.c.l.s4 1983009808
    %v3459 = vunpack.c.0.s8 %v3458
    %v3460 = vlaneseq
    %v3461 = vshrl.u32 %v3460, 7
    %v3462 = vsub.s32 %v3459, %v3461
    %v3463 = vrot.slane %v3449, %v3462
    %v3464 = vcombine.high %v3456, %v3456
    %v3465 = vcombine.high %v3463, %v3463
    %v3466 = vcombine.high %v2618, %v2618
    %v3468 = vunpack.c.l.s4 1983009808
    %v3469 = vunpack.c.0.s8 %v3468
    %v3470 = vlaneseq
    %v3471 = vshrl.u32 %v3470, 7
    %v3472 = vsub.s32 %v3469, %v3471
    %v3473 = vrot.slane %v2618, %v3472
    %v3475 = vunpack.c.l.s4 1983009808
    %v3476 = vunpack.c.0.s8 %v3475
    %v3477 = vlaneseq
    %v3478 = vshrl.u32 %v3477, 7
    %v3479 = vsub.s32 %v3476, %v3478
    %v3480 = vrot.slane %v3466, %v3479
    %v3481 = vcombine.high %v3473, %v3473
    %v3482 = vcombine.high %v3480, %v3480
    %v3483 = vcombine.high %v2619, %v2619
    %v3485 = vunpack.c.l.s4 1983009808
    %v3486 = vunpack.c.0.s8 %v3485
    %v3487 = vlaneseq
    %v3488 = vshrl.u32 %v3487, 7
    %v3489 = vsub.s32 %v3486, %v3488
    %v3490 = vrot.slane %v2619, %v3489
    %v3492 = vunpack.c.l.s4 1983009808
    %v3493 = vunpack.c.0.s8 %v3492
    %v3494 = vlaneseq
    %v3495 = vshrl.u32 %v3494, 7
    %v3496 = vsub.s32 %v3493, %v3495
    %v3497 = vrot.slane %v3483, %v3496
    %v3498 = vcombine.high %v3490, %v3490
    %v3499 = vcombine.high %v3497, %v3497
    %v3500 = vcombine.high %v2620, %v2620
    %v3502 = vunpack.c.l.s4 1983009808
    %v3503 = vunpack.c.0.s8 %v3502
    %v3504 = vlaneseq
    %v3505 = vshrl.u32 %v3504, 7
    %v3506 = vsub.s32 %v3503, %v3505
    %v3507 = vrot.slane %v2620, %v3506
    %v3509 = vunpack.c.l.s4 1983009808
    %v3510 = vunpack.c.0.s8 %v3509
    %v3511 = vlaneseq
    %v3512 = vshrl.u32 %v3511, 7
    %v3513 = vsub.s32 %v3510, %v3512
    %v3514 = vrot.slane %v3500, %v3513
    %v3515 = vcombine.high %v3507, %v3507
    %v3516 = vcombine.high %v3514, %v3514
    %v3517 = vcombine.high %v2621, %v2621
    %v3519 = vunpack.c.l.s4 1983009808
    %v3520 = vunpack.c.0.s8 %v3519
    %v3521 = vlaneseq
    %v3522 = vshrl.u32 %v3521, 7
    %v3523 = vsub.s32 %v3520, %v3522
    %v3524 = vrot.slane %v2621, %v3523
    %v3526 = vunpack.c.l.s4 1983009808
    %v3527 = vunpack.c.0.s8 %v3526
    %v3528 = vlaneseq
    %v3529 = vshrl.u32 %v3528, 7
    %v3530 = vsub.s32 %v3527, %v3529
    %v3531 = vrot.slane %v3517, %v3530
    %v3532 = vcombine.high %v3524, %v3524
    %v3533 = vcombine.high %v3531, %v3531
    %v3534 = vcombine.high %v2622, %v2622
    %v3536 = vunpack.c.l.s4 1983009808
    %v3537 = vunpack.c.0.s8 %v3536
    %v3538 = vlaneseq
    %v3539 = vshrl.u32 %v3538, 7
    %v3540 = vsub.s32 %v3537, %v3539
    %v3541 = vrot.slane %v2622, %v3540
    %v3543 = vunpack.c.l.s4 1983009808
    %v3544 = vunpack.c.0.s8 %v3543
    %v3545 = vlaneseq
    %v3546 = vshrl.u32 %v3545, 7
    %v3547 = vsub.s32 %v3544, %v3546
    %v3548 = vrot.slane %v3534, %v3547
    %v3549 = vcombine.high %v3541, %v3541
    %v3550 = vcombine.high %v3548, %v3548
    %v3551 = vcombine.high %v2623, %v2623
    %v3553 = vunpack.c.l.s4 1983009808
    %v3554 = vunpack.c.0.s8 %v3553
    %v3555 = vlaneseq
    %v3556 = vshrl.u32 %v3555, 7
    %v3557 = vsub.s32 %v3554, %v3556
    %v3558 = vrot.slane %v2623, %v3557
    %v3560 = vunpack.c.l.s4 1983009808
    %v3561 = vunpack.c.0.s8 %v3560
    %v3562 = vlaneseq
    %v3563 = vshrl.u32 %v3562, 7
    %v3564 = vsub.s32 %v3561, %v3563
    %v3565 = vrot.slane %v3551, %v3564
    %v3566 = vcombine.high %v3558, %v3558
    %v3567 = vcombine.high %v3565, %v3565
    %v3568 = vcombine.high %v2624, %v2624
    %v3570 = vunpack.c.l.s4 1983009808
    %v3571 = vunpack.c.0.s8 %v3570
    %v3572 = vlaneseq
    %v3573 = vshrl.u32 %v3572, 7
    %v3574 = vsub.s32 %v3571, %v3573
    %v3575 = vrot.slane %v2624, %v3574
    %v3577 = vunpack.c.l.s4 1983009808
    %v3578 = vunpack.c.0.s8 %v3577
    %v3579 = vlaneseq
    %v3580 = vshrl.u32 %v3579, 7
    %v3581 = vsub.s32 %v3578, %v3580
    %v3582 = vrot.slane %v3568, %v3581
    %v3583 = vcombine.high %v3575, %v3575
    %v3584 = vcombine.high %v3582, %v3582
    %v3585 = vcombine.high %v2625, %v2625
    %v3587 = vunpack.c.l.s4 1983009808
    %v3588 = vunpack.c.0.s8 %v3587
    %v3589 = vlaneseq
    %v3590 = vshrl.u32 %v3589, 7
    %v3591 = vsub.s32 %v3588, %v3590
    %v3592 = vrot.slane %v2625, %v3591
    %v3594 = vunpack.c.l.s4 1983009808
    %v3595 = vunpack.c.0.s8 %v3594
    %v3596 = vlaneseq
    %v3597 = vshrl.u32 %v3596, 7
    %v3598 = vsub.s32 %v3595, %v3597
    %v3599 = vrot.slane %v3585, %v3598
    %v3600 = vcombine.high %v3592, %v3592
    %v3601 = vcombine.high %v3599, %v3599
    %v3602 = vcombine.high %v2626, %v2626
    %v3604 = vunpack.c.l.s4 1983009808
    %v3605 = vunpack.c.0.s8 %v3604
    %v3606 = vlaneseq
    %v3607 = vshrl.u32 %v3606, 7
    %v3608 = vsub.s32 %v3605, %v3607
    %v3609 = vrot.slane %v2626, %v3608
    %v3611 = vunpack.c.l.s4 1983009808
    %v3612 = vunpack.c.0.s8 %v3611
    %v3613 = vlaneseq
    %v3614 = vshrl.u32 %v3613, 7
    %v3615 = vsub.s32 %v3612, %v3614
    %v3616 = vrot.slane %v3602, %v3615
    %v3617 = vcombine.high %v3609, %v3609
    %v3618 = vcombine.high %v3616, %v3616
    %v3619 = vcombine.high %v2627, %v2627
    %v3621 = vunpack.c.l.s4 1983009808
    %v3622 = vunpack.c.0.s8 %v3621
    %v3623 = vlaneseq
    %v3624 = vshrl.u32 %v3623, 7
    %v3625 = vsub.s32 %v3622, %v3624
    %v3626 = vrot.slane %v2627, %v3625
    %v3628 = vunpack.c.l.s4 1983009808
    %v3629 = vunpack.c.0.s8 %v3628
    %v3630 = vlaneseq
    %v3631 = vshrl.u32 %v3630, 7
    %v3632 = vsub.s32 %v3629, %v3631
    %v3633 = vrot.slane %v3619, %v3632
    %v3634 = vcombine.high %v3626, %v3626
    %v3635 = vcombine.high %v3633, %v3633
    %v3636 = vcombine.high %v2628, %v2628
    %v3638 = vunpack.c.l.s4 1983009808
    %v3639 = vunpack.c.0.s8 %v3638
    %v3640 = vlaneseq
    %v3641 = vshrl.u32 %v3640, 7
    %v3642 = vsub.s32 %v3639, %v3641
    %v3643 = vrot.slane %v2628, %v3642
    %v3645 = vunpack.c.l.s4 1983009808
    %v3646 = vunpack.c.0.s8 %v3645
    %v3647 = vlaneseq
    %v3648 = vshrl.u32 %v3647, 7
    %v3649 = vsub.s32 %v3646, %v3648
    %v3650 = vrot.slane %v3636, %v3649
    %v3651 = vcombine.high %v3643, %v3643
    %v3652 = vcombine.high %v3650, %v3650
    %v3653 = vcombine.high %v2629, %v2629
    %v3655 = vunpack.c.l.s4 1983009808
    %v3656 = vunpack.c.0.s8 %v3655
    %v3657 = vlaneseq
    %v3658 = vshrl.u32 %v3657, 7
    %v3659 = vsub.s32 %v3656, %v3658
    %v3660 = vrot.slane %v2629, %v3659
    %v3662 = vunpack.c.l.s4 1983009808
    %v3663 = vunpack.c.0.s8 %v3662
    %v3664 = vlaneseq
    %v3665 = vshrl.u32 %v3664, 7
    %v3666 = vsub.s32 %v3663, %v3665
    %v3667 = vrot.slane %v3653, %v3666
    %v3668 = vcombine.high %v3660, %v3660
    %v3669 = vcombine.high %v3667, %v3667
    %v3670 = vcombine.high %v2630, %v2630
    %v3672 = vunpack.c.l.s4 1983009808
    %v3673 = vunpack.c.0.s8 %v3672
    %v3674 = vlaneseq
    %v3675 = vshrl.u32 %v3674, 7
    %v3676 = vsub.s32 %v3673, %v3675
    %v3677 = vrot.slane %v2630, %v3676
    %v3679 = vunpack.c.l.s4 1983009808
    %v3680 = vunpack.c.0.s8 %v3679
    %v3681 = vlaneseq
    %v3682 = vshrl.u32 %v3681, 7
    %v3683 = vsub.s32 %v3680, %v3682
    %v3684 = vrot.slane %v3670, %v3683
    %v3685 = vcombine.high %v3677, %v3677
    %v3686 = vcombine.high %v3684, %v3684
    %v3687 = vcombine.high %v2631, %v2631
    %v3689 = vunpack.c.l.s4 1983009808
    %v3690 = vunpack.c.0.s8 %v3689
    %v3691 = vlaneseq
    %v3692 = vshrl.u32 %v3691, 7
    %v3693 = vsub.s32 %v3690, %v3692
    %v3694 = vrot.slane %v2631, %v3693
    %v3696 = vunpack.c.l.s4 1983009808
    %v3697 = vunpack.c.0.s8 %v3696
    %v3698 = vlaneseq
    %v3699 = vshrl.u32 %v3698, 7
    %v3700 = vsub.s32 %v3697, %v3699
    %v3701 = vrot.slane %v3687, %v3700
    %v3702 = vcombine.high %v3694, %v3694
    %v3703 = vcombine.high %v3701, %v3701
    %v3704 = vcombine.high %v2632, %v2632
    %v3706 = vunpack.c.l.s4 1983009808
    %v3707 = vunpack.c.0.s8 %v3706
    %v3708 = vlaneseq
    %v3709 = vshrl.u32 %v3708, 7
    %v3710 = vsub.s32 %v3707, %v3709
    %v3711 = vrot.slane %v2632, %v3710
    %v3713 = vunpack.c.l.s4 1983009808
    %v3714 = vunpack.c.0.s8 %v3713
    %v3715 = vlaneseq
    %v3716 = vshrl.u32 %v3715, 7
    %v3717 = vsub.s32 %v3714, %v3716
    %v3718 = vrot.slane %v3704, %v3717
    %v3719 = vcombine.high %v3711, %v3711
    %v3720 = vcombine.high %v3718, %v3718
    %v3721 = vcombine.high %v2633, %v2633
    %v3723 = vunpack.c.l.s4 1983009808
    %v3724 = vunpack.c.0.s8 %v3723
    %v3725 = vlaneseq
    %v3726 = vshrl.u32 %v3725, 7
    %v3727 = vsub.s32 %v3724, %v3726
    %v3728 = vrot.slane %v2633, %v3727
    %v3730 = vunpack.c.l.s4 1983009808
    %v3731 = vunpack.c.0.s8 %v3730
    %v3732 = vlaneseq
    %v3733 = vshrl.u32 %v3732, 7
    %v3734 = vsub.s32 %v3731, %v3733
    %v3735 = vrot.slane %v3721, %v3734
    %v3736 = vcombine.high %v3728, %v3728
    %v3737 = vcombine.high %v3735, %v3735
    %v3738 = vcombine.high %v2634, %v2634
    %v3740 = vunpack.c.l.s4 1983009808
    %v3741 = vunpack.c.0.s8 %v3740
    %v3742 = vlaneseq
    %v3743 = vshrl.u32 %v3742, 7
    %v3744 = vsub.s32 %v3741, %v3743
    %v3745 = vrot.slane %v2634, %v3744
    %v3747 = vunpack.c.l.s4 1983009808
    %v3748 = vunpack.c.0.s8 %v3747
    %v3749 = vlaneseq
    %v3750 = vshrl.u32 %v3749, 7
    %v3751 = vsub.s32 %v3748, %v3750
    %v3752 = vrot.slane %v3738, %v3751
    %v3753 = vcombine.high %v3745, %v3745
    %v3754 = vcombine.high %v3752, %v3752
    %v3755 = vcombine.high %v2635, %v2635
    %v3757 = vunpack.c.l.s4 1983009808
    %v3758 = vunpack.c.0.s8 %v3757
    %v3759 = vlaneseq
    %v3760 = vshrl.u32 %v3759, 7
    %v3761 = vsub.s32 %v3758, %v3760
    %v3762 = vrot.slane %v2635, %v3761
    %v3764 = vunpack.c.l.s4 1983009808
    %v3765 = vunpack.c.0.s8 %v3764
    %v3766 = vlaneseq
    %v3767 = vshrl.u32 %v3766, 7
    %v3768 = vsub.s32 %v3765, %v3767
    %v3769 = vrot.slane %v3755, %v3768
    %v3770 = vcombine.high %v3762, %v3762
    %v3771 = vcombine.high %v3769, %v3769
    %v3772 = vcombine.high %v2636, %v2636
    %v3774 = vunpack.c.l.s4 1983009808
    %v3775 = vunpack.c.0.s8 %v3774
    %v3776 = vlaneseq
    %v3777 = vshrl.u32 %v3776, 7
    %v3778 = vsub.s32 %v3775, %v3777
    %v3779 = vrot.slane %v2636, %v3778
    %v3781 = vunpack.c.l.s4 1983009808
    %v3782 = vunpack.c.0.s8 %v3781
    %v3783 = vlaneseq
    %v3784 = vshrl.u32 %v3783, 7
    %v3785 = vsub.s32 %v3782, %v3784
    %v3786 = vrot.slane %v3772, %v3785
    %v3787 = vcombine.high %v3779, %v3779
    %v3788 = vcombine.high %v3786, %v3786
    %v3789 = vcombine.high %v2637, %v2637
    %v3791 = vunpack.c.l.s4 1983009808
    %v3792 = vunpack.c.0.s8 %v3791
    %v3793 = vlaneseq
    %v3794 = vshrl.u32 %v3793, 7
    %v3795 = vsub.s32 %v3792, %v3794
    %v3796 = vrot.slane %v2637, %v3795
    %v3798 = vunpack.c.l.s4 1983009808
    %v3799 = vunpack.c.0.s8 %v3798
    %v3800 = vlaneseq
    %v3801 = vshrl.u32 %v3800, 7
    %v3802 = vsub.s32 %v3799, %v3801
    %v3803 = vrot.slane %v3789, %v3802
    %v3804 = vcombine.high %v3796, %v3796
    %v3805 = vcombine.high %v3803, %v3803
    %v3806 = vcombine.high %v2638, %v2638
    %v3808 = vunpack.c.l.s4 1983009808
    %v3809 = vunpack.c.0.s8 %v3808
    %v3810 = vlaneseq
    %v3811 = vshrl.u32 %v3810, 7
    %v3812 = vsub.s32 %v3809, %v3811
    %v3813 = vrot.slane %v2638, %v3812
    %v3815 = vunpack.c.l.s4 1983009808
    %v3816 = vunpack.c.0.s8 %v3815
    %v3817 = vlaneseq
    %v3818 = vshrl.u32 %v3817, 7
    %v3819 = vsub.s32 %v3816, %v3818
    %v3820 = vrot.slane %v3806, %v3819
    %v3821 = vcombine.high %v3813, %v3813
    %v3822 = vcombine.high %v3820, %v3820
    %v3823 = vcombine.high %v2639, %v2639
    %v3825 = vunpack.c.l.s4 1983009808
    %v3826 = vunpack.c.0.s8 %v3825
    %v3827 = vlaneseq
    %v3828 = vshrl.u32 %v3827, 7
    %v3829 = vsub.s32 %v3826, %v3828
    %v3830 = vrot.slane %v2639, %v3829
    %v3832 = vunpack.c.l.s4 1983009808
    %v3833 = vunpack.c.0.s8 %v3832
    %v3834 = vlaneseq
    %v3835 = vshrl.u32 %v3834, 7
    %v3836 = vsub.s32 %v3833, %v3835
    %v3837 = vrot.slane %v3823, %v3836
    %v3838 = vcombine.high %v3830, %v3830
    %v3839 = vcombine.high %v3837, %v3837
    %v3840 = vcombine.high %v2640, %v2640
    %v3842 = vunpack.c.l.s4 1983009808
    %v3843 = vunpack.c.0.s8 %v3842
    %v3844 = vlaneseq
    %v3845 = vshrl.u32 %v3844, 7
    %v3846 = vsub.s32 %v3843, %v3845
    %v3847 = vrot.slane %v2640, %v3846
    %v3849 = vunpack.c.l.s4 1983009808
    %v3850 = vunpack.c.0.s8 %v3849
    %v3851 = vlaneseq
    %v3852 = vshrl.u32 %v3851, 7
    %v3853 = vsub.s32 %v3850, %v3852
    %v3854 = vrot.slane %v3840, %v3853
    %v3855 = vcombine.high %v3847, %v3847
    %v3856 = vcombine.high %v3854, %v3854
    %v3857 = vcombine.high %v2641, %v2641
    %v3859 = vunpack.c.l.s4 1983009808
    %v3860 = vunpack.c.0.s8 %v3859
    %v3861 = vlaneseq
    %v3862 = vshrl.u32 %v3861, 7
    %v3863 = vsub.s32 %v3860, %v3862
    %v3864 = vrot.slane %v2641, %v3863
    %v3866 = vunpack.c.l.s4 1983009808
    %v3867 = vunpack.c.0.s8 %v3866
    %v3868 = vlaneseq
    %v3869 = vshrl.u32 %v3868, 7
    %v3870 = vsub.s32 %v3867, %v3869
    %v3871 = vrot.slane %v3857, %v3870
    %v3872 = vcombine.high %v3864, %v3864
    %v3873 = vcombine.high %v3871, %v3871
    %v3874 = vcombine.high %v2642, %v2642
    %v3876 = vunpack.c.l.s4 1983009808
    %v3877 = vunpack.c.0.s8 %v3876
    %v3878 = vlaneseq
    %v3879 = vshrl.u32 %v3878, 7
    %v3880 = vsub.s32 %v3877, %v3879
    %v3881 = vrot.slane %v2642, %v3880
    %v3883 = vunpack.c.l.s4 1983009808
    %v3884 = vunpack.c.0.s8 %v3883
    %v3885 = vlaneseq
    %v3886 = vshrl.u32 %v3885, 7
    %v3887 = vsub.s32 %v3884, %v3886
    %v3888 = vrot.slane %v3874, %v3887
    %v3889 = vcombine.high %v3881, %v3881
    %v3890 = vcombine.high %v3888, %v3888
    %v3891 = vcombine.high %v2643, %v2643
    %v3893 = vunpack.c.l.s4 1983009808
    %v3894 = vunpack.c.0.s8 %v3893
    %v3895 = vlaneseq
    %v3896 = vshrl.u32 %v3895, 7
    %v3897 = vsub.s32 %v3894, %v3896
    %v3898 = vrot.slane %v2643, %v3897
    %v3900 = vunpack.c.l.s4 1983009808
    %v3901 = vunpack.c.0.s8 %v3900
    %v3902 = vlaneseq
    %v3903 = vshrl.u32 %v3902, 7
    %v3904 = vsub.s32 %v3901, %v3903
    %v3905 = vrot.slane %v3891, %v3904
    %v3906 = vcombine.high %v3898, %v3898
    %v3907 = vcombine.high %v3905, %v3905
    %v3908 = vcombine.high %v2644, %v2644
    %v3910 = vunpack.c.l.s4 1983009808
    %v3911 = vunpack.c.0.s8 %v3910
    %v3912 = vlaneseq
    %v3913 = vshrl.u32 %v3912, 7
    %v3914 = vsub.s32 %v3911, %v3913
    %v3915 = vrot.slane %v2644, %v3914
    %v3917 = vunpack.c.l.s4 1983009808
    %v3918 = vunpack.c.0.s8 %v3917
    %v3919 = vlaneseq
    %v3920 = vshrl.u32 %v3919, 7
    %v3921 = vsub.s32 %v3918, %v3920
    %v3922 = vrot.slane %v3908, %v3921
    %v3923 = vcombine.high %v3915, %v3915
    %v3924 = vcombine.high %v3922, %v3922
    %v3925 = vcombine.high %v2645, %v2645
    %v3927 = vunpack.c.l.s4 1983009808
    %v3928 = vunpack.c.0.s8 %v3927
    %v3929 = vlaneseq
    %v3930 = vshrl.u32 %v3929, 7
    %v3931 = vsub.s32 %v3928, %v3930
    %v3932 = vrot.slane %v2645, %v3931
    %v3934 = vunpack.c.l.s4 1983009808
    %v3935 = vunpack.c.0.s8 %v3934
    %v3936 = vlaneseq
    %v3937 = vshrl.u32 %v3936, 7
    %v3938 = vsub.s32 %v3935, %v3937
    %v3939 = vrot.slane %v3925, %v3938
    %v3940 = vcombine.high %v3932, %v3932
    %v3941 = vcombine.high %v3939, %v3939
    %vm4230 = vcmask 1041408
    %v4231 = vsel %vm4230, %v2725, -inf
    %v4232 = vrot.slane %v4231, 4
    %v4233 = vmax.f32 %v4231, %v4232
    %v4234 = vrot.slane %v4233, 2
    %v4235 = vmax.f32 %v4233, %v4234
    %v4236 = vrot.slane %v4235, 1
    %v4237 = vmax.f32 %v4235, %v4236
    %v4238 = vsel %vm4230, %v2733, -inf
    %v4239 = vrot.slane %v4238, 4
    %v4240 = vmax.f32 %v4238, %v4239
    %v4241 = vrot.slane %v4240, 2
    %v4242 = vmax.f32 %v4240, %v4241
    %v4243 = vrot.slane %v4242, 1
    %v4244 = vmax.f32 %v4242, %v4243
    %v4245 = vsel %vm4230, %v2732, -inf
    %v4246 = vrot.slane %v4245, 4
    %v4247 = vmax.f32 %v4245, %v4246
    %v4248 = vrot.slane %v4247, 2
    %v4249 = vmax.f32 %v4247, %v4248
    %v4250 = vrot.slane %v4249, 1
    %v4251 = vmax.f32 %v4249, %v4250
    %v4252 = vsel %vm4230, %v2734, -inf
    %v4253 = vrot.slane %v4252, 4
    %v4254 = vmax.f32 %v4252, %v4253
    %v4255 = vrot.slane %v4254, 2
    %v4256 = vmax.f32 %v4254, %v4255
    %v4257 = vrot.slane %v4256, 1
    %v4258 = vmax.f32 %v4256, %v4257
    %v4259 = vsel %vm4230, %v2742, -inf
    %v4260 = vrot.slane %v4259, 4
    %v4261 = vmax.f32 %v4259, %v4260
    %v4262 = vrot.slane %v4261, 2
    %v4263 = vmax.f32 %v4261, %v4262
    %v4264 = vrot.slane %v4263, 1
    %v4265 = vmax.f32 %v4263, %v4264
    %v4266 = vsel %vm4230, %v2750, -inf
    %v4267 = vrot.slane %v4266, 4
    %v4268 = vmax.f32 %v4266, %v4267
    %v4269 = vrot.slane %v4268, 2
    %v4270 = vmax.f32 %v4268, %v4269
    %v4271 = vrot.slane %v4270, 1
    %v4272 = vmax.f32 %v4270, %v4271
    %v4273 = vsel %vm4230, %v2749, -inf
    %v4274 = vrot.slane %v4273, 4
    %v4275 = vmax.f32 %v4273, %v4274
    %v4276 = vrot.slane %v4275, 2
    %v4277 = vmax.f32 %v4275, %v4276
    %v4278 = vrot.slane %v4277, 1
    %v4279 = vmax.f32 %v4277, %v4278
    %v4280 = vsel %vm4230, %v2751, -inf
    %v4281 = vrot.slane %v4280, 4
    %v4282 = vmax.f32 %v4280, %v4281
    %v4283 = vrot.slane %v4282, 2
    %v4284 = vmax.f32 %v4282, %v4283
    %v4285 = vrot.slane %v4284, 1
    %v4286 = vmax.f32 %v4284, %v4285
    %v4287 = vsel %vm4230, %v2759, -inf
    %v4288 = vrot.slane %v4287, 4
    %v4289 = vmax.f32 %v4287, %v4288
    %v4290 = vrot.slane %v4289, 2
    %v4291 = vmax.f32 %v4289, %v4290
    %v4292 = vrot.slane %v4291, 1
    %v4293 = vmax.f32 %v4291, %v4292
    %v4294 = vsel %vm4230, %v2767, -inf
    %v4295 = vrot.slane %v4294, 4
    %v4296 = vmax.f32 %v4294, %v4295
    %v4297 = vrot.slane %v4296, 2
    %v4298 = vmax.f32 %v4296, %v4297
    %v4299 = vrot.slane %v4298, 1
    %v4300 = vmax.f32 %v4298, %v4299
    %v4301 = vsel %vm4230, %v2766, -inf
    %v4302 = vrot.slane %v4301, 4
    %v4303 = vmax.f32 %v4301, %v4302
    %v4304 = vrot.slane %v4303, 2
    %v4305 = vmax.f32 %v4303, %v4304
    %v4306 = vrot.slane %v4305, 1
    %v4307 = vmax.f32 %v4305, %v4306
    %v4308 = vsel %vm4230, %v2768, -inf
    %v4309 = vrot.slane %v4308, 4
    %v4310 = vmax.f32 %v4308, %v4309
    %v4311 = vrot.slane %v4310, 2
    %v4312 = vmax.f32 %v4310, %v4311
    %v4313 = vrot.slane %v4312, 1
    %v4314 = vmax.f32 %v4312, %v4313
    %v4315 = vsel %vm4230, %v2776, -inf
    %v4316 = vrot.slane %v4315, 4
    %v4317 = vmax.f32 %v4315, %v4316
    %v4318 = vrot.slane %v4317, 2
    %v4319 = vmax.f32 %v4317, %v4318
    %v4320 = vrot.slane %v4319, 1
    %v4321 = vmax.f32 %v4319, %v4320
    %v4322 = vsel %vm4230, %v2784, -inf
    %v4323 = vrot.slane %v4322, 4
    %v4324 = vmax.f32 %v4322, %v4323
    %v4325 = vrot.slane %v4324, 2
    %v4326 = vmax.f32 %v4324, %v4325
    %v4327 = vrot.slane %v4326, 1
    %v4328 = vmax.f32 %v4326, %v4327
    %v4329 = vsel %vm4230, %v2783, -inf
    %v4330 = vrot.slane %v4329, 4
    %v4331 = vmax.f32 %v4329, %v4330
    %v4332 = vrot.slane %v4331, 2
    %v4333 = vmax.f32 %v4331, %v4332
    %v4334 = vrot.slane %v4333, 1
    %v4335 = vmax.f32 %v4333, %v4334
    %v4336 = vsel %vm4230, %v2785, -inf
    %v4337 = vrot.slane %v4336, 4
    %v4338 = vmax.f32 %v4336, %v4337
    %v4339 = vrot.slane %v4338, 2
    %v4340 = vmax.f32 %v4338, %v4339
    %v4341 = vrot.slane %v4340, 1
    %v4342 = vmax.f32 %v4340, %v4341
    %v4343 = vsel %vm4230, %v2793, -inf
    %v4344 = vrot.slane %v4343, 4
    %v4345 = vmax.f32 %v4343, %v4344
    %v4346 = vrot.slane %v4345, 2
    %v4347 = vmax.f32 %v4345, %v4346
    %v4348 = vrot.slane %v4347, 1
    %v4349 = vmax.f32 %v4347, %v4348
    %v4350 = vsel %vm4230, %v2801, -inf
    %v4351 = vrot.slane %v4350, 4
    %v4352 = vmax.f32 %v4350, %v4351
    %v4353 = vrot.slane %v4352, 2
    %v4354 = vmax.f32 %v4352, %v4353
    %v4355 = vrot.slane %v4354, 1
    %v4356 = vmax.f32 %v4354, %v4355
    %v4357 = vsel %vm4230, %v2800, -inf
    %v4358 = vrot.slane %v4357, 4
    %v4359 = vmax.f32 %v4357, %v4358
    %v4360 = vrot.slane %v4359, 2
    %v4361 = vmax.f32 %v4359, %v4360
    %v4362 = vrot.slane %v4361, 1
    %v4363 = vmax.f32 %v4361, %v4362
    %v4364 = vsel %vm4230, %v2802, -inf
    %v4365 = vrot.slane %v4364, 4
    %v4366 = vmax.f32 %v4364, %v4365
    %v4367 = vrot.slane %v4366, 2
    %v4368 = vmax.f32 %v4366, %v4367
    %v4369 = vrot.slane %v4368, 1
    %v4370 = vmax.f32 %v4368, %v4369
    %v4371 = vsel %vm4230, %v2810, -inf
    %v4372 = vrot.slane %v4371, 4
    %v4373 = vmax.f32 %v4371, %v4372
    %v4374 = vrot.slane %v4373, 2
    %v4375 = vmax.f32 %v4373, %v4374
    %v4376 = vrot.slane %v4375, 1
    %v4377 = vmax.f32 %v4375, %v4376
    %v4378 = vsel %vm4230, %v2818, -inf
    %v4379 = vrot.slane %v4378, 4
    %v4380 = vmax.f32 %v4378, %v4379
    %v4381 = vrot.slane %v4380, 2
    %v4382 = vmax.f32 %v4380, %v4381
    %v4383 = vrot.slane %v4382, 1
    %v4384 = vmax.f32 %v4382, %v4383
    %v4385 = vsel %vm4230, %v2817, -inf
    %v4386 = vrot.slane %v4385, 4
    %v4387 = vmax.f32 %v4385, %v4386
    %v4388 = vrot.slane %v4387, 2
    %v4389 = vmax.f32 %v4387, %v4388
    %v4390 = vrot.slane %v4389, 1
    %v4391 = vmax.f32 %v4389, %v4390
    %v4392 = vsel %vm4230, %v2819, -inf
    %v4393 = vrot.slane %v4392, 4
    %v4394 = vmax.f32 %v4392, %v4393
    %v4395 = vrot.slane %v4394, 2
    %v4396 = vmax.f32 %v4394, %v4395
    %v4397 = vrot.slane %v4396, 1
    %v4398 = vmax.f32 %v4396, %v4397
    %v4399 = vsel %vm4230, %v2827, -inf
    %v4400 = vrot.slane %v4399, 4
    %v4401 = vmax.f32 %v4399, %v4400
    %v4402 = vrot.slane %v4401, 2
    %v4403 = vmax.f32 %v4401, %v4402
    %v4404 = vrot.slane %v4403, 1
    %v4405 = vmax.f32 %v4403, %v4404
    %v4406 = vsel %vm4230, %v2835, -inf
    %v4407 = vrot.slane %v4406, 4
    %v4408 = vmax.f32 %v4406, %v4407
    %v4409 = vrot.slane %v4408, 2
    %v4410 = vmax.f32 %v4408, %v4409
    %v4411 = vrot.slane %v4410, 1
    %v4412 = vmax.f32 %v4410, %v4411
    %v4413 = vsel %vm4230, %v2834, -inf
    %v4414 = vrot.slane %v4413, 4
    %v4415 = vmax.f32 %v4413, %v4414
    %v4416 = vrot.slane %v4415, 2
    %v4417 = vmax.f32 %v4415, %v4416
    %v4418 = vrot.slane %v4417, 1
    %v4419 = vmax.f32 %v4417, %v4418
    %v4420 = vsel %vm4230, %v2836, -inf
    %v4421 = vrot.slane %v4420, 4
    %v4422 = vmax.f32 %v4420, %v4421
    %v4423 = vrot.slane %v4422, 2
    %v4424 = vmax.f32 %v4422, %v4423
    %v4425 = vrot.slane %v4424, 1
    %v4426 = vmax.f32 %v4424, %v4425
    %v4427 = vsel %vm4230, %v2844, -inf
    %v4428 = vrot.slane %v4427, 4
    %v4429 = vmax.f32 %v4427, %v4428
    %v4430 = vrot.slane %v4429, 2
    %v4431 = vmax.f32 %v4429, %v4430
    %v4432 = vrot.slane %v4431, 1
    %v4433 = vmax.f32 %v4431, %v4432
    %v4434 = vsel %vm4230, %v2852, -inf
    %v4435 = vrot.slane %v4434, 4
    %v4436 = vmax.f32 %v4434, %v4435
    %v4437 = vrot.slane %v4436, 2
    %v4438 = vmax.f32 %v4436, %v4437
    %v4439 = vrot.slane %v4438, 1
    %v4440 = vmax.f32 %v4438, %v4439
    %v4441 = vsel %vm4230, %v2851, -inf
    %v4442 = vrot.slane %v4441, 4
    %v4443 = vmax.f32 %v4441, %v4442
    %v4444 = vrot.slane %v4443, 2
    %v4445 = vmax.f32 %v4443, %v4444
    %v4446 = vrot.slane %v4445, 1
    %v4447 = vmax.f32 %v4445, %v4446
    %v4448 = vsel %vm4230, %v2853, -inf
    %v4449 = vrot.slane %v4448, 4
    %v4450 = vmax.f32 %v4448, %v4449
    %v4451 = vrot.slane %v4450, 2
    %v4452 = vmax.f32 %v4450, %v4451
    %v4453 = vrot.slane %v4452, 1
    %v4454 = vmax.f32 %v4452, %v4453
    %v4455 = vsel %vm4230, %v2861, -inf
    %v4456 = vrot.slane %v4455, 4
    %v4457 = vmax.f32 %v4455, %v4456
    %v4458 = vrot.slane %v4457, 2
    %v4459 = vmax.f32 %v4457, %v4458
    %v4460 = vrot.slane %v4459, 1
    %v4461 = vmax.f32 %v4459, %v4460
    %v4462 = vsel %vm4230, %v2869, -inf
    %v4463 = vrot.slane %v4462, 4
    %v4464 = vmax.f32 %v4462, %v4463
    %v4465 = vrot.slane %v4464, 2
    %v4466 = vmax.f32 %v4464, %v4465
    %v4467 = vrot.slane %v4466, 1
    %v4468 = vmax.f32 %v4466, %v4467
    %v4469 = vsel %vm4230, %v2868, -inf
    %v4470 = vrot.slane %v4469, 4
    %v4471 = vmax.f32 %v4469, %v4470
    %v4472 = vrot.slane %v4471, 2
    %v4473 = vmax.f32 %v4471, %v4472
    %v4474 = vrot.slane %v4473, 1
    %v4475 = vmax.f32 %v4473, %v4474
    %v4476 = vsel %vm4230, %v2870, -inf
    %v4477 = vrot.slane %v4476, 4
    %v4478 = vmax.f32 %v4476, %v4477
    %v4479 = vrot.slane %v4478, 2
    %v4480 = vmax.f32 %v4478, %v4479
    %v4481 = vrot.slane %v4480, 1
    %v4482 = vmax.f32 %v4480, %v4481
    %v4483 = vsel %vm4230, %v2878, -inf
    %v4484 = vrot.slane %v4483, 4
    %v4485 = vmax.f32 %v4483, %v4484
    %v4486 = vrot.slane %v4485, 2
    %v4487 = vmax.f32 %v4485, %v4486
    %v4488 = vrot.slane %v4487, 1
    %v4489 = vmax.f32 %v4487, %v4488
    %v4490 = vsel %vm4230, %v2886, -inf
    %v4491 = vrot.slane %v4490, 4
    %v4492 = vmax.f32 %v4490, %v4491
    %v4493 = vrot.slane %v4492, 2
    %v4494 = vmax.f32 %v4492, %v4493
    %v4495 = vrot.slane %v4494, 1
    %v4496 = vmax.f32 %v4494, %v4495
    %v4497 = vsel %vm4230, %v2885, -inf
    %v4498 = vrot.slane %v4497, 4
    %v4499 = vmax.f32 %v4497, %v4498
    %v4500 = vrot.slane %v4499, 2
    %v4501 = vmax.f32 %v4499, %v4500
    %v4502 = vrot.slane %v4501, 1
    %v4503 = vmax.f32 %v4501, %v4502
    %v4504 = vsel %vm4230, %v2887, -inf
    %v4505 = vrot.slane %v4504, 4
    %v4506 = vmax.f32 %v4504, %v4505
    %v4507 = vrot.slane %v4506, 2
    %v4508 = vmax.f32 %v4506, %v4507
    %v4509 = vrot.slane %v4508, 1
    %v4510 = vmax.f32 %v4508, %v4509
    %v4511 = vsel %vm4230, %v2895, -inf
    %v4512 = vrot.slane %v4511, 4
    %v4513 = vmax.f32 %v4511, %v4512
    %v4514 = vrot.slane %v4513, 2
    %v4515 = vmax.f32 %v4513, %v4514
    %v4516 = vrot.slane %v4515, 1
    %v4517 = vmax.f32 %v4515, %v4516
    %v4518 = vsel %vm4230, %v2903, -inf
    %v4519 = vrot.slane %v4518, 4
    %v4520 = vmax.f32 %v4518, %v4519
    %v4521 = vrot.slane %v4520, 2
    %v4522 = vmax.f32 %v4520, %v4521
    %v4523 = vrot.slane %v4522, 1
    %v4524 = vmax.f32 %v4522, %v4523
    %v4525 = vsel %vm4230, %v2902, -inf
    %v4526 = vrot.slane %v4525, 4
    %v4527 = vmax.f32 %v4525, %v4526
    %v4528 = vrot.slane %v4527, 2
    %v4529 = vmax.f32 %v4527, %v4528
    %v4530 = vrot.slane %v4529, 1
    %v4531 = vmax.f32 %v4529, %v4530
    %v4532 = vsel %vm4230, %v2904, -inf
    %v4533 = vrot.slane %v4532, 4
    %v4534 = vmax.f32 %v4532, %v4533
    %v4535 = vrot.slane %v4534, 2
    %v4536 = vmax.f32 %v4534, %v4535
    %v4537 = vrot.slane %v4536, 1
    %v4538 = vmax.f32 %v4536, %v4537
    %v4539 = vsel %vm4230, %v2912, -inf
    %v4540 = vrot.slane %v4539, 4
    %v4541 = vmax.f32 %v4539, %v4540
    %v4542 = vrot.slane %v4541, 2
    %v4543 = vmax.f32 %v4541, %v4542
    %v4544 = vrot.slane %v4543, 1
    %v4545 = vmax.f32 %v4543, %v4544
    %v4546 = vsel %vm4230, %v2920, -inf
    %v4547 = vrot.slane %v4546, 4
    %v4548 = vmax.f32 %v4546, %v4547
    %v4549 = vrot.slane %v4548, 2
    %v4550 = vmax.f32 %v4548, %v4549
    %v4551 = vrot.slane %v4550, 1
    %v4552 = vmax.f32 %v4550, %v4551
    %v4553 = vsel %vm4230, %v2919, -inf
    %v4554 = vrot.slane %v4553, 4
    %v4555 = vmax.f32 %v4553, %v4554
    %v4556 = vrot.slane %v4555, 2
    %v4557 = vmax.f32 %v4555, %v4556
    %v4558 = vrot.slane %v4557, 1
    %v4559 = vmax.f32 %v4557, %v4558
    %v4560 = vsel %vm4230, %v2921, -inf
    %v4561 = vrot.slane %v4560, 4
    %v4562 = vmax.f32 %v4560, %v4561
    %v4563 = vrot.slane %v4562, 2
    %v4564 = vmax.f32 %v4562, %v4563
    %v4565 = vrot.slane %v4564, 1
    %v4566 = vmax.f32 %v4564, %v4565
    %v4567 = vsel %vm4230, %v2929, -inf
    %v4568 = vrot.slane %v4567, 4
    %v4569 = vmax.f32 %v4567, %v4568
    %v4570 = vrot.slane %v4569, 2
    %v4571 = vmax.f32 %v4569, %v4570
    %v4572 = vrot.slane %v4571, 1
    %v4573 = vmax.f32 %v4571, %v4572
    %v4574 = vsel %vm4230, %v2937, -inf
    %v4575 = vrot.slane %v4574, 4
    %v4576 = vmax.f32 %v4574, %v4575
    %v4577 = vrot.slane %v4576, 2
    %v4578 = vmax.f32 %v4576, %v4577
    %v4579 = vrot.slane %v4578, 1
    %v4580 = vmax.f32 %v4578, %v4579
    %v4581 = vsel %vm4230, %v2936, -inf
    %v4582 = vrot.slane %v4581, 4
    %v4583 = vmax.f32 %v4581, %v4582
    %v4584 = vrot.slane %v4583, 2
    %v4585 = vmax.f32 %v4583, %v4584
    %v4586 = vrot.slane %v4585, 1
    %v4587 = vmax.f32 %v4585, %v4586
    %v4588 = vsel %vm4230, %v2938, -inf
    %v4589 = vrot.slane %v4588, 4
    %v4590 = vmax.f32 %v4588, %v4589
    %v4591 = vrot.slane %v4590, 2
    %v4592 = vmax.f32 %v4590, %v4591
    %v4593 = vrot.slane %v4592, 1
    %v4594 = vmax.f32 %v4592, %v4593
    %v4595 = vsel %vm4230, %v2946, -inf
    %v4596 = vrot.slane %v4595, 4
    %v4597 = vmax.f32 %v4595, %v4596
    %v4598 = vrot.slane %v4597, 2
    %v4599 = vmax.f32 %v4597, %v4598
    %v4600 = vrot.slane %v4599, 1
    %v4601 = vmax.f32 %v4599, %v4600
    %v4602 = vsel %vm4230, %v2954, -inf
    %v4603 = vrot.slane %v4602, 4
    %v4604 = vmax.f32 %v4602, %v4603
    %v4605 = vrot.slane %v4604, 2
    %v4606 = vmax.f32 %v4604, %v4605
    %v4607 = vrot.slane %v4606, 1
    %v4608 = vmax.f32 %v4606, %v4607
    %v4609 = vsel %vm4230, %v2953, -inf
    %v4610 = vrot.slane %v4609, 4
    %v4611 = vmax.f32 %v4609, %v4610
    %v4612 = vrot.slane %v4611, 2
    %v4613 = vmax.f32 %v4611, %v4612
    %v4614 = vrot.slane %v4613, 1
    %v4615 = vmax.f32 %v4613, %v4614
    %v4616 = vsel %vm4230, %v2955, -inf
    %v4617 = vrot.slane %v4616, 4
    %v4618 = vmax.f32 %v4616, %v4617
    %v4619 = vrot.slane %v4618, 2
    %v4620 = vmax.f32 %v4618, %v4619
    %v4621 = vrot.slane %v4620, 1
    %v4622 = vmax.f32 %v4620, %v4621
    %v4623 = vsel %vm4230, %v2963, -inf
    %v4624 = vrot.slane %v4623, 4
    %v4625 = vmax.f32 %v4623, %v4624
    %v4626 = vrot.slane %v4625, 2
    %v4627 = vmax.f32 %v4625, %v4626
    %v4628 = vrot.slane %v4627, 1
    %v4629 = vmax.f32 %v4627, %v4628
    %v4630 = vsel %vm4230, %v2971, -inf
    %v4631 = vrot.slane %v4630, 4
    %v4632 = vmax.f32 %v4630, %v4631
    %v4633 = vrot.slane %v4632, 2
    %v4634 = vmax.f32 %v4632, %v4633
    %v4635 = vrot.slane %v4634, 1
    %v4636 = vmax.f32 %v4634, %v4635
    %v4637 = vsel %vm4230, %v2970, -inf
    %v4638 = vrot.slane %v4637, 4
    %v4639 = vmax.f32 %v4637, %v4638
    %v4640 = vrot.slane %v4639, 2
    %v4641 = vmax.f32 %v4639, %v4640
    %v4642 = vrot.slane %v4641, 1
    %v4643 = vmax.f32 %v4641, %v4642
    %v4644 = vsel %vm4230, %v2972, -inf
    %v4645 = vrot.slane %v4644, 4
    %v4646 = vmax.f32 %v4644, %v4645
    %v4647 = vrot.slane %v4646, 2
    %v4648 = vmax.f32 %v4646, %v4647
    %v4649 = vrot.slane %v4648, 1
    %v4650 = vmax.f32 %v4648, %v4649
    %v4651 = vsel %vm4230, %v2980, -inf
    %v4652 = vrot.slane %v4651, 4
    %v4653 = vmax.f32 %v4651, %v4652
    %v4654 = vrot.slane %v4653, 2
    %v4655 = vmax.f32 %v4653, %v4654
    %v4656 = vrot.slane %v4655, 1
    %v4657 = vmax.f32 %v4655, %v4656
    %v4658 = vsel %vm4230, %v2988, -inf
    %v4659 = vrot.slane %v4658, 4
    %v4660 = vmax.f32 %v4658, %v4659
    %v4661 = vrot.slane %v4660, 2
    %v4662 = vmax.f32 %v4660, %v4661
    %v4663 = vrot.slane %v4662, 1
    %v4664 = vmax.f32 %v4662, %v4663
    %v4665 = vsel %vm4230, %v2987, -inf
    %v4666 = vrot.slane %v4665, 4
    %v4667 = vmax.f32 %v4665, %v4666
    %v4668 = vrot.slane %v4667, 2
    %v4669 = vmax.f32 %v4667, %v4668
    %v4670 = vrot.slane %v4669, 1
    %v4671 = vmax.f32 %v4669, %v4670
    %v4672 = vsel %vm4230, %v2989, -inf
    %v4673 = vrot.slane %v4672, 4
    %v4674 = vmax.f32 %v4672, %v4673
    %v4675 = vrot.slane %v4674, 2
    %v4676 = vmax.f32 %v4674, %v4675
    %v4677 = vrot.slane %v4676, 1
    %v4678 = vmax.f32 %v4676, %v4677
    %v4679 = vsel %vm4230, %v2997, -inf
    %v4680 = vrot.slane %v4679, 4
    %v4681 = vmax.f32 %v4679, %v4680
    %v4682 = vrot.slane %v4681, 2
    %v4683 = vmax.f32 %v4681, %v4682
    %v4684 = vrot.slane %v4683, 1
    %v4685 = vmax.f32 %v4683, %v4684
    %v4686 = vsel %vm4230, %v3005, -inf
    %v4687 = vrot.slane %v4686, 4
    %v4688 = vmax.f32 %v4686, %v4687
    %v4689 = vrot.slane %v4688, 2
    %v4690 = vmax.f32 %v4688, %v4689
    %v4691 = vrot.slane %v4690, 1
    %v4692 = vmax.f32 %v4690, %v4691
    %v4693 = vsel %vm4230, %v3004, -inf
    %v4694 = vrot.slane %v4693, 4
    %v4695 = vmax.f32 %v4693, %v4694
    %v4696 = vrot.slane %v4695, 2
    %v4697 = vmax.f32 %v4695, %v4696
    %v4698 = vrot.slane %v4697, 1
    %v4699 = vmax.f32 %v4697, %v4698
    %v4700 = vsel %vm4230, %v3006, -inf
    %v4701 = vrot.slane %v4700, 4
    %v4702 = vmax.f32 %v4700, %v4701
    %v4703 = vrot.slane %v4702, 2
    %v4704 = vmax.f32 %v4702, %v4703
    %v4705 = vrot.slane %v4704, 1
    %v4706 = vmax.f32 %v4704, %v4705
    %v4707 = vsel %vm4230, %v3014, -inf
    %v4708 = vrot.slane %v4707, 4
    %v4709 = vmax.f32 %v4707, %v4708
    %v4710 = vrot.slane %v4709, 2
    %v4711 = vmax.f32 %v4709, %v4710
    %v4712 = vrot.slane %v4711, 1
    %v4713 = vmax.f32 %v4711, %v4712
    %v4714 = vsel %vm4230, %v3022, -inf
    %v4715 = vrot.slane %v4714, 4
    %v4716 = vmax.f32 %v4714, %v4715
    %v4717 = vrot.slane %v4716, 2
    %v4718 = vmax.f32 %v4716, %v4717
    %v4719 = vrot.slane %v4718, 1
    %v4720 = vmax.f32 %v4718, %v4719
    %v4721 = vsel %vm4230, %v3021, -inf
    %v4722 = vrot.slane %v4721, 4
    %v4723 = vmax.f32 %v4721, %v4722
    %v4724 = vrot.slane %v4723, 2
    %v4725 = vmax.f32 %v4723, %v4724
    %v4726 = vrot.slane %v4725, 1
    %v4727 = vmax.f32 %v4725, %v4726
    %v4728 = vsel %vm4230, %v3023, -inf
    %v4729 = vrot.slane %v4728, 4
    %v4730 = vmax.f32 %v4728, %v4729
    %v4731 = vrot.slane %v4730, 2
    %v4732 = vmax.f32 %v4730, %v4731
    %v4733 = vrot.slane %v4732, 1
    %v4734 = vmax.f32 %v4732, %v4733
    %v4735 = vsel %vm4230, %v3031, -inf
    %v4736 = vrot.slane %v4735, 4
    %v4737 = vmax.f32 %v4735, %v4736
    %v4738 = vrot.slane %v4737, 2
    %v4739 = vmax.f32 %v4737, %v4738
    %v4740 = vrot.slane %v4739, 1
    %v4741 = vmax.f32 %v4739, %v4740
    %v4742 = vsel %vm4230, %v3039, -inf
    %v4743 = vrot.slane %v4742, 4
    %v4744 = vmax.f32 %v4742, %v4743
    %v4745 = vrot.slane %v4744, 2
    %v4746 = vmax.f32 %v4744, %v4745
    %v4747 = vrot.slane %v4746, 1
    %v4748 = vmax.f32 %v4746, %v4747
    %v4749 = vsel %vm4230, %v3038, -inf
    %v4750 = vrot.slane %v4749, 4
    %v4751 = vmax.f32 %v4749, %v4750
    %v4752 = vrot.slane %v4751, 2
    %v4753 = vmax.f32 %v4751, %v4752
    %v4754 = vrot.slane %v4753, 1
    %v4755 = vmax.f32 %v4753, %v4754
    %v4756 = vsel %vm4230, %v3040, -inf
    %v4757 = vrot.slane %v4756, 4
    %v4758 = vmax.f32 %v4756, %v4757
    %v4759 = vrot.slane %v4758, 2
    %v4760 = vmax.f32 %v4758, %v4759
    %v4761 = vrot.slane %v4760, 1
    %v4762 = vmax.f32 %v4760, %v4761
    %v4763 = vsel %vm4230, %v3048, -inf
    %v4764 = vrot.slane %v4763, 4
    %v4765 = vmax.f32 %v4763, %v4764
    %v4766 = vrot.slane %v4765, 2
    %v4767 = vmax.f32 %v4765, %v4766
    %v4768 = vrot.slane %v4767, 1
    %v4769 = vmax.f32 %v4767, %v4768
    %v4770 = vsel %vm4230, %v3056, -inf
    %v4771 = vrot.slane %v4770, 4
    %v4772 = vmax.f32 %v4770, %v4771
    %v4773 = vrot.slane %v4772, 2
    %v4774 = vmax.f32 %v4772, %v4773
    %v4775 = vrot.slane %v4774, 1
    %v4776 = vmax.f32 %v4774, %v4775
    %v4777 = vsel %vm4230, %v3055, -inf
    %v4778 = vrot.slane %v4777, 4
    %v4779 = vmax.f32 %v4777, %v4778
    %v4780 = vrot.slane %v4779, 2
    %v4781 = vmax.f32 %v4779, %v4780
    %v4782 = vrot.slane %v4781, 1
    %v4783 = vmax.f32 %v4781, %v4782
    %v4784 = vsel %vm4230, %v3057, -inf
    %v4785 = vrot.slane %v4784, 4
    %v4786 = vmax.f32 %v4784, %v4785
    %v4787 = vrot.slane %v4786, 2
    %v4788 = vmax.f32 %v4786, %v4787
    %v4789 = vrot.slane %v4788, 1
    %v4790 = vmax.f32 %v4788, %v4789
    %v4791 = vsel %vm4230, %v3065, -inf
    %v4792 = vrot.slane %v4791, 4
    %v4793 = vmax.f32 %v4791, %v4792
    %v4794 = vrot.slane %v4793, 2
    %v4795 = vmax.f32 %v4793, %v4794
    %v4796 = vrot.slane %v4795, 1
    %v4797 = vmax.f32 %v4795, %v4796
    %v4798 = vsel %vm4230, %v3073, -inf
    %v4799 = vrot.slane %v4798, 4
    %v4800 = vmax.f32 %v4798, %v4799
    %v4801 = vrot.slane %v4800, 2
    %v4802 = vmax.f32 %v4800, %v4801
    %v4803 = vrot.slane %v4802, 1
    %v4804 = vmax.f32 %v4802, %v4803
    %v4805 = vsel %vm4230, %v3072, -inf
    %v4806 = vrot.slane %v4805, 4
    %v4807 = vmax.f32 %v4805, %v4806
    %v4808 = vrot.slane %v4807, 2
    %v4809 = vmax.f32 %v4807, %v4808
    %v4810 = vrot.slane %v4809, 1
    %v4811 = vmax.f32 %v4809, %v4810
    %v4812 = vsel %vm4230, %v3074, -inf
    %v4813 = vrot.slane %v4812, 4
    %v4814 = vmax.f32 %v4812, %v4813
    %v4815 = vrot.slane %v4814, 2
    %v4816 = vmax.f32 %v4814, %v4815
    %v4817 = vrot.slane %v4816, 1
    %v4818 = vmax.f32 %v4816, %v4817
    %v4819 = vsel %vm4230, %v3082, -inf
    %v4820 = vrot.slane %v4819, 4
    %v4821 = vmax.f32 %v4819, %v4820
    %v4822 = vrot.slane %v4821, 2
    %v4823 = vmax.f32 %v4821, %v4822
    %v4824 = vrot.slane %v4823, 1
    %v4825 = vmax.f32 %v4823, %v4824
    %v4826 = vsel %vm4230, %v3090, -inf
    %v4827 = vrot.slane %v4826, 4
    %v4828 = vmax.f32 %v4826, %v4827
    %v4829 = vrot.slane %v4828, 2
    %v4830 = vmax.f32 %v4828, %v4829
    %v4831 = vrot.slane %v4830, 1
    %v4832 = vmax.f32 %v4830, %v4831
    %v4833 = vsel %vm4230, %v3089, -inf
    %v4834 = vrot.slane %v4833, 4
    %v4835 = vmax.f32 %v4833, %v4834
    %v4836 = vrot.slane %v4835, 2
    %v4837 = vmax.f32 %v4835, %v4836
    %v4838 = vrot.slane %v4837, 1
    %v4839 = vmax.f32 %v4837, %v4838
    %v4840 = vsel %vm4230, %v3091, -inf
    %v4841 = vrot.slane %v4840, 4
    %v4842 = vmax.f32 %v4840, %v4841
    %v4843 = vrot.slane %v4842, 2
    %v4844 = vmax.f32 %v4842, %v4843
    %v4845 = vrot.slane %v4844, 1
    %v4846 = vmax.f32 %v4844, %v4845
    %v4847 = vsel %vm4230, %v3099, -inf
    %v4848 = vrot.slane %v4847, 4
    %v4849 = vmax.f32 %v4847, %v4848
    %v4850 = vrot.slane %v4849, 2
    %v4851 = vmax.f32 %v4849, %v4850
    %v4852 = vrot.slane %v4851, 1
    %v4853 = vmax.f32 %v4851, %v4852
    %v4854 = vsel %vm4230, %v3107, -inf
    %v4855 = vrot.slane %v4854, 4
    %v4856 = vmax.f32 %v4854, %v4855
    %v4857 = vrot.slane %v4856, 2
    %v4858 = vmax.f32 %v4856, %v4857
    %v4859 = vrot.slane %v4858, 1
    %v4860 = vmax.f32 %v4858, %v4859
    %v4861 = vsel %vm4230, %v3106, -inf
    %v4862 = vrot.slane %v4861, 4
    %v4863 = vmax.f32 %v4861, %v4862
    %v4864 = vrot.slane %v4863, 2
    %v4865 = vmax.f32 %v4863, %v4864
    %v4866 = vrot.slane %v4865, 1
    %v4867 = vmax.f32 %v4865, %v4866
    %v4868 = vsel %vm4230, %v3108, -inf
    %v4869 = vrot.slane %v4868, 4
    %v4870 = vmax.f32 %v4868, %v4869
    %v4871 = vrot.slane %v4870, 2
    %v4872 = vmax.f32 %v4870, %v4871
    %v4873 = vrot.slane %v4872, 1
    %v4874 = vmax.f32 %v4872, %v4873
    %v4875 = vsel %vm4230, %v3116, -inf
    %v4876 = vrot.slane %v4875, 4
    %v4877 = vmax.f32 %v4875, %v4876
    %v4878 = vrot.slane %v4877, 2
    %v4879 = vmax.f32 %v4877, %v4878
    %v4880 = vrot.slane %v4879, 1
    %v4881 = vmax.f32 %v4879, %v4880
    %v4882 = vsel %vm4230, %v3124, -inf
    %v4883 = vrot.slane %v4882, 4
    %v4884 = vmax.f32 %v4882, %v4883
    %v4885 = vrot.slane %v4884, 2
    %v4886 = vmax.f32 %v4884, %v4885
    %v4887 = vrot.slane %v4886, 1
    %v4888 = vmax.f32 %v4886, %v4887
    %v4889 = vsel %vm4230, %v3123, -inf
    %v4890 = vrot.slane %v4889, 4
    %v4891 = vmax.f32 %v4889, %v4890
    %v4892 = vrot.slane %v4891, 2
    %v4893 = vmax.f32 %v4891, %v4892
    %v4894 = vrot.slane %v4893, 1
    %v4895 = vmax.f32 %v4893, %v4894
    %v4896 = vsel %vm4230, %v3125, -inf
    %v4897 = vrot.slane %v4896, 4
    %v4898 = vmax.f32 %v4896, %v4897
    %v4899 = vrot.slane %v4898, 2
    %v4900 = vmax.f32 %v4898, %v4899
    %v4901 = vrot.slane %v4900, 1
    %v4902 = vmax.f32 %v4900, %v4901
    %v4903 = vsel %vm4230, %v3133, -inf
    %v4904 = vrot.slane %v4903, 4
    %v4905 = vmax.f32 %v4903, %v4904
    %v4906 = vrot.slane %v4905, 2
    %v4907 = vmax.f32 %v4905, %v4906
    %v4908 = vrot.slane %v4907, 1
    %v4909 = vmax.f32 %v4907, %v4908
    %v4910 = vsel %vm4230, %v3141, -inf
    %v4911 = vrot.slane %v4910, 4
    %v4912 = vmax.f32 %v4910, %v4911
    %v4913 = vrot.slane %v4912, 2
    %v4914 = vmax.f32 %v4912, %v4913
    %v4915 = vrot.slane %v4914, 1
    %v4916 = vmax.f32 %v4914, %v4915
    %v4917 = vsel %vm4230, %v3140, -inf
    %v4918 = vrot.slane %v4917, 4
    %v4919 = vmax.f32 %v4917, %v4918
    %v4920 = vrot.slane %v4919, 2
    %v4921 = vmax.f32 %v4919, %v4920
    %v4922 = vrot.slane %v4921, 1
    %v4923 = vmax.f32 %v4921, %v4922
    %v4924 = vsel %vm4230, %v3142, -inf
    %v4925 = vrot.slane %v4924, 4
    %v4926 = vmax.f32 %v4924, %v4925
    %v4927 = vrot.slane %v4926, 2
    %v4928 = vmax.f32 %v4926, %v4927
    %v4929 = vrot.slane %v4928, 1
    %v4930 = vmax.f32 %v4928, %v4929
    %v4931 = vsel %vm4230, %v3150, -inf
    %v4932 = vrot.slane %v4931, 4
    %v4933 = vmax.f32 %v4931, %v4932
    %v4934 = vrot.slane %v4933, 2
    %v4935 = vmax.f32 %v4933, %v4934
    %v4936 = vrot.slane %v4935, 1
    %v4937 = vmax.f32 %v4935, %v4936
    %v4938 = vsel %vm4230, %v3158, -inf
    %v4939 = vrot.slane %v4938, 4
    %v4940 = vmax.f32 %v4938, %v4939
    %v4941 = vrot.slane %v4940, 2
    %v4942 = vmax.f32 %v4940, %v4941
    %v4943 = vrot.slane %v4942, 1
    %v4944 = vmax.f32 %v4942, %v4943
    %v4945 = vsel %vm4230, %v3157, -inf
    %v4946 = vrot.slane %v4945, 4
    %v4947 = vmax.f32 %v4945, %v4946
    %v4948 = vrot.slane %v4947, 2
    %v4949 = vmax.f32 %v4947, %v4948
    %v4950 = vrot.slane %v4949, 1
    %v4951 = vmax.f32 %v4949, %v4950
    %v4952 = vsel %vm4230, %v3159, -inf
    %v4953 = vrot.slane %v4952, 4
    %v4954 = vmax.f32 %v4952, %v4953
    %v4955 = vrot.slane %v4954, 2
    %v4956 = vmax.f32 %v4954, %v4955
    %v4957 = vrot.slane %v4956, 1
    %v4958 = vmax.f32 %v4956, %v4957
    %v4959 = vsel %vm4230, %v3167, -inf
    %v4960 = vrot.slane %v4959, 4
    %v4961 = vmax.f32 %v4959, %v4960
    %v4962 = vrot.slane %v4961, 2
    %v4963 = vmax.f32 %v4961, %v4962
    %v4964 = vrot.slane %v4963, 1
    %v4965 = vmax.f32 %v4963, %v4964
    %v4966 = vsel %vm4230, %v3175, -inf
    %v4967 = vrot.slane %v4966, 4
    %v4968 = vmax.f32 %v4966, %v4967
    %v4969 = vrot.slane %v4968, 2
    %v4970 = vmax.f32 %v4968, %v4969
    %v4971 = vrot.slane %v4970, 1
    %v4972 = vmax.f32 %v4970, %v4971
    %v4973 = vsel %vm4230, %v3174, -inf
    %v4974 = vrot.slane %v4973, 4
    %v4975 = vmax.f32 %v4973, %v4974
    %v4976 = vrot.slane %v4975, 2
    %v4977 = vmax.f32 %v4975, %v4976
    %v4978 = vrot.slane %v4977, 1
    %v4979 = vmax.f32 %v4977, %v4978
    %v4980 = vsel %vm4230, %v3176, -inf
    %v4981 = vrot.slane %v4980, 4
    %v4982 = vmax.f32 %v4980, %v4981
    %v4983 = vrot.slane %v4982, 2
    %v4984 = vmax.f32 %v4982, %v4983
    %v4985 = vrot.slane %v4984, 1
    %v4986 = vmax.f32 %v4984, %v4985
    %v4987 = vsel %vm4230, %v3184, -inf
    %v4988 = vrot.slane %v4987, 4
    %v4989 = vmax.f32 %v4987, %v4988
    %v4990 = vrot.slane %v4989, 2
    %v4991 = vmax.f32 %v4989, %v4990
    %v4992 = vrot.slane %v4991, 1
    %v4993 = vmax.f32 %v4991, %v4992
    %v4994 = vsel %vm4230, %v3192, -inf
    %v4995 = vrot.slane %v4994, 4
    %v4996 = vmax.f32 %v4994, %v4995
    %v4997 = vrot.slane %v4996, 2
    %v4998 = vmax.f32 %v4996, %v4997
    %v4999 = vrot.slane %v4998, 1
    %v5000 = vmax.f32 %v4998, %v4999
    %v5001 = vsel %vm4230, %v3191, -inf
    %v5002 = vrot.slane %v5001, 4
    %v5003 = vmax.f32 %v5001, %v5002
    %v5004 = vrot.slane %v5003, 2
    %v5005 = vmax.f32 %v5003, %v5004
    %v5006 = vrot.slane %v5005, 1
    %v5007 = vmax.f32 %v5005, %v5006
    %v5008 = vsel %vm4230, %v3193, -inf
    %v5009 = vrot.slane %v5008, 4
    %v5010 = vmax.f32 %v5008, %v5009
    %v5011 = vrot.slane %v5010, 2
    %v5012 = vmax.f32 %v5010, %v5011
    %v5013 = vrot.slane %v5012, 1
    %v5014 = vmax.f32 %v5012, %v5013
    %v5015 = vsel %vm4230, %v3201, -inf
    %v5016 = vrot.slane %v5015, 4
    %v5017 = vmax.f32 %v5015, %v5016
    %v5018 = vrot.slane %v5017, 2
    %v5019 = vmax.f32 %v5017, %v5018
    %v5020 = vrot.slane %v5019, 1
    %v5021 = vmax.f32 %v5019, %v5020
    %v5022 = vsel %vm4230, %v3209, -inf
    %v5023 = vrot.slane %v5022, 4
    %v5024 = vmax.f32 %v5022, %v5023
    %v5025 = vrot.slane %v5024, 2
    %v5026 = vmax.f32 %v5024, %v5025
    %v5027 = vrot.slane %v5026, 1
    %v5028 = vmax.f32 %v5026, %v5027
    %v5029 = vsel %vm4230, %v3208, -inf
    %v5030 = vrot.slane %v5029, 4
    %v5031 = vmax.f32 %v5029, %v5030
    %v5032 = vrot.slane %v5031, 2
    %v5033 = vmax.f32 %v5031, %v5032
    %v5034 = vrot.slane %v5033, 1
    %v5035 = vmax.f32 %v5033, %v5034
    %v5036 = vsel %vm4230, %v3210, -inf
    %v5037 = vrot.slane %v5036, 4
    %v5038 = vmax.f32 %v5036, %v5037
    %v5039 = vrot.slane %v5038, 2
    %v5040 = vmax.f32 %v5038, %v5039
    %v5041 = vrot.slane %v5040, 1
    %v5042 = vmax.f32 %v5040, %v5041
    %v5043 = vsel %vm4230, %v3218, -inf
    %v5044 = vrot.slane %v5043, 4
    %v5045 = vmax.f32 %v5043, %v5044
    %v5046 = vrot.slane %v5045, 2
    %v5047 = vmax.f32 %v5045, %v5046
    %v5048 = vrot.slane %v5047, 1
    %v5049 = vmax.f32 %v5047, %v5048
    %v5050 = vsel %vm4230, %v3226, -inf
    %v5051 = vrot.slane %v5050, 4
    %v5052 = vmax.f32 %v5050, %v5051
    %v5053 = vrot.slane %v5052, 2
    %v5054 = vmax.f32 %v5052, %v5053
    %v5055 = vrot.slane %v5054, 1
    %v5056 = vmax.f32 %v5054, %v5055
    %v5057 = vsel %vm4230, %v3225, -inf
    %v5058 = vrot.slane %v5057, 4
    %v5059 = vmax.f32 %v5057, %v5058
    %v5060 = vrot.slane %v5059, 2
    %v5061 = vmax.f32 %v5059, %v5060
    %v5062 = vrot.slane %v5061, 1
    %v5063 = vmax.f32 %v5061, %v5062
    %v5064 = vsel %vm4230, %v3227, -inf
    %v5065 = vrot.slane %v5064, 4
    %v5066 = vmax.f32 %v5064, %v5065
    %v5067 = vrot.slane %v5066, 2
    %v5068 = vmax.f32 %v5066, %v5067
    %v5069 = vrot.slane %v5068, 1
    %v5070 = vmax.f32 %v5068, %v5069
    %v5071 = vsel %vm4230, %v3235, -inf
    %v5072 = vrot.slane %v5071, 4
    %v5073 = vmax.f32 %v5071, %v5072
    %v5074 = vrot.slane %v5073, 2
    %v5075 = vmax.f32 %v5073, %v5074
    %v5076 = vrot.slane %v5075, 1
    %v5077 = vmax.f32 %v5075, %v5076
    %v5078 = vsel %vm4230, %v3243, -inf
    %v5079 = vrot.slane %v5078, 4
    %v5080 = vmax.f32 %v5078, %v5079
    %v5081 = vrot.slane %v5080, 2
    %v5082 = vmax.f32 %v5080, %v5081
    %v5083 = vrot.slane %v5082, 1
    %v5084 = vmax.f32 %v5082, %v5083
    %v5085 = vsel %vm4230, %v3242, -inf
    %v5086 = vrot.slane %v5085, 4
    %v5087 = vmax.f32 %v5085, %v5086
    %v5088 = vrot.slane %v5087, 2
    %v5089 = vmax.f32 %v5087, %v5088
    %v5090 = vrot.slane %v5089, 1
    %v5091 = vmax.f32 %v5089, %v5090
    %v5092 = vsel %vm4230, %v3244, -inf
    %v5093 = vrot.slane %v5092, 4
    %v5094 = vmax.f32 %v5092, %v5093
    %v5095 = vrot.slane %v5094, 2
    %v5096 = vmax.f32 %v5094, %v5095
    %v5097 = vrot.slane %v5096, 1
    %v5098 = vmax.f32 %v5096, %v5097
    %v5099 = vsel %vm4230, %v3252, -inf
    %v5100 = vrot.slane %v5099, 4
    %v5101 = vmax.f32 %v5099, %v5100
    %v5102 = vrot.slane %v5101, 2
    %v5103 = vmax.f32 %v5101, %v5102
    %v5104 = vrot.slane %v5103, 1
    %v5105 = vmax.f32 %v5103, %v5104
    %v5106 = vsel %vm4230, %v3260, -inf
    %v5107 = vrot.slane %v5106, 4
    %v5108 = vmax.f32 %v5106, %v5107
    %v5109 = vrot.slane %v5108, 2
    %v5110 = vmax.f32 %v5108, %v5109
    %v5111 = vrot.slane %v5110, 1
    %v5112 = vmax.f32 %v5110, %v5111
    %v5113 = vsel %vm4230, %v3259, -inf
    %v5114 = vrot.slane %v5113, 4
    %v5115 = vmax.f32 %v5113, %v5114
    %v5116 = vrot.slane %v5115, 2
    %v5117 = vmax.f32 %v5115, %v5116
    %v5118 = vrot.slane %v5117, 1
    %v5119 = vmax.f32 %v5117, %v5118
    %v5120 = vsel %vm4230, %v3261, -inf
    %v5121 = vrot.slane %v5120, 4
    %v5122 = vmax.f32 %v5120, %v5121
    %v5123 = vrot.slane %v5122, 2
    %v5124 = vmax.f32 %v5122, %v5123
    %v5125 = vrot.slane %v5124, 1
    %v5126 = vmax.f32 %v5124, %v5125
    %v5127 = vsel %vm4230, %v3269, -inf
    %v5128 = vrot.slane %v5127, 4
    %v5129 = vmax.f32 %v5127, %v5128
    %v5130 = vrot.slane %v5129, 2
    %v5131 = vmax.f32 %v5129, %v5130
    %v5132 = vrot.slane %v5131, 1
    %v5133 = vmax.f32 %v5131, %v5132
    %v5134 = vsel %vm4230, %v3277, -inf
    %v5135 = vrot.slane %v5134, 4
    %v5136 = vmax.f32 %v5134, %v5135
    %v5137 = vrot.slane %v5136, 2
    %v5138 = vmax.f32 %v5136, %v5137
    %v5139 = vrot.slane %v5138, 1
    %v5140 = vmax.f32 %v5138, %v5139
    %v5141 = vsel %vm4230, %v3276, -inf
    %v5142 = vrot.slane %v5141, 4
    %v5143 = vmax.f32 %v5141, %v5142
    %v5144 = vrot.slane %v5143, 2
    %v5145 = vmax.f32 %v5143, %v5144
    %v5146 = vrot.slane %v5145, 1
    %v5147 = vmax.f32 %v5145, %v5146
    %v5148 = vsel %vm4230, %v3278, -inf
    %v5149 = vrot.slane %v5148, 4
    %v5150 = vmax.f32 %v5148, %v5149
    %v5151 = vrot.slane %v5150, 2
    %v5152 = vmax.f32 %v5150, %v5151
    %v5153 = vrot.slane %v5152, 1
    %v5154 = vmax.f32 %v5152, %v5153
    %v5155 = vsel %vm4230, %v3286, -inf
    %v5156 = vrot.slane %v5155, 4
    %v5157 = vmax.f32 %v5155, %v5156
    %v5158 = vrot.slane %v5157, 2
    %v5159 = vmax.f32 %v5157, %v5158
    %v5160 = vrot.slane %v5159, 1
    %v5161 = vmax.f32 %v5159, %v5160
    %v5162 = vsel %vm4230, %v3294, -inf
    %v5163 = vrot.slane %v5162, 4
    %v5164 = vmax.f32 %v5162, %v5163
    %v5165 = vrot.slane %v5164, 2
    %v5166 = vmax.f32 %v5164, %v5165
    %v5167 = vrot.slane %v5166, 1
    %v5168 = vmax.f32 %v5166, %v5167
    %v5169 = vsel %vm4230, %v3293, -inf
    %v5170 = vrot.slane %v5169, 4
    %v5171 = vmax.f32 %v5169, %v5170
    %v5172 = vrot.slane %v5171, 2
    %v5173 = vmax.f32 %v5171, %v5172
    %v5174 = vrot.slane %v5173, 1
    %v5175 = vmax.f32 %v5173, %v5174
    %v5176 = vsel %vm4230, %v3295, -inf
    %v5177 = vrot.slane %v5176, 4
    %v5178 = vmax.f32 %v5176, %v5177
    %v5179 = vrot.slane %v5178, 2
    %v5180 = vmax.f32 %v5178, %v5179
    %v5181 = vrot.slane %v5180, 1
    %v5182 = vmax.f32 %v5180, %v5181
    %v5183 = vsel %vm4230, %v3303, -inf
    %v5184 = vrot.slane %v5183, 4
    %v5185 = vmax.f32 %v5183, %v5184
    %v5186 = vrot.slane %v5185, 2
    %v5187 = vmax.f32 %v5185, %v5186
    %v5188 = vrot.slane %v5187, 1
    %v5189 = vmax.f32 %v5187, %v5188
    %v5190 = vsel %vm4230, %v3311, -inf
    %v5191 = vrot.slane %v5190, 4
    %v5192 = vmax.f32 %v5190, %v5191
    %v5193 = vrot.slane %v5192, 2
    %v5194 = vmax.f32 %v5192, %v5193
    %v5195 = vrot.slane %v5194, 1
    %v5196 = vmax.f32 %v5194, %v5195
    %v5197 = vsel %vm4230, %v3310, -inf
    %v5198 = vrot.slane %v5197, 4
    %v5199 = vmax.f32 %v5197, %v5198
    %v5200 = vrot.slane %v5199, 2
    %v5201 = vmax.f32 %v5199, %v5200
    %v5202 = vrot.slane %v5201, 1
    %v5203 = vmax.f32 %v5201, %v5202
    %v5204 = vsel %vm4230, %v3312, -inf
    %v5205 = vrot.slane %v5204, 4
    %v5206 = vmax.f32 %v5204, %v5205
    %v5207 = vrot.slane %v5206, 2
    %v5208 = vmax.f32 %v5206, %v5207
    %v5209 = vrot.slane %v5208, 1
    %v5210 = vmax.f32 %v5208, %v5209
    %v5211 = vsel %vm4230, %v3320, -inf
    %v5212 = vrot.slane %v5211, 4
    %v5213 = vmax.f32 %v5211, %v5212
    %v5214 = vrot.slane %v5213, 2
    %v5215 = vmax.f32 %v5213, %v5214
    %v5216 = vrot.slane %v5215, 1
    %v5217 = vmax.f32 %v5215, %v5216
    %v5218 = vsel %vm4230, %v3328, -inf
    %v5219 = vrot.slane %v5218, 4
    %v5220 = vmax.f32 %v5218, %v5219
    %v5221 = vrot.slane %v5220, 2
    %v5222 = vmax.f32 %v5220, %v5221
    %v5223 = vrot.slane %v5222, 1
    %v5224 = vmax.f32 %v5222, %v5223
    %v5225 = vsel %vm4230, %v3327, -inf
    %v5226 = vrot.slane %v5225, 4
    %v5227 = vmax.f32 %v5225, %v5226
    %v5228 = vrot.slane %v5227, 2
    %v5229 = vmax.f32 %v5227, %v5228
    %v5230 = vrot.slane %v5229, 1
    %v5231 = vmax.f32 %v5229, %v5230
    %v5232 = vsel %vm4230, %v3329, -inf
    %v5233 = vrot.slane %v5232, 4
    %v5234 = vmax.f32 %v5232, %v5233
    %v5235 = vrot.slane %v5234, 2
    %v5236 = vmax.f32 %v5234, %v5235
    %v5237 = vrot.slane %v5236, 1
    %v5238 = vmax.f32 %v5236, %v5237
    %v5239 = vsel %vm4230, %v3337, -inf
    %v5240 = vrot.slane %v5239, 4
    %v5241 = vmax.f32 %v5239, %v5240
    %v5242 = vrot.slane %v5241, 2
    %v5243 = vmax.f32 %v5241, %v5242
    %v5244 = vrot.slane %v5243, 1
    %v5245 = vmax.f32 %v5243, %v5244
    %v5246 = vsel %vm4230, %v3345, -inf
    %v5247 = vrot.slane %v5246, 4
    %v5248 = vmax.f32 %v5246, %v5247
    %v5249 = vrot.slane %v5248, 2
    %v5250 = vmax.f32 %v5248, %v5249
    %v5251 = vrot.slane %v5250, 1
    %v5252 = vmax.f32 %v5250, %v5251
    %v5253 = vsel %vm4230, %v3344, -inf
    %v5254 = vrot.slane %v5253, 4
    %v5255 = vmax.f32 %v5253, %v5254
    %v5256 = vrot.slane %v5255, 2
    %v5257 = vmax.f32 %v5255, %v5256
    %v5258 = vrot.slane %v5257, 1
    %v5259 = vmax.f32 %v5257, %v5258
    %v5260 = vsel %vm4230, %v3346, -inf
    %v5261 = vrot.slane %v5260, 4
    %v5262 = vmax.f32 %v5260, %v5261
    %v5263 = vrot.slane %v5262, 2
    %v5264 = vmax.f32 %v5262, %v5263
    %v5265 = vrot.slane %v5264, 1
    %v5266 = vmax.f32 %v5264, %v5265
    %v5267 = vsel %vm4230, %v3354, -inf
    %v5268 = vrot.slane %v5267, 4
    %v5269 = vmax.f32 %v5267, %v5268
    %v5270 = vrot.slane %v5269, 2
    %v5271 = vmax.f32 %v5269, %v5270
    %v5272 = vrot.slane %v5271, 1
    %v5273 = vmax.f32 %v5271, %v5272
    %v5274 = vsel %vm4230, %v3362, -inf
    %v5275 = vrot.slane %v5274, 4
    %v5276 = vmax.f32 %v5274, %v5275
    %v5277 = vrot.slane %v5276, 2
    %v5278 = vmax.f32 %v5276, %v5277
    %v5279 = vrot.slane %v5278, 1
    %v5280 = vmax.f32 %v5278, %v5279
    %v5281 = vsel %vm4230, %v3361, -inf
    %v5282 = vrot.slane %v5281, 4
    %v5283 = vmax.f32 %v5281, %v5282
    %v5284 = vrot.slane %v5283, 2
    %v5285 = vmax.f32 %v5283, %v5284
    %v5286 = vrot.slane %v5285, 1
    %v5287 = vmax.f32 %v5285, %v5286
    %v5288 = vsel %vm4230, %v3363, -inf
    %v5289 = vrot.slane %v5288, 4
    %v5290 = vmax.f32 %v5288, %v5289
    %v5291 = vrot.slane %v5290, 2
    %v5292 = vmax.f32 %v5290, %v5291
    %v5293 = vrot.slane %v5292, 1
    %v5294 = vmax.f32 %v5292, %v5293
    %v5295 = vsel %vm4230, %v3371, -inf
    %v5296 = vrot.slane %v5295, 4
    %v5297 = vmax.f32 %v5295, %v5296
    %v5298 = vrot.slane %v5297, 2
    %v5299 = vmax.f32 %v5297, %v5298
    %v5300 = vrot.slane %v5299, 1
    %v5301 = vmax.f32 %v5299, %v5300
    %v5302 = vsel %vm4230, %v3379, -inf
    %v5303 = vrot.slane %v5302, 4
    %v5304 = vmax.f32 %v5302, %v5303
    %v5305 = vrot.slane %v5304, 2
    %v5306 = vmax.f32 %v5304, %v5305
    %v5307 = vrot.slane %v5306, 1
    %v5308 = vmax.f32 %v5306, %v5307
    %v5309 = vsel %vm4230, %v3378, -inf
    %v5310 = vrot.slane %v5309, 4
    %v5311 = vmax.f32 %v5309, %v5310
    %v5312 = vrot.slane %v5311, 2
    %v5313 = vmax.f32 %v5311, %v5312
    %v5314 = vrot.slane %v5313, 1
    %v5315 = vmax.f32 %v5313, %v5314
    %v5316 = vsel %vm4230, %v3380, -inf
    %v5317 = vrot.slane %v5316, 4
    %v5318 = vmax.f32 %v5316, %v5317
    %v5319 = vrot.slane %v5318, 2
    %v5320 = vmax.f32 %v5318, %v5319
    %v5321 = vrot.slane %v5320, 1
    %v5322 = vmax.f32 %v5320, %v5321
    %v5323 = vsel %vm4230, %v3388, -inf
    %v5324 = vrot.slane %v5323, 4
    %v5325 = vmax.f32 %v5323, %v5324
    %v5326 = vrot.slane %v5325, 2
    %v5327 = vmax.f32 %v5325, %v5326
    %v5328 = vrot.slane %v5327, 1
    %v5329 = vmax.f32 %v5327, %v5328
    %v5330 = vsel %vm4230, %v3396, -inf
    %v5331 = vrot.slane %v5330, 4
    %v5332 = vmax.f32 %v5330, %v5331
    %v5333 = vrot.slane %v5332, 2
    %v5334 = vmax.f32 %v5332, %v5333
    %v5335 = vrot.slane %v5334, 1
    %v5336 = vmax.f32 %v5334, %v5335
    %v5337 = vsel %vm4230, %v3395, -inf
    %v5338 = vrot.slane %v5337, 4
    %v5339 = vmax.f32 %v5337, %v5338
    %v5340 = vrot.slane %v5339, 2
    %v5341 = vmax.f32 %v5339, %v5340
    %v5342 = vrot.slane %v5341, 1
    %v5343 = vmax.f32 %v5341, %v5342
    %v5344 = vsel %vm4230, %v3397, -inf
    %v5345 = vrot.slane %v5344, 4
    %v5346 = vmax.f32 %v5344, %v5345
    %v5347 = vrot.slane %v5346, 2
    %v5348 = vmax.f32 %v5346, %v5347
    %v5349 = vrot.slane %v5348, 1
    %v5350 = vmax.f32 %v5348, %v5349
    %v5351 = vsel %vm4230, %v3405, -inf
    %v5352 = vrot.slane %v5351, 4
    %v5353 = vmax.f32 %v5351, %v5352
    %v5354 = vrot.slane %v5353, 2
    %v5355 = vmax.f32 %v5353, %v5354
    %v5356 = vrot.slane %v5355, 1
    %v5357 = vmax.f32 %v5355, %v5356
    %v5358 = vsel %vm4230, %v3413, -inf
    %v5359 = vrot.slane %v5358, 4
    %v5360 = vmax.f32 %v5358, %v5359
    %v5361 = vrot.slane %v5360, 2
    %v5362 = vmax.f32 %v5360, %v5361
    %v5363 = vrot.slane %v5362, 1
    %v5364 = vmax.f32 %v5362, %v5363
    %v5365 = vsel %vm4230, %v3412, -inf
    %v5366 = vrot.slane %v5365, 4
    %v5367 = vmax.f32 %v5365, %v5366
    %v5368 = vrot.slane %v5367, 2
    %v5369 = vmax.f32 %v5367, %v5368
    %v5370 = vrot.slane %v5369, 1
    %v5371 = vmax.f32 %v5369, %v5370
    %v5372 = vsel %vm4230, %v3414, -inf
    %v5373 = vrot.slane %v5372, 4
    %v5374 = vmax.f32 %v5372, %v5373
    %v5375 = vrot.slane %v5374, 2
    %v5376 = vmax.f32 %v5374, %v5375
    %v5377 = vrot.slane %v5376, 1
    %v5378 = vmax.f32 %v5376, %v5377
    %v5379 = vsel %vm4230, %v3422, -inf
    %v5380 = vrot.slane %v5379, 4
    %v5381 = vmax.f32 %v5379, %v5380
    %v5382 = vrot.slane %v5381, 2
    %v5383 = vmax.f32 %v5381, %v5382
    %v5384 = vrot.slane %v5383, 1
    %v5385 = vmax.f32 %v5383, %v5384
    %v5386 = vsel %vm4230, %v3430, -inf
    %v5387 = vrot.slane %v5386, 4
    %v5388 = vmax.f32 %v5386, %v5387
    %v5389 = vrot.slane %v5388, 2
    %v5390 = vmax.f32 %v5388, %v5389
    %v5391 = vrot.slane %v5390, 1
    %v5392 = vmax.f32 %v5390, %v5391
    %v5393 = vsel %vm4230, %v3429, -inf
    %v5394 = vrot.slane %v5393, 4
    %v5395 = vmax.f32 %v5393, %v5394
    %v5396 = vrot.slane %v5395, 2
    %v5397 = vmax.f32 %v5395, %v5396
    %v5398 = vrot.slane %v5397, 1
    %v5399 = vmax.f32 %v5397, %v5398
    %v5400 = vsel %vm4230, %v3431, -inf
    %v5401 = vrot.slane %v5400, 4
    %v5402 = vmax.f32 %v5400, %v5401
    %v5403 = vrot.slane %v5402, 2
    %v5404 = vmax.f32 %v5402, %v5403
    %v5405 = vrot.slane %v5404, 1
    %v5406 = vmax.f32 %v5404, %v5405
    %v5407 = vsel %vm4230, %v3439, -inf
    %v5408 = vrot.slane %v5407, 4
    %v5409 = vmax.f32 %v5407, %v5408
    %v5410 = vrot.slane %v5409, 2
    %v5411 = vmax.f32 %v5409, %v5410
    %v5412 = vrot.slane %v5411, 1
    %v5413 = vmax.f32 %v5411, %v5412
    %v5414 = vsel %vm4230, %v3447, -inf
    %v5415 = vrot.slane %v5414, 4
    %v5416 = vmax.f32 %v5414, %v5415
    %v5417 = vrot.slane %v5416, 2
    %v5418 = vmax.f32 %v5416, %v5417
    %v5419 = vrot.slane %v5418, 1
    %v5420 = vmax.f32 %v5418, %v5419
    %v5421 = vsel %vm4230, %v3446, -inf
    %v5422 = vrot.slane %v5421, 4
    %v5423 = vmax.f32 %v5421, %v5422
    %v5424 = vrot.slane %v5423, 2
    %v5425 = vmax.f32 %v5423, %v5424
    %v5426 = vrot.slane %v5425, 1
    %v5427 = vmax.f32 %v5425, %v5426
    %v5428 = vsel %vm4230, %v3448, -inf
    %v5429 = vrot.slane %v5428, 4
    %v5430 = vmax.f32 %v5428, %v5429
    %v5431 = vrot.slane %v5430, 2
    %v5432 = vmax.f32 %v5430, %v5431
    %v5433 = vrot.slane %v5432, 1
    %v5434 = vmax.f32 %v5432, %v5433
    %v5435 = vsel %vm4230, %v3456, -inf
    %v5436 = vrot.slane %v5435, 4
    %v5437 = vmax.f32 %v5435, %v5436
    %v5438 = vrot.slane %v5437, 2
    %v5439 = vmax.f32 %v5437, %v5438
    %v5440 = vrot.slane %v5439, 1
    %v5441 = vmax.f32 %v5439, %v5440
    %v5442 = vsel %vm4230, %v3464, -inf
    %v5443 = vrot.slane %v5442, 4
    %v5444 = vmax.f32 %v5442, %v5443
    %v5445 = vrot.slane %v5444, 2
    %v5446 = vmax.f32 %v5444, %v5445
    %v5447 = vrot.slane %v5446, 1
    %v5448 = vmax.f32 %v5446, %v5447
    %v5449 = vsel %vm4230, %v3463, -inf
    %v5450 = vrot.slane %v5449, 4
    %v5451 = vmax.f32 %v5449, %v5450
    %v5452 = vrot.slane %v5451, 2
    %v5453 = vmax.f32 %v5451, %v5452
    %v5454 = vrot.slane %v5453, 1
    %v5455 = vmax.f32 %v5453, %v5454
    %v5456 = vsel %vm4230, %v3465, -inf
    %v5457 = vrot.slane %v5456, 4
    %v5458 = vmax.f32 %v5456, %v5457
    %v5459 = vrot.slane %v5458, 2
    %v5460 = vmax.f32 %v5458, %v5459
    %v5461 = vrot.slane %v5460, 1
    %v5462 = vmax.f32 %v5460, %v5461
    %v5463 = vsel %vm4230, %v3473, -inf
    %v5464 = vrot.slane %v5463, 4
    %v5465 = vmax.f32 %v5463, %v5464
    %v5466 = vrot.slane %v5465, 2
    %v5467 = vmax.f32 %v5465, %v5466
    %v5468 = vrot.slane %v5467, 1
    %v5469 = vmax.f32 %v5467, %v5468
    %v5470 = vsel %vm4230, %v3481, -inf
    %v5471 = vrot.slane %v5470, 4
    %v5472 = vmax.f32 %v5470, %v5471
    %v5473 = vrot.slane %v5472, 2
    %v5474 = vmax.f32 %v5472, %v5473
    %v5475 = vrot.slane %v5474, 1
    %v5476 = vmax.f32 %v5474, %v5475
    %v5477 = vsel %vm4230, %v3480, -inf
    %v5478 = vrot.slane %v5477, 4
    %v5479 = vmax.f32 %v5477, %v5478
    %v5480 = vrot.slane %v5479, 2
    %v5481 = vmax.f32 %v5479, %v5480
    %v5482 = vrot.slane %v5481, 1
    %v5483 = vmax.f32 %v5481, %v5482
    %v5484 = vsel %vm4230, %v3482, -inf
    %v5485 = vrot.slane %v5484, 4
    %v5486 = vmax.f32 %v5484, %v5485
    %v5487 = vrot.slane %v5486, 2
    %v5488 = vmax.f32 %v5486, %v5487
    %v5489 = vrot.slane %v5488, 1
    %v5490 = vmax.f32 %v5488, %v5489
    %v5491 = vsel %vm4230, %v3490, -inf
    %v5492 = vrot.slane %v5491, 4
    %v5493 = vmax.f32 %v5491, %v5492
    %v5494 = vrot.slane %v5493, 2
    %v5495 = vmax.f32 %v5493, %v5494
    %v5496 = vrot.slane %v5495, 1
    %v5497 = vmax.f32 %v5495, %v5496
    %v5498 = vsel %vm4230, %v3498, -inf
    %v5499 = vrot.slane %v5498, 4
    %v5500 = vmax.f32 %v5498, %v5499
    %v5501 = vrot.slane %v5500, 2
    %v5502 = vmax.f32 %v5500, %v5501
    %v5503 = vrot.slane %v5502, 1
    %v5504 = vmax.f32 %v5502, %v5503
    %v5505 = vsel %vm4230, %v3497, -inf
    %v5506 = vrot.slane %v5505, 4
    %v5507 = vmax.f32 %v5505, %v5506
    %v5508 = vrot.slane %v5507, 2
    %v5509 = vmax.f32 %v5507, %v5508
    %v5510 = vrot.slane %v5509, 1
    %v5511 = vmax.f32 %v5509, %v5510
    %v5512 = vsel %vm4230, %v3499, -inf
    %v5513 = vrot.slane %v5512, 4
    %v5514 = vmax.f32 %v5512, %v5513
    %v5515 = vrot.slane %v5514, 2
    %v5516 = vmax.f32 %v5514, %v5515
    %v5517 = vrot.slane %v5516, 1
    %v5518 = vmax.f32 %v5516, %v5517
    %v5519 = vsel %vm4230, %v3507, -inf
    %v5520 = vrot.slane %v5519, 4
    %v5521 = vmax.f32 %v5519, %v5520
    %v5522 = vrot.slane %v5521, 2
    %v5523 = vmax.f32 %v5521, %v5522
    %v5524 = vrot.slane %v5523, 1
    %v5525 = vmax.f32 %v5523, %v5524
    %v5526 = vsel %vm4230, %v3515, -inf
    %v5527 = vrot.slane %v5526, 4
    %v5528 = vmax.f32 %v5526, %v5527
    %v5529 = vrot.slane %v5528, 2
    %v5530 = vmax.f32 %v5528, %v5529
    %v5531 = vrot.slane %v5530, 1
    %v5532 = vmax.f32 %v5530, %v5531
    %v5533 = vsel %vm4230, %v3514, -inf
    %v5534 = vrot.slane %v5533, 4
    %v5535 = vmax.f32 %v5533, %v5534
    %v5536 = vrot.slane %v5535, 2
    %v5537 = vmax.f32 %v5535, %v5536
    %v5538 = vrot.slane %v5537, 1
    %v5539 = vmax.f32 %v5537, %v5538
    %v5540 = vsel %vm4230, %v3516, -inf
    %v5541 = vrot.slane %v5540, 4
    %v5542 = vmax.f32 %v5540, %v5541
    %v5543 = vrot.slane %v5542, 2
    %v5544 = vmax.f32 %v5542, %v5543
    %v5545 = vrot.slane %v5544, 1
    %v5546 = vmax.f32 %v5544, %v5545
    %v5547 = vsel %vm4230, %v3524, -inf
    %v5548 = vrot.slane %v5547, 4
    %v5549 = vmax.f32 %v5547, %v5548
    %v5550 = vrot.slane %v5549, 2
    %v5551 = vmax.f32 %v5549, %v5550
    %v5552 = vrot.slane %v5551, 1
    %v5553 = vmax.f32 %v5551, %v5552
    %v5554 = vsel %vm4230, %v3532, -inf
    %v5555 = vrot.slane %v5554, 4
    %v5556 = vmax.f32 %v5554, %v5555
    %v5557 = vrot.slane %v5556, 2
    %v5558 = vmax.f32 %v5556, %v5557
    %v5559 = vrot.slane %v5558, 1
    %v5560 = vmax.f32 %v5558, %v5559
    %v5561 = vsel %vm4230, %v3531, -inf
    %v5562 = vrot.slane %v5561, 4
    %v5563 = vmax.f32 %v5561, %v5562
    %v5564 = vrot.slane %v5563, 2
    %v5565 = vmax.f32 %v5563, %v5564
    %v5566 = vrot.slane %v5565, 1
    %v5567 = vmax.f32 %v5565, %v5566
    %v5568 = vsel %vm4230, %v3533, -inf
    %v5569 = vrot.slane %v5568, 4
    %v5570 = vmax.f32 %v5568, %v5569
    %v5571 = vrot.slane %v5570, 2
    %v5572 = vmax.f32 %v5570, %v5571
    %v5573 = vrot.slane %v5572, 1
    %v5574 = vmax.f32 %v5572, %v5573
    %v5575 = vsel %vm4230, %v3541, -inf
    %v5576 = vrot.slane %v5575, 4
    %v5577 = vmax.f32 %v5575, %v5576
    %v5578 = vrot.slane %v5577, 2
    %v5579 = vmax.f32 %v5577, %v5578
    %v5580 = vrot.slane %v5579, 1
    %v5581 = vmax.f32 %v5579, %v5580
    %v5582 = vsel %vm4230, %v3549, -inf
    %v5583 = vrot.slane %v5582, 4
    %v5584 = vmax.f32 %v5582, %v5583
    %v5585 = vrot.slane %v5584, 2
    %v5586 = vmax.f32 %v5584, %v5585
    %v5587 = vrot.slane %v5586, 1
    %v5588 = vmax.f32 %v5586, %v5587
    %v5589 = vsel %vm4230, %v3548, -inf
    %v5590 = vrot.slane %v5589, 4
    %v5591 = vmax.f32 %v5589, %v5590
    %v5592 = vrot.slane %v5591, 2
    %v5593 = vmax.f32 %v5591, %v5592
    %v5594 = vrot.slane %v5593, 1
    %v5595 = vmax.f32 %v5593, %v5594
    %v5596 = vsel %vm4230, %v3550, -inf
    %v5597 = vrot.slane %v5596, 4
    %v5598 = vmax.f32 %v5596, %v5597
    %v5599 = vrot.slane %v5598, 2
    %v5600 = vmax.f32 %v5598, %v5599
    %v5601 = vrot.slane %v5600, 1
    %v5602 = vmax.f32 %v5600, %v5601
    %v5603 = vsel %vm4230, %v3558, -inf
    %v5604 = vrot.slane %v5603, 4
    %v5605 = vmax.f32 %v5603, %v5604
    %v5606 = vrot.slane %v5605, 2
    %v5607 = vmax.f32 %v5605, %v5606
    %v5608 = vrot.slane %v5607, 1
    %v5609 = vmax.f32 %v5607, %v5608
    %v5610 = vsel %vm4230, %v3566, -inf
    %v5611 = vrot.slane %v5610, 4
    %v5612 = vmax.f32 %v5610, %v5611
    %v5613 = vrot.slane %v5612, 2
    %v5614 = vmax.f32 %v5612, %v5613
    %v5615 = vrot.slane %v5614, 1
    %v5616 = vmax.f32 %v5614, %v5615
    %v5617 = vsel %vm4230, %v3565, -inf
    %v5618 = vrot.slane %v5617, 4
    %v5619 = vmax.f32 %v5617, %v5618
    %v5620 = vrot.slane %v5619, 2
    %v5621 = vmax.f32 %v5619, %v5620
    %v5622 = vrot.slane %v5621, 1
    %v5623 = vmax.f32 %v5621, %v5622
    %v5624 = vsel %vm4230, %v3567, -inf
    %v5625 = vrot.slane %v5624, 4
    %v5626 = vmax.f32 %v5624, %v5625
    %v5627 = vrot.slane %v5626, 2
    %v5628 = vmax.f32 %v5626, %v5627
    %v5629 = vrot.slane %v5628, 1
    %v5630 = vmax.f32 %v5628, %v5629
    %v5631 = vsel %vm4230, %v3575, -inf
    %v5632 = vrot.slane %v5631, 4
    %v5633 = vmax.f32 %v5631, %v5632
    %v5634 = vrot.slane %v5633, 2
    %v5635 = vmax.f32 %v5633, %v5634
    %v5636 = vrot.slane %v5635, 1
    %v5637 = vmax.f32 %v5635, %v5636
    %v5638 = vsel %vm4230, %v3583, -inf
    %v5639 = vrot.slane %v5638, 4
    %v5640 = vmax.f32 %v5638, %v5639
    %v5641 = vrot.slane %v5640, 2
    %v5642 = vmax.f32 %v5640, %v5641
    %v5643 = vrot.slane %v5642, 1
    %v5644 = vmax.f32 %v5642, %v5643
    %v5645 = vsel %vm4230, %v3582, -inf
    %v5646 = vrot.slane %v5645, 4
    %v5647 = vmax.f32 %v5645, %v5646
    %v5648 = vrot.slane %v5647, 2
    %v5649 = vmax.f32 %v5647, %v5648
    %v5650 = vrot.slane %v5649, 1
    %v5651 = vmax.f32 %v5649, %v5650
    %v5652 = vsel %vm4230, %v3584, -inf
    %v5653 = vrot.slane %v5652, 4
    %v5654 = vmax.f32 %v5652, %v5653
    %v5655 = vrot.slane %v5654, 2
    %v5656 = vmax.f32 %v5654, %v5655
    %v5657 = vrot.slane %v5656, 1
    %v5658 = vmax.f32 %v5656, %v5657
    %v5659 = vsel %vm4230, %v3592, -inf
    %v5660 = vrot.slane %v5659, 4
    %v5661 = vmax.f32 %v5659, %v5660
    %v5662 = vrot.slane %v5661, 2
    %v5663 = vmax.f32 %v5661, %v5662
    %v5664 = vrot.slane %v5663, 1
    %v5665 = vmax.f32 %v5663, %v5664
    %v5666 = vsel %vm4230, %v3600, -inf
    %v5667 = vrot.slane %v5666, 4
    %v5668 = vmax.f32 %v5666, %v5667
    %v5669 = vrot.slane %v5668, 2
    %v5670 = vmax.f32 %v5668, %v5669
    %v5671 = vrot.slane %v5670, 1
    %v5672 = vmax.f32 %v5670, %v5671
    %v5673 = vsel %vm4230, %v3599, -inf
    %v5674 = vrot.slane %v5673, 4
    %v5675 = vmax.f32 %v5673, %v5674
    %v5676 = vrot.slane %v5675, 2
    %v5677 = vmax.f32 %v5675, %v5676
    %v5678 = vrot.slane %v5677, 1
    %v5679 = vmax.f32 %v5677, %v5678
    %v5680 = vsel %vm4230, %v3601, -inf
    %v5681 = vrot.slane %v5680, 4
    %v5682 = vmax.f32 %v5680, %v5681
    %v5683 = vrot.slane %v5682, 2
    %v5684 = vmax.f32 %v5682, %v5683
    %v5685 = vrot.slane %v5684, 1
    %v5686 = vmax.f32 %v5684, %v5685
    %v5687 = vsel %vm4230, %v3609, -inf
    %v5688 = vrot.slane %v5687, 4
    %v5689 = vmax.f32 %v5687, %v5688
    %v5690 = vrot.slane %v5689, 2
    %v5691 = vmax.f32 %v5689, %v5690
    %v5692 = vrot.slane %v5691, 1
    %v5693 = vmax.f32 %v5691, %v5692
    %v5694 = vsel %vm4230, %v3617, -inf
    %v5695 = vrot.slane %v5694, 4
    %v5696 = vmax.f32 %v5694, %v5695
    %v5697 = vrot.slane %v5696, 2
    %v5698 = vmax.f32 %v5696, %v5697
    %v5699 = vrot.slane %v5698, 1
    %v5700 = vmax.f32 %v5698, %v5699
    %v5701 = vsel %vm4230, %v3616, -inf
    %v5702 = vrot.slane %v5701, 4
    %v5703 = vmax.f32 %v5701, %v5702
    %v5704 = vrot.slane %v5703, 2
    %v5705 = vmax.f32 %v5703, %v5704
    %v5706 = vrot.slane %v5705, 1
    %v5707 = vmax.f32 %v5705, %v5706
    %v5708 = vsel %vm4230, %v3618, -inf
    %v5709 = vrot.slane %v5708, 4
    %v5710 = vmax.f32 %v5708, %v5709
    %v5711 = vrot.slane %v5710, 2
    %v5712 = vmax.f32 %v5710, %v5711
    %v5713 = vrot.slane %v5712, 1
    %v5714 = vmax.f32 %v5712, %v5713
    %v5715 = vsel %vm4230, %v3626, -inf
    %v5716 = vrot.slane %v5715, 4
    %v5717 = vmax.f32 %v5715, %v5716
    %v5718 = vrot.slane %v5717, 2
    %v5719 = vmax.f32 %v5717, %v5718
    %v5720 = vrot.slane %v5719, 1
    %v5721 = vmax.f32 %v5719, %v5720
    %v5722 = vsel %vm4230, %v3634, -inf
    %v5723 = vrot.slane %v5722, 4
    %v5724 = vmax.f32 %v5722, %v5723
    %v5725 = vrot.slane %v5724, 2
    %v5726 = vmax.f32 %v5724, %v5725
    %v5727 = vrot.slane %v5726, 1
    %v5728 = vmax.f32 %v5726, %v5727
    %v5729 = vsel %vm4230, %v3633, -inf
    %v5730 = vrot.slane %v5729, 4
    %v5731 = vmax.f32 %v5729, %v5730
    %v5732 = vrot.slane %v5731, 2
    %v5733 = vmax.f32 %v5731, %v5732
    %v5734 = vrot.slane %v5733, 1
    %v5735 = vmax.f32 %v5733, %v5734
    %v5736 = vsel %vm4230, %v3635, -inf
    %v5737 = vrot.slane %v5736, 4
    %v5738 = vmax.f32 %v5736, %v5737
    %v5739 = vrot.slane %v5738, 2
    %v5740 = vmax.f32 %v5738, %v5739
    %v5741 = vrot.slane %v5740, 1
    %v5742 = vmax.f32 %v5740, %v5741
    %v5743 = vsel %vm4230, %v3643, -inf
    %v5744 = vrot.slane %v5743, 4
    %v5745 = vmax.f32 %v5743, %v5744
    %v5746 = vrot.slane %v5745, 2
    %v5747 = vmax.f32 %v5745, %v5746
    %v5748 = vrot.slane %v5747, 1
    %v5749 = vmax.f32 %v5747, %v5748
    %v5750 = vsel %vm4230, %v3651, -inf
    %v5751 = vrot.slane %v5750, 4
    %v5752 = vmax.f32 %v5750, %v5751
    %v5753 = vrot.slane %v5752, 2
    %v5754 = vmax.f32 %v5752, %v5753
    %v5755 = vrot.slane %v5754, 1
    %v5756 = vmax.f32 %v5754, %v5755
    %v5757 = vsel %vm4230, %v3650, -inf
    %v5758 = vrot.slane %v5757, 4
    %v5759 = vmax.f32 %v5757, %v5758
    %v5760 = vrot.slane %v5759, 2
    %v5761 = vmax.f32 %v5759, %v5760
    %v5762 = vrot.slane %v5761, 1
    %v5763 = vmax.f32 %v5761, %v5762
    %v5764 = vsel %vm4230, %v3652, -inf
    %v5765 = vrot.slane %v5764, 4
    %v5766 = vmax.f32 %v5764, %v5765
    %v5767 = vrot.slane %v5766, 2
    %v5768 = vmax.f32 %v5766, %v5767
    %v5769 = vrot.slane %v5768, 1
    %v5770 = vmax.f32 %v5768, %v5769
    %v5771 = vsel %vm4230, %v3660, -inf
    %v5772 = vrot.slane %v5771, 4
    %v5773 = vmax.f32 %v5771, %v5772
    %v5774 = vrot.slane %v5773, 2
    %v5775 = vmax.f32 %v5773, %v5774
    %v5776 = vrot.slane %v5775, 1
    %v5777 = vmax.f32 %v5775, %v5776
    %v5778 = vsel %vm4230, %v3668, -inf
    %v5779 = vrot.slane %v5778, 4
    %v5780 = vmax.f32 %v5778, %v5779
    %v5781 = vrot.slane %v5780, 2
    %v5782 = vmax.f32 %v5780, %v5781
    %v5783 = vrot.slane %v5782, 1
    %v5784 = vmax.f32 %v5782, %v5783
    %v5785 = vsel %vm4230, %v3667, -inf
    %v5786 = vrot.slane %v5785, 4
    %v5787 = vmax.f32 %v5785, %v5786
    %v5788 = vrot.slane %v5787, 2
    %v5789 = vmax.f32 %v5787, %v5788
    %v5790 = vrot.slane %v5789, 1
    %v5791 = vmax.f32 %v5789, %v5790
    %v5792 = vsel %vm4230, %v3669, -inf
    %v5793 = vrot.slane %v5792, 4
    %v5794 = vmax.f32 %v5792, %v5793
    %v5795 = vrot.slane %v5794, 2
    %v5796 = vmax.f32 %v5794, %v5795
    %v5797 = vrot.slane %v5796, 1
    %v5798 = vmax.f32 %v5796, %v5797
    %v5799 = vsel %vm4230, %v3677, -inf
    %v5800 = vrot.slane %v5799, 4
    %v5801 = vmax.f32 %v5799, %v5800
    %v5802 = vrot.slane %v5801, 2
    %v5803 = vmax.f32 %v5801, %v5802
    %v5804 = vrot.slane %v5803, 1
    %v5805 = vmax.f32 %v5803, %v5804
    %v5806 = vsel %vm4230, %v3685, -inf
    %v5807 = vrot.slane %v5806, 4
    %v5808 = vmax.f32 %v5806, %v5807
    %v5809 = vrot.slane %v5808, 2
    %v5810 = vmax.f32 %v5808, %v5809
    %v5811 = vrot.slane %v5810, 1
    %v5812 = vmax.f32 %v5810, %v5811
    %v5813 = vsel %vm4230, %v3684, -inf
    %v5814 = vrot.slane %v5813, 4
    %v5815 = vmax.f32 %v5813, %v5814
    %v5816 = vrot.slane %v5815, 2
    %v5817 = vmax.f32 %v5815, %v5816
    %v5818 = vrot.slane %v5817, 1
    %v5819 = vmax.f32 %v5817, %v5818
    %v5820 = vsel %vm4230, %v3686, -inf
    %v5821 = vrot.slane %v5820, 4
    %v5822 = vmax.f32 %v5820, %v5821
    %v5823 = vrot.slane %v5822, 2
    %v5824 = vmax.f32 %v5822, %v5823
    %v5825 = vrot.slane %v5824, 1
    %v5826 = vmax.f32 %v5824, %v5825
    %v5827 = vsel %vm4230, %v3694, -inf
    %v5828 = vrot.slane %v5827, 4
    %v5829 = vmax.f32 %v5827, %v5828
    %v5830 = vrot.slane %v5829, 2
    %v5831 = vmax.f32 %v5829, %v5830
    %v5832 = vrot.slane %v5831, 1
    %v5833 = vmax.f32 %v5831, %v5832
    %v5834 = vsel %vm4230, %v3702, -inf
    %v5835 = vrot.slane %v5834, 4
    %v5836 = vmax.f32 %v5834, %v5835
    %v5837 = vrot.slane %v5836, 2
    %v5838 = vmax.f32 %v5836, %v5837
    %v5839 = vrot.slane %v5838, 1
    %v5840 = vmax.f32 %v5838, %v5839
    %v5841 = vsel %vm4230, %v3701, -inf
    %v5842 = vrot.slane %v5841, 4
    %v5843 = vmax.f32 %v5841, %v5842
    %v5844 = vrot.slane %v5843, 2
    %v5845 = vmax.f32 %v5843, %v5844
    %v5846 = vrot.slane %v5845, 1
    %v5847 = vmax.f32 %v5845, %v5846
    %v5848 = vsel %vm4230, %v3703, -inf
    %v5849 = vrot.slane %v5848, 4
    %v5850 = vmax.f32 %v5848, %v5849
    %v5851 = vrot.slane %v5850, 2
    %v5852 = vmax.f32 %v5850, %v5851
    %v5853 = vrot.slane %v5852, 1
    %v5854 = vmax.f32 %v5852, %v5853
    %v5855 = vsel %vm4230, %v3711, -inf
    %v5856 = vrot.slane %v5855, 4
    %v5857 = vmax.f32 %v5855, %v5856
    %v5858 = vrot.slane %v5857, 2
    %v5859 = vmax.f32 %v5857, %v5858
    %v5860 = vrot.slane %v5859, 1
    %v5861 = vmax.f32 %v5859, %v5860
    %v5862 = vsel %vm4230, %v3719, -inf
    %v5863 = vrot.slane %v5862, 4
    %v5864 = vmax.f32 %v5862, %v5863
    %v5865 = vrot.slane %v5864, 2
    %v5866 = vmax.f32 %v5864, %v5865
    %v5867 = vrot.slane %v5866, 1
    %v5868 = vmax.f32 %v5866, %v5867
    %v5869 = vsel %vm4230, %v3718, -inf
    %v5870 = vrot.slane %v5869, 4
    %v5871 = vmax.f32 %v5869, %v5870
    %v5872 = vrot.slane %v5871, 2
    %v5873 = vmax.f32 %v5871, %v5872
    %v5874 = vrot.slane %v5873, 1
    %v5875 = vmax.f32 %v5873, %v5874
    %v5876 = vsel %vm4230, %v3720, -inf
    %v5877 = vrot.slane %v5876, 4
    %v5878 = vmax.f32 %v5876, %v5877
    %v5879 = vrot.slane %v5878, 2
    %v5880 = vmax.f32 %v5878, %v5879
    %v5881 = vrot.slane %v5880, 1
    %v5882 = vmax.f32 %v5880, %v5881
    %v5883 = vsel %vm4230, %v3728, -inf
    %v5884 = vrot.slane %v5883, 4
    %v5885 = vmax.f32 %v5883, %v5884
    %v5886 = vrot.slane %v5885, 2
    %v5887 = vmax.f32 %v5885, %v5886
    %v5888 = vrot.slane %v5887, 1
    %v5889 = vmax.f32 %v5887, %v5888
    %v5890 = vsel %vm4230, %v3736, -inf
    %v5891 = vrot.slane %v5890, 4
    %v5892 = vmax.f32 %v5890, %v5891
    %v5893 = vrot.slane %v5892, 2
    %v5894 = vmax.f32 %v5892, %v5893
    %v5895 = vrot.slane %v5894, 1
    %v5896 = vmax.f32 %v5894, %v5895
    %v5897 = vsel %vm4230, %v3735, -inf
    %v5898 = vrot.slane %v5897, 4
    %v5899 = vmax.f32 %v5897, %v5898
    %v5900 = vrot.slane %v5899, 2
    %v5901 = vmax.f32 %v5899, %v5900
    %v5902 = vrot.slane %v5901, 1
    %v5903 = vmax.f32 %v5901, %v5902
    %v5904 = vsel %vm4230, %v3737, -inf
    %v5905 = vrot.slane %v5904, 4
    %v5906 = vmax.f32 %v5904, %v5905
    %v5907 = vrot.slane %v5906, 2
    %v5908 = vmax.f32 %v5906, %v5907
    %v5909 = vrot.slane %v5908, 1
    %v5910 = vmax.f32 %v5908, %v5909
    %v5911 = vsel %vm4230, %v3745, -inf
    %v5912 = vrot.slane %v5911, 4
    %v5913 = vmax.f32 %v5911, %v5912
    %v5914 = vrot.slane %v5913, 2
    %v5915 = vmax.f32 %v5913, %v5914
    %v5916 = vrot.slane %v5915, 1
    %v5917 = vmax.f32 %v5915, %v5916
    %v5918 = vsel %vm4230, %v3753, -inf
    %v5919 = vrot.slane %v5918, 4
    %v5920 = vmax.f32 %v5918, %v5919
    %v5921 = vrot.slane %v5920, 2
    %v5922 = vmax.f32 %v5920, %v5921
    %v5923 = vrot.slane %v5922, 1
    %v5924 = vmax.f32 %v5922, %v5923
    %v5925 = vsel %vm4230, %v3752, -inf
    %v5926 = vrot.slane %v5925, 4
    %v5927 = vmax.f32 %v5925, %v5926
    %v5928 = vrot.slane %v5927, 2
    %v5929 = vmax.f32 %v5927, %v5928
    %v5930 = vrot.slane %v5929, 1
    %v5931 = vmax.f32 %v5929, %v5930
    %v5932 = vsel %vm4230, %v3754, -inf
    %v5933 = vrot.slane %v5932, 4
    %v5934 = vmax.f32 %v5932, %v5933
    %v5935 = vrot.slane %v5934, 2
    %v5936 = vmax.f32 %v5934, %v5935
    %v5937 = vrot.slane %v5936, 1
    %v5938 = vmax.f32 %v5936, %v5937
    %v5939 = vsel %vm4230, %v3762, -inf
    %v5940 = vrot.slane %v5939, 4
    %v5941 = vmax.f32 %v5939, %v5940
    %v5942 = vrot.slane %v5941, 2
    %v5943 = vmax.f32 %v5941, %v5942
    %v5944 = vrot.slane %v5943, 1
    %v5945 = vmax.f32 %v5943, %v5944
    %v5946 = vsel %vm4230, %v3770, -inf
    %v5947 = vrot.slane %v5946, 4
    %v5948 = vmax.f32 %v5946, %v5947
    %v5949 = vrot.slane %v5948, 2
    %v5950 = vmax.f32 %v5948, %v5949
    %v5951 = vrot.slane %v5950, 1
    %v5952 = vmax.f32 %v5950, %v5951
    %v5953 = vsel %vm4230, %v3769, -inf
    %v5954 = vrot.slane %v5953, 4
    %v5955 = vmax.f32 %v5953, %v5954
    %v5956 = vrot.slane %v5955, 2
    %v5957 = vmax.f32 %v5955, %v5956
    %v5958 = vrot.slane %v5957, 1
    %v5959 = vmax.f32 %v5957, %v5958
    %v5960 = vsel %vm4230, %v3771, -inf
    %v5961 = vrot.slane %v5960, 4
    %v5962 = vmax.f32 %v5960, %v5961
    %v5963 = vrot.slane %v5962, 2
    %v5964 = vmax.f32 %v5962, %v5963
    %v5965 = vrot.slane %v5964, 1
    %v5966 = vmax.f32 %v5964, %v5965
    %v5967 = vsel %vm4230, %v3779, -inf
    %v5968 = vrot.slane %v5967, 4
    %v5969 = vmax.f32 %v5967, %v5968
    %v5970 = vrot.slane %v5969, 2
    %v5971 = vmax.f32 %v5969, %v5970
    %v5972 = vrot.slane %v5971, 1
    %v5973 = vmax.f32 %v5971, %v5972
    %v5974 = vsel %vm4230, %v3787, -inf
    %v5975 = vrot.slane %v5974, 4
    %v5976 = vmax.f32 %v5974, %v5975
    %v5977 = vrot.slane %v5976, 2
    %v5978 = vmax.f32 %v5976, %v5977
    %v5979 = vrot.slane %v5978, 1
    %v5980 = vmax.f32 %v5978, %v5979
    %v5981 = vsel %vm4230, %v3786, -inf
    %v5982 = vrot.slane %v5981, 4
    %v5983 = vmax.f32 %v5981, %v5982
    %v5984 = vrot.slane %v5983, 2
    %v5985 = vmax.f32 %v5983, %v5984
    %v5986 = vrot.slane %v5985, 1
    %v5987 = vmax.f32 %v5985, %v5986
    %v5988 = vsel %vm4230, %v3788, -inf
    %v5989 = vrot.slane %v5988, 4
    %v5990 = vmax.f32 %v5988, %v5989
    %v5991 = vrot.slane %v5990, 2
    %v5992 = vmax.f32 %v5990, %v5991
    %v5993 = vrot.slane %v5992, 1
    %v5994 = vmax.f32 %v5992, %v5993
    %v5995 = vsel %vm4230, %v3796, -inf
    %v5996 = vrot.slane %v5995, 4
    %v5997 = vmax.f32 %v5995, %v5996
    %v5998 = vrot.slane %v5997, 2
    %v5999 = vmax.f32 %v5997, %v5998
    %v6000 = vrot.slane %v5999, 1
    %v6001 = vmax.f32 %v5999, %v6000
    %v6002 = vsel %vm4230, %v3804, -inf
    %v6003 = vrot.slane %v6002, 4
    %v6004 = vmax.f32 %v6002, %v6003
    %v6005 = vrot.slane %v6004, 2
    %v6006 = vmax.f32 %v6004, %v6005
    %v6007 = vrot.slane %v6006, 1
    %v6008 = vmax.f32 %v6006, %v6007
    %v6009 = vsel %vm4230, %v3803, -inf
    %v6010 = vrot.slane %v6009, 4
    %v6011 = vmax.f32 %v6009, %v6010
    %v6012 = vrot.slane %v6011, 2
    %v6013 = vmax.f32 %v6011, %v6012
    %v6014 = vrot.slane %v6013, 1
    %v6015 = vmax.f32 %v6013, %v6014
    %v6016 = vsel %vm4230, %v3805, -inf
    %v6017 = vrot.slane %v6016, 4
    %v6018 = vmax.f32 %v6016, %v6017
    %v6019 = vrot.slane %v6018, 2
    %v6020 = vmax.f32 %v6018, %v6019
    %v6021 = vrot.slane %v6020, 1
    %v6022 = vmax.f32 %v6020, %v6021
    %v6023 = vsel %vm4230, %v3813, -inf
    %v6024 = vrot.slane %v6023, 4
    %v6025 = vmax.f32 %v6023, %v6024
    %v6026 = vrot.slane %v6025, 2
    %v6027 = vmax.f32 %v6025, %v6026
    %v6028 = vrot.slane %v6027, 1
    %v6029 = vmax.f32 %v6027, %v6028
    %v6030 = vsel %vm4230, %v3821, -inf
    %v6031 = vrot.slane %v6030, 4
    %v6032 = vmax.f32 %v6030, %v6031
    %v6033 = vrot.slane %v6032, 2
    %v6034 = vmax.f32 %v6032, %v6033
    %v6035 = vrot.slane %v6034, 1
    %v6036 = vmax.f32 %v6034, %v6035
    %v6037 = vsel %vm4230, %v3820, -inf
    %v6038 = vrot.slane %v6037, 4
    %v6039 = vmax.f32 %v6037, %v6038
    %v6040 = vrot.slane %v6039, 2
    %v6041 = vmax.f32 %v6039, %v6040
    %v6042 = vrot.slane %v6041, 1
    %v6043 = vmax.f32 %v6041, %v6042
    %v6044 = vsel %vm4230, %v3822, -inf
    %v6045 = vrot.slane %v6044, 4
    %v6046 = vmax.f32 %v6044, %v6045
    %v6047 = vrot.slane %v6046, 2
    %v6048 = vmax.f32 %v6046, %v6047
    %v6049 = vrot.slane %v6048, 1
    %v6050 = vmax.f32 %v6048, %v6049
    %v6051 = vsel %vm4230, %v3830, -inf
    %v6052 = vrot.slane %v6051, 4
    %v6053 = vmax.f32 %v6051, %v6052
    %v6054 = vrot.slane %v6053, 2
    %v6055 = vmax.f32 %v6053, %v6054
    %v6056 = vrot.slane %v6055, 1
    %v6057 = vmax.f32 %v6055, %v6056
    %v6058 = vsel %vm4230, %v3838, -inf
    %v6059 = vrot.slane %v6058, 4
    %v6060 = vmax.f32 %v6058, %v6059
    %v6061 = vrot.slane %v6060, 2
    %v6062 = vmax.f32 %v6060, %v6061
    %v6063 = vrot.slane %v6062, 1
    %v6064 = vmax.f32 %v6062, %v6063
    %v6065 = vsel %vm4230, %v3837, -inf
    %v6066 = vrot.slane %v6065, 4
    %v6067 = vmax.f32 %v6065, %v6066
    %v6068 = vrot.slane %v6067, 2
    %v6069 = vmax.f32 %v6067, %v6068
    %v6070 = vrot.slane %v6069, 1
    %v6071 = vmax.f32 %v6069, %v6070
    %v6072 = vsel %vm4230, %v3839, -inf
    %v6073 = vrot.slane %v6072, 4
    %v6074 = vmax.f32 %v6072, %v6073
    %v6075 = vrot.slane %v6074, 2
    %v6076 = vmax.f32 %v6074, %v6075
    %v6077 = vrot.slane %v6076, 1
    %v6078 = vmax.f32 %v6076, %v6077
    %v6079 = vsel %vm4230, %v3847, -inf
    %v6080 = vrot.slane %v6079, 4
    %v6081 = vmax.f32 %v6079, %v6080
    %v6082 = vrot.slane %v6081, 2
    %v6083 = vmax.f32 %v6081, %v6082
    %v6084 = vrot.slane %v6083, 1
    %v6085 = vmax.f32 %v6083, %v6084
    %v6086 = vsel %vm4230, %v3855, -inf
    %v6087 = vrot.slane %v6086, 4
    %v6088 = vmax.f32 %v6086, %v6087
    %v6089 = vrot.slane %v6088, 2
    %v6090 = vmax.f32 %v6088, %v6089
    %v6091 = vrot.slane %v6090, 1
    %v6092 = vmax.f32 %v6090, %v6091
    %v6093 = vsel %vm4230, %v3854, -inf
    %v6094 = vrot.slane %v6093, 4
    %v6095 = vmax.f32 %v6093, %v6094
    %v6096 = vrot.slane %v6095, 2
    %v6097 = vmax.f32 %v6095, %v6096
    %v6098 = vrot.slane %v6097, 1
    %v6099 = vmax.f32 %v6097, %v6098
    %v6100 = vsel %vm4230, %v3856, -inf
    %v6101 = vrot.slane %v6100, 4
    %v6102 = vmax.f32 %v6100, %v6101
    %v6103 = vrot.slane %v6102, 2
    %v6104 = vmax.f32 %v6102, %v6103
    %v6105 = vrot.slane %v6104, 1
    %v6106 = vmax.f32 %v6104, %v6105
    %v6107 = vsel %vm4230, %v3864, -inf
    %v6108 = vrot.slane %v6107, 4
    %v6109 = vmax.f32 %v6107, %v6108
    %v6110 = vrot.slane %v6109, 2
    %v6111 = vmax.f32 %v6109, %v6110
    %v6112 = vrot.slane %v6111, 1
    %v6113 = vmax.f32 %v6111, %v6112
    %v6114 = vsel %vm4230, %v3872, -inf
    %v6115 = vrot.slane %v6114, 4
    %v6116 = vmax.f32 %v6114, %v6115
    %v6117 = vrot.slane %v6116, 2
    %v6118 = vmax.f32 %v6116, %v6117
    %v6119 = vrot.slane %v6118, 1
    %v6120 = vmax.f32 %v6118, %v6119
    %v6121 = vsel %vm4230, %v3871, -inf
    %v6122 = vrot.slane %v6121, 4
    %v6123 = vmax.f32 %v6121, %v6122
    %v6124 = vrot.slane %v6123, 2
    %v6125 = vmax.f32 %v6123, %v6124
    %v6126 = vrot.slane %v6125, 1
    %v6127 = vmax.f32 %v6125, %v6126
    %v6128 = vsel %vm4230, %v3873, -inf
    %v6129 = vrot.slane %v6128, 4
    %v6130 = vmax.f32 %v6128, %v6129
    %v6131 = vrot.slane %v6130, 2
    %v6132 = vmax.f32 %v6130, %v6131
    %v6133 = vrot.slane %v6132, 1
    %v6134 = vmax.f32 %v6132, %v6133
    %v6135 = vsel %vm4230, %v3881, -inf
    %v6136 = vrot.slane %v6135, 4
    %v6137 = vmax.f32 %v6135, %v6136
    %v6138 = vrot.slane %v6137, 2
    %v6139 = vmax.f32 %v6137, %v6138
    %v6140 = vrot.slane %v6139, 1
    %v6141 = vmax.f32 %v6139, %v6140
    %v6142 = vsel %vm4230, %v3889, -inf
    %v6143 = vrot.slane %v6142, 4
    %v6144 = vmax.f32 %v6142, %v6143
    %v6145 = vrot.slane %v6144, 2
    %v6146 = vmax.f32 %v6144, %v6145
    %v6147 = vrot.slane %v6146, 1
    %v6148 = vmax.f32 %v6146, %v6147
    %v6149 = vsel %vm4230, %v3888, -inf
    %v6150 = vrot.slane %v6149, 4
    %v6151 = vmax.f32 %v6149, %v6150
    %v6152 = vrot.slane %v6151, 2
    %v6153 = vmax.f32 %v6151, %v6152
    %v6154 = vrot.slane %v6153, 1
    %v6155 = vmax.f32 %v6153, %v6154
    %v6156 = vsel %vm4230, %v3890, -inf
    %v6157 = vrot.slane %v6156, 4
    %v6158 = vmax.f32 %v6156, %v6157
    %v6159 = vrot.slane %v6158, 2
    %v6160 = vmax.f32 %v6158, %v6159
    %v6161 = vrot.slane %v6160, 1
    %v6162 = vmax.f32 %v6160, %v6161
    %v6163 = vsel %vm4230, %v3898, -inf
    %v6164 = vrot.slane %v6163, 4
    %v6165 = vmax.f32 %v6163, %v6164
    %v6166 = vrot.slane %v6165, 2
    %v6167 = vmax.f32 %v6165, %v6166
    %v6168 = vrot.slane %v6167, 1
    %v6169 = vmax.f32 %v6167, %v6168
    %v6170 = vsel %vm4230, %v3906, -inf
    %v6171 = vrot.slane %v6170, 4
    %v6172 = vmax.f32 %v6170, %v6171
    %v6173 = vrot.slane %v6172, 2
    %v6174 = vmax.f32 %v6172, %v6173
    %v6175 = vrot.slane %v6174, 1
    %v6176 = vmax.f32 %v6174, %v6175
    %v6177 = vsel %vm4230, %v3905, -inf
    %v6178 = vrot.slane %v6177, 4
    %v6179 = vmax.f32 %v6177, %v6178
    %v6180 = vrot.slane %v6179, 2
    %v6181 = vmax.f32 %v6179, %v6180
    %v6182 = vrot.slane %v6181, 1
    %v6183 = vmax.f32 %v6181, %v6182
    %v6184 = vsel %vm4230, %v3907, -inf
    %v6185 = vrot.slane %v6184, 4
    %v6186 = vmax.f32 %v6184, %v6185
    %v6187 = vrot.slane %v6186, 2
    %v6188 = vmax.f32 %v6186, %v6187
    %v6189 = vrot.slane %v6188, 1
    %v6190 = vmax.f32 %v6188, %v6189
    %v6191 = vsel %vm4230, %v3915, -inf
    %v6192 = vrot.slane %v6191, 4
    %v6193 = vmax.f32 %v6191, %v6192
    %v6194 = vrot.slane %v6193, 2
    %v6195 = vmax.f32 %v6193, %v6194
    %v6196 = vrot.slane %v6195, 1
    %v6197 = vmax.f32 %v6195, %v6196
    %v6198 = vsel %vm4230, %v3923, -inf
    %v6199 = vrot.slane %v6198, 4
    %v6200 = vmax.f32 %v6198, %v6199
    %v6201 = vrot.slane %v6200, 2
    %v6202 = vmax.f32 %v6200, %v6201
    %v6203 = vrot.slane %v6202, 1
    %v6204 = vmax.f32 %v6202, %v6203
    %v6205 = vsel %vm4230, %v3922, -inf
    %v6206 = vrot.slane %v6205, 4
    %v6207 = vmax.f32 %v6205, %v6206
    %v6208 = vrot.slane %v6207, 2
    %v6209 = vmax.f32 %v6207, %v6208
    %v6210 = vrot.slane %v6209, 1
    %v6211 = vmax.f32 %v6209, %v6210
    %v6212 = vsel %vm4230, %v3924, -inf
    %v6213 = vrot.slane %v6212, 4
    %v6214 = vmax.f32 %v6212, %v6213
    %v6215 = vrot.slane %v6214, 2
    %v6216 = vmax.f32 %v6214, %v6215
    %v6217 = vrot.slane %v6216, 1
    %v6218 = vmax.f32 %v6216, %v6217
    %v6219 = vsel %vm4230, %v3932, -inf
    %v6220 = vrot.slane %v6219, 4
    %v6221 = vmax.f32 %v6219, %v6220
    %v6222 = vrot.slane %v6221, 2
    %v6223 = vmax.f32 %v6221, %v6222
    %v6224 = vrot.slane %v6223, 1
    %v6225 = vmax.f32 %v6223, %v6224
    %v6226 = vsel %vm4230, %v3940, -inf
    %v6227 = vrot.slane %v6226, 4
    %v6228 = vmax.f32 %v6226, %v6227
    %v6229 = vrot.slane %v6228, 2
    %v6230 = vmax.f32 %v6228, %v6229
    %v6231 = vrot.slane %v6230, 1
    %v6232 = vmax.f32 %v6230, %v6231
    %v6233 = vsel %vm4230, %v3939, -inf
    %v6234 = vrot.slane %v6233, 4
    %v6235 = vmax.f32 %v6233, %v6234
    %v6236 = vrot.slane %v6235, 2
    %v6237 = vmax.f32 %v6235, %v6236
    %v6238 = vrot.slane %v6237, 1
    %v6239 = vmax.f32 %v6237, %v6238
    %v6240 = vsel %vm4230, %v3941, -inf
    %v6241 = vrot.slane %v6240, 4
    %v6242 = vmax.f32 %v6240, %v6241
    %v6243 = vrot.slane %v6242, 2
    %v6244 = vmax.f32 %v6242, %v6243
    %v6245 = vrot.slane %v6244, 1
    %v6246 = vmax.f32 %v6244, %v6245
    %v6247 = vpack.c.bf16 %v4237, %v4237
    %v6248 = vpack.c.bf16 %v4244, %v4244
    %v6249 = vpack.c.bf16 %v4251, %v4251
    %v6250 = vpack.c.bf16 %v4258, %v4258
    %v6251 = vpack.c.bf16 %v4265, %v4265
    %v6252 = vpack.c.bf16 %v4272, %v4272
    %v6253 = vpack.c.bf16 %v4279, %v4279
    %v6254 = vpack.c.bf16 %v4286, %v4286
    %v6255 = vpack.c.bf16 %v4293, %v4293
    %v6256 = vpack.c.bf16 %v4300, %v4300
    %v6257 = vpack.c.bf16 %v4307, %v4307
    %v6258 = vpack.c.bf16 %v4314, %v4314
    %v6259 = vpack.c.bf16 %v4321, %v4321
    %v6260 = vpack.c.bf16 %v4328, %v4328
    %v6261 = vpack.c.bf16 %v4335, %v4335
    %v6262 = vpack.c.bf16 %v4342, %v4342
    %v6263 = vpack.c.bf16 %v4349, %v4349
    %v6264 = vpack.c.bf16 %v4356, %v4356
    %v6265 = vpack.c.bf16 %v4363, %v4363
    %v6266 = vpack.c.bf16 %v4370, %v4370
    %v6267 = vpack.c.bf16 %v4377, %v4377
    %v6268 = vpack.c.bf16 %v4384, %v4384
    %v6269 = vpack.c.bf16 %v4391, %v4391
    %v6270 = vpack.c.bf16 %v4398, %v4398
    %v6271 = vpack.c.bf16 %v4405, %v4405
    %v6272 = vpack.c.bf16 %v4412, %v4412
    %v6273 = vpack.c.bf16 %v4419, %v4419
    %v6274 = vpack.c.bf16 %v4426, %v4426
    %v6275 = vpack.c.bf16 %v4433, %v4433
    %v6276 = vpack.c.bf16 %v4440, %v4440
    %v6277 = vpack.c.bf16 %v4447, %v4447
    %v6278 = vpack.c.bf16 %v4454, %v4454
    %v6279 = vpack.c.bf16 %v4461, %v4461
    %v6280 = vpack.c.bf16 %v4468, %v4468
    %v6281 = vpack.c.bf16 %v4475, %v4475
    %v6282 = vpack.c.bf16 %v4482, %v4482
    %v6283 = vpack.c.bf16 %v4489, %v4489
    %v6284 = vpack.c.bf16 %v4496, %v4496
    %v6285 = vpack.c.bf16 %v4503, %v4503
    %v6286 = vpack.c.bf16 %v4510, %v4510
    %v6287 = vpack.c.bf16 %v4517, %v4517
    %v6288 = vpack.c.bf16 %v4524, %v4524
    %v6289 = vpack.c.bf16 %v4531, %v4531
    %v6290 = vpack.c.bf16 %v4538, %v4538
    %v6291 = vpack.c.bf16 %v4545, %v4545
    %v6292 = vpack.c.bf16 %v4552, %v4552
    %v6293 = vpack.c.bf16 %v4559, %v4559
    %v6294 = vpack.c.bf16 %v4566, %v4566
    %v6295 = vpack.c.bf16 %v4573, %v4573
    %v6296 = vpack.c.bf16 %v4580, %v4580
    %v6297 = vpack.c.bf16 %v4587, %v4587
    %v6298 = vpack.c.bf16 %v4594, %v4594
    %v6299 = vpack.c.bf16 %v4601, %v4601
    %v6300 = vpack.c.bf16 %v4608, %v4608
    %v6301 = vpack.c.bf16 %v4615, %v4615
    %v6302 = vpack.c.bf16 %v4622, %v4622
    %v6303 = vpack.c.bf16 %v4629, %v4629
    %v6304 = vpack.c.bf16 %v4636, %v4636
    %v6305 = vpack.c.bf16 %v4643, %v4643
    %v6306 = vpack.c.bf16 %v4650, %v4650
    %v6307 = vpack.c.bf16 %v4657, %v4657
    %v6308 = vpack.c.bf16 %v4664, %v4664
    %v6309 = vpack.c.bf16 %v4671, %v4671
    %v6310 = vpack.c.bf16 %v4678, %v4678
    %v6311 = vpack.c.bf16 %v4685, %v4685
    %v6312 = vpack.c.bf16 %v4692, %v4692
    %v6313 = vpack.c.bf16 %v4699, %v4699
    %v6314 = vpack.c.bf16 %v4706, %v4706
    %v6315 = vpack.c.bf16 %v4713, %v4713
    %v6316 = vpack.c.bf16 %v4720, %v4720
    %v6317 = vpack.c.bf16 %v4727, %v4727
    %v6318 = vpack.c.bf16 %v4734, %v4734
    %v6319 = vpack.c.bf16 %v4741, %v4741
    %v6320 = vpack.c.bf16 %v4748, %v4748
    %v6321 = vpack.c.bf16 %v4755, %v4755
    %v6322 = vpack.c.bf16 %v4762, %v4762
    %v6323 = vpack.c.bf16 %v4769, %v4769
    %v6324 = vpack.c.bf16 %v4776, %v4776
    %v6325 = vpack.c.bf16 %v4783, %v4783
    %v6326 = vpack.c.bf16 %v4790, %v4790
    %v6327 = vpack.c.bf16 %v4797, %v4797
    %v6328 = vpack.c.bf16 %v4804, %v4804
    %v6329 = vpack.c.bf16 %v4811, %v4811
    %v6330 = vpack.c.bf16 %v4818, %v4818
    %v6331 = vpack.c.bf16 %v4825, %v4825
    %v6332 = vpack.c.bf16 %v4832, %v4832
    %v6333 = vpack.c.bf16 %v4839, %v4839
    %v6334 = vpack.c.bf16 %v4846, %v4846
    %v6335 = vpack.c.bf16 %v4853, %v4853
    %v6336 = vpack.c.bf16 %v4860, %v4860
    %v6337 = vpack.c.bf16 %v4867, %v4867
    %v6338 = vpack.c.bf16 %v4874, %v4874
    %v6339 = vpack.c.bf16 %v4881, %v4881
    %v6340 = vpack.c.bf16 %v4888, %v4888
    %v6341 = vpack.c.bf16 %v4895, %v4895
    %v6342 = vpack.c.bf16 %v4902, %v4902
    %v6343 = vpack.c.bf16 %v4909, %v4909
    %v6344 = vpack.c.bf16 %v4916, %v4916
    %v6345 = vpack.c.bf16 %v4923, %v4923
    %v6346 = vpack.c.bf16 %v4930, %v4930
    %v6347 = vpack.c.bf16 %v4937, %v4937
    %v6348 = vpack.c.bf16 %v4944, %v4944
    %v6349 = vpack.c.bf16 %v4951, %v4951
    %v6350 = vpack.c.bf16 %v4958, %v4958
    %v6351 = vpack.c.bf16 %v4965, %v4965
    %v6352 = vpack.c.bf16 %v4972, %v4972
    %v6353 = vpack.c.bf16 %v4979, %v4979
    %v6354 = vpack.c.bf16 %v4986, %v4986
    %v6355 = vpack.c.bf16 %v4993, %v4993
    %v6356 = vpack.c.bf16 %v5000, %v5000
    %v6357 = vpack.c.bf16 %v5007, %v5007
    %v6358 = vpack.c.bf16 %v5014, %v5014
    %v6359 = vpack.c.bf16 %v5021, %v5021
    %v6360 = vpack.c.bf16 %v5028, %v5028
    %v6361 = vpack.c.bf16 %v5035, %v5035
    %v6362 = vpack.c.bf16 %v5042, %v5042
    %v6363 = vpack.c.bf16 %v5049, %v5049
    %v6364 = vpack.c.bf16 %v5056, %v5056
    %v6365 = vpack.c.bf16 %v5063, %v5063
    %v6366 = vpack.c.bf16 %v5070, %v5070
    %v6367 = vpack.c.bf16 %v5077, %v5077
    %v6368 = vpack.c.bf16 %v5084, %v5084
    %v6369 = vpack.c.bf16 %v5091, %v5091
    %v6370 = vpack.c.bf16 %v5098, %v5098
    %v6371 = vpack.c.bf16 %v5105, %v5105
    %v6372 = vpack.c.bf16 %v5112, %v5112
    %v6373 = vpack.c.bf16 %v5119, %v5119
    %v6374 = vpack.c.bf16 %v5126, %v5126
    %v6375 = vpack.c.bf16 %v5133, %v5133
    %v6376 = vpack.c.bf16 %v5140, %v5140
    %v6377 = vpack.c.bf16 %v5147, %v5147
    %v6378 = vpack.c.bf16 %v5154, %v5154
    %v6379 = vpack.c.bf16 %v5161, %v5161
    %v6380 = vpack.c.bf16 %v5168, %v5168
    %v6381 = vpack.c.bf16 %v5175, %v5175
    %v6382 = vpack.c.bf16 %v5182, %v5182
    %v6383 = vpack.c.bf16 %v5189, %v5189
    %v6384 = vpack.c.bf16 %v5196, %v5196
    %v6385 = vpack.c.bf16 %v5203, %v5203
    %v6386 = vpack.c.bf16 %v5210, %v5210
    %v6387 = vpack.c.bf16 %v5217, %v5217
    %v6388 = vpack.c.bf16 %v5224, %v5224
    %v6389 = vpack.c.bf16 %v5231, %v5231
    %v6390 = vpack.c.bf16 %v5238, %v5238
    %v6391 = vpack.c.bf16 %v5245, %v5245
    %v6392 = vpack.c.bf16 %v5252, %v5252
    %v6393 = vpack.c.bf16 %v5259, %v5259
    %v6394 = vpack.c.bf16 %v5266, %v5266
    %v6395 = vpack.c.bf16 %v5273, %v5273
    %v6396 = vpack.c.bf16 %v5280, %v5280
    %v6397 = vpack.c.bf16 %v5287, %v5287
    %v6398 = vpack.c.bf16 %v5294, %v5294
    %v6399 = vpack.c.bf16 %v5301, %v5301
    %v6400 = vpack.c.bf16 %v5308, %v5308
    %v6401 = vpack.c.bf16 %v5315, %v5315
    %v6402 = vpack.c.bf16 %v5322, %v5322
    %v6403 = vpack.c.bf16 %v5329, %v5329
    %v6404 = vpack.c.bf16 %v5336, %v5336
    %v6405 = vpack.c.bf16 %v5343, %v5343
    %v6406 = vpack.c.bf16 %v5350, %v5350
    %v6407 = vpack.c.bf16 %v5357, %v5357
    %v6408 = vpack.c.bf16 %v5364, %v5364
    %v6409 = vpack.c.bf16 %v5371, %v5371
    %v6410 = vpack.c.bf16 %v5378, %v5378
    %v6411 = vpack.c.bf16 %v5385, %v5385
    %v6412 = vpack.c.bf16 %v5392, %v5392
    %v6413 = vpack.c.bf16 %v5399, %v5399
    %v6414 = vpack.c.bf16 %v5406, %v5406
    %v6415 = vpack.c.bf16 %v5413, %v5413
    %v6416 = vpack.c.bf16 %v5420, %v5420
    %v6417 = vpack.c.bf16 %v5427, %v5427
    %v6418 = vpack.c.bf16 %v5434, %v5434
    %v6419 = vpack.c.bf16 %v5441, %v5441
    %v6420 = vpack.c.bf16 %v5448, %v5448
    %v6421 = vpack.c.bf16 %v5455, %v5455
    %v6422 = vpack.c.bf16 %v5462, %v5462
    %v6423 = vpack.c.bf16 %v5469, %v5469
    %v6424 = vpack.c.bf16 %v5476, %v5476
    %v6425 = vpack.c.bf16 %v5483, %v5483
    %v6426 = vpack.c.bf16 %v5490, %v5490
    %v6427 = vpack.c.bf16 %v5497, %v5497
    %v6428 = vpack.c.bf16 %v5504, %v5504
    %v6429 = vpack.c.bf16 %v5511, %v5511
    %v6430 = vpack.c.bf16 %v5518, %v5518
    %v6431 = vpack.c.bf16 %v5525, %v5525
    %v6432 = vpack.c.bf16 %v5532, %v5532
    %v6433 = vpack.c.bf16 %v5539, %v5539
    %v6434 = vpack.c.bf16 %v5546, %v5546
    %v6435 = vpack.c.bf16 %v5553, %v5553
    %v6436 = vpack.c.bf16 %v5560, %v5560
    %v6437 = vpack.c.bf16 %v5567, %v5567
    %v6438 = vpack.c.bf16 %v5574, %v5574
    %v6439 = vpack.c.bf16 %v5581, %v5581
    %v6440 = vpack.c.bf16 %v5588, %v5588
    %v6441 = vpack.c.bf16 %v5595, %v5595
    %v6442 = vpack.c.bf16 %v5602, %v5602
    %v6443 = vpack.c.bf16 %v5609, %v5609
    %v6444 = vpack.c.bf16 %v5616, %v5616
    %v6445 = vpack.c.bf16 %v5623, %v5623
    %v6446 = vpack.c.bf16 %v5630, %v5630
    %v6447 = vpack.c.bf16 %v5637, %v5637
    %v6448 = vpack.c.bf16 %v5644, %v5644
    %v6449 = vpack.c.bf16 %v5651, %v5651
    %v6450 = vpack.c.bf16 %v5658, %v5658
    %v6451 = vpack.c.bf16 %v5665, %v5665
    %v6452 = vpack.c.bf16 %v5672, %v5672
    %v6453 = vpack.c.bf16 %v5679, %v5679
    %v6454 = vpack.c.bf16 %v5686, %v5686
    %v6455 = vpack.c.bf16 %v5693, %v5693
    %v6456 = vpack.c.bf16 %v5700, %v5700
    %v6457 = vpack.c.bf16 %v5707, %v5707
    %v6458 = vpack.c.bf16 %v5714, %v5714
    %v6459 = vpack.c.bf16 %v5721, %v5721
    %v6460 = vpack.c.bf16 %v5728, %v5728
    %v6461 = vpack.c.bf16 %v5735, %v5735
    %v6462 = vpack.c.bf16 %v5742, %v5742
    %v6463 = vpack.c.bf16 %v5749, %v5749
    %v6464 = vpack.c.bf16 %v5756, %v5756
    %v6465 = vpack.c.bf16 %v5763, %v5763
    %v6466 = vpack.c.bf16 %v5770, %v5770
    %v6467 = vpack.c.bf16 %v5777, %v5777
    %v6468 = vpack.c.bf16 %v5784, %v5784
    %v6469 = vpack.c.bf16 %v5791, %v5791
    %v6470 = vpack.c.bf16 %v5798, %v5798
    %v6471 = vpack.c.bf16 %v5805, %v5805
    %v6472 = vpack.c.bf16 %v5812, %v5812
    %v6473 = vpack.c.bf16 %v5819, %v5819
    %v6474 = vpack.c.bf16 %v5826, %v5826
    %v6475 = vpack.c.bf16 %v5833, %v5833
    %v6476 = vpack.c.bf16 %v5840, %v5840
    %v6477 = vpack.c.bf16 %v5847, %v5847
    %v6478 = vpack.c.bf16 %v5854, %v5854
    %v6479 = vpack.c.bf16 %v5861, %v5861
    %v6480 = vpack.c.bf16 %v5868, %v5868
    %v6481 = vpack.c.bf16 %v5875, %v5875
    %v6482 = vpack.c.bf16 %v5882, %v5882
    %v6483 = vpack.c.bf16 %v5889, %v5889
    %v6484 = vpack.c.bf16 %v5896, %v5896
    %v6485 = vpack.c.bf16 %v5903, %v5903
    %v6486 = vpack.c.bf16 %v5910, %v5910
    %v6487 = vpack.c.bf16 %v5917, %v5917
    %v6488 = vpack.c.bf16 %v5924, %v5924
    %v6489 = vpack.c.bf16 %v5931, %v5931
    %v6490 = vpack.c.bf16 %v5938, %v5938
    %v6491 = vpack.c.bf16 %v5945, %v5945
    %v6492 = vpack.c.bf16 %v5952, %v5952
    %v6493 = vpack.c.bf16 %v5959, %v5959
    %v6494 = vpack.c.bf16 %v5966, %v5966
    %v6495 = vpack.c.bf16 %v5973, %v5973
    %v6496 = vpack.c.bf16 %v5980, %v5980
    %v6497 = vpack.c.bf16 %v5987, %v5987
    %v6498 = vpack.c.bf16 %v5994, %v5994
    %v6499 = vpack.c.bf16 %v6001, %v6001
    %v6500 = vpack.c.bf16 %v6008, %v6008
    %v6501 = vpack.c.bf16 %v6015, %v6015
    %v6502 = vpack.c.bf16 %v6022, %v6022
    %v6503 = vpack.c.bf16 %v6029, %v6029
    %v6504 = vpack.c.bf16 %v6036, %v6036
    %v6505 = vpack.c.bf16 %v6043, %v6043
    %v6506 = vpack.c.bf16 %v6050, %v6050
    %v6507 = vpack.c.bf16 %v6057, %v6057
    %v6508 = vpack.c.bf16 %v6064, %v6064
    %v6509 = vpack.c.bf16 %v6071, %v6071
    %v6510 = vpack.c.bf16 %v6078, %v6078
    %v6511 = vpack.c.bf16 %v6085, %v6085
    %v6512 = vpack.c.bf16 %v6092, %v6092
    %v6513 = vpack.c.bf16 %v6099, %v6099
    %v6514 = vpack.c.bf16 %v6106, %v6106
    %v6515 = vpack.c.bf16 %v6113, %v6113
    %v6516 = vpack.c.bf16 %v6120, %v6120
    %v6517 = vpack.c.bf16 %v6127, %v6127
    %v6518 = vpack.c.bf16 %v6134, %v6134
    %v6519 = vpack.c.bf16 %v6141, %v6141
    %v6520 = vpack.c.bf16 %v6148, %v6148
    %v6521 = vpack.c.bf16 %v6155, %v6155
    %v6522 = vpack.c.bf16 %v6162, %v6162
    %v6523 = vpack.c.bf16 %v6169, %v6169
    %v6524 = vpack.c.bf16 %v6176, %v6176
    %v6525 = vpack.c.bf16 %v6183, %v6183
    %v6526 = vpack.c.bf16 %v6190, %v6190
    %v6527 = vpack.c.bf16 %v6197, %v6197
    %v6528 = vpack.c.bf16 %v6204, %v6204
    %v6529 = vpack.c.bf16 %v6211, %v6211
    %v6530 = vpack.c.bf16 %v6218, %v6218
    %v6531 = vpack.c.bf16 %v6225, %v6225
    %v6532 = vpack.c.bf16 %v6232, %v6232
    %v6533 = vpack.c.bf16 %v6239, %v6239
    %v6534 = vpack.c.bf16 %v6246, %v6246
    %v6663 = vunpack.c.l.b16 %v6247
    %v6664 = vunpack.c.l.b16 %v6248
    %v6665 = vunpack.c.l.b16 %v6249
    %v6666 = vunpack.c.l.b16 %v6250
    %v6667 = vunpack.c.l.b16 %v6251
    %v6668 = vunpack.c.l.b16 %v6252
    %v6669 = vunpack.c.l.b16 %v6253
    %v6670 = vunpack.c.l.b16 %v6254
    %v6671 = vunpack.c.l.b16 %v6259
    %v6672 = vunpack.c.l.b16 %v6260
    %v6673 = vunpack.c.l.b16 %v6261
    %v6674 = vunpack.c.l.b16 %v6262
    %v6675 = vunpack.c.l.b16 %v6263
    %v6676 = vunpack.c.l.b16 %v6264
    %v6677 = vunpack.c.l.b16 %v6265
    %v6678 = vunpack.c.l.b16 %v6266
    %v6679 = vunpack.c.l.b16 %v6271
    %v6680 = vunpack.c.l.b16 %v6272
    %v6681 = vunpack.c.l.b16 %v6273
    %v6682 = vunpack.c.l.b16 %v6274
    %v6683 = vunpack.c.l.b16 %v6275
    %v6684 = vunpack.c.l.b16 %v6276
    %v6685 = vunpack.c.l.b16 %v6277
    %v6686 = vunpack.c.l.b16 %v6278
    %v6687 = vunpack.c.l.b16 %v6283
    %v6688 = vunpack.c.l.b16 %v6284
    %v6689 = vunpack.c.l.b16 %v6285
    %v6690 = vunpack.c.l.b16 %v6286
    %v6691 = vunpack.c.l.b16 %v6287
    %v6692 = vunpack.c.l.b16 %v6288
    %v6693 = vunpack.c.l.b16 %v6289
    %v6694 = vunpack.c.l.b16 %v6290
    %v6695 = vunpack.c.l.b16 %v6295
    %v6696 = vunpack.c.l.b16 %v6296
    %v6697 = vunpack.c.l.b16 %v6297
    %v6698 = vunpack.c.l.b16 %v6298
    %v6699 = vunpack.c.l.b16 %v6299
    %v6700 = vunpack.c.l.b16 %v6300
    %v6701 = vunpack.c.l.b16 %v6301
    %v6702 = vunpack.c.l.b16 %v6302
    %v6703 = vunpack.c.l.b16 %v6307
    %v6704 = vunpack.c.l.b16 %v6308
    %v6705 = vunpack.c.l.b16 %v6309
    %v6706 = vunpack.c.l.b16 %v6310
    %v6707 = vunpack.c.l.b16 %v6311
    %v6708 = vunpack.c.l.b16 %v6312
    %v6709 = vunpack.c.l.b16 %v6313
    %v6710 = vunpack.c.l.b16 %v6314
    %v6711 = vunpack.c.l.b16 %v6319
    %v6712 = vunpack.c.l.b16 %v6320
    %v6713 = vunpack.c.l.b16 %v6321
    %v6714 = vunpack.c.l.b16 %v6322
    %v6715 = vunpack.c.l.b16 %v6323
    %v6716 = vunpack.c.l.b16 %v6324
    %v6717 = vunpack.c.l.b16 %v6325
    %v6718 = vunpack.c.l.b16 %v6326
    %v6719 = vunpack.c.l.b16 %v6331
    %v6720 = vunpack.c.l.b16 %v6332
    %v6721 = vunpack.c.l.b16 %v6333
    %v6722 = vunpack.c.l.b16 %v6334
    %v6723 = vunpack.c.l.b16 %v6335
    %v6724 = vunpack.c.l.b16 %v6336
    %v6725 = vunpack.c.l.b16 %v6337
    %v6726 = vunpack.c.l.b16 %v6338
    %v6727 = vunpack.c.l.b16 %v6391
    %v6728 = vunpack.c.l.b16 %v6392
    %v6729 = vunpack.c.l.b16 %v6393
    %v6730 = vunpack.c.l.b16 %v6394
    %v6731 = vunpack.c.l.b16 %v6395
    %v6732 = vunpack.c.l.b16 %v6396
    %v6733 = vunpack.c.l.b16 %v6397
    %v6734 = vunpack.c.l.b16 %v6398
    %v6735 = vunpack.c.l.b16 %v6403
    %v6736 = vunpack.c.l.b16 %v6404
    %v6737 = vunpack.c.l.b16 %v6405
    %v6738 = vunpack.c.l.b16 %v6406
    %v6739 = vunpack.c.l.b16 %v6407
    %v6740 = vunpack.c.l.b16 %v6408
    %v6741 = vunpack.c.l.b16 %v6409
    %v6742 = vunpack.c.l.b16 %v6410
    %v6743 = vunpack.c.l.b16 %v6415
    %v6744 = vunpack.c.l.b16 %v6416
    %v6745 = vunpack.c.l.b16 %v6417
    %v6746 = vunpack.c.l.b16 %v6418
    %v6747 = vunpack.c.l.b16 %v6419
    %v6748 = vunpack.c.l.b16 %v6420
    %v6749 = vunpack.c.l.b16 %v6421
    %v6750 = vunpack.c.l.b16 %v6422
    %v6751 = vunpack.c.l.b16 %v6427
    %v6752 = vunpack.c.l.b16 %v6428
    %v6753 = vunpack.c.l.b16 %v6429
    %v6754 = vunpack.c.l.b16 %v6430
    %v6755 = vunpack.c.l.b16 %v6431
    %v6756 = vunpack.c.l.b16 %v6432
    %v6757 = vunpack.c.l.b16 %v6433
    %v6758 = vunpack.c.l.b16 %v6434
    %v6759 = vunpack.c.l.b16 %v6439
    %v6760 = vunpack.c.l.b16 %v6440
    %v6761 = vunpack.c.l.b16 %v6441
    %v6762 = vunpack.c.l.b16 %v6442
    %v6763 = vunpack.c.l.b16 %v6443
    %v6764 = vunpack.c.l.b16 %v6444
    %v6765 = vunpack.c.l.b16 %v6445
    %v6766 = vunpack.c.l.b16 %v6446
    %v6767 = vunpack.c.l.b16 %v6451
    %v6768 = vunpack.c.l.b16 %v6452
    %v6769 = vunpack.c.l.b16 %v6453
    %v6770 = vunpack.c.l.b16 %v6454
    %v6771 = vunpack.c.l.b16 %v6455
    %v6772 = vunpack.c.l.b16 %v6456
    %v6773 = vunpack.c.l.b16 %v6457
    %v6774 = vunpack.c.l.b16 %v6458
    %v6775 = vunpack.c.l.b16 %v6463
    %v6776 = vunpack.c.l.b16 %v6464
    %v6777 = vunpack.c.l.b16 %v6465
    %v6778 = vunpack.c.l.b16 %v6466
    %v6779 = vunpack.c.l.b16 %v6467
    %v6780 = vunpack.c.l.b16 %v6468
    %v6781 = vunpack.c.l.b16 %v6469
    %v6782 = vunpack.c.l.b16 %v6470
    %v6783 = vunpack.c.l.b16 %v6475
    %v6784 = vunpack.c.l.b16 %v6476
    %v6785 = vunpack.c.l.b16 %v6477
    %v6786 = vunpack.c.l.b16 %v6478
    %v6787 = vunpack.c.l.b16 %v6479
    %v6788 = vunpack.c.l.b16 %v6480
    %v6789 = vunpack.c.l.b16 %v6481
    %v6790 = vunpack.c.l.b16 %v6482
    %vm6791 = vcmask 1041409
    %v6792 = vsel %vm6791, %v6664, %v6663
    %vm6793 = vcmask 1042434
    %v6794 = vsel %vm6793, %v6665, %v6792
    %vm6795 = vcmask 1043459
    %v6796 = vsel %vm6795, %v6666, %v6794
    %vm6797 = vcmask 1044484
    %v6798 = vsel %vm6797, %v6667, %v6796
    %vm6799 = vcmask 1045509
    %v6800 = vsel %vm6799, %v6668, %v6798
    %vm6801 = vcmask 1046534
    %v6802 = vsel %vm6801, %v6669, %v6800
    %vm6803 = vcmask 1047559
    %v6804 = vsel %vm6803, %v6670, %v6802
    %v6805 = vsel %vm6791, %v6672, %v6671
    %v6806 = vsel %vm6793, %v6673, %v6805
    %v6807 = vsel %vm6795, %v6674, %v6806
    %v6808 = vsel %vm6797, %v6675, %v6807
    %v6809 = vsel %vm6799, %v6676, %v6808
    %v6810 = vsel %vm6801, %v6677, %v6809
    %v6811 = vsel %vm6803, %v6678, %v6810
    %v6812 = vsel %vm6791, %v6680, %v6679
    %v6813 = vsel %vm6793, %v6681, %v6812
    %v6814 = vsel %vm6795, %v6682, %v6813
    %v6815 = vsel %vm6797, %v6683, %v6814
    %v6816 = vsel %vm6799, %v6684, %v6815
    %v6817 = vsel %vm6801, %v6685, %v6816
    %v6818 = vsel %vm6803, %v6686, %v6817
    %v6819 = vsel %vm6791, %v6688, %v6687
    %v6820 = vsel %vm6793, %v6689, %v6819
    %v6821 = vsel %vm6795, %v6690, %v6820
    %v6822 = vsel %vm6797, %v6691, %v6821
    %v6823 = vsel %vm6799, %v6692, %v6822
    %v6824 = vsel %vm6801, %v6693, %v6823
    %v6825 = vsel %vm6803, %v6694, %v6824
    %v6826 = vsel %vm6791, %v6696, %v6695
    %v6827 = vsel %vm6793, %v6697, %v6826
    %v6828 = vsel %vm6795, %v6698, %v6827
    %v6829 = vsel %vm6797, %v6699, %v6828
    %v6830 = vsel %vm6799, %v6700, %v6829
    %v6831 = vsel %vm6801, %v6701, %v6830
    %v6832 = vsel %vm6803, %v6702, %v6831
    %v6833 = vsel %vm6791, %v6704, %v6703
    %v6834 = vsel %vm6793, %v6705, %v6833
    %v6835 = vsel %vm6795, %v6706, %v6834
    %v6836 = vsel %vm6797, %v6707, %v6835
    %v6837 = vsel %vm6799, %v6708, %v6836
    %v6838 = vsel %vm6801, %v6709, %v6837
    %v6839 = vsel %vm6803, %v6710, %v6838
    %v6840 = vsel %vm6791, %v6712, %v6711
    %v6841 = vsel %vm6793, %v6713, %v6840
    %v6842 = vsel %vm6795, %v6714, %v6841
    %v6843 = vsel %vm6797, %v6715, %v6842
    %v6844 = vsel %vm6799, %v6716, %v6843
    %v6845 = vsel %vm6801, %v6717, %v6844
    %v6846 = vsel %vm6803, %v6718, %v6845
    %v6847 = vsel %vm6791, %v6720, %v6719
    %v6848 = vsel %vm6793, %v6721, %v6847
    %v6849 = vsel %vm6795, %v6722, %v6848
    %v6850 = vsel %vm6797, %v6723, %v6849
    %v6851 = vsel %vm6799, %v6724, %v6850
    %v6852 = vsel %vm6801, %v6725, %v6851
    %v6853 = vsel %vm6803, %v6726, %v6852
    %v6854 = vsel %vm6791, %v6728, %v6727
    %v6855 = vsel %vm6793, %v6729, %v6854
    %v6856 = vsel %vm6795, %v6730, %v6855
    %v6857 = vsel %vm6797, %v6731, %v6856
    %v6858 = vsel %vm6799, %v6732, %v6857
    %v6859 = vsel %vm6801, %v6733, %v6858
    %v6860 = vsel %vm6803, %v6734, %v6859
    %v6861 = vsel %vm6791, %v6736, %v6735
    %v6862 = vsel %vm6793, %v6737, %v6861
    %v6863 = vsel %vm6795, %v6738, %v6862
    %v6864 = vsel %vm6797, %v6739, %v6863
    %v6865 = vsel %vm6799, %v6740, %v6864
    %v6866 = vsel %vm6801, %v6741, %v6865
    %v6867 = vsel %vm6803, %v6742, %v6866
    %v6868 = vsel %vm6791, %v6744, %v6743
    %v6869 = vsel %vm6793, %v6745, %v6868
    %v6870 = vsel %vm6795, %v6746, %v6869
    %v6871 = vsel %vm6797, %v6747, %v6870
    %v6872 = vsel %vm6799, %v6748, %v6871
    %v6873 = vsel %vm6801, %v6749, %v6872
    %v6874 = vsel %vm6803, %v6750, %v6873
    %v6875 = vsel %vm6791, %v6752, %v6751
    %v6876 = vsel %vm6793, %v6753, %v6875
    %v6877 = vsel %vm6795, %v6754, %v6876
    %v6878 = vsel %vm6797, %v6755, %v6877
    %v6879 = vsel %vm6799, %v6756, %v6878
    %v6880 = vsel %vm6801, %v6757, %v6879
    %v6881 = vsel %vm6803, %v6758, %v6880
    %v6882 = vsel %vm6791, %v6760, %v6759
    %v6883 = vsel %vm6793, %v6761, %v6882
    %v6884 = vsel %vm6795, %v6762, %v6883
    %v6885 = vsel %vm6797, %v6763, %v6884
    %v6886 = vsel %vm6799, %v6764, %v6885
    %v6887 = vsel %vm6801, %v6765, %v6886
    %v6888 = vsel %vm6803, %v6766, %v6887
    %v6889 = vsel %vm6791, %v6768, %v6767
    %v6890 = vsel %vm6793, %v6769, %v6889
    %v6891 = vsel %vm6795, %v6770, %v6890
    %v6892 = vsel %vm6797, %v6771, %v6891
    %v6893 = vsel %vm6799, %v6772, %v6892
    %v6894 = vsel %vm6801, %v6773, %v6893
    %v6895 = vsel %vm6803, %v6774, %v6894
    %v6896 = vsel %vm6791, %v6776, %v6775
    %v6897 = vsel %vm6793, %v6777, %v6896
    %v6898 = vsel %vm6795, %v6778, %v6897
    %v6899 = vsel %vm6797, %v6779, %v6898
    %v6900 = vsel %vm6799, %v6780, %v6899
    %v6901 = vsel %vm6801, %v6781, %v6900
    %v6902 = vsel %vm6803, %v6782, %v6901
    %v6903 = vsel %vm6791, %v6784, %v6783
    %v6904 = vsel %vm6793, %v6785, %v6903
    %v6905 = vsel %vm6795, %v6786, %v6904
    %v6906 = vsel %vm6797, %v6787, %v6905
    %v6907 = vsel %vm6799, %v6788, %v6906
    %v6908 = vsel %vm6801, %v6789, %v6907
    %v6909 = vsel %vm6803, %v6790, %v6908
    %v6910 = vpack.c.b16 %v6811, %v6804
    %v6911 = vpack.c.b16 %v6825, %v6818
    %v6912 = vpack.c.b16 %v6839, %v6832
    %v6913 = vpack.c.b16 %v6853, %v6846
    %v6914 = vpack.c.b16 %v6867, %v6860
    %v6915 = vpack.c.b16 %v6881, %v6874
    %v6916 = vpack.c.b16 %v6895, %v6888
    %v6917 = vpack.c.b16 %v6909, %v6902
    %v6942 = vunpack.c.l.b16 %v6255
    %v6943 = vunpack.c.l.b16 %v6267
    %v6944 = vunpack.c.l.b16 %v6279
    %v6945 = vunpack.c.l.b16 %v6291
    %v6946 = vunpack.c.l.b16 %v6303
    %v6947 = vunpack.c.l.b16 %v6315
    %v6948 = vunpack.c.l.b16 %v6327
    %v6949 = vunpack.c.l.b16 %v6339
    %v6950 = vunpack.c.l.b16 %v6399
    %v6951 = vunpack.c.l.b16 %v6411
    %v6952 = vunpack.c.l.b16 %v6423
    %v6953 = vunpack.c.l.b16 %v6435
    %v6954 = vunpack.c.l.b16 %v6447
    %v6955 = vunpack.c.l.b16 %v6459
    %v6956 = vunpack.c.l.b16 %v6471
    %v6957 = vunpack.c.l.b16 %v6483
    %v6958 = vsel %vm6791, %v6665, %v6664
    %v6959 = vsel %vm6793, %v6666, %v6958
    %v6960 = vsel %vm6795, %v6667, %v6959
    %v6961 = vsel %vm6797, %v6668, %v6960
    %v6962 = vsel %vm6799, %v6669, %v6961
    %v6963 = vsel %vm6801, %v6670, %v6962
    %v6964 = vsel %vm6803, %v6942, %v6963
    %v6965 = vsel %vm6791, %v6673, %v6672
    %v6966 = vsel %vm6793, %v6674, %v6965
    %v6967 = vsel %vm6795, %v6675, %v6966
    %v6968 = vsel %vm6797, %v6676, %v6967
    %v6969 = vsel %vm6799, %v6677, %v6968
    %v6970 = vsel %vm6801, %v6678, %v6969
    %v6971 = vsel %vm6803, %v6943, %v6970
    %v6972 = vsel %vm6791, %v6681, %v6680
    %v6973 = vsel %vm6793, %v6682, %v6972
    %v6974 = vsel %vm6795, %v6683, %v6973
    %v6975 = vsel %vm6797, %v6684, %v6974
    %v6976 = vsel %vm6799, %v6685, %v6975
    %v6977 = vsel %vm6801, %v6686, %v6976
    %v6978 = vsel %vm6803, %v6944, %v6977
    %v6979 = vsel %vm6791, %v6689, %v6688
    %v6980 = vsel %vm6793, %v6690, %v6979
    %v6981 = vsel %vm6795, %v6691, %v6980
    %v6982 = vsel %vm6797, %v6692, %v6981
    %v6983 = vsel %vm6799, %v6693, %v6982
    %v6984 = vsel %vm6801, %v6694, %v6983
    %v6985 = vsel %vm6803, %v6945, %v6984
    %v6986 = vsel %vm6791, %v6697, %v6696
    %v6987 = vsel %vm6793, %v6698, %v6986
    %v6988 = vsel %vm6795, %v6699, %v6987
    %v6989 = vsel %vm6797, %v6700, %v6988
    %v6990 = vsel %vm6799, %v6701, %v6989
    %v6991 = vsel %vm6801, %v6702, %v6990
    %v6992 = vsel %vm6803, %v6946, %v6991
    %v6993 = vsel %vm6791, %v6705, %v6704
    %v6994 = vsel %vm6793, %v6706, %v6993
    %v6995 = vsel %vm6795, %v6707, %v6994
    %v6996 = vsel %vm6797, %v6708, %v6995
    %v6997 = vsel %vm6799, %v6709, %v6996
    %v6998 = vsel %vm6801, %v6710, %v6997
    %v6999 = vsel %vm6803, %v6947, %v6998
    %v7000 = vsel %vm6791, %v6713, %v6712
    %v7001 = vsel %vm6793, %v6714, %v7000
    %v7002 = vsel %vm6795, %v6715, %v7001
    %v7003 = vsel %vm6797, %v6716, %v7002
    %v7004 = vsel %vm6799, %v6717, %v7003
    %v7005 = vsel %vm6801, %v6718, %v7004
    %v7006 = vsel %vm6803, %v6948, %v7005
    %v7007 = vsel %vm6791, %v6721, %v6720
    %v7008 = vsel %vm6793, %v6722, %v7007
    %v7009 = vsel %vm6795, %v6723, %v7008
    %v7010 = vsel %vm6797, %v6724, %v7009
    %v7011 = vsel %vm6799, %v6725, %v7010
    %v7012 = vsel %vm6801, %v6726, %v7011
    %v7013 = vsel %vm6803, %v6949, %v7012
    %v7014 = vsel %vm6791, %v6729, %v6728
    %v7015 = vsel %vm6793, %v6730, %v7014
    %v7016 = vsel %vm6795, %v6731, %v7015
    %v7017 = vsel %vm6797, %v6732, %v7016
    %v7018 = vsel %vm6799, %v6733, %v7017
    %v7019 = vsel %vm6801, %v6734, %v7018
    %v7020 = vsel %vm6803, %v6950, %v7019
    %v7021 = vsel %vm6791, %v6737, %v6736
    %v7022 = vsel %vm6793, %v6738, %v7021
    %v7023 = vsel %vm6795, %v6739, %v7022
    %v7024 = vsel %vm6797, %v6740, %v7023
    %v7025 = vsel %vm6799, %v6741, %v7024
    %v7026 = vsel %vm6801, %v6742, %v7025
    %v7027 = vsel %vm6803, %v6951, %v7026
    %v7028 = vsel %vm6791, %v6745, %v6744
    %v7029 = vsel %vm6793, %v6746, %v7028
    %v7030 = vsel %vm6795, %v6747, %v7029
    %v7031 = vsel %vm6797, %v6748, %v7030
    %v7032 = vsel %vm6799, %v6749, %v7031
    %v7033 = vsel %vm6801, %v6750, %v7032
    %v7034 = vsel %vm6803, %v6952, %v7033
    %v7035 = vsel %vm6791, %v6753, %v6752
    %v7036 = vsel %vm6793, %v6754, %v7035
    %v7037 = vsel %vm6795, %v6755, %v7036
    %v7038 = vsel %vm6797, %v6756, %v7037
    %v7039 = vsel %vm6799, %v6757, %v7038
    %v7040 = vsel %vm6801, %v6758, %v7039
    %v7041 = vsel %vm6803, %v6953, %v7040
    %v7042 = vsel %vm6791, %v6761, %v6760
    %v7043 = vsel %vm6793, %v6762, %v7042
    %v7044 = vsel %vm6795, %v6763, %v7043
    %v7045 = vsel %vm6797, %v6764, %v7044
    %v7046 = vsel %vm6799, %v6765, %v7045
    %v7047 = vsel %vm6801, %v6766, %v7046
    %v7048 = vsel %vm6803, %v6954, %v7047
    %v7049 = vsel %vm6791, %v6769, %v6768
    %v7050 = vsel %vm6793, %v6770, %v7049
    %v7051 = vsel %vm6795, %v6771, %v7050
    %v7052 = vsel %vm6797, %v6772, %v7051
    %v7053 = vsel %vm6799, %v6773, %v7052
    %v7054 = vsel %vm6801, %v6774, %v7053
    %v7055 = vsel %vm6803, %v6955, %v7054
    %v7056 = vsel %vm6791, %v6777, %v6776
    %v7057 = vsel %vm6793, %v6778, %v7056
    %v7058 = vsel %vm6795, %v6779, %v7057
    %v7059 = vsel %vm6797, %v6780, %v7058
    %v7060 = vsel %vm6799, %v6781, %v7059
    %v7061 = vsel %vm6801, %v6782, %v7060
    %v7062 = vsel %vm6803, %v6956, %v7061
    %v7063 = vsel %vm6791, %v6785, %v6784
    %v7064 = vsel %vm6793, %v6786, %v7063
    %v7065 = vsel %vm6795, %v6787, %v7064
    %v7066 = vsel %vm6797, %v6788, %v7065
    %v7067 = vsel %vm6799, %v6789, %v7066
    %v7068 = vsel %vm6801, %v6790, %v7067
    %v7069 = vsel %vm6803, %v6957, %v7068
    %v7070 = vpack.c.b16 %v6971, %v6964
    %v7071 = vpack.c.b16 %v6985, %v6978
    %v7072 = vpack.c.b16 %v6999, %v6992
    %v7073 = vpack.c.b16 %v7013, %v7006
    %v7074 = vpack.c.b16 %v7027, %v7020
    %v7075 = vpack.c.b16 %v7041, %v7034
    %v7076 = vpack.c.b16 %v7055, %v7048
    %v7077 = vpack.c.b16 %v7069, %v7062
    %v7102 = vunpack.c.l.b16 %v6256
    %v7103 = vunpack.c.l.b16 %v6268
    %v7104 = vunpack.c.l.b16 %v6280
    %v7105 = vunpack.c.l.b16 %v6292
    %v7106 = vunpack.c.l.b16 %v6304
    %v7107 = vunpack.c.l.b16 %v6316
    %v7108 = vunpack.c.l.b16 %v6328
    %v7109 = vunpack.c.l.b16 %v6340
    %v7110 = vunpack.c.l.b16 %v6400
    %v7111 = vunpack.c.l.b16 %v6412
    %v7112 = vunpack.c.l.b16 %v6424
    %v7113 = vunpack.c.l.b16 %v6436
    %v7114 = vunpack.c.l.b16 %v6448
    %v7115 = vunpack.c.l.b16 %v6460
    %v7116 = vunpack.c.l.b16 %v6472
    %v7117 = vunpack.c.l.b16 %v6484
    %v7118 = vsel %vm6791, %v6666, %v6665
    %v7119 = vsel %vm6793, %v6667, %v7118
    %v7120 = vsel %vm6795, %v6668, %v7119
    %v7121 = vsel %vm6797, %v6669, %v7120
    %v7122 = vsel %vm6799, %v6670, %v7121
    %v7123 = vsel %vm6801, %v6942, %v7122
    %v7124 = vsel %vm6803, %v7102, %v7123
    %v7125 = vsel %vm6791, %v6674, %v6673
    %v7126 = vsel %vm6793, %v6675, %v7125
    %v7127 = vsel %vm6795, %v6676, %v7126
    %v7128 = vsel %vm6797, %v6677, %v7127
    %v7129 = vsel %vm6799, %v6678, %v7128
    %v7130 = vsel %vm6801, %v6943, %v7129
    %v7131 = vsel %vm6803, %v7103, %v7130
    %v7132 = vsel %vm6791, %v6682, %v6681
    %v7133 = vsel %vm6793, %v6683, %v7132
    %v7134 = vsel %vm6795, %v6684, %v7133
    %v7135 = vsel %vm6797, %v6685, %v7134
    %v7136 = vsel %vm6799, %v6686, %v7135
    %v7137 = vsel %vm6801, %v6944, %v7136
    %v7138 = vsel %vm6803, %v7104, %v7137
    %v7139 = vsel %vm6791, %v6690, %v6689
    %v7140 = vsel %vm6793, %v6691, %v7139
    %v7141 = vsel %vm6795, %v6692, %v7140
    %v7142 = vsel %vm6797, %v6693, %v7141
    %v7143 = vsel %vm6799, %v6694, %v7142
    %v7144 = vsel %vm6801, %v6945, %v7143
    %v7145 = vsel %vm6803, %v7105, %v7144
    %v7146 = vsel %vm6791, %v6698, %v6697
    %v7147 = vsel %vm6793, %v6699, %v7146
    %v7148 = vsel %vm6795, %v6700, %v7147
    %v7149 = vsel %vm6797, %v6701, %v7148
    %v7150 = vsel %vm6799, %v6702, %v7149
    %v7151 = vsel %vm6801, %v6946, %v7150
    %v7152 = vsel %vm6803, %v7106, %v7151
    %v7153 = vsel %vm6791, %v6706, %v6705
    %v7154 = vsel %vm6793, %v6707, %v7153
    %v7155 = vsel %vm6795, %v6708, %v7154
    %v7156 = vsel %vm6797, %v6709, %v7155
    %v7157 = vsel %vm6799, %v6710, %v7156
    %v7158 = vsel %vm6801, %v6947, %v7157
    %v7159 = vsel %vm6803, %v7107, %v7158
    %v7160 = vsel %vm6791, %v6714, %v6713
    %v7161 = vsel %vm6793, %v6715, %v7160
    %v7162 = vsel %vm6795, %v6716, %v7161
    %v7163 = vsel %vm6797, %v6717, %v7162
    %v7164 = vsel %vm6799, %v6718, %v7163
    %v7165 = vsel %vm6801, %v6948, %v7164
    %v7166 = vsel %vm6803, %v7108, %v7165
    %v7167 = vsel %vm6791, %v6722, %v6721
    %v7168 = vsel %vm6793, %v6723, %v7167
    %v7169 = vsel %vm6795, %v6724, %v7168
    %v7170 = vsel %vm6797, %v6725, %v7169
    %v7171 = vsel %vm6799, %v6726, %v7170
    %v7172 = vsel %vm6801, %v6949, %v7171
    %v7173 = vsel %vm6803, %v7109, %v7172
    %v7174 = vsel %vm6791, %v6730, %v6729
    %v7175 = vsel %vm6793, %v6731, %v7174
    %v7176 = vsel %vm6795, %v6732, %v7175
    %v7177 = vsel %vm6797, %v6733, %v7176
    %v7178 = vsel %vm6799, %v6734, %v7177
    %v7179 = vsel %vm6801, %v6950, %v7178
    %v7180 = vsel %vm6803, %v7110, %v7179
    %v7181 = vsel %vm6791, %v6738, %v6737
    %v7182 = vsel %vm6793, %v6739, %v7181
    %v7183 = vsel %vm6795, %v6740, %v7182
    %v7184 = vsel %vm6797, %v6741, %v7183
    %v7185 = vsel %vm6799, %v6742, %v7184
    %v7186 = vsel %vm6801, %v6951, %v7185
    %v7187 = vsel %vm6803, %v7111, %v7186
    %v7188 = vsel %vm6791, %v6746, %v6745
    %v7189 = vsel %vm6793, %v6747, %v7188
    %v7190 = vsel %vm6795, %v6748, %v7189
    %v7191 = vsel %vm6797, %v6749, %v7190
    %v7192 = vsel %vm6799, %v6750, %v7191
    %v7193 = vsel %vm6801, %v6952, %v7192
    %v7194 = vsel %vm6803, %v7112, %v7193
    %v7195 = vsel %vm6791, %v6754, %v6753
    %v7196 = vsel %vm6793, %v6755, %v7195
    %v7197 = vsel %vm6795, %v6756, %v7196
    %v7198 = vsel %vm6797, %v6757, %v7197
    %v7199 = vsel %vm6799, %v6758, %v7198
    %v7200 = vsel %vm6801, %v6953, %v7199
    %v7201 = vsel %vm6803, %v7113, %v7200
    %v7202 = vsel %vm6791, %v6762, %v6761
    %v7203 = vsel %vm6793, %v6763, %v7202
    %v7204 = vsel %vm6795, %v6764, %v7203
    %v7205 = vsel %vm6797, %v6765, %v7204
    %v7206 = vsel %vm6799, %v6766, %v7205
    %v7207 = vsel %vm6801, %v6954, %v7206
    %v7208 = vsel %vm6803, %v7114, %v7207
    %v7209 = vsel %vm6791, %v6770, %v6769
    %v7210 = vsel %vm6793, %v6771, %v7209
    %v7211 = vsel %vm6795, %v6772, %v7210
    %v7212 = vsel %vm6797, %v6773, %v7211
    %v7213 = vsel %vm6799, %v6774, %v7212
    %v7214 = vsel %vm6801, %v6955, %v7213
    %v7215 = vsel %vm6803, %v7115, %v7214
    %v7216 = vsel %vm6791, %v6778, %v6777
    %v7217 = vsel %vm6793, %v6779, %v7216
    %v7218 = vsel %vm6795, %v6780, %v7217
    %v7219 = vsel %vm6797, %v6781, %v7218
    %v7220 = vsel %vm6799, %v6782, %v7219
    %v7221 = vsel %vm6801, %v6956, %v7220
    %v7222 = vsel %vm6803, %v7116, %v7221
    %v7223 = vsel %vm6791, %v6786, %v6785
    %v7224 = vsel %vm6793, %v6787, %v7223
    %v7225 = vsel %vm6795, %v6788, %v7224
    %v7226 = vsel %vm6797, %v6789, %v7225
    %v7227 = vsel %vm6799, %v6790, %v7226
    %v7228 = vsel %vm6801, %v6957, %v7227
    %v7229 = vsel %vm6803, %v7117, %v7228
    %v7230 = vpack.c.b16 %v7131, %v7124
    %v7231 = vpack.c.b16 %v7145, %v7138
    %v7232 = vpack.c.b16 %v7159, %v7152
    %v7233 = vpack.c.b16 %v7173, %v7166
    %v7234 = vpack.c.b16 %v7187, %v7180
    %v7235 = vpack.c.b16 %v7201, %v7194
    %v7236 = vpack.c.b16 %v7215, %v7208
    %v7237 = vpack.c.b16 %v7229, %v7222
    %v7262 = vunpack.c.l.b16 %v6257
    %v7263 = vunpack.c.l.b16 %v6269
    %v7264 = vunpack.c.l.b16 %v6281
    %v7265 = vunpack.c.l.b16 %v6293
    %v7266 = vunpack.c.l.b16 %v6305
    %v7267 = vunpack.c.l.b16 %v6317
    %v7268 = vunpack.c.l.b16 %v6329
    %v7269 = vunpack.c.l.b16 %v6341
    %v7270 = vunpack.c.l.b16 %v6401
    %v7271 = vunpack.c.l.b16 %v6413
    %v7272 = vunpack.c.l.b16 %v6425
    %v7273 = vunpack.c.l.b16 %v6437
    %v7274 = vunpack.c.l.b16 %v6449
    %v7275 = vunpack.c.l.b16 %v6461
    %v7276 = vunpack.c.l.b16 %v6473
    %v7277 = vunpack.c.l.b16 %v6485
    %v7278 = vsel %vm6791, %v6667, %v6666
    %v7279 = vsel %vm6793, %v6668, %v7278
    %v7280 = vsel %vm6795, %v6669, %v7279
    %v7281 = vsel %vm6797, %v6670, %v7280
    %v7282 = vsel %vm6799, %v6942, %v7281
    %v7283 = vsel %vm6801, %v7102, %v7282
    %v7284 = vsel %vm6803, %v7262, %v7283
    %v7285 = vsel %vm6791, %v6675, %v6674
    %v7286 = vsel %vm6793, %v6676, %v7285
    %v7287 = vsel %vm6795, %v6677, %v7286
    %v7288 = vsel %vm6797, %v6678, %v7287
    %v7289 = vsel %vm6799, %v6943, %v7288
    %v7290 = vsel %vm6801, %v7103, %v7289
    %v7291 = vsel %vm6803, %v7263, %v7290
    %v7292 = vsel %vm6791, %v6683, %v6682
    %v7293 = vsel %vm6793, %v6684, %v7292
    %v7294 = vsel %vm6795, %v6685, %v7293
    %v7295 = vsel %vm6797, %v6686, %v7294
    %v7296 = vsel %vm6799, %v6944, %v7295
    %v7297 = vsel %vm6801, %v7104, %v7296
    %v7298 = vsel %vm6803, %v7264, %v7297
    %v7299 = vsel %vm6791, %v6691, %v6690
    %v7300 = vsel %vm6793, %v6692, %v7299
    %v7301 = vsel %vm6795, %v6693, %v7300
    %v7302 = vsel %vm6797, %v6694, %v7301
    %v7303 = vsel %vm6799, %v6945, %v7302
    %v7304 = vsel %vm6801, %v7105, %v7303
    %v7305 = vsel %vm6803, %v7265, %v7304
    %v7306 = vsel %vm6791, %v6699, %v6698
    %v7307 = vsel %vm6793, %v6700, %v7306
    %v7308 = vsel %vm6795, %v6701, %v7307
    %v7309 = vsel %vm6797, %v6702, %v7308
    %v7310 = vsel %vm6799, %v6946, %v7309
    %v7311 = vsel %vm6801, %v7106, %v7310
    %v7312 = vsel %vm6803, %v7266, %v7311
    %v7313 = vsel %vm6791, %v6707, %v6706
    %v7314 = vsel %vm6793, %v6708, %v7313
    %v7315 = vsel %vm6795, %v6709, %v7314
    %v7316 = vsel %vm6797, %v6710, %v7315
    %v7317 = vsel %vm6799, %v6947, %v7316
    %v7318 = vsel %vm6801, %v7107, %v7317
    %v7319 = vsel %vm6803, %v7267, %v7318
    %v7320 = vsel %vm6791, %v6715, %v6714
    %v7321 = vsel %vm6793, %v6716, %v7320
    %v7322 = vsel %vm6795, %v6717, %v7321
    %v7323 = vsel %vm6797, %v6718, %v7322
    %v7324 = vsel %vm6799, %v6948, %v7323
    %v7325 = vsel %vm6801, %v7108, %v7324
    %v7326 = vsel %vm6803, %v7268, %v7325
    %v7327 = vsel %vm6791, %v6723, %v6722
    %v7328 = vsel %vm6793, %v6724, %v7327
    %v7329 = vsel %vm6795, %v6725, %v7328
    %v7330 = vsel %vm6797, %v6726, %v7329
    %v7331 = vsel %vm6799, %v6949, %v7330
    %v7332 = vsel %vm6801, %v7109, %v7331
    %v7333 = vsel %vm6803, %v7269, %v7332
    %v7334 = vsel %vm6791, %v6731, %v6730
    %v7335 = vsel %vm6793, %v6732, %v7334
    %v7336 = vsel %vm6795, %v6733, %v7335
    %v7337 = vsel %vm6797, %v6734, %v7336
    %v7338 = vsel %vm6799, %v6950, %v7337
    %v7339 = vsel %vm6801, %v7110, %v7338
    %v7340 = vsel %vm6803, %v7270, %v7339
    %v7341 = vsel %vm6791, %v6739, %v6738
    %v7342 = vsel %vm6793, %v6740, %v7341
    %v7343 = vsel %vm6795, %v6741, %v7342
    %v7344 = vsel %vm6797, %v6742, %v7343
    %v7345 = vsel %vm6799, %v6951, %v7344
    %v7346 = vsel %vm6801, %v7111, %v7345
    %v7347 = vsel %vm6803, %v7271, %v7346
    %v7348 = vsel %vm6791, %v6747, %v6746
    %v7349 = vsel %vm6793, %v6748, %v7348
    %v7350 = vsel %vm6795, %v6749, %v7349
    %v7351 = vsel %vm6797, %v6750, %v7350
    %v7352 = vsel %vm6799, %v6952, %v7351
    %v7353 = vsel %vm6801, %v7112, %v7352
    %v7354 = vsel %vm6803, %v7272, %v7353
    %v7355 = vsel %vm6791, %v6755, %v6754
    %v7356 = vsel %vm6793, %v6756, %v7355
    %v7357 = vsel %vm6795, %v6757, %v7356
    %v7358 = vsel %vm6797, %v6758, %v7357
    %v7359 = vsel %vm6799, %v6953, %v7358
    %v7360 = vsel %vm6801, %v7113, %v7359
    %v7361 = vsel %vm6803, %v7273, %v7360
    %v7362 = vsel %vm6791, %v6763, %v6762
    %v7363 = vsel %vm6793, %v6764, %v7362
    %v7364 = vsel %vm6795, %v6765, %v7363
    %v7365 = vsel %vm6797, %v6766, %v7364
    %v7366 = vsel %vm6799, %v6954, %v7365
    %v7367 = vsel %vm6801, %v7114, %v7366
    %v7368 = vsel %vm6803, %v7274, %v7367
    %v7369 = vsel %vm6791, %v6771, %v6770
    %v7370 = vsel %vm6793, %v6772, %v7369
    %v7371 = vsel %vm6795, %v6773, %v7370
    %v7372 = vsel %vm6797, %v6774, %v7371
    %v7373 = vsel %vm6799, %v6955, %v7372
    %v7374 = vsel %vm6801, %v7115, %v7373
    %v7375 = vsel %vm6803, %v7275, %v7374
    %v7376 = vsel %vm6791, %v6779, %v6778
    %v7377 = vsel %vm6793, %v6780, %v7376
    %v7378 = vsel %vm6795, %v6781, %v7377
    %v7379 = vsel %vm6797, %v6782, %v7378
    %v7380 = vsel %vm6799, %v6956, %v7379
    %v7381 = vsel %vm6801, %v7116, %v7380
    %v7382 = vsel %vm6803, %v7276, %v7381
    %v7383 = vsel %vm6791, %v6787, %v6786
    %v7384 = vsel %vm6793, %v6788, %v7383
    %v7385 = vsel %vm6795, %v6789, %v7384
    %v7386 = vsel %vm6797, %v6790, %v7385
    %v7387 = vsel %vm6799, %v6957, %v7386
    %v7388 = vsel %vm6801, %v7117, %v7387
    %v7389 = vsel %vm6803, %v7277, %v7388
    %v7390 = vpack.c.b16 %v7291, %v7284
    %v7391 = vpack.c.b16 %v7305, %v7298
    %v7392 = vpack.c.b16 %v7319, %v7312
    %v7393 = vpack.c.b16 %v7333, %v7326
    %v7394 = vpack.c.b16 %v7347, %v7340
    %v7395 = vpack.c.b16 %v7361, %v7354
    %v7396 = vpack.c.b16 %v7375, %v7368
    %v7397 = vpack.c.b16 %v7389, %v7382
    %v7422 = vunpack.c.l.b16 %v6258
    %v7423 = vunpack.c.l.b16 %v6270
    %v7424 = vunpack.c.l.b16 %v6282
    %v7425 = vunpack.c.l.b16 %v6294
    %v7426 = vunpack.c.l.b16 %v6306
    %v7427 = vunpack.c.l.b16 %v6318
    %v7428 = vunpack.c.l.b16 %v6330
    %v7429 = vunpack.c.l.b16 %v6342
    %v7430 = vunpack.c.l.b16 %v6402
    %v7431 = vunpack.c.l.b16 %v6414
    %v7432 = vunpack.c.l.b16 %v6426
    %v7433 = vunpack.c.l.b16 %v6438
    %v7434 = vunpack.c.l.b16 %v6450
    %v7435 = vunpack.c.l.b16 %v6462
    %v7436 = vunpack.c.l.b16 %v6474
    %v7437 = vunpack.c.l.b16 %v6486
    %v7438 = vsel %vm6791, %v6668, %v6667
    %v7439 = vsel %vm6793, %v6669, %v7438
    %v7440 = vsel %vm6795, %v6670, %v7439
    %v7441 = vsel %vm6797, %v6942, %v7440
    %v7442 = vsel %vm6799, %v7102, %v7441
    %v7443 = vsel %vm6801, %v7262, %v7442
    %v7444 = vsel %vm6803, %v7422, %v7443
    %v7445 = vsel %vm6791, %v6676, %v6675
    %v7446 = vsel %vm6793, %v6677, %v7445
    %v7447 = vsel %vm6795, %v6678, %v7446
    %v7448 = vsel %vm6797, %v6943, %v7447
    %v7449 = vsel %vm6799, %v7103, %v7448
    %v7450 = vsel %vm6801, %v7263, %v7449
    %v7451 = vsel %vm6803, %v7423, %v7450
    %v7452 = vsel %vm6791, %v6684, %v6683
    %v7453 = vsel %vm6793, %v6685, %v7452
    %v7454 = vsel %vm6795, %v6686, %v7453
    %v7455 = vsel %vm6797, %v6944, %v7454
    %v7456 = vsel %vm6799, %v7104, %v7455
    %v7457 = vsel %vm6801, %v7264, %v7456
    %v7458 = vsel %vm6803, %v7424, %v7457
    %v7459 = vsel %vm6791, %v6692, %v6691
    %v7460 = vsel %vm6793, %v6693, %v7459
    %v7461 = vsel %vm6795, %v6694, %v7460
    %v7462 = vsel %vm6797, %v6945, %v7461
    %v7463 = vsel %vm6799, %v7105, %v7462
    %v7464 = vsel %vm6801, %v7265, %v7463
    %v7465 = vsel %vm6803, %v7425, %v7464
    %v7466 = vsel %vm6791, %v6700, %v6699
    %v7467 = vsel %vm6793, %v6701, %v7466
    %v7468 = vsel %vm6795, %v6702, %v7467
    %v7469 = vsel %vm6797, %v6946, %v7468
    %v7470 = vsel %vm6799, %v7106, %v7469
    %v7471 = vsel %vm6801, %v7266, %v7470
    %v7472 = vsel %vm6803, %v7426, %v7471
    %v7473 = vsel %vm6791, %v6708, %v6707
    %v7474 = vsel %vm6793, %v6709, %v7473
    %v7475 = vsel %vm6795, %v6710, %v7474
    %v7476 = vsel %vm6797, %v6947, %v7475
    %v7477 = vsel %vm6799, %v7107, %v7476
    %v7478 = vsel %vm6801, %v7267, %v7477
    %v7479 = vsel %vm6803, %v7427, %v7478
    %v7480 = vsel %vm6791, %v6716, %v6715
    %v7481 = vsel %vm6793, %v6717, %v7480
    %v7482 = vsel %vm6795, %v6718, %v7481
    %v7483 = vsel %vm6797, %v6948, %v7482
    %v7484 = vsel %vm6799, %v7108, %v7483
    %v7485 = vsel %vm6801, %v7268, %v7484
    %v7486 = vsel %vm6803, %v7428, %v7485
    %v7487 = vsel %vm6791, %v6724, %v6723
    %v7488 = vsel %vm6793, %v6725, %v7487
    %v7489 = vsel %vm6795, %v6726, %v7488
    %v7490 = vsel %vm6797, %v6949, %v7489
    %v7491 = vsel %vm6799, %v7109, %v7490
    %v7492 = vsel %vm6801, %v7269, %v7491
    %v7493 = vsel %vm6803, %v7429, %v7492
    %v7494 = vsel %vm6791, %v6732, %v6731
    %v7495 = vsel %vm6793, %v6733, %v7494
    %v7496 = vsel %vm6795, %v6734, %v7495
    %v7497 = vsel %vm6797, %v6950, %v7496
    %v7498 = vsel %vm6799, %v7110, %v7497
    %v7499 = vsel %vm6801, %v7270, %v7498
    %v7500 = vsel %vm6803, %v7430, %v7499
    %v7501 = vsel %vm6791, %v6740, %v6739
    %v7502 = vsel %vm6793, %v6741, %v7501
    %v7503 = vsel %vm6795, %v6742, %v7502
    %v7504 = vsel %vm6797, %v6951, %v7503
    %v7505 = vsel %vm6799, %v7111, %v7504
    %v7506 = vsel %vm6801, %v7271, %v7505
    %v7507 = vsel %vm6803, %v7431, %v7506
    %v7508 = vsel %vm6791, %v6748, %v6747
    %v7509 = vsel %vm6793, %v6749, %v7508
    %v7510 = vsel %vm6795, %v6750, %v7509
    %v7511 = vsel %vm6797, %v6952, %v7510
    %v7512 = vsel %vm6799, %v7112, %v7511
    %v7513 = vsel %vm6801, %v7272, %v7512
    %v7514 = vsel %vm6803, %v7432, %v7513
    %v7515 = vsel %vm6791, %v6756, %v6755
    %v7516 = vsel %vm6793, %v6757, %v7515
    %v7517 = vsel %vm6795, %v6758, %v7516
    %v7518 = vsel %vm6797, %v6953, %v7517
    %v7519 = vsel %vm6799, %v7113, %v7518
    %v7520 = vsel %vm6801, %v7273, %v7519
    %v7521 = vsel %vm6803, %v7433, %v7520
    %v7522 = vsel %vm6791, %v6764, %v6763
    %v7523 = vsel %vm6793, %v6765, %v7522
    %v7524 = vsel %vm6795, %v6766, %v7523
    %v7525 = vsel %vm6797, %v6954, %v7524
    %v7526 = vsel %vm6799, %v7114, %v7525
    %v7527 = vsel %vm6801, %v7274, %v7526
    %v7528 = vsel %vm6803, %v7434, %v7527
    %v7529 = vsel %vm6791, %v6772, %v6771
    %v7530 = vsel %vm6793, %v6773, %v7529
    %v7531 = vsel %vm6795, %v6774, %v7530
    %v7532 = vsel %vm6797, %v6955, %v7531
    %v7533 = vsel %vm6799, %v7115, %v7532
    %v7534 = vsel %vm6801, %v7275, %v7533
    %v7535 = vsel %vm6803, %v7435, %v7534
    %v7536 = vsel %vm6791, %v6780, %v6779
    %v7537 = vsel %vm6793, %v6781, %v7536
    %v7538 = vsel %vm6795, %v6782, %v7537
    %v7539 = vsel %vm6797, %v6956, %v7538
    %v7540 = vsel %vm6799, %v7116, %v7539
    %v7541 = vsel %vm6801, %v7276, %v7540
    %v7542 = vsel %vm6803, %v7436, %v7541
    %v7543 = vsel %vm6791, %v6788, %v6787
    %v7544 = vsel %vm6793, %v6789, %v7543
    %v7545 = vsel %vm6795, %v6790, %v7544
    %v7546 = vsel %vm6797, %v6957, %v7545
    %v7547 = vsel %vm6799, %v7117, %v7546
    %v7548 = vsel %vm6801, %v7277, %v7547
    %v7549 = vsel %vm6803, %v7437, %v7548
    %v7550 = vpack.c.b16 %v7451, %v7444
    %v7551 = vpack.c.b16 %v7465, %v7458
    %v7552 = vpack.c.b16 %v7479, %v7472
    %v7553 = vpack.c.b16 %v7493, %v7486
    %v7554 = vpack.c.b16 %v7507, %v7500
    %v7555 = vpack.c.b16 %v7521, %v7514
    %v7556 = vpack.c.b16 %v7535, %v7528
    %v7557 = vpack.c.b16 %v7549, %v7542
    %v7582 = vunpack.c.l.b16 %v6343
    %v7583 = vunpack.c.l.b16 %v6344
    %v7584 = vunpack.c.l.b16 %v6345
    %v7585 = vunpack.c.l.b16 %v6346
    %v7586 = vunpack.c.l.b16 %v6347
    %v7587 = vunpack.c.l.b16 %v6348
    %v7588 = vunpack.c.l.b16 %v6349
    %v7589 = vunpack.c.l.b16 %v6350
    %v7590 = vunpack.c.l.b16 %v6487
    %v7591 = vunpack.c.l.b16 %v6488
    %v7592 = vunpack.c.l.b16 %v6489
    %v7593 = vunpack.c.l.b16 %v6490
    %v7594 = vunpack.c.l.b16 %v6491
    %v7595 = vunpack.c.l.b16 %v6492
    %v7596 = vunpack.c.l.b16 %v6493
    %v7597 = vunpack.c.l.b16 %v6494
    %v7598 = vsel %vm6791, %v7583, %v7582
    %v7599 = vsel %vm6793, %v7584, %v7598
    %v7600 = vsel %vm6795, %v7585, %v7599
    %v7601 = vsel %vm6797, %v7586, %v7600
    %v7602 = vsel %vm6799, %v7587, %v7601
    %v7603 = vsel %vm6801, %v7588, %v7602
    %v7604 = vsel %vm6803, %v7589, %v7603
    %v7605 = vsel %vm6791, %v7591, %v7590
    %v7606 = vsel %vm6793, %v7592, %v7605
    %v7607 = vsel %vm6795, %v7593, %v7606
    %v7608 = vsel %vm6797, %v7594, %v7607
    %v7609 = vsel %vm6799, %v7595, %v7608
    %v7610 = vsel %vm6801, %v7596, %v7609
    %v7611 = vsel %vm6803, %v7597, %v7610
    %v7612 = vpack.c.b16 %v6818, %v6811
    %v7613 = vpack.c.b16 %v6832, %v6825
    %v7614 = vpack.c.b16 %v6846, %v6839
    %v7615 = vpack.c.b16 %v7604, %v6853
    %v7616 = vpack.c.b16 %v6874, %v6867
    %v7617 = vpack.c.b16 %v6888, %v6881
    %v7618 = vpack.c.b16 %v6902, %v6895
    %v7619 = vpack.c.b16 %v7611, %v6909
    %v7630 = vunpack.c.l.b16 %v6351
    %v7631 = vunpack.c.l.b16 %v6495
    %v7632 = vsel %vm6791, %v7584, %v7583
    %v7633 = vsel %vm6793, %v7585, %v7632
    %v7634 = vsel %vm6795, %v7586, %v7633
    %v7635 = vsel %vm6797, %v7587, %v7634
    %v7636 = vsel %vm6799, %v7588, %v7635
    %v7637 = vsel %vm6801, %v7589, %v7636
    %v7638 = vsel %vm6803, %v7630, %v7637
    %v7639 = vsel %vm6791, %v7592, %v7591
    %v7640 = vsel %vm6793, %v7593, %v7639
    %v7641 = vsel %vm6795, %v7594, %v7640
    %v7642 = vsel %vm6797, %v7595, %v7641
    %v7643 = vsel %vm6799, %v7596, %v7642
    %v7644 = vsel %vm6801, %v7597, %v7643
    %v7645 = vsel %vm6803, %v7631, %v7644
    %v7646 = vpack.c.b16 %v6978, %v6971
    %v7647 = vpack.c.b16 %v6992, %v6985
    %v7648 = vpack.c.b16 %v7006, %v6999
    %v7649 = vpack.c.b16 %v7638, %v7013
    %v7650 = vpack.c.b16 %v7034, %v7027
    %v7651 = vpack.c.b16 %v7048, %v7041
    %v7652 = vpack.c.b16 %v7062, %v7055
    %v7653 = vpack.c.b16 %v7645, %v7069
    %v7664 = vunpack.c.l.b16 %v6352
    %v7665 = vunpack.c.l.b16 %v6496
    %v7666 = vsel %vm6791, %v7585, %v7584
    %v7667 = vsel %vm6793, %v7586, %v7666
    %v7668 = vsel %vm6795, %v7587, %v7667
    %v7669 = vsel %vm6797, %v7588, %v7668
    %v7670 = vsel %vm6799, %v7589, %v7669
    %v7671 = vsel %vm6801, %v7630, %v7670
    %v7672 = vsel %vm6803, %v7664, %v7671
    %v7673 = vsel %vm6791, %v7593, %v7592
    %v7674 = vsel %vm6793, %v7594, %v7673
    %v7675 = vsel %vm6795, %v7595, %v7674
    %v7676 = vsel %vm6797, %v7596, %v7675
    %v7677 = vsel %vm6799, %v7597, %v7676
    %v7678 = vsel %vm6801, %v7631, %v7677
    %v7679 = vsel %vm6803, %v7665, %v7678
    %v7680 = vpack.c.b16 %v7138, %v7131
    %v7681 = vpack.c.b16 %v7152, %v7145
    %v7682 = vpack.c.b16 %v7166, %v7159
    %v7683 = vpack.c.b16 %v7672, %v7173
    %v7684 = vpack.c.b16 %v7194, %v7187
    %v7685 = vpack.c.b16 %v7208, %v7201
    %v7686 = vpack.c.b16 %v7222, %v7215
    %v7687 = vpack.c.b16 %v7679, %v7229
    %v7698 = vunpack.c.l.b16 %v6353
    %v7699 = vunpack.c.l.b16 %v6497
    %v7700 = vsel %vm6791, %v7586, %v7585
    %v7701 = vsel %vm6793, %v7587, %v7700
    %v7702 = vsel %vm6795, %v7588, %v7701
    %v7703 = vsel %vm6797, %v7589, %v7702
    %v7704 = vsel %vm6799, %v7630, %v7703
    %v7705 = vsel %vm6801, %v7664, %v7704
    %v7706 = vsel %vm6803, %v7698, %v7705
    %v7707 = vsel %vm6791, %v7594, %v7593
    %v7708 = vsel %vm6793, %v7595, %v7707
    %v7709 = vsel %vm6795, %v7596, %v7708
    %v7710 = vsel %vm6797, %v7597, %v7709
    %v7711 = vsel %vm6799, %v7631, %v7710
    %v7712 = vsel %vm6801, %v7665, %v7711
    %v7713 = vsel %vm6803, %v7699, %v7712
    %v7714 = vpack.c.b16 %v7298, %v7291
    %v7715 = vpack.c.b16 %v7312, %v7305
    %v7716 = vpack.c.b16 %v7326, %v7319
    %v7717 = vpack.c.b16 %v7706, %v7333
    %v7718 = vpack.c.b16 %v7354, %v7347
    %v7719 = vpack.c.b16 %v7368, %v7361
    %v7720 = vpack.c.b16 %v7382, %v7375
    %v7721 = vpack.c.b16 %v7713, %v7389
    %v7732 = vunpack.c.l.b16 %v6354
    %v7733 = vunpack.c.l.b16 %v6498
    %v7734 = vsel %vm6791, %v7587, %v7586
    %v7735 = vsel %vm6793, %v7588, %v7734
    %v7736 = vsel %vm6795, %v7589, %v7735
    %v7737 = vsel %vm6797, %v7630, %v7736
    %v7738 = vsel %vm6799, %v7664, %v7737
    %v7739 = vsel %vm6801, %v7698, %v7738
    %v7740 = vsel %vm6803, %v7732, %v7739
    %v7741 = vsel %vm6791, %v7595, %v7594
    %v7742 = vsel %vm6793, %v7596, %v7741
    %v7743 = vsel %vm6795, %v7597, %v7742
    %v7744 = vsel %vm6797, %v7631, %v7743
    %v7745 = vsel %vm6799, %v7665, %v7744
    %v7746 = vsel %vm6801, %v7699, %v7745
    %v7747 = vsel %vm6803, %v7733, %v7746
    %v7748 = vpack.c.b16 %v7458, %v7451
    %v7749 = vpack.c.b16 %v7472, %v7465
    %v7750 = vpack.c.b16 %v7486, %v7479
    %v7751 = vpack.c.b16 %v7740, %v7493
    %v7752 = vpack.c.b16 %v7514, %v7507
    %v7753 = vpack.c.b16 %v7528, %v7521
    %v7754 = vpack.c.b16 %v7542, %v7535
    %v7755 = vpack.c.b16 %v7747, %v7549
    %v7780 = vunpack.c.l.b16 %v6355
    %v7781 = vunpack.c.l.b16 %v6356
    %v7782 = vunpack.c.l.b16 %v6357
    %v7783 = vunpack.c.l.b16 %v6358
    %v7784 = vunpack.c.l.b16 %v6359
    %v7785 = vunpack.c.l.b16 %v6360
    %v7786 = vunpack.c.l.b16 %v6361
    %v7787 = vunpack.c.l.b16 %v6362
    %v7788 = vunpack.c.l.b16 %v6499
    %v7789 = vunpack.c.l.b16 %v6500
    %v7790 = vunpack.c.l.b16 %v6501
    %v7791 = vunpack.c.l.b16 %v6502
    %v7792 = vunpack.c.l.b16 %v6503
    %v7793 = vunpack.c.l.b16 %v6504
    %v7794 = vunpack.c.l.b16 %v6505
    %v7795 = vunpack.c.l.b16 %v6506
    %v7796 = vsel %vm6791, %v7781, %v7780
    %v7797 = vsel %vm6793, %v7782, %v7796
    %v7798 = vsel %vm6795, %v7783, %v7797
    %v7799 = vsel %vm6797, %v7784, %v7798
    %v7800 = vsel %vm6799, %v7785, %v7799
    %v7801 = vsel %vm6801, %v7786, %v7800
    %v7802 = vsel %vm6803, %v7787, %v7801
    %v7803 = vsel %vm6791, %v7789, %v7788
    %v7804 = vsel %vm6793, %v7790, %v7803
    %v7805 = vsel %vm6795, %v7791, %v7804
    %v7806 = vsel %vm6797, %v7792, %v7805
    %v7807 = vsel %vm6799, %v7793, %v7806
    %v7808 = vsel %vm6801, %v7794, %v7807
    %v7809 = vsel %vm6803, %v7795, %v7808
    %v7810 = vpack.c.b16 %v7802, %v7604
    %v7811 = vpack.c.b16 %v7809, %v7611
    %v7816 = vunpack.c.l.b16 %v6363
    %v7817 = vunpack.c.l.b16 %v6507
    %v7818 = vsel %vm6791, %v7782, %v7781
    %v7819 = vsel %vm6793, %v7783, %v7818
    %v7820 = vsel %vm6795, %v7784, %v7819
    %v7821 = vsel %vm6797, %v7785, %v7820
    %v7822 = vsel %vm6799, %v7786, %v7821
    %v7823 = vsel %vm6801, %v7787, %v7822
    %v7824 = vsel %vm6803, %v7816, %v7823
    %v7825 = vsel %vm6791, %v7790, %v7789
    %v7826 = vsel %vm6793, %v7791, %v7825
    %v7827 = vsel %vm6795, %v7792, %v7826
    %v7828 = vsel %vm6797, %v7793, %v7827
    %v7829 = vsel %vm6799, %v7794, %v7828
    %v7830 = vsel %vm6801, %v7795, %v7829
    %v7831 = vsel %vm6803, %v7817, %v7830
    %v7832 = vpack.c.b16 %v7824, %v7638
    %v7833 = vpack.c.b16 %v7831, %v7645
    %v7838 = vunpack.c.l.b16 %v6364
    %v7839 = vunpack.c.l.b16 %v6508
    %v7840 = vsel %vm6791, %v7783, %v7782
    %v7841 = vsel %vm6793, %v7784, %v7840
    %v7842 = vsel %vm6795, %v7785, %v7841
    %v7843 = vsel %vm6797, %v7786, %v7842
    %v7844 = vsel %vm6799, %v7787, %v7843
    %v7845 = vsel %vm6801, %v7816, %v7844
    %v7846 = vsel %vm6803, %v7838, %v7845
    %v7847 = vsel %vm6791, %v7791, %v7790
    %v7848 = vsel %vm6793, %v7792, %v7847
    %v7849 = vsel %vm6795, %v7793, %v7848
    %v7850 = vsel %vm6797, %v7794, %v7849
    %v7851 = vsel %vm6799, %v7795, %v7850
    %v7852 = vsel %vm6801, %v7817, %v7851
    %v7853 = vsel %vm6803, %v7839, %v7852
    %v7854 = vpack.c.b16 %v7846, %v7672
    %v7855 = vpack.c.b16 %v7853, %v7679
    %v7860 = vunpack.c.l.b16 %v6365
    %v7861 = vunpack.c.l.b16 %v6509
    %v7862 = vsel %vm6791, %v7784, %v7783
    %v7863 = vsel %vm6793, %v7785, %v7862
    %v7864 = vsel %vm6795, %v7786, %v7863
    %v7865 = vsel %vm6797, %v7787, %v7864
    %v7866 = vsel %vm6799, %v7816, %v7865
    %v7867 = vsel %vm6801, %v7838, %v7866
    %v7868 = vsel %vm6803, %v7860, %v7867
    %v7869 = vsel %vm6791, %v7792, %v7791
    %v7870 = vsel %vm6793, %v7793, %v7869
    %v7871 = vsel %vm6795, %v7794, %v7870
    %v7872 = vsel %vm6797, %v7795, %v7871
    %v7873 = vsel %vm6799, %v7817, %v7872
    %v7874 = vsel %vm6801, %v7839, %v7873
    %v7875 = vsel %vm6803, %v7861, %v7874
    %v7876 = vpack.c.b16 %v7868, %v7706
    %v7877 = vpack.c.b16 %v7875, %v7713
    %v7882 = vunpack.c.l.b16 %v6366
    %v7883 = vunpack.c.l.b16 %v6510
    %v7884 = vsel %vm6791, %v7785, %v7784
    %v7885 = vsel %vm6793, %v7786, %v7884
    %v7886 = vsel %vm6795, %v7787, %v7885
    %v7887 = vsel %vm6797, %v7816, %v7886
    %v7888 = vsel %vm6799, %v7838, %v7887
    %v7889 = vsel %vm6801, %v7860, %v7888
    %v7890 = vsel %vm6803, %v7882, %v7889
    %v7891 = vsel %vm6791, %v7793, %v7792
    %v7892 = vsel %vm6793, %v7794, %v7891
    %v7893 = vsel %vm6795, %v7795, %v7892
    %v7894 = vsel %vm6797, %v7817, %v7893
    %v7895 = vsel %vm6799, %v7839, %v7894
    %v7896 = vsel %vm6801, %v7861, %v7895
    %v7897 = vsel %vm6803, %v7883, %v7896
    %v7898 = vpack.c.b16 %v7890, %v7740
    %v7899 = vpack.c.b16 %v7897, %v7747
    %v7918 = vunpack.c.l.b16 %v6367
    %v7919 = vunpack.c.l.b16 %v6368
    %v7920 = vunpack.c.l.b16 %v6369
    %v7921 = vunpack.c.l.b16 %v6370
    %v7922 = vunpack.c.l.b16 %v6371
    %v7923 = vunpack.c.l.b16 %v6372
    %v7924 = vunpack.c.l.b16 %v6373
    %v7925 = vunpack.c.l.b16 %v6374
    %v7926 = vunpack.c.l.b16 %v6511
    %v7927 = vunpack.c.l.b16 %v6512
    %v7928 = vunpack.c.l.b16 %v6513
    %v7929 = vunpack.c.l.b16 %v6514
    %v7930 = vunpack.c.l.b16 %v6515
    %v7931 = vunpack.c.l.b16 %v6516
    %v7932 = vunpack.c.l.b16 %v6517
    %v7933 = vunpack.c.l.b16 %v6518
    %v7934 = vsel %vm6791, %v7919, %v7918
    %v7935 = vsel %vm6793, %v7920, %v7934
    %v7936 = vsel %vm6795, %v7921, %v7935
    %v7937 = vsel %vm6797, %v7922, %v7936
    %v7938 = vsel %vm6799, %v7923, %v7937
    %v7939 = vsel %vm6801, %v7924, %v7938
    %v7940 = vsel %vm6803, %v7925, %v7939
    %v7941 = vsel %vm6791, %v7927, %v7926
    %v7942 = vsel %vm6793, %v7928, %v7941
    %v7943 = vsel %vm6795, %v7929, %v7942
    %v7944 = vsel %vm6797, %v7930, %v7943
    %v7945 = vsel %vm6799, %v7931, %v7944
    %v7946 = vsel %vm6801, %v7932, %v7945
    %v7947 = vsel %vm6803, %v7933, %v7946
    %v7948 = vpack.c.b16 %v7940, %v7802
    %v7949 = vpack.c.b16 %v7947, %v7809
    %v7954 = vunpack.c.l.b16 %v6375
    %v7955 = vunpack.c.l.b16 %v6519
    %v7956 = vsel %vm6791, %v7920, %v7919
    %v7957 = vsel %vm6793, %v7921, %v7956
    %v7958 = vsel %vm6795, %v7922, %v7957
    %v7959 = vsel %vm6797, %v7923, %v7958
    %v7960 = vsel %vm6799, %v7924, %v7959
    %v7961 = vsel %vm6801, %v7925, %v7960
    %v7962 = vsel %vm6803, %v7954, %v7961
    %v7963 = vsel %vm6791, %v7928, %v7927
    %v7964 = vsel %vm6793, %v7929, %v7963
    %v7965 = vsel %vm6795, %v7930, %v7964
    %v7966 = vsel %vm6797, %v7931, %v7965
    %v7967 = vsel %vm6799, %v7932, %v7966
    %v7968 = vsel %vm6801, %v7933, %v7967
    %v7969 = vsel %vm6803, %v7955, %v7968
    %v7970 = vpack.c.b16 %v7962, %v7824
    %v7971 = vpack.c.b16 %v7969, %v7831
    %v7976 = vunpack.c.l.b16 %v6376
    %v7977 = vunpack.c.l.b16 %v6520
    %v7978 = vsel %vm6791, %v7921, %v7920
    %v7979 = vsel %vm6793, %v7922, %v7978
    %v7980 = vsel %vm6795, %v7923, %v7979
    %v7981 = vsel %vm6797, %v7924, %v7980
    %v7982 = vsel %vm6799, %v7925, %v7981
    %v7983 = vsel %vm6801, %v7954, %v7982
    %v7984 = vsel %vm6803, %v7976, %v7983
    %v7985 = vsel %vm6791, %v7929, %v7928
    %v7986 = vsel %vm6793, %v7930, %v7985
    %v7987 = vsel %vm6795, %v7931, %v7986
    %v7988 = vsel %vm6797, %v7932, %v7987
    %v7989 = vsel %vm6799, %v7933, %v7988
    %v7990 = vsel %vm6801, %v7955, %v7989
    %v7991 = vsel %vm6803, %v7977, %v7990
    %v7992 = vpack.c.b16 %v7984, %v7846
    %v7993 = vpack.c.b16 %v7991, %v7853
    %v7998 = vunpack.c.l.b16 %v6377
    %v7999 = vunpack.c.l.b16 %v6521
    %v8000 = vsel %vm6791, %v7922, %v7921
    %v8001 = vsel %vm6793, %v7923, %v8000
    %v8002 = vsel %vm6795, %v7924, %v8001
    %v8003 = vsel %vm6797, %v7925, %v8002
    %v8004 = vsel %vm6799, %v7954, %v8003
    %v8005 = vsel %vm6801, %v7976, %v8004
    %v8006 = vsel %vm6803, %v7998, %v8005
    %v8007 = vsel %vm6791, %v7930, %v7929
    %v8008 = vsel %vm6793, %v7931, %v8007
    %v8009 = vsel %vm6795, %v7932, %v8008
    %v8010 = vsel %vm6797, %v7933, %v8009
    %v8011 = vsel %vm6799, %v7955, %v8010
    %v8012 = vsel %vm6801, %v7977, %v8011
    %v8013 = vsel %vm6803, %v7999, %v8012
    %v8014 = vpack.c.b16 %v8006, %v7868
    %v8015 = vpack.c.b16 %v8013, %v7875
    %v8020 = vunpack.c.l.b16 %v6378
    %v8021 = vunpack.c.l.b16 %v6522
    %v8022 = vsel %vm6791, %v7923, %v7922
    %v8023 = vsel %vm6793, %v7924, %v8022
    %v8024 = vsel %vm6795, %v7925, %v8023
    %v8025 = vsel %vm6797, %v7954, %v8024
    %v8026 = vsel %vm6799, %v7976, %v8025
    %v8027 = vsel %vm6801, %v7998, %v8026
    %v8028 = vsel %vm6803, %v8020, %v8027
    %v8029 = vsel %vm6791, %v7931, %v7930
    %v8030 = vsel %vm6793, %v7932, %v8029
    %v8031 = vsel %vm6795, %v7933, %v8030
    %v8032 = vsel %vm6797, %v7955, %v8031
    %v8033 = vsel %vm6799, %v7977, %v8032
    %v8034 = vsel %vm6801, %v7999, %v8033
    %v8035 = vsel %vm6803, %v8021, %v8034
    %v8036 = vpack.c.b16 %v8028, %v7890
    %v8037 = vpack.c.b16 %v8035, %v7897
    %v8056 = vunpack.c.l.b16 %v6379
    %v8057 = vunpack.c.l.b16 %v6380
    %v8058 = vunpack.c.l.b16 %v6381
    %v8059 = vunpack.c.l.b16 %v6382
    %v8060 = vunpack.c.l.b16 %v6383
    %v8061 = vunpack.c.l.b16 %v6384
    %v8062 = vunpack.c.l.b16 %v6385
    %v8063 = vunpack.c.l.b16 %v6386
    %v8064 = vunpack.c.l.b16 %v6523
    %v8065 = vunpack.c.l.b16 %v6524
    %v8066 = vunpack.c.l.b16 %v6525
    %v8067 = vunpack.c.l.b16 %v6526
    %v8068 = vunpack.c.l.b16 %v6527
    %v8069 = vunpack.c.l.b16 %v6528
    %v8070 = vunpack.c.l.b16 %v6529
    %v8071 = vunpack.c.l.b16 %v6530
    %v8072 = vsel %vm6791, %v8057, %v8056
    %v8073 = vsel %vm6793, %v8058, %v8072
    %v8074 = vsel %vm6795, %v8059, %v8073
    %v8075 = vsel %vm6797, %v8060, %v8074
    %v8076 = vsel %vm6799, %v8061, %v8075
    %v8077 = vsel %vm6801, %v8062, %v8076
    %v8078 = vsel %vm6803, %v8063, %v8077
    %v8079 = vsel %vm6791, %v8065, %v8064
    %v8080 = vsel %vm6793, %v8066, %v8079
    %v8081 = vsel %vm6795, %v8067, %v8080
    %v8082 = vsel %vm6797, %v8068, %v8081
    %v8083 = vsel %vm6799, %v8069, %v8082
    %v8084 = vsel %vm6801, %v8070, %v8083
    %v8085 = vsel %vm6803, %v8071, %v8084
    %v8086 = vpack.c.b16 %v8078, %v7940
    %v8087 = vpack.c.b16 %v8085, %v7947
    %v8092 = vunpack.c.l.b16 %v6387
    %v8093 = vunpack.c.l.b16 %v6531
    %v8094 = vsel %vm6791, %v8058, %v8057
    %v8095 = vsel %vm6793, %v8059, %v8094
    %v8096 = vsel %vm6795, %v8060, %v8095
    %v8097 = vsel %vm6797, %v8061, %v8096
    %v8098 = vsel %vm6799, %v8062, %v8097
    %v8099 = vsel %vm6801, %v8063, %v8098
    %v8100 = vsel %vm6803, %v8092, %v8099
    %v8101 = vsel %vm6791, %v8066, %v8065
    %v8102 = vsel %vm6793, %v8067, %v8101
    %v8103 = vsel %vm6795, %v8068, %v8102
    %v8104 = vsel %vm6797, %v8069, %v8103
    %v8105 = vsel %vm6799, %v8070, %v8104
    %v8106 = vsel %vm6801, %v8071, %v8105
    %v8107 = vsel %vm6803, %v8093, %v8106
    %v8108 = vpack.c.b16 %v8100, %v7962
    %v8109 = vpack.c.b16 %v8107, %v7969
    %v8114 = vunpack.c.l.b16 %v6388
    %v8115 = vunpack.c.l.b16 %v6532
    %v8116 = vsel %vm6791, %v8059, %v8058
    %v8117 = vsel %vm6793, %v8060, %v8116
    %v8118 = vsel %vm6795, %v8061, %v8117
    %v8119 = vsel %vm6797, %v8062, %v8118
    %v8120 = vsel %vm6799, %v8063, %v8119
    %v8121 = vsel %vm6801, %v8092, %v8120
    %v8122 = vsel %vm6803, %v8114, %v8121
    %v8123 = vsel %vm6791, %v8067, %v8066
    %v8124 = vsel %vm6793, %v8068, %v8123
    %v8125 = vsel %vm6795, %v8069, %v8124
    %v8126 = vsel %vm6797, %v8070, %v8125
    %v8127 = vsel %vm6799, %v8071, %v8126
    %v8128 = vsel %vm6801, %v8093, %v8127
    %v8129 = vsel %vm6803, %v8115, %v8128
    %v8130 = vpack.c.b16 %v8122, %v7984
    %v8131 = vpack.c.b16 %v8129, %v7991
    %v8136 = vunpack.c.l.b16 %v6389
    %v8137 = vunpack.c.l.b16 %v6533
    %v8138 = vsel %vm6791, %v8060, %v8059
    %v8139 = vsel %vm6793, %v8061, %v8138
    %v8140 = vsel %vm6795, %v8062, %v8139
    %v8141 = vsel %vm6797, %v8063, %v8140
    %v8142 = vsel %vm6799, %v8092, %v8141
    %v8143 = vsel %vm6801, %v8114, %v8142
    %v8144 = vsel %vm6803, %v8136, %v8143
    %v8145 = vsel %vm6791, %v8068, %v8067
    %v8146 = vsel %vm6793, %v8069, %v8145
    %v8147 = vsel %vm6795, %v8070, %v8146
    %v8148 = vsel %vm6797, %v8071, %v8147
    %v8149 = vsel %vm6799, %v8093, %v8148
    %v8150 = vsel %vm6801, %v8115, %v8149
    %v8151 = vsel %vm6803, %v8137, %v8150
    %v8152 = vpack.c.b16 %v8144, %v8006
    %v8153 = vpack.c.b16 %v8151, %v8013
    %v8158 = vunpack.c.l.b16 %v6390
    %v8159 = vunpack.c.l.b16 %v6534
    %v8160 = vsel %vm6791, %v8061, %v8060
    %v8161 = vsel %vm6793, %v8062, %v8160
    %v8162 = vsel %vm6795, %v8063, %v8161
    %v8163 = vsel %vm6797, %v8092, %v8162
    %v8164 = vsel %vm6799, %v8114, %v8163
    %v8165 = vsel %vm6801, %v8136, %v8164
    %v8166 = vsel %vm6803, %v8158, %v8165
    %v8167 = vsel %vm6791, %v8069, %v8068
    %v8168 = vsel %vm6793, %v8070, %v8167
    %v8169 = vsel %vm6795, %v8071, %v8168
    %v8170 = vsel %vm6797, %v8093, %v8169
    %v8171 = vsel %vm6799, %v8115, %v8170
    %v8172 = vsel %vm6801, %v8137, %v8171
    %v8173 = vsel %vm6803, %v8159, %v8172
    %v8174 = vpack.c.b16 %v8166, %v8028
    %v8175 = vpack.c.b16 %v8173, %v8035
    %v8178 = vld [vmem:[%s4] sm:$0xf]
    %v8179 = vld [vmem:[%s4 + $0x4] sm:$0xf]
    %v8180 = vld [vmem:[%s4 + $0x8] sm:$0xf]
    %v8181 = vld [vmem:[%s4 + $0xc] sm:$0xf]
    %v8182 = vld [vmem:[%s4 + $0x10] sm:$0xf]
    %v8183 = vld [vmem:[%s4 + $0x14] sm:$0xf]
    %v8184 = vld [vmem:[%s4 + $0x18] sm:$0xf]
    %v8185 = vld [vmem:[%s4 + $0x1c] sm:$0xf]
    %v8186 = vld [vmem:[%s4 + $0x20] sm:$0xf]
    %v8187 = vld [vmem:[%s4 + $0x24] sm:$0xf]
    %v8188 = vld [vmem:[%s4 + $0x28] sm:$0xf]
    %v8189 = vld [vmem:[%s4 + $0x2c] sm:$0xf]
    %v8190 = vld [vmem:[%s4 + $0x30] sm:$0xf]
    %v8191 = vld [vmem:[%s4 + $0x34] sm:$0xf]
    %v8192 = vld [vmem:[%s4 + $0x38] sm:$0xf]
    %v8193 = vld [vmem:[%s4 + $0x3c] sm:$0xf]
    %v8194 = vld [vmem:[%s4 + $0x40] sm:$0xf]
    %v8195 = vld [vmem:[%s4 + $0x44] sm:$0xf]
    %v8196 = vld [vmem:[%s4 + $0x48] sm:$0xf]
    %v8197 = vld [vmem:[%s4 + $0x4c] sm:$0xf]
    %v8198 = vld [vmem:[%s4 + $0x50] sm:$0xf]
    %v8199 = vld [vmem:[%s4 + $0x54] sm:$0xf]
    %v8200 = vld [vmem:[%s4 + $0x58] sm:$0xf]
    %v8201 = vld [vmem:[%s4 + $0x5c] sm:$0xf]
    %v8202 = vld [vmem:[%s4 + $0x60] sm:$0xf]
    %v8203 = vld [vmem:[%s4 + $0x64] sm:$0xf]
    %v8204 = vld [vmem:[%s4 + $0x68] sm:$0xf]
    %v8205 = vld [vmem:[%s4 + $0x6c] sm:$0xf]
    %v8206 = vld [vmem:[%s4 + $0x70] sm:$0xf]
    %v8207 = vld [vmem:[%s4 + $0x74] sm:$0xf]
    %v8208 = vld [vmem:[%s4 + $0x78] sm:$0xf]
    %v8209 = vld [vmem:[%s4 + $0x7c] sm:$0xf]
    %v8210 = vld [vmem:[%s4 + $0x80] sm:$0xf]
    %v8211 = vld [vmem:[%s4 + $0x84] sm:$0xf]
    %v8212 = vld [vmem:[%s4 + $0x88] sm:$0xf]
    %v8213 = vld [vmem:[%s4 + $0x8c] sm:$0xf]
    %v8214 = vld [vmem:[%s4 + $0x90] sm:$0xf]
    %v8215 = vld [vmem:[%s4 + $0x94] sm:$0xf]
    %v8216 = vld [vmem:[%s4 + $0x98] sm:$0xf]
    %v8217 = vld [vmem:[%s4 + $0x9c] sm:$0xf]
    %v8218 = vld [vmem:[%s4 + $0xa0] sm:$0xf]
    %v8219 = vld [vmem:[%s4 + $0xa4] sm:$0xf]
    %v8220 = vld [vmem:[%s4 + $0xa8] sm:$0xf]
    %v8221 = vld [vmem:[%s4 + $0xac] sm:$0xf]
    %v8222 = vld [vmem:[%s4 + $0xb0] sm:$0xf]
    %v8223 = vld [vmem:[%s4 + $0xb4] sm:$0xf]
    %v8224 = vld [vmem:[%s4 + $0xb8] sm:$0xf]
    %v8225 = vld [vmem:[%s4 + $0xbc] sm:$0xf]
    %v8226 = vld [vmem:[%s4 + $0xc0] sm:$0xf]
    %v8227 = vld [vmem:[%s4 + $0xc4] sm:$0xf]
    %v8228 = vld [vmem:[%s4 + $0xc8] sm:$0xf]
    %v8229 = vld [vmem:[%s4 + $0xcc] sm:$0xf]
    %v8230 = vld [vmem:[%s4 + $0xd0] sm:$0xf]
    %v8231 = vld [vmem:[%s4 + $0xd4] sm:$0xf]
    %v8232 = vld [vmem:[%s4 + $0xd8] sm:$0xf]
    %v8233 = vld [vmem:[%s4 + $0xdc] sm:$0xf]
    %v8234 = vld [vmem:[%s4 + $0xe0] sm:$0xf]
    %v8235 = vld [vmem:[%s4 + $0xe4] sm:$0xf]
    %v8236 = vld [vmem:[%s4 + $0xe8] sm:$0xf]
    %v8237 = vld [vmem:[%s4 + $0xec] sm:$0xf]
    %v8238 = vld [vmem:[%s4 + $0xf0] sm:$0xf]
    %v8239 = vld [vmem:[%s4 + $0xf4] sm:$0xf]
    %v8240 = vld [vmem:[%s4 + $0xf8] sm:$0xf]
    %v8241 = vld [vmem:[%s4 + $0xfc] sm:$0xf]
    %v8242 = vld [vmem:[%s4 + $0x100] sm:$0xf]
    %v8243 = vld [vmem:[%s4 + $0x104] sm:$0xf]
    %v8244 = vld [vmem:[%s4 + $0x108] sm:$0xf]
    %v8245 = vld [vmem:[%s4 + $0x10c] sm:$0xf]
    %v8246 = vld [vmem:[%s4 + $0x110] sm:$0xf]
    %v8247 = vld [vmem:[%s4 + $0x114] sm:$0xf]
    %v8248 = vld [vmem:[%s4 + $0x118] sm:$0xf]
    %v8249 = vld [vmem:[%s4 + $0x11c] sm:$0xf]
    %v8250 = vld [vmem:[%s4 + $0x120] sm:$0xf]
    %v8251 = vld [vmem:[%s4 + $0x124] sm:$0xf]
    %v8252 = vld [vmem:[%s4 + $0x128] sm:$0xf]
    %v8253 = vld [vmem:[%s4 + $0x12c] sm:$0xf]
    %v8254 = vld [vmem:[%s4 + $0x130] sm:$0xf]
    %v8255 = vld [vmem:[%s4 + $0x134] sm:$0xf]
    %v8256 = vld [vmem:[%s4 + $0x138] sm:$0xf]
    %v8257 = vld [vmem:[%s4 + $0x13c] sm:$0xf]
    %v8258 = vld [vmem:[%s4 + $0x140] sm:$0xf]
    %v8259 = vld [vmem:[%s4 + $0x144] sm:$0xf]
    %v8260 = vld [vmem:[%s4 + $0x148] sm:$0xf]
    %v8261 = vld [vmem:[%s4 + $0x14c] sm:$0xf]
    %v8262 = vld [vmem:[%s4 + $0x150] sm:$0xf]
    %v8263 = vld [vmem:[%s4 + $0x154] sm:$0xf]
    %v8264 = vld [vmem:[%s4 + $0x158] sm:$0xf]
    %v8265 = vld [vmem:[%s4 + $0x15c] sm:$0xf]
    %v8266 = vld [vmem:[%s4 + $0x160] sm:$0xf]
    %v8267 = vld [vmem:[%s4 + $0x164] sm:$0xf]
    %v8268 = vld [vmem:[%s4 + $0x168] sm:$0xf]
    %v8269 = vld [vmem:[%s4 + $0x16c] sm:$0xf]
    %v8270 = vld [vmem:[%s4 + $0x170] sm:$0xf]
    %v8271 = vld [vmem:[%s4 + $0x174] sm:$0xf]
    %v8272 = vld [vmem:[%s4 + $0x178] sm:$0xf]
    %v8273 = vld [vmem:[%s4 + $0x17c] sm:$0xf]
    %v8274 = vld [vmem:[%s4 + $0x180] sm:$0xf]
    %v8275 = vld [vmem:[%s4 + $0x184] sm:$0xf]
    %v8276 = vld [vmem:[%s4 + $0x188] sm:$0xf]
    %v8277 = vld [vmem:[%s4 + $0x18c] sm:$0xf]
    %v8278 = vld [vmem:[%s4 + $0x190] sm:$0xf]
    %v8279 = vld [vmem:[%s4 + $0x194] sm:$0xf]
    %v8280 = vld [vmem:[%s4 + $0x198] sm:$0xf]
    %v8281 = vld [vmem:[%s4 + $0x19c] sm:$0xf]
    %v8282 = vld [vmem:[%s4 + $0x1a0] sm:$0xf]
    %v8283 = vld [vmem:[%s4 + $0x1a4] sm:$0xf]
    %v8284 = vld [vmem:[%s4 + $0x1a8] sm:$0xf]
    %v8285 = vld [vmem:[%s4 + $0x1ac] sm:$0xf]
    %v8286 = vld [vmem:[%s4 + $0x1b0] sm:$0xf]
    %v8287 = vld [vmem:[%s4 + $0x1b4] sm:$0xf]
    %v8288 = vld [vmem:[%s4 + $0x1b8] sm:$0xf]
    %v8289 = vld [vmem:[%s4 + $0x1bc] sm:$0xf]
    %v8290 = vld [vmem:[%s4 + $0x1c0] sm:$0xf]
    %v8291 = vld [vmem:[%s4 + $0x1c4] sm:$0xf]
    %v8292 = vld [vmem:[%s4 + $0x1c8] sm:$0xf]
    %v8293 = vld [vmem:[%s4 + $0x1cc] sm:$0xf]
    %v8294 = vld [vmem:[%s4 + $0x1d0] sm:$0xf]
    %v8295 = vld [vmem:[%s4 + $0x1d4] sm:$0xf]
    %v8296 = vld [vmem:[%s4 + $0x1d8] sm:$0xf]
    %v8297 = vld [vmem:[%s4 + $0x1dc] sm:$0xf]
    %v8298 = vld [vmem:[%s4 + $0x1e0] sm:$0xf]
    %v8299 = vld [vmem:[%s4 + $0x1e4] sm:$0xf]
    %v8300 = vld [vmem:[%s4 + $0x1e8] sm:$0xf]
    %v8301 = vld [vmem:[%s4 + $0x1ec] sm:$0xf]
    %v8302 = vld [vmem:[%s4 + $0x1f0] sm:$0xf]
    %v8303 = vld [vmem:[%s4 + $0x1f4] sm:$0xf]
    %v8304 = vld [vmem:[%s4 + $0x1f8] sm:$0xf]
    %v8305 = vld [vmem:[%s4 + $0x1fc] sm:$0xf]
    %v8306 = vld [vmem:[%s4 + $0x200] sm:$0xf]
    %v8307 = vld [vmem:[%s4 + $0x204] sm:$0xf]
    %v8308 = vld [vmem:[%s4 + $0x208] sm:$0xf]
    %v8309 = vld [vmem:[%s4 + $0x20c] sm:$0xf]
    %v8310 = vld [vmem:[%s4 + $0x210] sm:$0xf]
    %v8311 = vld [vmem:[%s4 + $0x214] sm:$0xf]
    %v8312 = vld [vmem:[%s4 + $0x218] sm:$0xf]
    %v8313 = vld [vmem:[%s4 + $0x21c] sm:$0xf]
    %v8314 = vld [vmem:[%s4 + $0x220] sm:$0xf]
    %v8315 = vld [vmem:[%s4 + $0x224] sm:$0xf]
    %v8316 = vld [vmem:[%s4 + $0x228] sm:$0xf]
    %v8317 = vld [vmem:[%s4 + $0x22c] sm:$0xf]
    %v8318 = vld [vmem:[%s4 + $0x230] sm:$0xf]
    %v8319 = vld [vmem:[%s4 + $0x234] sm:$0xf]
    %v8320 = vld [vmem:[%s4 + $0x238] sm:$0xf]
    %v8321 = vld [vmem:[%s4 + $0x23c] sm:$0xf]
    %v8322 = vld [vmem:[%s4 + $0x240] sm:$0xf]
    %v8323 = vld [vmem:[%s4 + $0x244] sm:$0xf]
    %v8324 = vld [vmem:[%s4 + $0x248] sm:$0xf]
    %v8325 = vld [vmem:[%s4 + $0x24c] sm:$0xf]
    %v8326 = vld [vmem:[%s4 + $0x250] sm:$0xf]
    %v8327 = vld [vmem:[%s4 + $0x254] sm:$0xf]
    %v8328 = vld [vmem:[%s4 + $0x258] sm:$0xf]
    %v8329 = vld [vmem:[%s4 + $0x25c] sm:$0xf]
    %v8330 = vld [vmem:[%s4 + $0x260] sm:$0xf]
    %v8331 = vld [vmem:[%s4 + $0x264] sm:$0xf]
    %v8332 = vld [vmem:[%s4 + $0x268] sm:$0xf]
    %v8333 = vld [vmem:[%s4 + $0x26c] sm:$0xf]
    %v8334 = vld [vmem:[%s4 + $0x270] sm:$0xf]
    %v8335 = vld [vmem:[%s4 + $0x274] sm:$0xf]
    %v8336 = vld [vmem:[%s4 + $0x278] sm:$0xf]
    %v8337 = vld [vmem:[%s4 + $0x27c] sm:$0xf]
    %v8338 = vld [vmem:[%s4 + $0x280] sm:$0xf]
    %v8339 = vld [vmem:[%s4 + $0x284] sm:$0xf]
    %v8340 = vld [vmem:[%s4 + $0x288] sm:$0xf]
    %v8341 = vld [vmem:[%s4 + $0x28c] sm:$0xf]
    %v8342 = vld [vmem:[%s4 + $0x290] sm:$0xf]
    %v8343 = vld [vmem:[%s4 + $0x294] sm:$0xf]
    %v8344 = vld [vmem:[%s4 + $0x298] sm:$0xf]
    %v8345 = vld [vmem:[%s4 + $0x29c] sm:$0xf]
    %v8346 = vld [vmem:[%s4 + $0x2a0] sm:$0xf]
    %v8347 = vld [vmem:[%s4 + $0x2a4] sm:$0xf]
    %v8348 = vld [vmem:[%s4 + $0x2a8] sm:$0xf]
    %v8349 = vld [vmem:[%s4 + $0x2ac] sm:$0xf]
    %v8350 = vld [vmem:[%s4 + $0x2b0] sm:$0xf]
    %v8351 = vld [vmem:[%s4 + $0x2b4] sm:$0xf]
    %v8352 = vld [vmem:[%s4 + $0x2b8] sm:$0xf]
    %v8353 = vld [vmem:[%s4 + $0x2bc] sm:$0xf]
    %v8354 = vld [vmem:[%s4 + $0x2c0] sm:$0xf]
    %v8355 = vld [vmem:[%s4 + $0x2c4] sm:$0xf]
    %v8356 = vld [vmem:[%s4 + $0x2c8] sm:$0xf]
    %v8357 = vld [vmem:[%s4 + $0x2cc] sm:$0xf]
    %v8358 = vld [vmem:[%s4 + $0x2d0] sm:$0xf]
    %v8359 = vld [vmem:[%s4 + $0x2d4] sm:$0xf]
    %v8360 = vld [vmem:[%s4 + $0x2d8] sm:$0xf]
    %v8361 = vld [vmem:[%s4 + $0x2dc] sm:$0xf]
    %v8362 = vld [vmem:[%s4 + $0x2e0] sm:$0xf]
    %v8363 = vld [vmem:[%s4 + $0x2e4] sm:$0xf]
    %v8364 = vld [vmem:[%s4 + $0x2e8] sm:$0xf]
    %v8365 = vld [vmem:[%s4 + $0x2ec] sm:$0xf]
    %v8366 = vld [vmem:[%s4 + $0x2f0] sm:$0xf]
    %v8367 = vld [vmem:[%s4 + $0x2f4] sm:$0xf]
    %v8368 = vld [vmem:[%s4 + $0x2f8] sm:$0xf]
    %v8369 = vld [vmem:[%s4 + $0x2fc] sm:$0xf]
    %v8370 = vld [vmem:[%s4 + $0x300] sm:$0xf]
    %v8371 = vld [vmem:[%s4 + $0x304] sm:$0xf]
    %v8372 = vld [vmem:[%s4 + $0x308] sm:$0xf]
    %v8373 = vld [vmem:[%s4 + $0x30c] sm:$0xf]
    %v8374 = vld [vmem:[%s4 + $0x310] sm:$0xf]
    %v8375 = vld [vmem:[%s4 + $0x314] sm:$0xf]
    %v8376 = vld [vmem:[%s4 + $0x318] sm:$0xf]
    %v8377 = vld [vmem:[%s4 + $0x31c] sm:$0xf]
    %v8378 = vld [vmem:[%s4 + $0x320] sm:$0xf]
    %v8379 = vld [vmem:[%s4 + $0x324] sm:$0xf]
    %v8380 = vld [vmem:[%s4 + $0x328] sm:$0xf]
    %v8381 = vld [vmem:[%s4 + $0x32c] sm:$0xf]
    %v8382 = vld [vmem:[%s4 + $0x330] sm:$0xf]
    %v8383 = vld [vmem:[%s4 + $0x334] sm:$0xf]
    %v8384 = vld [vmem:[%s4 + $0x338] sm:$0xf]
    %v8385 = vld [vmem:[%s4 + $0x33c] sm:$0xf]
    %v8386 = vld [vmem:[%s4 + $0x340] sm:$0xf]
    %v8387 = vld [vmem:[%s4 + $0x344] sm:$0xf]
    %v8388 = vld [vmem:[%s4 + $0x348] sm:$0xf]
    %v8389 = vld [vmem:[%s4 + $0x34c] sm:$0xf]
    %v8390 = vld [vmem:[%s4 + $0x350] sm:$0xf]
    %v8391 = vld [vmem:[%s4 + $0x354] sm:$0xf]
    %v8392 = vld [vmem:[%s4 + $0x358] sm:$0xf]
    %v8393 = vld [vmem:[%s4 + $0x35c] sm:$0xf]
    %v8394 = vld [vmem:[%s4 + $0x360] sm:$0xf]
    %v8395 = vld [vmem:[%s4 + $0x364] sm:$0xf]
    %v8396 = vld [vmem:[%s4 + $0x368] sm:$0xf]
    %v8397 = vld [vmem:[%s4 + $0x36c] sm:$0xf]
    %v8398 = vld [vmem:[%s4 + $0x370] sm:$0xf]
    %v8399 = vld [vmem:[%s4 + $0x374] sm:$0xf]
    %v8400 = vld [vmem:[%s4 + $0x378] sm:$0xf]
    %v8401 = vld [vmem:[%s4 + $0x37c] sm:$0xf]
    %v8402 = vld [vmem:[%s4 + $0x380] sm:$0xf]
    %v8403 = vld [vmem:[%s4 + $0x384] sm:$0xf]
    %v8404 = vld [vmem:[%s4 + $0x388] sm:$0xf]
    %v8405 = vld [vmem:[%s4 + $0x38c] sm:$0xf]
    %v8406 = vld [vmem:[%s4 + $0x390] sm:$0xf]
    %v8407 = vld [vmem:[%s4 + $0x394] sm:$0xf]
    %v8408 = vld [vmem:[%s4 + $0x398] sm:$0xf]
    %v8409 = vld [vmem:[%s4 + $0x39c] sm:$0xf]
    %v8410 = vld [vmem:[%s4 + $0x3a0] sm:$0xf]
    %v8411 = vld [vmem:[%s4 + $0x3a4] sm:$0xf]
    %v8412 = vld [vmem:[%s4 + $0x3a8] sm:$0xf]
    %v8413 = vld [vmem:[%s4 + $0x3ac] sm:$0xf]
    %v8414 = vld [vmem:[%s4 + $0x3b0] sm:$0xf]
    %v8415 = vld [vmem:[%s4 + $0x3b4] sm:$0xf]
    %v8416 = vld [vmem:[%s4 + $0x3b8] sm:$0xf]
    %v8417 = vld [vmem:[%s4 + $0x3bc] sm:$0xf]
    %v8418 = vld [vmem:[%s4 + $0x3c0] sm:$0xf]
    %v8419 = vld [vmem:[%s4 + $0x3c4] sm:$0xf]
    %v8420 = vld [vmem:[%s4 + $0x3c8] sm:$0xf]
    %v8421 = vld [vmem:[%s4 + $0x3cc] sm:$0xf]
    %v8422 = vld [vmem:[%s4 + $0x3d0] sm:$0xf]
    %v8423 = vld [vmem:[%s4 + $0x3d4] sm:$0xf]
    %v8424 = vld [vmem:[%s4 + $0x3d8] sm:$0xf]
    %v8425 = vld [vmem:[%s4 + $0x3dc] sm:$0xf]
    %v8426 = vld [vmem:[%s4 + $0x3e0] sm:$0xf]
    %v8427 = vld [vmem:[%s4 + $0x3e4] sm:$0xf]
    %v8428 = vld [vmem:[%s4 + $0x3e8] sm:$0xf]
    %v8429 = vld [vmem:[%s4 + $0x3ec] sm:$0xf]
    %v8430 = vld [vmem:[%s4 + $0x3f0] sm:$0xf]
    %v8431 = vld [vmem:[%s4 + $0x3f4] sm:$0xf]
    %v8432 = vld [vmem:[%s4 + $0x3f8] sm:$0xf]
    %v8433 = vld [vmem:[%s4 + $0x3fc] sm:$0xf]
    %v8434 = vld [vmem:[%s4 + $0x400] sm:$0xf]
    %v8435 = vld [vmem:[%s4 + $0x404] sm:$0xf]
    %v8436 = vld [vmem:[%s4 + $0x408] sm:$0xf]
    %v8437 = vld [vmem:[%s4 + $0x40c] sm:$0xf]
    %v8438 = vld [vmem:[%s4 + $0x410] sm:$0xf]
    %v8439 = vld [vmem:[%s4 + $0x414] sm:$0xf]
    %v8440 = vld [vmem:[%s4 + $0x418] sm:$0xf]
    %v8441 = vld [vmem:[%s4 + $0x41c] sm:$0xf]
    %v8442 = vld [vmem:[%s4 + $0x420] sm:$0xf]
    %v8443 = vld [vmem:[%s4 + $0x424] sm:$0xf]
    %v8444 = vld [vmem:[%s4 + $0x428] sm:$0xf]
    %v8445 = vld [vmem:[%s4 + $0x42c] sm:$0xf]
    %v8446 = vld [vmem:[%s4 + $0x430] sm:$0xf]
    %v8447 = vld [vmem:[%s4 + $0x434] sm:$0xf]
    %v8448 = vld [vmem:[%s4 + $0x438] sm:$0xf]
    %v8449 = vld [vmem:[%s4 + $0x43c] sm:$0xf]
    %v8450 = vld [vmem:[%s4 + $0x440] sm:$0xf]
    %v8451 = vld [vmem:[%s4 + $0x444] sm:$0xf]
    %v8452 = vld [vmem:[%s4 + $0x448] sm:$0xf]
    %v8453 = vld [vmem:[%s4 + $0x44c] sm:$0xf]
    %v8454 = vld [vmem:[%s4 + $0x450] sm:$0xf]
    %v8455 = vld [vmem:[%s4 + $0x454] sm:$0xf]
    %v8456 = vld [vmem:[%s4 + $0x458] sm:$0xf]
    %v8457 = vld [vmem:[%s4 + $0x45c] sm:$0xf]
    %v8458 = vld [vmem:[%s4 + $0x460] sm:$0xf]
    %v8459 = vld [vmem:[%s4 + $0x464] sm:$0xf]
    %v8460 = vld [vmem:[%s4 + $0x468] sm:$0xf]
    %v8461 = vld [vmem:[%s4 + $0x46c] sm:$0xf]
    %v8462 = vld [vmem:[%s4 + $0x470] sm:$0xf]
    %v8463 = vld [vmem:[%s4 + $0x474] sm:$0xf]
    %v8464 = vld [vmem:[%s4 + $0x478] sm:$0xf]
    %v8465 = vld [vmem:[%s4 + $0x47c] sm:$0xf]
    %v8466 = vld [vmem:[%s4 + $0x480] sm:$0xf]
    %v8467 = vld [vmem:[%s4 + $0x484] sm:$0xf]
    %v8468 = vld [vmem:[%s4 + $0x488] sm:$0xf]
    %v8469 = vld [vmem:[%s4 + $0x48c] sm:$0xf]
    %v8470 = vld [vmem:[%s4 + $0x490] sm:$0xf]
    %v8471 = vld [vmem:[%s4 + $0x494] sm:$0xf]
    %v8472 = vld [vmem:[%s4 + $0x498] sm:$0xf]
    %v8473 = vld [vmem:[%s4 + $0x49c] sm:$0xf]
    %v8474 = vld [vmem:[%s4 + $0x4a0] sm:$0xf]
    %v8475 = vld [vmem:[%s4 + $0x4a4] sm:$0xf]
    %v8476 = vld [vmem:[%s4 + $0x4a8] sm:$0xf]
    %v8477 = vld [vmem:[%s4 + $0x4ac] sm:$0xf]
    %v8478 = vld [vmem:[%s4 + $0x4b0] sm:$0xf]
    %v8479 = vld [vmem:[%s4 + $0x4b4] sm:$0xf]
    %v8480 = vld [vmem:[%s4 + $0x4b8] sm:$0xf]
    %v8481 = vld [vmem:[%s4 + $0x4bc] sm:$0xf]
    %v8482 = vld [vmem:[%s4 + $0x4c0] sm:$0xf]
    %v8483 = vld [vmem:[%s4 + $0x4c4] sm:$0xf]
    %v8484 = vld [vmem:[%s4 + $0x4c8] sm:$0xf]
    %v8485 = vld [vmem:[%s4 + $0x4cc] sm:$0xf]
    %v8486 = vld [vmem:[%s4 + $0x4d0] sm:$0xf]
    %v8487 = vld [vmem:[%s4 + $0x4d4] sm:$0xf]
    %v8488 = vld [vmem:[%s4 + $0x4d8] sm:$0xf]
    %v8489 = vld [vmem:[%s4 + $0x4dc] sm:$0xf]
    %v8490 = vld [vmem:[%s4 + $0x4e0] sm:$0xf]
    %v8491 = vld [vmem:[%s4 + $0x4e4] sm:$0xf]
    %v8492 = vld [vmem:[%s4 + $0x4e8] sm:$0xf]
    %v8493 = vld [vmem:[%s4 + $0x4ec] sm:$0xf]
    %v8494 = vld [vmem:[%s4 + $0x4f0] sm:$0xf]
    %v8495 = vld [vmem:[%s4 + $0x4f4] sm:$0xf]
    %v8496 = vld [vmem:[%s4 + $0x4f8] sm:$0xf]
    %v8497 = vld [vmem:[%s4 + $0x4fc] sm:$0xf]
    %v8498 = vld [vmem:[%s4 + $0x500] sm:$0xf]
    %v8499 = vld [vmem:[%s4 + $0x504] sm:$0xf]
    %v8500 = vld [vmem:[%s4 + $0x508] sm:$0xf]
    %v8501 = vld [vmem:[%s4 + $0x50c] sm:$0xf]
    %v8502 = vld [vmem:[%s4 + $0x510] sm:$0xf]
    %v8503 = vld [vmem:[%s4 + $0x514] sm:$0xf]
    %v8504 = vld [vmem:[%s4 + $0x518] sm:$0xf]
    %v8505 = vld [vmem:[%s4 + $0x51c] sm:$0xf]
    %v8506 = vld [vmem:[%s4 + $0x520] sm:$0xf]
    %v8507 = vld [vmem:[%s4 + $0x524] sm:$0xf]
    %v8508 = vld [vmem:[%s4 + $0x528] sm:$0xf]
    %v8509 = vld [vmem:[%s4 + $0x52c] sm:$0xf]
    %v8510 = vld [vmem:[%s4 + $0x530] sm:$0xf]
    %v8511 = vld [vmem:[%s4 + $0x534] sm:$0xf]
    %v8512 = vld [vmem:[%s4 + $0x538] sm:$0xf]
    %v8513 = vld [vmem:[%s4 + $0x53c] sm:$0xf]
    %v8514 = vld [vmem:[%s4 + $0x540] sm:$0xf]
    %v8515 = vld [vmem:[%s4 + $0x544] sm:$0xf]
    %v8516 = vld [vmem:[%s4 + $0x548] sm:$0xf]
    %v8517 = vld [vmem:[%s4 + $0x54c] sm:$0xf]
    %v8518 = vld [vmem:[%s4 + $0x550] sm:$0xf]
    %v8519 = vld [vmem:[%s4 + $0x554] sm:$0xf]
    %v8520 = vld [vmem:[%s4 + $0x558] sm:$0xf]
    %v8521 = vld [vmem:[%s4 + $0x55c] sm:$0xf]
    %v8522 = vld [vmem:[%s4 + $0x560] sm:$0xf]
    %v8523 = vld [vmem:[%s4 + $0x564] sm:$0xf]
    %v8524 = vld [vmem:[%s4 + $0x568] sm:$0xf]
    %v8525 = vld [vmem:[%s4 + $0x56c] sm:$0xf]
    %v8526 = vld [vmem:[%s4 + $0x570] sm:$0xf]
    %v8527 = vld [vmem:[%s4 + $0x574] sm:$0xf]
    %v8528 = vld [vmem:[%s4 + $0x578] sm:$0xf]
    %v8529 = vld [vmem:[%s4 + $0x57c] sm:$0xf]
    %v8530 = vld [vmem:[%s4 + $0x580] sm:$0xf]
    %v8531 = vld [vmem:[%s4 + $0x584] sm:$0xf]
    %v8532 = vld [vmem:[%s4 + $0x588] sm:$0xf]
    %v8533 = vld [vmem:[%s4 + $0x58c] sm:$0xf]
    %v8534 = vld [vmem:[%s4 + $0x590] sm:$0xf]
    %v8535 = vld [vmem:[%s4 + $0x594] sm:$0xf]
    %v8536 = vld [vmem:[%s4 + $0x598] sm:$0xf]
    %v8537 = vld [vmem:[%s4 + $0x59c] sm:$0xf]
    %v8538 = vld [vmem:[%s4 + $0x5a0] sm:$0xf]
    %v8539 = vld [vmem:[%s4 + $0x5a4] sm:$0xf]
    %v8540 = vld [vmem:[%s4 + $0x5a8] sm:$0xf]
    %v8541 = vld [vmem:[%s4 + $0x5ac] sm:$0xf]
    %v8542 = vld [vmem:[%s4 + $0x5b0] sm:$0xf]
    %v8543 = vld [vmem:[%s4 + $0x5b4] sm:$0xf]
    %v8544 = vld [vmem:[%s4 + $0x5b8] sm:$0xf]
    %v8545 = vld [vmem:[%s4 + $0x5bc] sm:$0xf]
    %v8546 = vld [vmem:[%s4 + $0x5c0] sm:$0xf]
    %v8547 = vld [vmem:[%s4 + $0x5c4] sm:$0xf]
    %v8548 = vld [vmem:[%s4 + $0x5c8] sm:$0xf]
    %v8549 = vld [vmem:[%s4 + $0x5cc] sm:$0xf]
    %v8550 = vld [vmem:[%s4 + $0x5d0] sm:$0xf]
    %v8551 = vld [vmem:[%s4 + $0x5d4] sm:$0xf]
    %v8552 = vld [vmem:[%s4 + $0x5d8] sm:$0xf]
    %v8553 = vld [vmem:[%s4 + $0x5dc] sm:$0xf]
    %v8554 = vld [vmem:[%s4 + $0x5e0] sm:$0xf]
    %v8555 = vld [vmem:[%s4 + $0x5e4] sm:$0xf]
    %v8556 = vld [vmem:[%s4 + $0x5e8] sm:$0xf]
    %v8557 = vld [vmem:[%s4 + $0x5ec] sm:$0xf]
    %v8558 = vld [vmem:[%s4 + $0x5f0] sm:$0xf]
    %v8559 = vld [vmem:[%s4 + $0x5f4] sm:$0xf]
    %v8560 = vld [vmem:[%s4 + $0x5f8] sm:$0xf]
    %v8561 = vld [vmem:[%s4 + $0x5fc] sm:$0xf]
    %v8562 = vld [vmem:[%s4 + $0x600] sm:$0xf]
    %v8563 = vld [vmem:[%s4 + $0x604] sm:$0xf]
    %v8564 = vld [vmem:[%s4 + $0x608] sm:$0xf]
    %v8565 = vld [vmem:[%s4 + $0x60c] sm:$0xf]
    %v8566 = vld [vmem:[%s4 + $0x610] sm:$0xf]
    %v8567 = vld [vmem:[%s4 + $0x614] sm:$0xf]
    %v8568 = vld [vmem:[%s4 + $0x618] sm:$0xf]
    %v8569 = vld [vmem:[%s4 + $0x61c] sm:$0xf]
    %v8570 = vld [vmem:[%s4 + $0x620] sm:$0xf]
    %v8571 = vld [vmem:[%s4 + $0x624] sm:$0xf]
    %v8572 = vld [vmem:[%s4 + $0x628] sm:$0xf]
    %v8573 = vld [vmem:[%s4 + $0x62c] sm:$0xf]
    %v8574 = vld [vmem:[%s4 + $0x630] sm:$0xf]
    %v8575 = vld [vmem:[%s4 + $0x634] sm:$0xf]
    %v8576 = vld [vmem:[%s4 + $0x638] sm:$0xf]
    %v8577 = vld [vmem:[%s4 + $0x63c] sm:$0xf]
    %v8978 = vunpack.c.l.b16 %v8178
    %v8979 = vunpack.c.l.b16 %v8179
    %v8980 = vunpack.c.l.b16 %v8180
    %v8981 = vunpack.c.l.b16 %v8181
    %v8982 = vunpack.c.l.b16 %v8182
    %v8983 = vunpack.c.l.b16 %v8183
    %v8984 = vunpack.c.l.b16 %v8184
    %v8985 = vunpack.c.l.b16 %v8185
    %v8986 = vunpack.c.l.b16 %v8186
    %v8987 = vunpack.c.l.b16 %v8187
    %v8988 = vunpack.c.l.b16 %v8188
    %v8989 = vunpack.c.l.b16 %v8189
    %v8990 = vunpack.c.l.b16 %v8190
    %v8991 = vunpack.c.l.b16 %v8191
    %v8992 = vunpack.c.l.b16 %v8192
    %v8993 = vunpack.c.l.b16 %v8193
    %v8994 = vunpack.c.l.b16 %v8194
    %v8995 = vunpack.c.l.b16 %v8195
    %v8996 = vunpack.c.l.b16 %v8196
    %v8997 = vunpack.c.l.b16 %v8197
    %v8998 = vunpack.c.l.b16 %v8198
    %v8999 = vunpack.c.l.b16 %v8199
    %v9000 = vunpack.c.l.b16 %v8200
    %v9001 = vunpack.c.l.b16 %v8201
    %v9002 = vunpack.c.l.b16 %v8202
    %v9003 = vunpack.c.l.b16 %v8203
    %v9004 = vunpack.c.l.b16 %v8204
    %v9005 = vunpack.c.l.b16 %v8205
    %v9006 = vunpack.c.l.b16 %v8206
    %v9007 = vunpack.c.l.b16 %v8207
    %v9008 = vunpack.c.l.b16 %v8208
    %v9009 = vunpack.c.l.b16 %v8209
    %v9010 = vunpack.c.l.b16 %v8210
    %v9011 = vunpack.c.l.b16 %v8211
    %v9012 = vunpack.c.l.b16 %v8212
    %v9013 = vunpack.c.l.b16 %v8213
    %v9014 = vunpack.c.l.b16 %v8214
    %v9015 = vunpack.c.l.b16 %v8215
    %v9016 = vunpack.c.l.b16 %v8216
    %v9017 = vunpack.c.l.b16 %v8217
    %v9018 = vunpack.c.l.b16 %v8218
    %v9019 = vunpack.c.l.b16 %v8219
    %v9020 = vunpack.c.l.b16 %v8220
    %v9021 = vunpack.c.l.b16 %v8221
    %v9022 = vunpack.c.l.b16 %v8222
    %v9023 = vunpack.c.l.b16 %v8223
    %v9024 = vunpack.c.l.b16 %v8224
    %v9025 = vunpack.c.l.b16 %v8225
    %v9026 = vunpack.c.l.b16 %v8226
    %v9027 = vunpack.c.l.b16 %v8227
    %v9028 = vunpack.c.l.b16 %v8228
    %v9029 = vunpack.c.l.b16 %v8229
    %v9030 = vunpack.c.l.b16 %v8230
    %v9031 = vunpack.c.l.b16 %v8231
    %v9032 = vunpack.c.l.b16 %v8232
    %v9033 = vunpack.c.l.b16 %v8233
    %v9034 = vunpack.c.l.b16 %v8234
    %v9035 = vunpack.c.l.b16 %v8235
    %v9036 = vunpack.c.l.b16 %v8236
    %v9037 = vunpack.c.l.b16 %v8237
    %v9038 = vunpack.c.l.b16 %v8238
    %v9039 = vunpack.c.l.b16 %v8239
    %v9040 = vunpack.c.l.b16 %v8240
    %v9041 = vunpack.c.l.b16 %v8241
    %v9042 = vunpack.c.l.b16 %v8242
    %v9043 = vunpack.c.l.b16 %v8243
    %v9044 = vunpack.c.l.b16 %v8244
    %v9045 = vunpack.c.l.b16 %v8245
    %v9046 = vunpack.c.l.b16 %v8246
    %v9047 = vunpack.c.l.b16 %v8247
    %v9048 = vunpack.c.l.b16 %v8248
    %v9049 = vunpack.c.l.b16 %v8249
    %v9050 = vunpack.c.l.b16 %v8250
    %v9051 = vunpack.c.l.b16 %v8251
    %v9052 = vunpack.c.l.b16 %v8252
    %v9053 = vunpack.c.l.b16 %v8253
    %v9054 = vunpack.c.l.b16 %v8254
    %v9055 = vunpack.c.l.b16 %v8255
    %v9056 = vunpack.c.l.b16 %v8256
    %v9057 = vunpack.c.l.b16 %v8257
    %v9058 = vunpack.c.l.b16 %v8258
    %v9059 = vunpack.c.l.b16 %v8259
    %v9060 = vunpack.c.l.b16 %v8260
    %v9061 = vunpack.c.l.b16 %v8261
    %v9062 = vunpack.c.l.b16 %v8262
    %v9063 = vunpack.c.l.b16 %v8263
    %v9064 = vunpack.c.l.b16 %v8264
    %v9065 = vunpack.c.l.b16 %v8265
    %v9066 = vunpack.c.l.b16 %v8266
    %v9067 = vunpack.c.l.b16 %v8267
    %v9068 = vunpack.c.l.b16 %v8268
    %v9069 = vunpack.c.l.b16 %v8269
    %v9070 = vunpack.c.l.b16 %v8270
    %v9071 = vunpack.c.l.b16 %v8271
    %v9072 = vunpack.c.l.b16 %v8272
    %v9073 = vunpack.c.l.b16 %v8273
    %v9074 = vunpack.c.l.b16 %v8274
    %v9075 = vunpack.c.l.b16 %v8275
    %v9076 = vunpack.c.l.b16 %v8276
    %v9077 = vunpack.c.l.b16 %v8277
    %v9078 = vunpack.c.l.b16 %v8278
    %v9079 = vunpack.c.l.b16 %v8279
    %v9080 = vunpack.c.l.b16 %v8280
    %v9081 = vunpack.c.l.b16 %v8281
    %v9082 = vunpack.c.l.b16 %v8282
    %v9083 = vunpack.c.l.b16 %v8283
    %v9084 = vunpack.c.l.b16 %v8284
    %v9085 = vunpack.c.l.b16 %v8285
    %v9086 = vunpack.c.l.b16 %v8286
    %v9087 = vunpack.c.l.b16 %v8287
    %v9088 = vunpack.c.l.b16 %v8288
    %v9089 = vunpack.c.l.b16 %v8289
    %v9090 = vunpack.c.l.b16 %v8290
    %v9091 = vunpack.c.l.b16 %v8291
    %v9092 = vunpack.c.l.b16 %v8292
    %v9093 = vunpack.c.l.b16 %v8293
    %v9094 = vunpack.c.l.b16 %v8294
    %v9095 = vunpack.c.l.b16 %v8295
    %v9096 = vunpack.c.l.b16 %v8296
    %v9097 = vunpack.c.l.b16 %v8297
    %v9098 = vunpack.c.l.b16 %v8298
    %v9099 = vunpack.c.l.b16 %v8299
    %v9100 = vunpack.c.l.b16 %v8300
    %v9101 = vunpack.c.l.b16 %v8301
    %v9102 = vunpack.c.l.b16 %v8302
    %v9103 = vunpack.c.l.b16 %v8303
    %v9104 = vunpack.c.l.b16 %v8304
    %v9105 = vunpack.c.l.b16 %v8305
    %v9106 = vunpack.c.l.b16 %v8306
    %v9107 = vunpack.c.l.b16 %v8307
    %v9108 = vunpack.c.l.b16 %v8308
    %v9109 = vunpack.c.l.b16 %v8309
    %v9110 = vunpack.c.l.b16 %v8310
    %v9111 = vunpack.c.l.b16 %v8311
    %v9112 = vunpack.c.l.b16 %v8312
    %v9113 = vunpack.c.l.b16 %v8313
    %v9114 = vunpack.c.l.b16 %v8314
    %v9115 = vunpack.c.l.b16 %v8315
    %v9116 = vunpack.c.l.b16 %v8316
    %v9117 = vunpack.c.l.b16 %v8317
    %v9118 = vunpack.c.l.b16 %v8318
    %v9119 = vunpack.c.l.b16 %v8319
    %v9120 = vunpack.c.l.b16 %v8320
    %v9121 = vunpack.c.l.b16 %v8321
    %v9122 = vunpack.c.l.b16 %v8322
    %v9123 = vunpack.c.l.b16 %v8323
    %v9124 = vunpack.c.l.b16 %v8324
    %v9125 = vunpack.c.l.b16 %v8325
    %v9126 = vunpack.c.l.b16 %v8326
    %v9127 = vunpack.c.l.b16 %v8327
    %v9128 = vunpack.c.l.b16 %v8328
    %v9129 = vunpack.c.l.b16 %v8329
    %v9130 = vunpack.c.l.b16 %v8330
    %v9131 = vunpack.c.l.b16 %v8331
    %v9132 = vunpack.c.l.b16 %v8332
    %v9133 = vunpack.c.l.b16 %v8333
    %v9134 = vunpack.c.l.b16 %v8334
    %v9135 = vunpack.c.l.b16 %v8335
    %v9136 = vunpack.c.l.b16 %v8336
    %v9137 = vunpack.c.l.b16 %v8337
    %v9138 = vunpack.c.l.b16 %v8338
    %v9139 = vunpack.c.l.b16 %v8339
    %v9140 = vunpack.c.l.b16 %v8340
    %v9141 = vunpack.c.l.b16 %v8341
    %v9142 = vunpack.c.l.b16 %v8342
    %v9143 = vunpack.c.l.b16 %v8343
    %v9144 = vunpack.c.l.b16 %v8344
    %v9145 = vunpack.c.l.b16 %v8345
    %v9146 = vunpack.c.l.b16 %v8346
    %v9147 = vunpack.c.l.b16 %v8347
    %v9148 = vunpack.c.l.b16 %v8348
    %v9149 = vunpack.c.l.b16 %v8349
    %v9150 = vunpack.c.l.b16 %v8350
    %v9151 = vunpack.c.l.b16 %v8351
    %v9152 = vunpack.c.l.b16 %v8352
    %v9153 = vunpack.c.l.b16 %v8353
    %v9154 = vunpack.c.l.b16 %v8354
    %v9155 = vunpack.c.l.b16 %v8355
    %v9156 = vunpack.c.l.b16 %v8356
    %v9157 = vunpack.c.l.b16 %v8357
    %v9158 = vunpack.c.l.b16 %v8358
    %v9159 = vunpack.c.l.b16 %v8359
    %v9160 = vunpack.c.l.b16 %v8360
    %v9161 = vunpack.c.l.b16 %v8361
    %v9162 = vunpack.c.l.b16 %v8362
    %v9163 = vunpack.c.l.b16 %v8363
    %v9164 = vunpack.c.l.b16 %v8364
    %v9165 = vunpack.c.l.b16 %v8365
    %v9166 = vunpack.c.l.b16 %v8366
    %v9167 = vunpack.c.l.b16 %v8367
    %v9168 = vunpack.c.l.b16 %v8368
    %v9169 = vunpack.c.l.b16 %v8369
    %v9170 = vunpack.c.l.b16 %v8370
    %v9171 = vunpack.c.l.b16 %v8371
    %v9172 = vunpack.c.l.b16 %v8372
    %v9173 = vunpack.c.l.b16 %v8373
    %v9174 = vunpack.c.l.b16 %v8374
    %v9175 = vunpack.c.l.b16 %v8375
    %v9176 = vunpack.c.l.b16 %v8376
    %v9177 = vunpack.c.l.b16 %v8377
    %v9178 = vunpack.c.l.b16 %v8378
    %v9179 = vunpack.c.l.b16 %v8379
    %v9180 = vunpack.c.l.b16 %v8380
    %v9181 = vunpack.c.l.b16 %v8381
    %v9182 = vunpack.c.l.b16 %v8382
    %v9183 = vunpack.c.l.b16 %v8383
    %v9184 = vunpack.c.l.b16 %v8384
    %v9185 = vunpack.c.l.b16 %v8385
    %v9186 = vunpack.c.l.b16 %v8386
    %v9187 = vunpack.c.l.b16 %v8387
    %v9188 = vunpack.c.l.b16 %v8388
    %v9189 = vunpack.c.l.b16 %v8389
    %v9190 = vunpack.c.l.b16 %v8390
    %v9191 = vunpack.c.l.b16 %v8391
    %v9192 = vunpack.c.l.b16 %v8392
    %v9193 = vunpack.c.l.b16 %v8393
    %v9194 = vunpack.c.l.b16 %v8394
    %v9195 = vunpack.c.l.b16 %v8395
    %v9196 = vunpack.c.l.b16 %v8396
    %v9197 = vunpack.c.l.b16 %v8397
    %v9198 = vunpack.c.l.b16 %v8398
    %v9199 = vunpack.c.l.b16 %v8399
    %v9200 = vunpack.c.l.b16 %v8400
    %v9201 = vunpack.c.l.b16 %v8401
    %v9202 = vunpack.c.l.b16 %v8402
    %v9203 = vunpack.c.l.b16 %v8403
    %v9204 = vunpack.c.l.b16 %v8404
    %v9205 = vunpack.c.l.b16 %v8405
    %v9206 = vunpack.c.l.b16 %v8406
    %v9207 = vunpack.c.l.b16 %v8407
    %v9208 = vunpack.c.l.b16 %v8408
    %v9209 = vunpack.c.l.b16 %v8409
    %v9210 = vunpack.c.l.b16 %v8410
    %v9211 = vunpack.c.l.b16 %v8411
    %v9212 = vunpack.c.l.b16 %v8412
    %v9213 = vunpack.c.l.b16 %v8413
    %v9214 = vunpack.c.l.b16 %v8414
    %v9215 = vunpack.c.l.b16 %v8415
    %v9216 = vunpack.c.l.b16 %v8416
    %v9217 = vunpack.c.l.b16 %v8417
    %v9218 = vunpack.c.l.b16 %v8418
    %v9219 = vunpack.c.l.b16 %v8419
    %v9220 = vunpack.c.l.b16 %v8420
    %v9221 = vunpack.c.l.b16 %v8421
    %v9222 = vunpack.c.l.b16 %v8422
    %v9223 = vunpack.c.l.b16 %v8423
    %v9224 = vunpack.c.l.b16 %v8424
    %v9225 = vunpack.c.l.b16 %v8425
    %v9226 = vunpack.c.l.b16 %v8426
    %v9227 = vunpack.c.l.b16 %v8427
    %v9228 = vunpack.c.l.b16 %v8428
    %v9229 = vunpack.c.l.b16 %v8429
    %v9230 = vunpack.c.l.b16 %v8430
    %v9231 = vunpack.c.l.b16 %v8431
    %v9232 = vunpack.c.l.b16 %v8432
    %v9233 = vunpack.c.l.b16 %v8433
    %v9234 = vunpack.c.l.b16 %v8434
    %v9235 = vunpack.c.l.b16 %v8435
    %v9236 = vunpack.c.l.b16 %v8436
    %v9237 = vunpack.c.l.b16 %v8437
    %v9238 = vunpack.c.l.b16 %v8438
    %v9239 = vunpack.c.l.b16 %v8439
    %v9240 = vunpack.c.l.b16 %v8440
    %v9241 = vunpack.c.l.b16 %v8441
    %v9242 = vunpack.c.l.b16 %v8442
    %v9243 = vunpack.c.l.b16 %v8443
    %v9244 = vunpack.c.l.b16 %v8444
    %v9245 = vunpack.c.l.b16 %v8445
    %v9246 = vunpack.c.l.b16 %v8446
    %v9247 = vunpack.c.l.b16 %v8447
    %v9248 = vunpack.c.l.b16 %v8448
    %v9249 = vunpack.c.l.b16 %v8449
    %v9250 = vunpack.c.l.b16 %v8450
    %v9251 = vunpack.c.l.b16 %v8451
    %v9252 = vunpack.c.l.b16 %v8452
    %v9253 = vunpack.c.l.b16 %v8453
    %v9254 = vunpack.c.l.b16 %v8454
    %v9255 = vunpack.c.l.b16 %v8455
    %v9256 = vunpack.c.l.b16 %v8456
    %v9257 = vunpack.c.l.b16 %v8457
    %v9258 = vunpack.c.l.b16 %v8458
    %v9259 = vunpack.c.l.b16 %v8459
    %v9260 = vunpack.c.l.b16 %v8460
    %v9261 = vunpack.c.l.b16 %v8461
    %v9262 = vunpack.c.l.b16 %v8462
    %v9263 = vunpack.c.l.b16 %v8463
    %v9264 = vunpack.c.l.b16 %v8464
    %v9265 = vunpack.c.l.b16 %v8465
    %v9266 = vunpack.c.l.b16 %v8466
    %v9267 = vunpack.c.l.b16 %v8467
    %v9268 = vunpack.c.l.b16 %v8468
    %v9269 = vunpack.c.l.b16 %v8469
    %v9270 = vunpack.c.l.b16 %v8470
    %v9271 = vunpack.c.l.b16 %v8471
    %v9272 = vunpack.c.l.b16 %v8472
    %v9273 = vunpack.c.l.b16 %v8473
    %v9274 = vunpack.c.l.b16 %v8474
    %v9275 = vunpack.c.l.b16 %v8475
    %v9276 = vunpack.c.l.b16 %v8476
    %v9277 = vunpack.c.l.b16 %v8477
    %v9278 = vunpack.c.l.b16 %v8478
    %v9279 = vunpack.c.l.b16 %v8479
    %v9280 = vunpack.c.l.b16 %v8480
    %v9281 = vunpack.c.l.b16 %v8481
    %v9282 = vunpack.c.l.b16 %v8482
    %v9283 = vunpack.c.l.b16 %v8483
    %v9284 = vunpack.c.l.b16 %v8484
    %v9285 = vunpack.c.l.b16 %v8485
    %v9286 = vunpack.c.l.b16 %v8486
    %v9287 = vunpack.c.l.b16 %v8487
    %v9288 = vunpack.c.l.b16 %v8488
    %v9289 = vunpack.c.l.b16 %v8489
    %v9290 = vunpack.c.l.b16 %v8490
    %v9291 = vunpack.c.l.b16 %v8491
    %v9292 = vunpack.c.l.b16 %v8492
    %v9293 = vunpack.c.l.b16 %v8493
    %v9294 = vunpack.c.l.b16 %v8494
    %v9295 = vunpack.c.l.b16 %v8495
    %v9296 = vunpack.c.l.b16 %v8496
    %v9297 = vunpack.c.l.b16 %v8497
    %v9298 = vunpack.c.l.b16 %v8498
    %v9299 = vunpack.c.l.b16 %v8499
    %v9300 = vunpack.c.l.b16 %v8500
    %v9301 = vunpack.c.l.b16 %v8501
    %v9302 = vunpack.c.l.b16 %v8502
    %v9303 = vunpack.c.l.b16 %v8503
    %v9304 = vunpack.c.l.b16 %v8504
    %v9305 = vunpack.c.l.b16 %v8505
    %v9306 = vunpack.c.l.b16 %v8506
    %v9307 = vunpack.c.l.b16 %v8507
    %v9308 = vunpack.c.l.b16 %v8508
    %v9309 = vunpack.c.l.b16 %v8509
    %v9310 = vunpack.c.l.b16 %v8510
    %v9311 = vunpack.c.l.b16 %v8511
    %v9312 = vunpack.c.l.b16 %v8512
    %v9313 = vunpack.c.l.b16 %v8513
    %v9314 = vunpack.c.l.b16 %v8514
    %v9315 = vunpack.c.l.b16 %v8515
    %v9316 = vunpack.c.l.b16 %v8516
    %v9317 = vunpack.c.l.b16 %v8517
    %v9318 = vunpack.c.l.b16 %v8518
    %v9319 = vunpack.c.l.b16 %v8519
    %v9320 = vunpack.c.l.b16 %v8520
    %v9321 = vunpack.c.l.b16 %v8521
    %v9322 = vunpack.c.l.b16 %v8522
    %v9323 = vunpack.c.l.b16 %v8523
    %v9324 = vunpack.c.l.b16 %v8524
    %v9325 = vunpack.c.l.b16 %v8525
    %v9326 = vunpack.c.l.b16 %v8526
    %v9327 = vunpack.c.l.b16 %v8527
    %v9328 = vunpack.c.l.b16 %v8528
    %v9329 = vunpack.c.l.b16 %v8529
    %v9330 = vunpack.c.l.b16 %v8530
    %v9331 = vunpack.c.l.b16 %v8531
    %v9332 = vunpack.c.l.b16 %v8532
    %v9333 = vunpack.c.l.b16 %v8533
    %v9334 = vunpack.c.l.b16 %v8534
    %v9335 = vunpack.c.l.b16 %v8535
    %v9336 = vunpack.c.l.b16 %v8536
    %v9337 = vunpack.c.l.b16 %v8537
    %v9338 = vunpack.c.l.b16 %v8538
    %v9339 = vunpack.c.l.b16 %v8539
    %v9340 = vunpack.c.l.b16 %v8540
    %v9341 = vunpack.c.l.b16 %v8541
    %v9342 = vunpack.c.l.b16 %v8542
    %v9343 = vunpack.c.l.b16 %v8543
    %v9344 = vunpack.c.l.b16 %v8544
    %v9345 = vunpack.c.l.b16 %v8545
    %v9346 = vunpack.c.l.b16 %v8546
    %v9347 = vunpack.c.l.b16 %v8547
    %v9348 = vunpack.c.l.b16 %v8548
    %v9349 = vunpack.c.l.b16 %v8549
    %v9350 = vunpack.c.l.b16 %v8550
    %v9351 = vunpack.c.l.b16 %v8551
    %v9352 = vunpack.c.l.b16 %v8552
    %v9353 = vunpack.c.l.b16 %v8553
    %v9354 = vunpack.c.l.b16 %v8554
    %v9355 = vunpack.c.l.b16 %v8555
    %v9356 = vunpack.c.l.b16 %v8556
    %v9357 = vunpack.c.l.b16 %v8557
    %v9358 = vunpack.c.l.b16 %v8558
    %v9359 = vunpack.c.l.b16 %v8559
    %v9360 = vunpack.c.l.b16 %v8560
    %v9361 = vunpack.c.l.b16 %v8561
    %v9362 = vunpack.c.l.b16 %v8562
    %v9363 = vunpack.c.l.b16 %v8563
    %v9364 = vunpack.c.l.b16 %v8564
    %v9365 = vunpack.c.l.b16 %v8565
    %v9366 = vunpack.c.l.b16 %v8566
    %v9367 = vunpack.c.l.b16 %v8567
    %v9368 = vunpack.c.l.b16 %v8568
    %v9369 = vunpack.c.l.b16 %v8569
    %v9370 = vunpack.c.l.b16 %v8570
    %v9371 = vunpack.c.l.b16 %v8571
    %v9372 = vunpack.c.l.b16 %v8572
    %v9373 = vunpack.c.l.b16 %v8573
    %v9374 = vunpack.c.l.b16 %v8574
    %v9375 = vunpack.c.l.b16 %v8575
    %v9376 = vunpack.c.l.b16 %v8576
    %v9377 = vunpack.c.l.b16 %v8577
    %v9378 = vpack.c.b16 %v8979, %v8978
    %v9379 = vpack.c.b16 %v8981, %v8980
    %v9380 = vpack.c.b16 %v8983, %v8982
    %v9381 = vpack.c.b16 %v8985, %v8984
    %v9382 = vpack.c.b16 %v8987, %v8986
    %v9383 = vpack.c.b16 %v8989, %v8988
    %v9384 = vpack.c.b16 %v8991, %v8990
    %v9385 = vpack.c.b16 %v8993, %v8992
    %v9386 = vpack.c.b16 %v8995, %v8994
    %v9387 = vpack.c.b16 %v8997, %v8996
    %v9388 = vpack.c.b16 %v8999, %v8998
    %v9389 = vpack.c.b16 %v9001, %v9000
    %v9390 = vpack.c.b16 %v9003, %v9002
    %v9391 = vpack.c.b16 %v9005, %v9004
    %v9392 = vpack.c.b16 %v9007, %v9006
    %v9393 = vpack.c.b16 %v9009, %v9008
    %v9394 = vpack.c.b16 %v9011, %v9010
    %v9395 = vpack.c.b16 %v9013, %v9012
    %v9396 = vpack.c.b16 %v9015, %v9014
    %v9397 = vpack.c.b16 %v9017, %v9016
    %v9398 = vpack.c.b16 %v9019, %v9018
    %v9399 = vpack.c.b16 %v9021, %v9020
    %v9400 = vpack.c.b16 %v9023, %v9022
    %v9401 = vpack.c.b16 %v9025, %v9024
    %v9402 = vpack.c.b16 %v9027, %v9026
    %v9403 = vpack.c.b16 %v9029, %v9028
    %v9404 = vpack.c.b16 %v9031, %v9030
    %v9405 = vpack.c.b16 %v9033, %v9032
    %v9406 = vpack.c.b16 %v9035, %v9034
    %v9407 = vpack.c.b16 %v9037, %v9036
    %v9408 = vpack.c.b16 %v9039, %v9038
    %v9409 = vpack.c.b16 %v9041, %v9040
    %v9410 = vpack.c.b16 %v9043, %v9042
    %v9411 = vpack.c.b16 %v9045, %v9044
    %v9412 = vpack.c.b16 %v9047, %v9046
    %v9413 = vpack.c.b16 %v9049, %v9048
    %v9414 = vpack.c.b16 %v9051, %v9050
    %v9415 = vpack.c.b16 %v9053, %v9052
    %v9416 = vpack.c.b16 %v9055, %v9054
    %v9417 = vpack.c.b16 %v9057, %v9056
    %v9418 = vpack.c.b16 %v9059, %v9058
    %v9419 = vpack.c.b16 %v9061, %v9060
    %v9420 = vpack.c.b16 %v9063, %v9062
    %v9421 = vpack.c.b16 %v9065, %v9064
    %v9422 = vpack.c.b16 %v9067, %v9066
    %v9423 = vpack.c.b16 %v9069, %v9068
    %v9424 = vpack.c.b16 %v9071, %v9070
    %v9425 = vpack.c.b16 %v9073, %v9072
    %v9426 = vpack.c.b16 %v9075, %v9074
    %v9427 = vpack.c.b16 %v9077, %v9076
    %v9428 = vpack.c.b16 %v9079, %v9078
    %v9429 = vpack.c.b16 %v9081, %v9080
    %v9430 = vpack.c.b16 %v9083, %v9082
    %v9431 = vpack.c.b16 %v9085, %v9084
    %v9432 = vpack.c.b16 %v9087, %v9086
    %v9433 = vpack.c.b16 %v9089, %v9088
    %v9434 = vpack.c.b16 %v9091, %v9090
    %v9435 = vpack.c.b16 %v9093, %v9092
    %v9436 = vpack.c.b16 %v9095, %v9094
    %v9437 = vpack.c.b16 %v9097, %v9096
    %v9438 = vpack.c.b16 %v9099, %v9098
    %v9439 = vpack.c.b16 %v9101, %v9100
    %v9440 = vpack.c.b16 %v9103, %v9102
    %v9441 = vpack.c.b16 %v9105, %v9104
    %v9442 = vpack.c.b16 %v9107, %v9106
    %v9443 = vpack.c.b16 %v9109, %v9108
    %v9444 = vpack.c.b16 %v9111, %v9110
    %v9445 = vpack.c.b16 %v9113, %v9112
    %v9446 = vpack.c.b16 %v9115, %v9114
    %v9447 = vpack.c.b16 %v9117, %v9116
    %v9448 = vpack.c.b16 %v9119, %v9118
    %v9449 = vpack.c.b16 %v9121, %v9120
    %v9450 = vpack.c.b16 %v9123, %v9122
    %v9451 = vpack.c.b16 %v9125, %v9124
    %v9452 = vpack.c.b16 %v9127, %v9126
    %v9453 = vpack.c.b16 %v9129, %v9128
    %v9454 = vpack.c.b16 %v9131, %v9130
    %v9455 = vpack.c.b16 %v9133, %v9132
    %v9456 = vpack.c.b16 %v9135, %v9134
    %v9457 = vpack.c.b16 %v9137, %v9136
    %v9458 = vpack.c.b16 %v9139, %v9138
    %v9459 = vpack.c.b16 %v9141, %v9140
    %v9460 = vpack.c.b16 %v9143, %v9142
    %v9461 = vpack.c.b16 %v9145, %v9144
    %v9462 = vpack.c.b16 %v9147, %v9146
    %v9463 = vpack.c.b16 %v9149, %v9148
    %v9464 = vpack.c.b16 %v9151, %v9150
    %v9465 = vpack.c.b16 %v9153, %v9152
    %v9466 = vpack.c.b16 %v9155, %v9154
    %v9467 = vpack.c.b16 %v9157, %v9156
    %v9468 = vpack.c.b16 %v9159, %v9158
    %v9469 = vpack.c.b16 %v9161, %v9160
    %v9470 = vpack.c.b16 %v9163, %v9162
    %v9471 = vpack.c.b16 %v9165, %v9164
    %v9472 = vpack.c.b16 %v9167, %v9166
    %v9473 = vpack.c.b16 %v9169, %v9168
    %v9474 = vpack.c.b16 %v9171, %v9170
    %v9475 = vpack.c.b16 %v9173, %v9172
    %v9476 = vpack.c.b16 %v9175, %v9174
    %v9477 = vpack.c.b16 %v9177, %v9176
    %v9478 = vpack.c.b16 %v9179, %v9178
    %v9479 = vpack.c.b16 %v9181, %v9180
    %v9480 = vpack.c.b16 %v9183, %v9182
    %v9481 = vpack.c.b16 %v9185, %v9184
    %v9482 = vpack.c.b16 %v9187, %v9186
    %v9483 = vpack.c.b16 %v9189, %v9188
    %v9484 = vpack.c.b16 %v9191, %v9190
    %v9485 = vpack.c.b16 %v9193, %v9192
    %v9486 = vpack.c.b16 %v9195, %v9194
    %v9487 = vpack.c.b16 %v9197, %v9196
    %v9488 = vpack.c.b16 %v9199, %v9198
    %v9489 = vpack.c.b16 %v9201, %v9200
    %v9490 = vpack.c.b16 %v9203, %v9202
    %v9491 = vpack.c.b16 %v9205, %v9204
    %v9492 = vpack.c.b16 %v9207, %v9206
    %v9493 = vpack.c.b16 %v9209, %v9208
    %v9494 = vpack.c.b16 %v9211, %v9210
    %v9495 = vpack.c.b16 %v9213, %v9212
    %v9496 = vpack.c.b16 %v9215, %v9214
    %v9497 = vpack.c.b16 %v9217, %v9216
    %v9498 = vpack.c.b16 %v9219, %v9218
    %v9499 = vpack.c.b16 %v9221, %v9220
    %v9500 = vpack.c.b16 %v9223, %v9222
    %v9501 = vpack.c.b16 %v9225, %v9224
    %v9502 = vpack.c.b16 %v9227, %v9226
    %v9503 = vpack.c.b16 %v9229, %v9228
    %v9504 = vpack.c.b16 %v9231, %v9230
    %v9505 = vpack.c.b16 %v9233, %v9232
    %v9506 = vpack.c.b16 %v9235, %v9234
    %v9507 = vpack.c.b16 %v9237, %v9236
    %v9508 = vpack.c.b16 %v9239, %v9238
    %v9509 = vpack.c.b16 %v9241, %v9240
    %v9510 = vpack.c.b16 %v9243, %v9242
    %v9511 = vpack.c.b16 %v9245, %v9244
    %v9512 = vpack.c.b16 %v9247, %v9246
    %v9513 = vpack.c.b16 %v9249, %v9248
    %v9514 = vpack.c.b16 %v9251, %v9250
    %v9515 = vpack.c.b16 %v9253, %v9252
    %v9516 = vpack.c.b16 %v9255, %v9254
    %v9517 = vpack.c.b16 %v9257, %v9256
    %v9518 = vpack.c.b16 %v9259, %v9258
    %v9519 = vpack.c.b16 %v9261, %v9260
    %v9520 = vpack.c.b16 %v9263, %v9262
    %v9521 = vpack.c.b16 %v9265, %v9264
    %v9522 = vpack.c.b16 %v9267, %v9266
    %v9523 = vpack.c.b16 %v9269, %v9268
    %v9524 = vpack.c.b16 %v9271, %v9270
    %v9525 = vpack.c.b16 %v9273, %v9272
    %v9526 = vpack.c.b16 %v9275, %v9274
    %v9527 = vpack.c.b16 %v9277, %v9276
    %v9528 = vpack.c.b16 %v9279, %v9278
    %v9529 = vpack.c.b16 %v9281, %v9280
    %v9530 = vpack.c.b16 %v9283, %v9282
    %v9531 = vpack.c.b16 %v9285, %v9284
    %v9532 = vpack.c.b16 %v9287, %v9286
    %v9533 = vpack.c.b16 %v9289, %v9288
    %v9534 = vpack.c.b16 %v9291, %v9290
    %v9535 = vpack.c.b16 %v9293, %v9292
    %v9536 = vpack.c.b16 %v9295, %v9294
    %v9537 = vpack.c.b16 %v9297, %v9296
    %v9538 = vpack.c.b16 %v9299, %v9298
    %v9539 = vpack.c.b16 %v9301, %v9300
    %v9540 = vpack.c.b16 %v9303, %v9302
    %v9541 = vpack.c.b16 %v9305, %v9304
    %v9542 = vpack.c.b16 %v9307, %v9306
    %v9543 = vpack.c.b16 %v9309, %v9308
    %v9544 = vpack.c.b16 %v9311, %v9310
    %v9545 = vpack.c.b16 %v9313, %v9312
    %v9546 = vpack.c.b16 %v9315, %v9314
    %v9547 = vpack.c.b16 %v9317, %v9316
    %v9548 = vpack.c.b16 %v9319, %v9318
    %v9549 = vpack.c.b16 %v9321, %v9320
    %v9550 = vpack.c.b16 %v9323, %v9322
    %v9551 = vpack.c.b16 %v9325, %v9324
    %v9552 = vpack.c.b16 %v9327, %v9326
    %v9553 = vpack.c.b16 %v9329, %v9328
    %v9554 = vpack.c.b16 %v9331, %v9330
    %v9555 = vpack.c.b16 %v9333, %v9332
    %v9556 = vpack.c.b16 %v9335, %v9334
    %v9557 = vpack.c.b16 %v9337, %v9336
    %v9558 = vpack.c.b16 %v9339, %v9338
    %v9559 = vpack.c.b16 %v9341, %v9340
    %v9560 = vpack.c.b16 %v9343, %v9342
    %v9561 = vpack.c.b16 %v9345, %v9344
    %v9562 = vpack.c.b16 %v9347, %v9346
    %v9563 = vpack.c.b16 %v9349, %v9348
    %v9564 = vpack.c.b16 %v9351, %v9350
    %v9565 = vpack.c.b16 %v9353, %v9352
    %v9566 = vpack.c.b16 %v9355, %v9354
    %v9567 = vpack.c.b16 %v9357, %v9356
    %v9568 = vpack.c.b16 %v9359, %v9358
    %v9569 = vpack.c.b16 %v9361, %v9360
    %v9570 = vpack.c.b16 %v9363, %v9362
    %v9571 = vpack.c.b16 %v9365, %v9364
    %v9572 = vpack.c.b16 %v9367, %v9366
    %v9573 = vpack.c.b16 %v9369, %v9368
    %v9574 = vpack.c.b16 %v9371, %v9370
    %v9575 = vpack.c.b16 %v9373, %v9372
    %v9576 = vpack.c.b16 %v9375, %v9374
    %v9577 = vpack.c.b16 %v9377, %v9376
    %9778 = vmatprep.subr.bf16.mxu0 0
    %9779 = vmatpush1.bf16.msra.mxu0 %v9385
    %9780 = vmatprep.subr.bf16.mxu0 0
    %9781 = vmatpush1.bf16.msra.mxu0 %v9384
    %9782 = vmatprep.subr.bf16.mxu0 0
    %9783 = vmatpush1.bf16.msra.mxu0 %v9383
    %9784 = vmatprep.subr.bf16.mxu0 0
    %9785 = vmatpush1.bf16.msra.mxu0 %v9382
    %9786 = vmatprep.subr.bf16.mxu0 0
    %9787 = vmatpush1.bf16.msra.mxu0 %v9381
    %9788 = vmatprep.subr.bf16.mxu0 0
    %9789 = vmatpush1.bf16.msra.mxu0 %v9380
    %9790 = vmatprep.subr.bf16.mxu0 0
    %9791 = vmatpush1.bf16.msra.mxu0 %v9379
    %9792 = vmatprep.subr.bf16.mxu0 0
    %9793 = vmatpush1.bf16.msra.mxu0 %v9378
    %9794 = vmatprep.subr.bf16.mxu0 0
    %9795 = vmatpush2.bf16.msra.mxu0 %v9393
    %9796 = vmatprep.subr.bf16.mxu0 0
    %9797 = vmatpush2.bf16.msra.mxu0 %v9392
    %9798 = vmatprep.subr.bf16.mxu0 0
    %9799 = vmatpush2.bf16.msra.mxu0 %v9391
    %9800 = vmatprep.subr.bf16.mxu0 0
    %9801 = vmatpush2.bf16.msra.mxu0 %v9390
    %9802 = vmatprep.subr.bf16.mxu0 0
    %9803 = vmatpush2.bf16.msra.mxu0 %v9389
    %9804 = vmatprep.subr.bf16.mxu0 0
    %9805 = vmatpush2.bf16.msra.mxu0 %v9388
    %9806 = vmatprep.subr.bf16.mxu0 0
    %9807 = vmatpush2.bf16.msra.mxu0 %v9387
    %9808 = vmatprep.subr.bf16.mxu0 0
    %9809 = vmatpush2.bf16.msra.mxu0 %v9386
    %9810 = vmatprep.mubr.bf16.mxu0 %v7070
    %9811 = vmatmul.mubr.bf16.gmra.mxu0 %v6910
    %v9812 = vpop.f32.mrf.mxu0
    %v9813 = vadd.f32 0.0, %v9812
    %v9814 = vpop.f32.mrf.mxu0
    %v9815 = vpop.f32.mrf.mxu0
    %v9816 = vadd.f32 0.0, %v9815
    %v9817 = vpop.f32.mrf.mxu0
    %9818 = vmatprep.mubr.bf16.mxu0 %v7071
    %9819 = vmatmul.mubr.bf16.gmra.mxu0 %v6911
    %v9820 = vpop.f32.mrf.mxu0
    %v9821 = vadd.f32 0.0, %v9820
    %v9822 = vpop.f32.mrf.mxu0
    %v9823 = vpop.f32.mrf.mxu0
    %v9824 = vadd.f32 0.0, %v9823
    %v9825 = vpop.f32.mrf.mxu0
    %9826 = vmatprep.mubr.bf16.mxu0 %v7072
    %9827 = vmatmul.mubr.bf16.gmra.mxu0 %v6912
    %v9828 = vpop.f32.mrf.mxu0
    %v9829 = vadd.f32 0.0, %v9828
    %v9830 = vpop.f32.mrf.mxu0
    %v9831 = vpop.f32.mrf.mxu0
    %v9832 = vadd.f32 0.0, %v9831
    %v9833 = vpop.f32.mrf.mxu0
    %9834 = vmatprep.mubr.bf16.mxu0 %v7073
    %9835 = vmatmul.mubr.bf16.gmra.mxu0 %v6913
    %v9836 = vpop.f32.mrf.mxu0
    %v9837 = vadd.f32 0.0, %v9836
    %v9838 = vpop.f32.mrf.mxu0
    %v9839 = vpop.f32.mrf.mxu0
    %v9840 = vadd.f32 0.0, %v9839
    %v9841 = vpop.f32.mrf.mxu0
    %9842 = vmatprep.mubr.bf16.mxu0 %v7074
    %9843 = vmatmul.mubr.bf16.gmra.mxu0 %v6914
    %v9844 = vpop.f32.mrf.mxu0
    %v9845 = vadd.f32 0.0, %v9844
    %v9846 = vpop.f32.mrf.mxu0
    %v9847 = vpop.f32.mrf.mxu0
    %v9848 = vadd.f32 0.0, %v9847
    %v9849 = vpop.f32.mrf.mxu0
    %9850 = vmatprep.mubr.bf16.mxu0 %v7075
    %9851 = vmatmul.mubr.bf16.gmra.mxu0 %v6915
    %v9852 = vpop.f32.mrf.mxu0
    %v9853 = vadd.f32 0.0, %v9852
    %v9854 = vpop.f32.mrf.mxu0
    %v9855 = vpop.f32.mrf.mxu0
    %v9856 = vadd.f32 0.0, %v9855
    %v9857 = vpop.f32.mrf.mxu0
    %9858 = vmatprep.mubr.bf16.mxu0 %v7076
    %9859 = vmatmul.mubr.bf16.gmra.mxu0 %v6916
    %v9860 = vpop.f32.mrf.mxu0
    %v9861 = vadd.f32 0.0, %v9860
    %v9862 = vpop.f32.mrf.mxu0
    %v9863 = vpop.f32.mrf.mxu0
    %v9864 = vadd.f32 0.0, %v9863
    %v9865 = vpop.f32.mrf.mxu0
    %9866 = vmatprep.mubr.bf16.mxu0 %v7077
    %9867 = vmatmul.mubr.bf16.gmra.mxu0 %v6917
    %v9868 = vpop.f32.mrf.mxu0
    %v9869 = vadd.f32 0.0, %v9868
    %v9870 = vpop.f32.mrf.mxu0
    %v9871 = vpop.f32.mrf.mxu0
    %v9872 = vadd.f32 0.0, %v9871
    %v9873 = vpop.f32.mrf.mxu0
    %9874 = vdwg.mxu0
    %9875 = vmatprep.subr.bf16.mxu0 0
    %9876 = vmatpush1.bf16.msra.mxu0 %v9401
    %9877 = vmatprep.subr.bf16.mxu0 0
    %9878 = vmatpush1.bf16.msra.mxu0 %v9400
    %9879 = vmatprep.subr.bf16.mxu0 0
    %9880 = vmatpush1.bf16.msra.mxu0 %v9399
    %9881 = vmatprep.subr.bf16.mxu0 0
    %9882 = vmatpush1.bf16.msra.mxu0 %v9398
    %9883 = vmatprep.subr.bf16.mxu0 0
    %9884 = vmatpush1.bf16.msra.mxu0 %v9397
    %9885 = vmatprep.subr.bf16.mxu0 0
    %9886 = vmatpush1.bf16.msra.mxu0 %v9396
    %9887 = vmatprep.subr.bf16.mxu0 0
    %9888 = vmatpush1.bf16.msra.mxu0 %v9395
    %9889 = vmatprep.subr.bf16.mxu0 0
    %9890 = vmatpush1.bf16.msra.mxu0 %v9394
    %9891 = vmatprep.subr.bf16.mxu0 0
    %9892 = vmatpush2.bf16.msra.mxu0 %v9409
    %9893 = vmatprep.subr.bf16.mxu0 0
    %9894 = vmatpush2.bf16.msra.mxu0 %v9408
    %9895 = vmatprep.subr.bf16.mxu0 0
    %9896 = vmatpush2.bf16.msra.mxu0 %v9407
    %9897 = vmatprep.subr.bf16.mxu0 0
    %9898 = vmatpush2.bf16.msra.mxu0 %v9406
    %9899 = vmatprep.subr.bf16.mxu0 0
    %9900 = vmatpush2.bf16.msra.mxu0 %v9405
    %9901 = vmatprep.subr.bf16.mxu0 0
    %9902 = vmatpush2.bf16.msra.mxu0 %v9404
    %9903 = vmatprep.subr.bf16.mxu0 0
    %9904 = vmatpush2.bf16.msra.mxu0 %v9403
    %9905 = vmatprep.subr.bf16.mxu0 0
    %9906 = vmatpush2.bf16.msra.mxu0 %v9402
    %9907 = vmatprep.mubr.bf16.mxu0 %v7390
    %9908 = vmatmul.mubr.bf16.gmra.mxu0 %v7230
    %v9909 = vpop.f32.mrf.mxu0
    %v9910 = vadd.f32 %v9813, %v9909
    %v9911 = vpop.f32.mrf.mxu0
    %v9912 = vpop.f32.mrf.mxu0
    %v9913 = vadd.f32 %v9816, %v9912
    %v9914 = vpop.f32.mrf.mxu0
    %9915 = vmatprep.mubr.bf16.mxu0 %v7391
    %9916 = vmatmul.mubr.bf16.gmra.mxu0 %v7231
    %v9917 = vpop.f32.mrf.mxu0
    %v9918 = vadd.f32 %v9821, %v9917
    %v9919 = vpop.f32.mrf.mxu0
    %v9920 = vpop.f32.mrf.mxu0
    %v9921 = vadd.f32 %v9824, %v9920
    %v9922 = vpop.f32.mrf.mxu0
    %9923 = vmatprep.mubr.bf16.mxu0 %v7392
    %9924 = vmatmul.mubr.bf16.gmra.mxu0 %v7232
    %v9925 = vpop.f32.mrf.mxu0
    %v9926 = vadd.f32 %v9829, %v9925
    %v9927 = vpop.f32.mrf.mxu0
    %v9928 = vpop.f32.mrf.mxu0
    %v9929 = vadd.f32 %v9832, %v9928
    %v9930 = vpop.f32.mrf.mxu0
    %9931 = vmatprep.mubr.bf16.mxu0 %v7393
    %9932 = vmatmul.mubr.bf16.gmra.mxu0 %v7233
    %v9933 = vpop.f32.mrf.mxu0
    %v9934 = vadd.f32 %v9837, %v9933
    %v9935 = vpop.f32.mrf.mxu0
    %v9936 = vpop.f32.mrf.mxu0
    %v9937 = vadd.f32 %v9840, %v9936
    %v9938 = vpop.f32.mrf.mxu0
    %9939 = vmatprep.mubr.bf16.mxu0 %v7394
    %9940 = vmatmul.mubr.bf16.gmra.mxu0 %v7234
    %v9941 = vpop.f32.mrf.mxu0
    %v9942 = vadd.f32 %v9845, %v9941
    %v9943 = vpop.f32.mrf.mxu0
    %v9944 = vpop.f32.mrf.mxu0
    %v9945 = vadd.f32 %v9848, %v9944
    %v9946 = vpop.f32.mrf.mxu0
    %9947 = vmatprep.mubr.bf16.mxu0 %v7395
    %9948 = vmatmul.mubr.bf16.gmra.mxu0 %v7235
    %v9949 = vpop.f32.mrf.mxu0
    %v9950 = vadd.f32 %v9853, %v9949
    %v9951 = vpop.f32.mrf.mxu0
    %v9952 = vpop.f32.mrf.mxu0
    %v9953 = vadd.f32 %v9856, %v9952
    %v9954 = vpop.f32.mrf.mxu0
    %9955 = vmatprep.mubr.bf16.mxu0 %v7396
    %9956 = vmatmul.mubr.bf16.gmra.mxu0 %v7236
    %v9957 = vpop.f32.mrf.mxu0
    %v9958 = vadd.f32 %v9861, %v9957
    %v9959 = vpop.f32.mrf.mxu0
    %v9960 = vpop.f32.mrf.mxu0
    %v9961 = vadd.f32 %v9864, %v9960
    %v9962 = vpop.f32.mrf.mxu0
    %9963 = vmatprep.mubr.bf16.mxu0 %v7397
    %9964 = vmatmul.mubr.bf16.gmra.mxu0 %v7237
    %v9965 = vpop.f32.mrf.mxu0
    %v9966 = vadd.f32 %v9869, %v9965
    %v9967 = vpop.f32.mrf.mxu0
    %v9968 = vpop.f32.mrf.mxu0
    %v9969 = vadd.f32 %v9872, %v9968
    %v9970 = vpop.f32.mrf.mxu0
    %9971 = vdwg.mxu0
    %9972 = vmatprep.subr.bf16.mxu0 0
    %9973 = vmatpush1.bf16.msra.mxu0 %v9417
    %9974 = vmatprep.subr.bf16.mxu0 0
    %9975 = vmatpush1.bf16.msra.mxu0 %v9416
    %9976 = vmatprep.subr.bf16.mxu0 0
    %9977 = vmatpush1.bf16.msra.mxu0 %v9415
    %9978 = vmatprep.subr.bf16.mxu0 0
    %9979 = vmatpush1.bf16.msra.mxu0 %v9414
    %9980 = vmatprep.subr.bf16.mxu0 0
    %9981 = vmatpush1.bf16.msra.mxu0 %v9413
    %9982 = vmatprep.subr.bf16.mxu0 0
    %9983 = vmatpush1.bf16.msra.mxu0 %v9412
    %9984 = vmatprep.subr.bf16.mxu0 0
    %9985 = vmatpush1.bf16.msra.mxu0 %v9411
    %9986 = vmatprep.subr.bf16.mxu0 0
    %9987 = vmatpush1.bf16.msra.mxu0 %v9410
    %9988 = vmatprep.subr.bf16.mxu0 0
    %9989 = vmatpush2.bf16.msra.mxu0 %v9425
    %9990 = vmatprep.subr.bf16.mxu0 0
    %9991 = vmatpush2.bf16.msra.mxu0 %v9424
    %9992 = vmatprep.subr.bf16.mxu0 0
    %9993 = vmatpush2.bf16.msra.mxu0 %v9423
    %9994 = vmatprep.subr.bf16.mxu0 0
    %9995 = vmatpush2.bf16.msra.mxu0 %v9422
    %9996 = vmatprep.subr.bf16.mxu0 0
    %9997 = vmatpush2.bf16.msra.mxu0 %v9421
    %9998 = vmatprep.subr.bf16.mxu0 0
    %9999 = vmatpush2.bf16.msra.mxu0 %v9420
    %10000 = vmatprep.subr.bf16.mxu0 0
    %10001 = vmatpush2.bf16.msra.mxu0 %v9419
    %10002 = vmatprep.subr.bf16.mxu0 0
    %10003 = vmatpush2.bf16.msra.mxu0 %v9418
    %10004 = vmatprep.mubr.bf16.mxu0 %v7612
    %10005 = vmatmul.mubr.bf16.gmra.mxu0 %v7550
    %v10006 = vpop.f32.mrf.mxu0
    %v10007 = vadd.f32 %v9910, %v10006
    %v10008 = vpop.f32.mrf.mxu0
    %v10009 = vpop.f32.mrf.mxu0
    %v10010 = vadd.f32 %v9913, %v10009
    %v10011 = vpop.f32.mrf.mxu0
    %10012 = vmatprep.mubr.bf16.mxu0 %v7613
    %10013 = vmatmul.mubr.bf16.gmra.mxu0 %v7551
    %v10014 = vpop.f32.mrf.mxu0
    %v10015 = vadd.f32 %v9918, %v10014
    %v10016 = vpop.f32.mrf.mxu0
    %v10017 = vpop.f32.mrf.mxu0
    %v10018 = vadd.f32 %v9921, %v10017
    %v10019 = vpop.f32.mrf.mxu0
    %10020 = vmatprep.mubr.bf16.mxu0 %v7614
    %10021 = vmatmul.mubr.bf16.gmra.mxu0 %v7552
    %v10022 = vpop.f32.mrf.mxu0
    %v10023 = vadd.f32 %v9926, %v10022
    %v10024 = vpop.f32.mrf.mxu0
    %v10025 = vpop.f32.mrf.mxu0
    %v10026 = vadd.f32 %v9929, %v10025
    %v10027 = vpop.f32.mrf.mxu0
    %10028 = vmatprep.mubr.bf16.mxu0 %v7615
    %10029 = vmatmul.mubr.bf16.gmra.mxu0 %v7553
    %v10030 = vpop.f32.mrf.mxu0
    %v10031 = vadd.f32 %v9934, %v10030
    %v10032 = vpop.f32.mrf.mxu0
    %v10033 = vpop.f32.mrf.mxu0
    %v10034 = vadd.f32 %v9937, %v10033
    %v10035 = vpop.f32.mrf.mxu0
    %10036 = vmatprep.mubr.bf16.mxu0 %v7616
    %10037 = vmatmul.mubr.bf16.gmra.mxu0 %v7554
    %v10038 = vpop.f32.mrf.mxu0
    %v10039 = vadd.f32 %v9942, %v10038
    %v10040 = vpop.f32.mrf.mxu0
    %v10041 = vpop.f32.mrf.mxu0
    %v10042 = vadd.f32 %v9945, %v10041
    %v10043 = vpop.f32.mrf.mxu0
    %10044 = vmatprep.mubr.bf16.mxu0 %v7617
    %10045 = vmatmul.mubr.bf16.gmra.mxu0 %v7555
    %v10046 = vpop.f32.mrf.mxu0
    %v10047 = vadd.f32 %v9950, %v10046
    %v10048 = vpop.f32.mrf.mxu0
    %v10049 = vpop.f32.mrf.mxu0
    %v10050 = vadd.f32 %v9953, %v10049
    %v10051 = vpop.f32.mrf.mxu0
    %10052 = vmatprep.mubr.bf16.mxu0 %v7618
    %10053 = vmatmul.mubr.bf16.gmra.mxu0 %v7556
    %v10054 = vpop.f32.mrf.mxu0
    %v10055 = vadd.f32 %v9958, %v10054
    %v10056 = vpop.f32.mrf.mxu0
    %v10057 = vpop.f32.mrf.mxu0
    %v10058 = vadd.f32 %v9961, %v10057
    %v10059 = vpop.f32.mrf.mxu0
    %10060 = vmatprep.mubr.bf16.mxu0 %v7619
    %10061 = vmatmul.mubr.bf16.gmra.mxu0 %v7557
    %v10062 = vpop.f32.mrf.mxu0
    %v10063 = vadd.f32 %v9966, %v10062
    %v10064 = vpop.f32.mrf.mxu0
    %v10065 = vpop.f32.mrf.mxu0
    %v10066 = vadd.f32 %v9969, %v10065
    %v10067 = vpop.f32.mrf.mxu0
    %10068 = vdwg.mxu0
    %10069 = vmatprep.subr.bf16.mxu0 0
    %10070 = vmatpush1.bf16.msra.mxu0 %v9433
    %10071 = vmatprep.subr.bf16.mxu0 0
    %10072 = vmatpush1.bf16.msra.mxu0 %v9432
    %10073 = vmatprep.subr.bf16.mxu0 0
    %10074 = vmatpush1.bf16.msra.mxu0 %v9431
    %10075 = vmatprep.subr.bf16.mxu0 0
    %10076 = vmatpush1.bf16.msra.mxu0 %v9430
    %10077 = vmatprep.subr.bf16.mxu0 0
    %10078 = vmatpush1.bf16.msra.mxu0 %v9429
    %10079 = vmatprep.subr.bf16.mxu0 0
    %10080 = vmatpush1.bf16.msra.mxu0 %v9428
    %10081 = vmatprep.subr.bf16.mxu0 0
    %10082 = vmatpush1.bf16.msra.mxu0 %v9427
    %10083 = vmatprep.subr.bf16.mxu0 0
    %10084 = vmatpush1.bf16.msra.mxu0 %v9426
    %10085 = vmatprep.subr.bf16.mxu0 0
    %10086 = vmatpush2.bf16.msra.mxu0 %v9441
    %10087 = vmatprep.subr.bf16.mxu0 0
    %10088 = vmatpush2.bf16.msra.mxu0 %v9440
    %10089 = vmatprep.subr.bf16.mxu0 0
    %10090 = vmatpush2.bf16.msra.mxu0 %v9439
    %10091 = vmatprep.subr.bf16.mxu0 0
    %10092 = vmatpush2.bf16.msra.mxu0 %v9438
    %10093 = vmatprep.subr.bf16.mxu0 0
    %10094 = vmatpush2.bf16.msra.mxu0 %v9437
    %10095 = vmatprep.subr.bf16.mxu0 0
    %10096 = vmatpush2.bf16.msra.mxu0 %v9436
    %10097 = vmatprep.subr.bf16.mxu0 0
    %10098 = vmatpush2.bf16.msra.mxu0 %v9435
    %10099 = vmatprep.subr.bf16.mxu0 0
    %10100 = vmatpush2.bf16.msra.mxu0 %v9434
    %10101 = vmatprep.mubr.bf16.mxu0 %v7680
    %10102 = vmatmul.mubr.bf16.gmra.mxu0 %v7646
    %v10103 = vpop.f32.mrf.mxu0
    %v10104 = vadd.f32 %v10007, %v10103
    %v10105 = vpop.f32.mrf.mxu0
    %v10106 = vpop.f32.mrf.mxu0
    %v10107 = vadd.f32 %v10010, %v10106
    %v10108 = vpop.f32.mrf.mxu0
    %10109 = vmatprep.mubr.bf16.mxu0 %v7681
    %10110 = vmatmul.mubr.bf16.gmra.mxu0 %v7647
    %v10111 = vpop.f32.mrf.mxu0
    %v10112 = vadd.f32 %v10015, %v10111
    %v10113 = vpop.f32.mrf.mxu0
    %v10114 = vpop.f32.mrf.mxu0
    %v10115 = vadd.f32 %v10018, %v10114
    %v10116 = vpop.f32.mrf.mxu0
    %10117 = vmatprep.mubr.bf16.mxu0 %v7682
    %10118 = vmatmul.mubr.bf16.gmra.mxu0 %v7648
    %v10119 = vpop.f32.mrf.mxu0
    %v10120 = vadd.f32 %v10023, %v10119
    %v10121 = vpop.f32.mrf.mxu0
    %v10122 = vpop.f32.mrf.mxu0
    %v10123 = vadd.f32 %v10026, %v10122
    %v10124 = vpop.f32.mrf.mxu0
    %10125 = vmatprep.mubr.bf16.mxu0 %v7683
    %10126 = vmatmul.mubr.bf16.gmra.mxu0 %v7649
    %v10127 = vpop.f32.mrf.mxu0
    %v10128 = vadd.f32 %v10031, %v10127
    %v10129 = vpop.f32.mrf.mxu0
    %v10130 = vpop.f32.mrf.mxu0
    %v10131 = vadd.f32 %v10034, %v10130
    %v10132 = vpop.f32.mrf.mxu0
    %10133 = vmatprep.mubr.bf16.mxu0 %v7684
    %10134 = vmatmul.mubr.bf16.gmra.mxu0 %v7650
    %v10135 = vpop.f32.mrf.mxu0
    %v10136 = vadd.f32 %v10039, %v10135
    %v10137 = vpop.f32.mrf.mxu0
    %v10138 = vpop.f32.mrf.mxu0
    %v10139 = vadd.f32 %v10042, %v10138
    %v10140 = vpop.f32.mrf.mxu0
    %10141 = vmatprep.mubr.bf16.mxu0 %v7685
    %10142 = vmatmul.mubr.bf16.gmra.mxu0 %v7651
    %v10143 = vpop.f32.mrf.mxu0
    %v10144 = vadd.f32 %v10047, %v10143
    %v10145 = vpop.f32.mrf.mxu0
    %v10146 = vpop.f32.mrf.mxu0
    %v10147 = vadd.f32 %v10050, %v10146
    %v10148 = vpop.f32.mrf.mxu0
    %10149 = vmatprep.mubr.bf16.mxu0 %v7686
    %10150 = vmatmul.mubr.bf16.gmra.mxu0 %v7652
    %v10151 = vpop.f32.mrf.mxu0
    %v10152 = vadd.f32 %v10055, %v10151
    %v10153 = vpop.f32.mrf.mxu0
    %v10154 = vpop.f32.mrf.mxu0
    %v10155 = vadd.f32 %v10058, %v10154
    %v10156 = vpop.f32.mrf.mxu0
    %10157 = vmatprep.mubr.bf16.mxu0 %v7687
    %10158 = vmatmul.mubr.bf16.gmra.mxu0 %v7653
    %v10159 = vpop.f32.mrf.mxu0
    %v10160 = vadd.f32 %v10063, %v10159
    %v10161 = vpop.f32.mrf.mxu0
    %v10162 = vpop.f32.mrf.mxu0
    %v10163 = vadd.f32 %v10066, %v10162
    %v10164 = vpop.f32.mrf.mxu0
    %10165 = vdwg.mxu0
    %10166 = vmatprep.subr.bf16.mxu0 0
    %10167 = vmatpush1.bf16.msra.mxu0 %v9449
    %10168 = vmatprep.subr.bf16.mxu0 0
    %10169 = vmatpush1.bf16.msra.mxu0 %v9448
    %10170 = vmatprep.subr.bf16.mxu0 0
    %10171 = vmatpush1.bf16.msra.mxu0 %v9447
    %10172 = vmatprep.subr.bf16.mxu0 0
    %10173 = vmatpush1.bf16.msra.mxu0 %v9446
    %10174 = vmatprep.subr.bf16.mxu0 0
    %10175 = vmatpush1.bf16.msra.mxu0 %v9445
    %10176 = vmatprep.subr.bf16.mxu0 0
    %10177 = vmatpush1.bf16.msra.mxu0 %v9444
    %10178 = vmatprep.subr.bf16.mxu0 0
    %10179 = vmatpush1.bf16.msra.mxu0 %v9443
    %10180 = vmatprep.subr.bf16.mxu0 0
    %10181 = vmatpush1.bf16.msra.mxu0 %v9442
    %10182 = vmatprep.subr.bf16.mxu0 0
    %10183 = vmatpush2.bf16.msra.mxu0 %v9457
    %10184 = vmatprep.subr.bf16.mxu0 0
    %10185 = vmatpush2.bf16.msra.mxu0 %v9456
    %10186 = vmatprep.subr.bf16.mxu0 0
    %10187 = vmatpush2.bf16.msra.mxu0 %v9455
    %10188 = vmatprep.subr.bf16.mxu0 0
    %10189 = vmatpush2.bf16.msra.mxu0 %v9454
    %10190 = vmatprep.subr.bf16.mxu0 0
    %10191 = vmatpush2.bf16.msra.mxu0 %v9453
    %10192 = vmatprep.subr.bf16.mxu0 0
    %10193 = vmatpush2.bf16.msra.mxu0 %v9452
    %10194 = vmatprep.subr.bf16.mxu0 0
    %10195 = vmatpush2.bf16.msra.mxu0 %v9451
    %10196 = vmatprep.subr.bf16.mxu0 0
    %10197 = vmatpush2.bf16.msra.mxu0 %v9450
    %10198 = vmatprep.mubr.bf16.mxu0 %v7748
    %10199 = vmatmul.mubr.bf16.gmra.mxu0 %v7714
    %v10200 = vpop.f32.mrf.mxu0
    %v10201 = vadd.f32 %v10104, %v10200
    %v10202 = vpop.f32.mrf.mxu0
    %v10203 = vpop.f32.mrf.mxu0
    %v10204 = vadd.f32 %v10107, %v10203
    %v10205 = vpop.f32.mrf.mxu0
    %10206 = vmatprep.mubr.bf16.mxu0 %v7749
    %10207 = vmatmul.mubr.bf16.gmra.mxu0 %v7715
    %v10208 = vpop.f32.mrf.mxu0
    %v10209 = vadd.f32 %v10112, %v10208
    %v10210 = vpop.f32.mrf.mxu0
    %v10211 = vpop.f32.mrf.mxu0
    %v10212 = vadd.f32 %v10115, %v10211
    %v10213 = vpop.f32.mrf.mxu0
    %10214 = vmatprep.mubr.bf16.mxu0 %v7750
    %10215 = vmatmul.mubr.bf16.gmra.mxu0 %v7716
    %v10216 = vpop.f32.mrf.mxu0
    %v10217 = vadd.f32 %v10120, %v10216
    %v10218 = vpop.f32.mrf.mxu0
    %v10219 = vpop.f32.mrf.mxu0
    %v10220 = vadd.f32 %v10123, %v10219
    %v10221 = vpop.f32.mrf.mxu0
    %10222 = vmatprep.mubr.bf16.mxu0 %v7751
    %10223 = vmatmul.mubr.bf16.gmra.mxu0 %v7717
    %v10224 = vpop.f32.mrf.mxu0
    %v10225 = vadd.f32 %v10128, %v10224
    %v10226 = vpop.f32.mrf.mxu0
    %v10227 = vpop.f32.mrf.mxu0
    %v10228 = vadd.f32 %v10131, %v10227
    %v10229 = vpop.f32.mrf.mxu0
    %10230 = vmatprep.mubr.bf16.mxu0 %v7752
    %10231 = vmatmul.mubr.bf16.gmra.mxu0 %v7718
    %v10232 = vpop.f32.mrf.mxu0
    %v10233 = vadd.f32 %v10136, %v10232
    %v10234 = vpop.f32.mrf.mxu0
    %v10235 = vpop.f32.mrf.mxu0
    %v10236 = vadd.f32 %v10139, %v10235
    %v10237 = vpop.f32.mrf.mxu0
    %10238 = vmatprep.mubr.bf16.mxu0 %v7753
    %10239 = vmatmul.mubr.bf16.gmra.mxu0 %v7719
    %v10240 = vpop.f32.mrf.mxu0
    %v10241 = vadd.f32 %v10144, %v10240
    %v10242 = vpop.f32.mrf.mxu0
    %v10243 = vpop.f32.mrf.mxu0
    %v10244 = vadd.f32 %v10147, %v10243
    %v10245 = vpop.f32.mrf.mxu0
    %10246 = vmatprep.mubr.bf16.mxu0 %v7754
    %10247 = vmatmul.mubr.bf16.gmra.mxu0 %v7720
    %v10248 = vpop.f32.mrf.mxu0
    %v10249 = vadd.f32 %v10152, %v10248
    %v10250 = vpop.f32.mrf.mxu0
    %v10251 = vpop.f32.mrf.mxu0
    %v10252 = vadd.f32 %v10155, %v10251
    %v10253 = vpop.f32.mrf.mxu0
    %10254 = vmatprep.mubr.bf16.mxu0 %v7755
    %10255 = vmatmul.mubr.bf16.gmra.mxu0 %v7721
    %v10256 = vpop.f32.mrf.mxu0
    %v10257 = vadd.f32 %v10160, %v10256
    %v10258 = vpop.f32.mrf.mxu0
    %v10259 = vpop.f32.mrf.mxu0
    %v10260 = vadd.f32 %v10163, %v10259
    %v10261 = vpop.f32.mrf.mxu0
    %10262 = vdwg.mxu0
    %10263 = vmatprep.subr.bf16.mxu0 0
    %10264 = vmatpush1.bf16.msra.mxu0 %v9465
    %10265 = vmatprep.subr.bf16.mxu0 0
    %10266 = vmatpush1.bf16.msra.mxu0 %v9464
    %10267 = vmatprep.subr.bf16.mxu0 0
    %10268 = vmatpush1.bf16.msra.mxu0 %v9463
    %10269 = vmatprep.subr.bf16.mxu0 0
    %10270 = vmatpush1.bf16.msra.mxu0 %v9462
    %10271 = vmatprep.subr.bf16.mxu0 0
    %10272 = vmatpush1.bf16.msra.mxu0 %v9461
    %10273 = vmatprep.subr.bf16.mxu0 0
    %10274 = vmatpush1.bf16.msra.mxu0 %v9460
    %10275 = vmatprep.subr.bf16.mxu0 0
    %10276 = vmatpush1.bf16.msra.mxu0 %v9459
    %10277 = vmatprep.subr.bf16.mxu0 0
    %10278 = vmatpush1.bf16.msra.mxu0 %v9458
    %10279 = vmatprep.subr.bf16.mxu0 0
    %10280 = vmatpush2.bf16.msra.mxu0 %v9473
    %10281 = vmatprep.subr.bf16.mxu0 0
    %10282 = vmatpush2.bf16.msra.mxu0 %v9472
    %10283 = vmatprep.subr.bf16.mxu0 0
    %10284 = vmatpush2.bf16.msra.mxu0 %v9471
    %10285 = vmatprep.subr.bf16.mxu0 0
    %10286 = vmatpush2.bf16.msra.mxu0 %v9470
    %10287 = vmatprep.subr.bf16.mxu0 0
    %10288 = vmatpush2.bf16.msra.mxu0 %v9469
    %10289 = vmatprep.subr.bf16.mxu0 0
    %10290 = vmatpush2.bf16.msra.mxu0 %v9468
    %10291 = vmatprep.subr.bf16.mxu0 0
    %10292 = vmatpush2.bf16.msra.mxu0 %v9467
    %10293 = vmatprep.subr.bf16.mxu0 0
    %10294 = vmatpush2.bf16.msra.mxu0 %v9466
    %10295 = vmatprep.mubr.bf16.mxu0 %v7071
    %10296 = vmatmul.mubr.bf16.gmra.mxu0 %v6911
    %v10297 = vpop.f32.mrf.mxu0
    %v10298 = vadd.f32 %v10201, %v10297
    %v10299 = vpop.f32.mrf.mxu0
    %v10300 = vpop.f32.mrf.mxu0
    %v10301 = vadd.f32 %v10204, %v10300
    %v10302 = vpop.f32.mrf.mxu0
    %10303 = vmatprep.mubr.bf16.mxu0 %v7072
    %10304 = vmatmul.mubr.bf16.gmra.mxu0 %v6912
    %v10305 = vpop.f32.mrf.mxu0
    %v10306 = vadd.f32 %v10209, %v10305
    %v10307 = vpop.f32.mrf.mxu0
    %v10308 = vpop.f32.mrf.mxu0
    %v10309 = vadd.f32 %v10212, %v10308
    %v10310 = vpop.f32.mrf.mxu0
    %10311 = vmatprep.mubr.bf16.mxu0 %v7073
    %10312 = vmatmul.mubr.bf16.gmra.mxu0 %v6913
    %v10313 = vpop.f32.mrf.mxu0
    %v10314 = vadd.f32 %v10217, %v10313
    %v10315 = vpop.f32.mrf.mxu0
    %v10316 = vpop.f32.mrf.mxu0
    %v10317 = vadd.f32 %v10220, %v10316
    %v10318 = vpop.f32.mrf.mxu0
    %10319 = vmatprep.mubr.bf16.mxu0 %v7832
    %10320 = vmatmul.mubr.bf16.gmra.mxu0 %v7810
    %v10321 = vpop.f32.mrf.mxu0
    %v10322 = vadd.f32 %v10225, %v10321
    %v10323 = vpop.f32.mrf.mxu0
    %v10324 = vpop.f32.mrf.mxu0
    %v10325 = vadd.f32 %v10228, %v10324
    %v10326 = vpop.f32.mrf.mxu0
    %10327 = vmatprep.mubr.bf16.mxu0 %v7075
    %10328 = vmatmul.mubr.bf16.gmra.mxu0 %v6915
    %v10329 = vpop.f32.mrf.mxu0
    %v10330 = vadd.f32 %v10233, %v10329
    %v10331 = vpop.f32.mrf.mxu0
    %v10332 = vpop.f32.mrf.mxu0
    %v10333 = vadd.f32 %v10236, %v10332
    %v10334 = vpop.f32.mrf.mxu0
    %10335 = vmatprep.mubr.bf16.mxu0 %v7076
    %10336 = vmatmul.mubr.bf16.gmra.mxu0 %v6916
    %v10337 = vpop.f32.mrf.mxu0
    %v10338 = vadd.f32 %v10241, %v10337
    %v10339 = vpop.f32.mrf.mxu0
    %v10340 = vpop.f32.mrf.mxu0
    %v10341 = vadd.f32 %v10244, %v10340
    %v10342 = vpop.f32.mrf.mxu0
    %10343 = vmatprep.mubr.bf16.mxu0 %v7077
    %10344 = vmatmul.mubr.bf16.gmra.mxu0 %v6917
    %v10345 = vpop.f32.mrf.mxu0
    %v10346 = vadd.f32 %v10249, %v10345
    %v10347 = vpop.f32.mrf.mxu0
    %v10348 = vpop.f32.mrf.mxu0
    %v10349 = vadd.f32 %v10252, %v10348
    %v10350 = vpop.f32.mrf.mxu0
    %10351 = vmatprep.mubr.bf16.mxu0 %v7833
    %10352 = vmatmul.mubr.bf16.gmra.mxu0 %v7811
    %v10353 = vpop.f32.mrf.mxu0
    %v10354 = vadd.f32 %v10257, %v10353
    %v10355 = vpop.f32.mrf.mxu0
    %v10356 = vpop.f32.mrf.mxu0
    %v10357 = vadd.f32 %v10260, %v10356
    %v10358 = vpop.f32.mrf.mxu0
    %10359 = vdwg.mxu0
    %10360 = vmatprep.subr.bf16.mxu0 0
    %10361 = vmatpush1.bf16.msra.mxu0 %v9481
    %10362 = vmatprep.subr.bf16.mxu0 0
    %10363 = vmatpush1.bf16.msra.mxu0 %v9480
    %10364 = vmatprep.subr.bf16.mxu0 0
    %10365 = vmatpush1.bf16.msra.mxu0 %v9479
    %10366 = vmatprep.subr.bf16.mxu0 0
    %10367 = vmatpush1.bf16.msra.mxu0 %v9478
    %10368 = vmatprep.subr.bf16.mxu0 0
    %10369 = vmatpush1.bf16.msra.mxu0 %v9477
    %10370 = vmatprep.subr.bf16.mxu0 0
    %10371 = vmatpush1.bf16.msra.mxu0 %v9476
    %10372 = vmatprep.subr.bf16.mxu0 0
    %10373 = vmatpush1.bf16.msra.mxu0 %v9475
    %10374 = vmatprep.subr.bf16.mxu0 0
    %10375 = vmatpush1.bf16.msra.mxu0 %v9474
    %10376 = vmatprep.subr.bf16.mxu0 0
    %10377 = vmatpush2.bf16.msra.mxu0 %v9489
    %10378 = vmatprep.subr.bf16.mxu0 0
    %10379 = vmatpush2.bf16.msra.mxu0 %v9488
    %10380 = vmatprep.subr.bf16.mxu0 0
    %10381 = vmatpush2.bf16.msra.mxu0 %v9487
    %10382 = vmatprep.subr.bf16.mxu0 0
    %10383 = vmatpush2.bf16.msra.mxu0 %v9486
    %10384 = vmatprep.subr.bf16.mxu0 0
    %10385 = vmatpush2.bf16.msra.mxu0 %v9485
    %10386 = vmatprep.subr.bf16.mxu0 0
    %10387 = vmatpush2.bf16.msra.mxu0 %v9484
    %10388 = vmatprep.subr.bf16.mxu0 0
    %10389 = vmatpush2.bf16.msra.mxu0 %v9483
    %10390 = vmatprep.subr.bf16.mxu0 0
    %10391 = vmatpush2.bf16.msra.mxu0 %v9482
    %10392 = vmatprep.mubr.bf16.mxu0 %v7391
    %10393 = vmatmul.mubr.bf16.gmra.mxu0 %v7231
    %v10394 = vpop.f32.mrf.mxu0
    %v10395 = vadd.f32 %v10298, %v10394
    %v10396 = vpop.f32.mrf.mxu0
    %v10397 = vpop.f32.mrf.mxu0
    %v10398 = vadd.f32 %v10301, %v10397
    %v10399 = vpop.f32.mrf.mxu0
    %10400 = vmatprep.mubr.bf16.mxu0 %v7392
    %10401 = vmatmul.mubr.bf16.gmra.mxu0 %v7232
    %v10402 = vpop.f32.mrf.mxu0
    %v10403 = vadd.f32 %v10306, %v10402
    %v10404 = vpop.f32.mrf.mxu0
    %v10405 = vpop.f32.mrf.mxu0
    %v10406 = vadd.f32 %v10309, %v10405
    %v10407 = vpop.f32.mrf.mxu0
    %10408 = vmatprep.mubr.bf16.mxu0 %v7393
    %10409 = vmatmul.mubr.bf16.gmra.mxu0 %v7233
    %v10410 = vpop.f32.mrf.mxu0
    %v10411 = vadd.f32 %v10314, %v10410
    %v10412 = vpop.f32.mrf.mxu0
    %v10413 = vpop.f32.mrf.mxu0
    %v10414 = vadd.f32 %v10317, %v10413
    %v10415 = vpop.f32.mrf.mxu0
    %10416 = vmatprep.mubr.bf16.mxu0 %v7876
    %10417 = vmatmul.mubr.bf16.gmra.mxu0 %v7854
    %v10418 = vpop.f32.mrf.mxu0
    %v10419 = vadd.f32 %v10322, %v10418
    %v10420 = vpop.f32.mrf.mxu0
    %v10421 = vpop.f32.mrf.mxu0
    %v10422 = vadd.f32 %v10325, %v10421
    %v10423 = vpop.f32.mrf.mxu0
    %10424 = vmatprep.mubr.bf16.mxu0 %v7395
    %10425 = vmatmul.mubr.bf16.gmra.mxu0 %v7235
    %v10426 = vpop.f32.mrf.mxu0
    %v10427 = vadd.f32 %v10330, %v10426
    %v10428 = vpop.f32.mrf.mxu0
    %v10429 = vpop.f32.mrf.mxu0
    %v10430 = vadd.f32 %v10333, %v10429
    %v10431 = vpop.f32.mrf.mxu0
    %10432 = vmatprep.mubr.bf16.mxu0 %v7396
    %10433 = vmatmul.mubr.bf16.gmra.mxu0 %v7236
    %v10434 = vpop.f32.mrf.mxu0
    %v10435 = vadd.f32 %v10338, %v10434
    %v10436 = vpop.f32.mrf.mxu0
    %v10437 = vpop.f32.mrf.mxu0
    %v10438 = vadd.f32 %v10341, %v10437
    %v10439 = vpop.f32.mrf.mxu0
    %10440 = vmatprep.mubr.bf16.mxu0 %v7397
    %10441 = vmatmul.mubr.bf16.gmra.mxu0 %v7237
    %v10442 = vpop.f32.mrf.mxu0
    %v10443 = vadd.f32 %v10346, %v10442
    %v10444 = vpop.f32.mrf.mxu0
    %v10445 = vpop.f32.mrf.mxu0
    %v10446 = vadd.f32 %v10349, %v10445
    %v10447 = vpop.f32.mrf.mxu0
    %10448 = vmatprep.mubr.bf16.mxu0 %v7877
    %10449 = vmatmul.mubr.bf16.gmra.mxu0 %v7855
    %v10450 = vpop.f32.mrf.mxu0
    %v10451 = vadd.f32 %v10354, %v10450
    %v10452 = vpop.f32.mrf.mxu0
    %v10453 = vpop.f32.mrf.mxu0
    %v10454 = vadd.f32 %v10357, %v10453
    %v10455 = vpop.f32.mrf.mxu0
    %10456 = vdwg.mxu0
    %10457 = vmatprep.subr.bf16.mxu0 0
    %10458 = vmatpush1.bf16.msra.mxu0 %v9497
    %10459 = vmatprep.subr.bf16.mxu0 0
    %10460 = vmatpush1.bf16.msra.mxu0 %v9496
    %10461 = vmatprep.subr.bf16.mxu0 0
    %10462 = vmatpush1.bf16.msra.mxu0 %v9495
    %10463 = vmatprep.subr.bf16.mxu0 0
    %10464 = vmatpush1.bf16.msra.mxu0 %v9494
    %10465 = vmatprep.subr.bf16.mxu0 0
    %10466 = vmatpush1.bf16.msra.mxu0 %v9493
    %10467 = vmatprep.subr.bf16.mxu0 0
    %10468 = vmatpush1.bf16.msra.mxu0 %v9492
    %10469 = vmatprep.subr.bf16.mxu0 0
    %10470 = vmatpush1.bf16.msra.mxu0 %v9491
    %10471 = vmatprep.subr.bf16.mxu0 0
    %10472 = vmatpush1.bf16.msra.mxu0 %v9490
    %10473 = vmatprep.subr.bf16.mxu0 0
    %10474 = vmatpush2.bf16.msra.mxu0 %v9505
    %10475 = vmatprep.subr.bf16.mxu0 0
    %10476 = vmatpush2.bf16.msra.mxu0 %v9504
    %10477 = vmatprep.subr.bf16.mxu0 0
    %10478 = vmatpush2.bf16.msra.mxu0 %v9503
    %10479 = vmatprep.subr.bf16.mxu0 0
    %10480 = vmatpush2.bf16.msra.mxu0 %v9502
    %10481 = vmatprep.subr.bf16.mxu0 0
    %10482 = vmatpush2.bf16.msra.mxu0 %v9501
    %10483 = vmatprep.subr.bf16.mxu0 0
    %10484 = vmatpush2.bf16.msra.mxu0 %v9500
    %10485 = vmatprep.subr.bf16.mxu0 0
    %10486 = vmatpush2.bf16.msra.mxu0 %v9499
    %10487 = vmatprep.subr.bf16.mxu0 0
    %10488 = vmatpush2.bf16.msra.mxu0 %v9498
    %10489 = vmatprep.mubr.bf16.mxu0 %v7613
    %10490 = vmatmul.mubr.bf16.gmra.mxu0 %v7551
    %v10491 = vpop.f32.mrf.mxu0
    %v10492 = vadd.f32 %v10395, %v10491
    %v10493 = vpop.f32.mrf.mxu0
    %v10494 = vpop.f32.mrf.mxu0
    %v10495 = vadd.f32 %v10398, %v10494
    %v10496 = vpop.f32.mrf.mxu0
    %10497 = vmatprep.mubr.bf16.mxu0 %v7614
    %10498 = vmatmul.mubr.bf16.gmra.mxu0 %v7552
    %v10499 = vpop.f32.mrf.mxu0
    %v10500 = vadd.f32 %v10403, %v10499
    %v10501 = vpop.f32.mrf.mxu0
    %v10502 = vpop.f32.mrf.mxu0
    %v10503 = vadd.f32 %v10406, %v10502
    %v10504 = vpop.f32.mrf.mxu0
    %10505 = vmatprep.mubr.bf16.mxu0 %v7615
    %10506 = vmatmul.mubr.bf16.gmra.mxu0 %v7553
    %v10507 = vpop.f32.mrf.mxu0
    %v10508 = vadd.f32 %v10411, %v10507
    %v10509 = vpop.f32.mrf.mxu0
    %v10510 = vpop.f32.mrf.mxu0
    %v10511 = vadd.f32 %v10414, %v10510
    %v10512 = vpop.f32.mrf.mxu0
    %10513 = vmatprep.mubr.bf16.mxu0 %v7948
    %10514 = vmatmul.mubr.bf16.gmra.mxu0 %v7898
    %v10515 = vpop.f32.mrf.mxu0
    %v10516 = vadd.f32 %v10419, %v10515
    %v10517 = vpop.f32.mrf.mxu0
    %v10518 = vpop.f32.mrf.mxu0
    %v10519 = vadd.f32 %v10422, %v10518
    %v10520 = vpop.f32.mrf.mxu0
    %10521 = vmatprep.mubr.bf16.mxu0 %v7617
    %10522 = vmatmul.mubr.bf16.gmra.mxu0 %v7555
    %v10523 = vpop.f32.mrf.mxu0
    %v10524 = vadd.f32 %v10427, %v10523
    %v10525 = vpop.f32.mrf.mxu0
    %v10526 = vpop.f32.mrf.mxu0
    %v10527 = vadd.f32 %v10430, %v10526
    %v10528 = vpop.f32.mrf.mxu0
    %10529 = vmatprep.mubr.bf16.mxu0 %v7618
    %10530 = vmatmul.mubr.bf16.gmra.mxu0 %v7556
    %v10531 = vpop.f32.mrf.mxu0
    %v10532 = vadd.f32 %v10435, %v10531
    %v10533 = vpop.f32.mrf.mxu0
    %v10534 = vpop.f32.mrf.mxu0
    %v10535 = vadd.f32 %v10438, %v10534
    %v10536 = vpop.f32.mrf.mxu0
    %10537 = vmatprep.mubr.bf16.mxu0 %v7619
    %10538 = vmatmul.mubr.bf16.gmra.mxu0 %v7557
    %v10539 = vpop.f32.mrf.mxu0
    %v10540 = vadd.f32 %v10443, %v10539
    %v10541 = vpop.f32.mrf.mxu0
    %v10542 = vpop.f32.mrf.mxu0
    %v10543 = vadd.f32 %v10446, %v10542
    %v10544 = vpop.f32.mrf.mxu0
    %10545 = vmatprep.mubr.bf16.mxu0 %v7949
    %10546 = vmatmul.mubr.bf16.gmra.mxu0 %v7899
    %v10547 = vpop.f32.mrf.mxu0
    %v10548 = vadd.f32 %v10451, %v10547
    %v10549 = vpop.f32.mrf.mxu0
    %v10550 = vpop.f32.mrf.mxu0
    %v10551 = vadd.f32 %v10454, %v10550
    %v10552 = vpop.f32.mrf.mxu0
    %10553 = vdwg.mxu0
    %10554 = vmatprep.subr.bf16.mxu0 0
    %10555 = vmatpush1.bf16.msra.mxu0 %v9513
    %10556 = vmatprep.subr.bf16.mxu0 0
    %10557 = vmatpush1.bf16.msra.mxu0 %v9512
    %10558 = vmatprep.subr.bf16.mxu0 0
    %10559 = vmatpush1.bf16.msra.mxu0 %v9511
    %10560 = vmatprep.subr.bf16.mxu0 0
    %10561 = vmatpush1.bf16.msra.mxu0 %v9510
    %10562 = vmatprep.subr.bf16.mxu0 0
    %10563 = vmatpush1.bf16.msra.mxu0 %v9509
    %10564 = vmatprep.subr.bf16.mxu0 0
    %10565 = vmatpush1.bf16.msra.mxu0 %v9508
    %10566 = vmatprep.subr.bf16.mxu0 0
    %10567 = vmatpush1.bf16.msra.mxu0 %v9507
    %10568 = vmatprep.subr.bf16.mxu0 0
    %10569 = vmatpush1.bf16.msra.mxu0 %v9506
    %10570 = vmatprep.subr.bf16.mxu0 0
    %10571 = vmatpush2.bf16.msra.mxu0 %v9521
    %10572 = vmatprep.subr.bf16.mxu0 0
    %10573 = vmatpush2.bf16.msra.mxu0 %v9520
    %10574 = vmatprep.subr.bf16.mxu0 0
    %10575 = vmatpush2.bf16.msra.mxu0 %v9519
    %10576 = vmatprep.subr.bf16.mxu0 0
    %10577 = vmatpush2.bf16.msra.mxu0 %v9518
    %10578 = vmatprep.subr.bf16.mxu0 0
    %10579 = vmatpush2.bf16.msra.mxu0 %v9517
    %10580 = vmatprep.subr.bf16.mxu0 0
    %10581 = vmatpush2.bf16.msra.mxu0 %v9516
    %10582 = vmatprep.subr.bf16.mxu0 0
    %10583 = vmatpush2.bf16.msra.mxu0 %v9515
    %10584 = vmatprep.subr.bf16.mxu0 0
    %10585 = vmatpush2.bf16.msra.mxu0 %v9514
    %10586 = vmatprep.mubr.bf16.mxu0 %v7681
    %10587 = vmatmul.mubr.bf16.gmra.mxu0 %v7647
    %v10588 = vpop.f32.mrf.mxu0
    %v10589 = vadd.f32 %v10492, %v10588
    %v10590 = vpop.f32.mrf.mxu0
    %v10591 = vpop.f32.mrf.mxu0
    %v10592 = vadd.f32 %v10495, %v10591
    %v10593 = vpop.f32.mrf.mxu0
    %10594 = vmatprep.mubr.bf16.mxu0 %v7682
    %10595 = vmatmul.mubr.bf16.gmra.mxu0 %v7648
    %v10596 = vpop.f32.mrf.mxu0
    %v10597 = vadd.f32 %v10500, %v10596
    %v10598 = vpop.f32.mrf.mxu0
    %v10599 = vpop.f32.mrf.mxu0
    %v10600 = vadd.f32 %v10503, %v10599
    %v10601 = vpop.f32.mrf.mxu0
    %10602 = vmatprep.mubr.bf16.mxu0 %v7683
    %10603 = vmatmul.mubr.bf16.gmra.mxu0 %v7649
    %v10604 = vpop.f32.mrf.mxu0
    %v10605 = vadd.f32 %v10508, %v10604
    %v10606 = vpop.f32.mrf.mxu0
    %v10607 = vpop.f32.mrf.mxu0
    %v10608 = vadd.f32 %v10511, %v10607
    %v10609 = vpop.f32.mrf.mxu0
    %10610 = vmatprep.mubr.bf16.mxu0 %v7992
    %10611 = vmatmul.mubr.bf16.gmra.mxu0 %v7970
    %v10612 = vpop.f32.mrf.mxu0
    %v10613 = vadd.f32 %v10516, %v10612
    %v10614 = vpop.f32.mrf.mxu0
    %v10615 = vpop.f32.mrf.mxu0
    %v10616 = vadd.f32 %v10519, %v10615
    %v10617 = vpop.f32.mrf.mxu0
    %10618 = vmatprep.mubr.bf16.mxu0 %v7685
    %10619 = vmatmul.mubr.bf16.gmra.mxu0 %v7651
    %v10620 = vpop.f32.mrf.mxu0
    %v10621 = vadd.f32 %v10524, %v10620
    %v10622 = vpop.f32.mrf.mxu0
    %v10623 = vpop.f32.mrf.mxu0
    %v10624 = vadd.f32 %v10527, %v10623
    %v10625 = vpop.f32.mrf.mxu0
    %10626 = vmatprep.mubr.bf16.mxu0 %v7686
    %10627 = vmatmul.mubr.bf16.gmra.mxu0 %v7652
    %v10628 = vpop.f32.mrf.mxu0
    %v10629 = vadd.f32 %v10532, %v10628
    %v10630 = vpop.f32.mrf.mxu0
    %v10631 = vpop.f32.mrf.mxu0
    %v10632 = vadd.f32 %v10535, %v10631
    %v10633 = vpop.f32.mrf.mxu0
    %10634 = vmatprep.mubr.bf16.mxu0 %v7687
    %10635 = vmatmul.mubr.bf16.gmra.mxu0 %v7653
    %v10636 = vpop.f32.mrf.mxu0
    %v10637 = vadd.f32 %v10540, %v10636
    %v10638 = vpop.f32.mrf.mxu0
    %v10639 = vpop.f32.mrf.mxu0
    %v10640 = vadd.f32 %v10543, %v10639
    %v10641 = vpop.f32.mrf.mxu0
    %10642 = vmatprep.mubr.bf16.mxu0 %v7993
    %10643 = vmatmul.mubr.bf16.gmra.mxu0 %v7971
    %v10644 = vpop.f32.mrf.mxu0
    %v10645 = vadd.f32 %v10548, %v10644
    %v10646 = vpop.f32.mrf.mxu0
    %v10647 = vpop.f32.mrf.mxu0
    %v10648 = vadd.f32 %v10551, %v10647
    %v10649 = vpop.f32.mrf.mxu0
    %10650 = vdwg.mxu0
    %10651 = vmatprep.subr.bf16.mxu0 0
    %10652 = vmatpush1.bf16.msra.mxu0 %v9529
    %10653 = vmatprep.subr.bf16.mxu0 0
    %10654 = vmatpush1.bf16.msra.mxu0 %v9528
    %10655 = vmatprep.subr.bf16.mxu0 0
    %10656 = vmatpush1.bf16.msra.mxu0 %v9527
    %10657 = vmatprep.subr.bf16.mxu0 0
    %10658 = vmatpush1.bf16.msra.mxu0 %v9526
    %10659 = vmatprep.subr.bf16.mxu0 0
    %10660 = vmatpush1.bf16.msra.mxu0 %v9525
    %10661 = vmatprep.subr.bf16.mxu0 0
    %10662 = vmatpush1.bf16.msra.mxu0 %v9524
    %10663 = vmatprep.subr.bf16.mxu0 0
    %10664 = vmatpush1.bf16.msra.mxu0 %v9523
    %10665 = vmatprep.subr.bf16.mxu0 0
    %10666 = vmatpush1.bf16.msra.mxu0 %v9522
    %10667 = vmatprep.subr.bf16.mxu0 0
    %10668 = vmatpush2.bf16.msra.mxu0 %v9537
    %10669 = vmatprep.subr.bf16.mxu0 0
    %10670 = vmatpush2.bf16.msra.mxu0 %v9536
    %10671 = vmatprep.subr.bf16.mxu0 0
    %10672 = vmatpush2.bf16.msra.mxu0 %v9535
    %10673 = vmatprep.subr.bf16.mxu0 0
    %10674 = vmatpush2.bf16.msra.mxu0 %v9534
    %10675 = vmatprep.subr.bf16.mxu0 0
    %10676 = vmatpush2.bf16.msra.mxu0 %v9533
    %10677 = vmatprep.subr.bf16.mxu0 0
    %10678 = vmatpush2.bf16.msra.mxu0 %v9532
    %10679 = vmatprep.subr.bf16.mxu0 0
    %10680 = vmatpush2.bf16.msra.mxu0 %v9531
    %10681 = vmatprep.subr.bf16.mxu0 0
    %10682 = vmatpush2.bf16.msra.mxu0 %v9530
    %10683 = vmatprep.mubr.bf16.mxu0 %v7749
    %10684 = vmatmul.mubr.bf16.gmra.mxu0 %v7715
    %v10685 = vpop.f32.mrf.mxu0
    %v10686 = vadd.f32 %v10589, %v10685
    %v10687 = vpop.f32.mrf.mxu0
    %v10688 = vpop.f32.mrf.mxu0
    %v10689 = vadd.f32 %v10592, %v10688
    %v10690 = vpop.f32.mrf.mxu0
    %10691 = vmatprep.mubr.bf16.mxu0 %v7750
    %10692 = vmatmul.mubr.bf16.gmra.mxu0 %v7716
    %v10693 = vpop.f32.mrf.mxu0
    %v10694 = vadd.f32 %v10597, %v10693
    %v10695 = vpop.f32.mrf.mxu0
    %v10696 = vpop.f32.mrf.mxu0
    %v10697 = vadd.f32 %v10600, %v10696
    %v10698 = vpop.f32.mrf.mxu0
    %10699 = vmatprep.mubr.bf16.mxu0 %v7751
    %10700 = vmatmul.mubr.bf16.gmra.mxu0 %v7717
    %v10701 = vpop.f32.mrf.mxu0
    %v10702 = vadd.f32 %v10605, %v10701
    %v10703 = vpop.f32.mrf.mxu0
    %v10704 = vpop.f32.mrf.mxu0
    %v10705 = vadd.f32 %v10608, %v10704
    %v10706 = vpop.f32.mrf.mxu0
    %10707 = vmatprep.mubr.bf16.mxu0 %v8036
    %10708 = vmatmul.mubr.bf16.gmra.mxu0 %v8014
    %v10709 = vpop.f32.mrf.mxu0
    %v10710 = vadd.f32 %v10613, %v10709
    %v10711 = vpop.f32.mrf.mxu0
    %v10712 = vpop.f32.mrf.mxu0
    %v10713 = vadd.f32 %v10616, %v10712
    %v10714 = vpop.f32.mrf.mxu0
    %10715 = vmatprep.mubr.bf16.mxu0 %v7753
    %10716 = vmatmul.mubr.bf16.gmra.mxu0 %v7719
    %v10717 = vpop.f32.mrf.mxu0
    %v10718 = vadd.f32 %v10621, %v10717
    %v10719 = vpop.f32.mrf.mxu0
    %v10720 = vpop.f32.mrf.mxu0
    %v10721 = vadd.f32 %v10624, %v10720
    %v10722 = vpop.f32.mrf.mxu0
    %10723 = vmatprep.mubr.bf16.mxu0 %v7754
    %10724 = vmatmul.mubr.bf16.gmra.mxu0 %v7720
    %v10725 = vpop.f32.mrf.mxu0
    %v10726 = vadd.f32 %v10629, %v10725
    %v10727 = vpop.f32.mrf.mxu0
    %v10728 = vpop.f32.mrf.mxu0
    %v10729 = vadd.f32 %v10632, %v10728
    %v10730 = vpop.f32.mrf.mxu0
    %10731 = vmatprep.mubr.bf16.mxu0 %v7755
    %10732 = vmatmul.mubr.bf16.gmra.mxu0 %v7721
    %v10733 = vpop.f32.mrf.mxu0
    %v10734 = vadd.f32 %v10637, %v10733
    %v10735 = vpop.f32.mrf.mxu0
    %v10736 = vpop.f32.mrf.mxu0
    %v10737 = vadd.f32 %v10640, %v10736
    %v10738 = vpop.f32.mrf.mxu0
    %10739 = vmatprep.mubr.bf16.mxu0 %v8037
    %10740 = vmatmul.mubr.bf16.gmra.mxu0 %v8015
    %v10741 = vpop.f32.mrf.mxu0
    %v10742 = vadd.f32 %v10645, %v10741
    %v10743 = vpop.f32.mrf.mxu0
    %v10744 = vpop.f32.mrf.mxu0
    %v10745 = vadd.f32 %v10648, %v10744
    %v10746 = vpop.f32.mrf.mxu0
    %10747 = vdwg.mxu0
    %10748 = vmatprep.subr.bf16.mxu0 0
    %10749 = vmatpush1.bf16.msra.mxu0 %v9545
    %10750 = vmatprep.subr.bf16.mxu0 0
    %10751 = vmatpush1.bf16.msra.mxu0 %v9544
    %10752 = vmatprep.subr.bf16.mxu0 0
    %10753 = vmatpush1.bf16.msra.mxu0 %v9543
    %10754 = vmatprep.subr.bf16.mxu0 0
    %10755 = vmatpush1.bf16.msra.mxu0 %v9542
    %10756 = vmatprep.subr.bf16.mxu0 0
    %10757 = vmatpush1.bf16.msra.mxu0 %v9541
    %10758 = vmatprep.subr.bf16.mxu0 0
    %10759 = vmatpush1.bf16.msra.mxu0 %v9540
    %10760 = vmatprep.subr.bf16.mxu0 0
    %10761 = vmatpush1.bf16.msra.mxu0 %v9539
    %10762 = vmatprep.subr.bf16.mxu0 0
    %10763 = vmatpush1.bf16.msra.mxu0 %v9538
    %10764 = vmatprep.subr.bf16.mxu0 0
    %10765 = vmatpush2.bf16.msra.mxu0 %v9553
    %10766 = vmatprep.subr.bf16.mxu0 0
    %10767 = vmatpush2.bf16.msra.mxu0 %v9552
    %10768 = vmatprep.subr.bf16.mxu0 0
    %10769 = vmatpush2.bf16.msra.mxu0 %v9551
    %10770 = vmatprep.subr.bf16.mxu0 0
    %10771 = vmatpush2.bf16.msra.mxu0 %v9550
    %10772 = vmatprep.subr.bf16.mxu0 0
    %10773 = vmatpush2.bf16.msra.mxu0 %v9549
    %10774 = vmatprep.subr.bf16.mxu0 0
    %10775 = vmatpush2.bf16.msra.mxu0 %v9548
    %10776 = vmatprep.subr.bf16.mxu0 0
    %10777 = vmatpush2.bf16.msra.mxu0 %v9547
    %10778 = vmatprep.subr.bf16.mxu0 0
    %10779 = vmatpush2.bf16.msra.mxu0 %v9546
    %10780 = vmatprep.mubr.bf16.mxu0 %v7072
    %10781 = vmatmul.mubr.bf16.gmra.mxu0 %v6912
    %v10782 = vpop.f32.mrf.mxu0
    %v10783 = vadd.f32 %v10686, %v10782
    %v10784 = vpop.f32.mrf.mxu0
    %v10785 = vpop.f32.mrf.mxu0
    %v10786 = vadd.f32 %v10689, %v10785
    %v10787 = vpop.f32.mrf.mxu0
    %10788 = vmatprep.mubr.bf16.mxu0 %v7073
    %10789 = vmatmul.mubr.bf16.gmra.mxu0 %v6913
    %v10790 = vpop.f32.mrf.mxu0
    %v10791 = vadd.f32 %v10694, %v10790
    %v10792 = vpop.f32.mrf.mxu0
    %v10793 = vpop.f32.mrf.mxu0
    %v10794 = vadd.f32 %v10697, %v10793
    %v10795 = vpop.f32.mrf.mxu0
    %10796 = vmatprep.mubr.bf16.mxu0 %v7832
    %10797 = vmatmul.mubr.bf16.gmra.mxu0 %v7810
    %v10798 = vpop.f32.mrf.mxu0
    %v10799 = vadd.f32 %v10702, %v10798
    %v10800 = vpop.f32.mrf.mxu0
    %v10801 = vpop.f32.mrf.mxu0
    %v10802 = vadd.f32 %v10705, %v10801
    %v10803 = vpop.f32.mrf.mxu0
    %10804 = vmatprep.mubr.bf16.mxu0 %v8108
    %10805 = vmatmul.mubr.bf16.gmra.mxu0 %v8086
    %v10806 = vpop.f32.mrf.mxu0
    %v10807 = vadd.f32 %v10710, %v10806
    %v10808 = vpop.f32.mrf.mxu0
    %v10809 = vpop.f32.mrf.mxu0
    %v10810 = vadd.f32 %v10713, %v10809
    %v10811 = vpop.f32.mrf.mxu0
    %10812 = vmatprep.mubr.bf16.mxu0 %v7076
    %10813 = vmatmul.mubr.bf16.gmra.mxu0 %v6916
    %v10814 = vpop.f32.mrf.mxu0
    %v10815 = vadd.f32 %v10718, %v10814
    %v10816 = vpop.f32.mrf.mxu0
    %v10817 = vpop.f32.mrf.mxu0
    %v10818 = vadd.f32 %v10721, %v10817
    %v10819 = vpop.f32.mrf.mxu0
    %10820 = vmatprep.mubr.bf16.mxu0 %v7077
    %10821 = vmatmul.mubr.bf16.gmra.mxu0 %v6917
    %v10822 = vpop.f32.mrf.mxu0
    %v10823 = vadd.f32 %v10726, %v10822
    %v10824 = vpop.f32.mrf.mxu0
    %v10825 = vpop.f32.mrf.mxu0
    %v10826 = vadd.f32 %v10729, %v10825
    %v10827 = vpop.f32.mrf.mxu0
    %10828 = vmatprep.mubr.bf16.mxu0 %v7833
    %10829 = vmatmul.mubr.bf16.gmra.mxu0 %v7811
    %v10830 = vpop.f32.mrf.mxu0
    %v10831 = vadd.f32 %v10734, %v10830
    %v10832 = vpop.f32.mrf.mxu0
    %v10833 = vpop.f32.mrf.mxu0
    %v10834 = vadd.f32 %v10737, %v10833
    %v10835 = vpop.f32.mrf.mxu0
    %10836 = vmatprep.mubr.bf16.mxu0 %v8109
    %10837 = vmatmul.mubr.bf16.gmra.mxu0 %v8087
    %v10838 = vpop.f32.mrf.mxu0
    %v10839 = vadd.f32 %v10742, %v10838
    %v10840 = vpop.f32.mrf.mxu0
    %v10841 = vpop.f32.mrf.mxu0
    %v10842 = vadd.f32 %v10745, %v10841
    %v10843 = vpop.f32.mrf.mxu0
    %10844 = vdwg.mxu0
    %10845 = vmatprep.subr.bf16.mxu0 0
    %10846 = vmatpush1.bf16.msra.mxu0 %v9561
    %10847 = vmatprep.subr.bf16.mxu0 0
    %10848 = vmatpush1.bf16.msra.mxu0 %v9560
    %10849 = vmatprep.subr.bf16.mxu0 0
    %10850 = vmatpush1.bf16.msra.mxu0 %v9559
    %10851 = vmatprep.subr.bf16.mxu0 0
    %10852 = vmatpush1.bf16.msra.mxu0 %v9558
    %10853 = vmatprep.subr.bf16.mxu0 0
    %10854 = vmatpush1.bf16.msra.mxu0 %v9557
    %10855 = vmatprep.subr.bf16.mxu0 0
    %10856 = vmatpush1.bf16.msra.mxu0 %v9556
    %10857 = vmatprep.subr.bf16.mxu0 0
    %10858 = vmatpush1.bf16.msra.mxu0 %v9555
    %10859 = vmatprep.subr.bf16.mxu0 0
    %10860 = vmatpush1.bf16.msra.mxu0 %v9554
    %10861 = vmatprep.subr.bf16.mxu0 0
    %10862 = vmatpush2.bf16.msra.mxu0 %v9569
    %10863 = vmatprep.subr.bf16.mxu0 0
    %10864 = vmatpush2.bf16.msra.mxu0 %v9568
    %10865 = vmatprep.subr.bf16.mxu0 0
    %10866 = vmatpush2.bf16.msra.mxu0 %v9567
    %10867 = vmatprep.subr.bf16.mxu0 0
    %10868 = vmatpush2.bf16.msra.mxu0 %v9566
    %10869 = vmatprep.subr.bf16.mxu0 0
    %10870 = vmatpush2.bf16.msra.mxu0 %v9565
    %10871 = vmatprep.subr.bf16.mxu0 0
    %10872 = vmatpush2.bf16.msra.mxu0 %v9564
    %10873 = vmatprep.subr.bf16.mxu0 0
    %10874 = vmatpush2.bf16.msra.mxu0 %v9563
    %10875 = vmatprep.subr.bf16.mxu0 0
    %10876 = vmatpush2.bf16.msra.mxu0 %v9562
    %10877 = vmatprep.mubr.bf16.mxu0 %v7392
    %10878 = vmatmul.mubr.bf16.gmra.mxu0 %v7232
    %v10879 = vpop.f32.mrf.mxu0
    %v10880 = vadd.f32 %v10783, %v10879
    %v10881 = vpop.f32.mrf.mxu0
    %v10882 = vpop.f32.mrf.mxu0
    %v10883 = vadd.f32 %v10786, %v10882
    %v10884 = vpop.f32.mrf.mxu0
    %10885 = vmatprep.mubr.bf16.mxu0 %v7393
    %10886 = vmatmul.mubr.bf16.gmra.mxu0 %v7233
    %v10887 = vpop.f32.mrf.mxu0
    %v10888 = vadd.f32 %v10791, %v10887
    %v10889 = vpop.f32.mrf.mxu0
    %v10890 = vpop.f32.mrf.mxu0
    %v10891 = vadd.f32 %v10794, %v10890
    %v10892 = vpop.f32.mrf.mxu0
    %10893 = vmatprep.mubr.bf16.mxu0 %v7876
    %10894 = vmatmul.mubr.bf16.gmra.mxu0 %v7854
    %v10895 = vpop.f32.mrf.mxu0
    %v10896 = vadd.f32 %v10799, %v10895
    %v10897 = vpop.f32.mrf.mxu0
    %v10898 = vpop.f32.mrf.mxu0
    %v10899 = vadd.f32 %v10802, %v10898
    %v10900 = vpop.f32.mrf.mxu0
    %10901 = vmatprep.mubr.bf16.mxu0 %v8152
    %10902 = vmatmul.mubr.bf16.gmra.mxu0 %v8130
    %v10903 = vpop.f32.mrf.mxu0
    %v10904 = vadd.f32 %v10807, %v10903
    %v10905 = vpop.f32.mrf.mxu0
    %v10906 = vpop.f32.mrf.mxu0
    %v10907 = vadd.f32 %v10810, %v10906
    %v10908 = vpop.f32.mrf.mxu0
    %10909 = vmatprep.mubr.bf16.mxu0 %v7396
    %10910 = vmatmul.mubr.bf16.gmra.mxu0 %v7236
    %v10911 = vpop.f32.mrf.mxu0
    %v10912 = vadd.f32 %v10815, %v10911
    %v10913 = vpop.f32.mrf.mxu0
    %v10914 = vpop.f32.mrf.mxu0
    %v10915 = vadd.f32 %v10818, %v10914
    %v10916 = vpop.f32.mrf.mxu0
    %10917 = vmatprep.mubr.bf16.mxu0 %v7397
    %10918 = vmatmul.mubr.bf16.gmra.mxu0 %v7237
    %v10919 = vpop.f32.mrf.mxu0
    %v10920 = vadd.f32 %v10823, %v10919
    %v10921 = vpop.f32.mrf.mxu0
    %v10922 = vpop.f32.mrf.mxu0
    %v10923 = vadd.f32 %v10826, %v10922
    %v10924 = vpop.f32.mrf.mxu0
    %10925 = vmatprep.mubr.bf16.mxu0 %v7877
    %10926 = vmatmul.mubr.bf16.gmra.mxu0 %v7855
    %v10927 = vpop.f32.mrf.mxu0
    %v10928 = vadd.f32 %v10831, %v10927
    %v10929 = vpop.f32.mrf.mxu0
    %v10930 = vpop.f32.mrf.mxu0
    %v10931 = vadd.f32 %v10834, %v10930
    %v10932 = vpop.f32.mrf.mxu0
    %10933 = vmatprep.mubr.bf16.mxu0 %v8153
    %10934 = vmatmul.mubr.bf16.gmra.mxu0 %v8131
    %v10935 = vpop.f32.mrf.mxu0
    %v10936 = vadd.f32 %v10839, %v10935
    %v10937 = vpop.f32.mrf.mxu0
    %v10938 = vpop.f32.mrf.mxu0
    %v10939 = vadd.f32 %v10842, %v10938
    %v10940 = vpop.f32.mrf.mxu0
    %10941 = vdwg.mxu0
    %10942 = vmatprep.subr.bf16.mxu0 0
    %10943 = vmatpush1.bf16.msra.mxu0 %v9577
    %10944 = vmatprep.subr.bf16.mxu0 0
    %10945 = vmatpush1.bf16.msra.mxu0 %v9576
    %10946 = vmatprep.subr.bf16.mxu0 0
    %10947 = vmatpush1.bf16.msra.mxu0 %v9575
    %10948 = vmatprep.subr.bf16.mxu0 0
    %10949 = vmatpush1.bf16.msra.mxu0 %v9574
    %10950 = vmatprep.subr.bf16.mxu0 0
    %10951 = vmatpush1.bf16.msra.mxu0 %v9573
    %10952 = vmatprep.subr.bf16.mxu0 0
    %10953 = vmatpush1.bf16.msra.mxu0 %v9572
    %10954 = vmatprep.subr.bf16.mxu0 0
    %10955 = vmatpush1.bf16.msra.mxu0 %v9571
    %10956 = vmatprep.subr.bf16.mxu0 0
    %10957 = vmatpush1.bf16.msra.mxu0 %v9570
    %10958 = vmatprep.subr.bf16.mxu0 0
    %10959 = vmatpush2.bf16.msra.mxu0 0
    %10960 = vmatprep.subr.bf16.mxu0 0
    %10961 = vmatpush2.bf16.msra.mxu0 0
    %10962 = vmatprep.subr.bf16.mxu0 0
    %10963 = vmatpush2.bf16.msra.mxu0 0
    %10964 = vmatprep.subr.bf16.mxu0 0
    %10965 = vmatpush2.bf16.msra.mxu0 0
    %10966 = vmatprep.subr.bf16.mxu0 0
    %10967 = vmatpush2.bf16.msra.mxu0 0
    %10968 = vmatprep.subr.bf16.mxu0 0
    %10969 = vmatpush2.bf16.msra.mxu0 0
    %10970 = vmatprep.subr.bf16.mxu0 0
    %10971 = vmatpush2.bf16.msra.mxu0 0
    %10972 = vmatprep.subr.bf16.mxu0 0
    %10973 = vmatpush2.bf16.msra.mxu0 0
    %10974 = vmatprep.mubr.bf16.mxu0 0
    %10975 = vmatmul.mubr.bf16.gmra.mxu0 %v7552
    %v10976 = vpop.f32.mrf.mxu0
    %v10977 = vadd.f32 %v10880, %v10976
    %v10978 = vpop.f32.mrf.mxu0
    %v10979 = vpop.f32.mrf.mxu0
    %v10980 = vadd.f32 %v10883, %v10979
    %v10981 = vpop.f32.mrf.mxu0
    %10982 = vmatprep.mubr.bf16.mxu0 0
    %10983 = vmatmul.mubr.bf16.gmra.mxu0 %v7553
    %v10984 = vpop.f32.mrf.mxu0
    %v10985 = vadd.f32 %v10888, %v10984
    %v10986 = vpop.f32.mrf.mxu0
    %v10987 = vpop.f32.mrf.mxu0
    %v10988 = vadd.f32 %v10891, %v10987
    %v10989 = vpop.f32.mrf.mxu0
    %10990 = vmatprep.mubr.bf16.mxu0 0
    %10991 = vmatmul.mubr.bf16.gmra.mxu0 %v7898
    %v10992 = vpop.f32.mrf.mxu0
    %v10993 = vadd.f32 %v10896, %v10992
    %v10994 = vpop.f32.mrf.mxu0
    %v10995 = vpop.f32.mrf.mxu0
    %v10996 = vadd.f32 %v10899, %v10995
    %v10997 = vpop.f32.mrf.mxu0
    %10998 = vmatprep.mubr.bf16.mxu0 0
    %10999 = vmatmul.mubr.bf16.gmra.mxu0 %v8174
    %v11000 = vpop.f32.mrf.mxu0
    %v11001 = vadd.f32 %v10904, %v11000
    %v11002 = vpop.f32.mrf.mxu0
    %v11003 = vpop.f32.mrf.mxu0
    %v11004 = vadd.f32 %v10907, %v11003
    %v11005 = vpop.f32.mrf.mxu0
    %11006 = vmatprep.mubr.bf16.mxu0 0
    %11007 = vmatmul.mubr.bf16.gmra.mxu0 %v7556
    %v11008 = vpop.f32.mrf.mxu0
    %v11009 = vadd.f32 %v10912, %v11008
    %v11010 = vpop.f32.mrf.mxu0
    %v11011 = vpop.f32.mrf.mxu0
    %v11012 = vadd.f32 %v10915, %v11011
    %v11013 = vpop.f32.mrf.mxu0
    %11014 = vmatprep.mubr.bf16.mxu0 0
    %11015 = vmatmul.mubr.bf16.gmra.mxu0 %v7557
    %v11016 = vpop.f32.mrf.mxu0
    %v11017 = vadd.f32 %v10920, %v11016
    %v11018 = vpop.f32.mrf.mxu0
    %v11019 = vpop.f32.mrf.mxu0
    %v11020 = vadd.f32 %v10923, %v11019
    %v11021 = vpop.f32.mrf.mxu0
    %11022 = vmatprep.mubr.bf16.mxu0 0
    %11023 = vmatmul.mubr.bf16.gmra.mxu0 %v7899
    %v11024 = vpop.f32.mrf.mxu0
    %v11025 = vadd.f32 %v10928, %v11024
    %v11026 = vpop.f32.mrf.mxu0
    %v11027 = vpop.f32.mrf.mxu0
    %v11028 = vadd.f32 %v10931, %v11027
    %v11029 = vpop.f32.mrf.mxu0
    %11030 = vmatprep.mubr.bf16.mxu0 0
    %11031 = vmatmul.mubr.bf16.gmra.mxu0 %v8175
    %v11032 = vpop.f32.mrf.mxu0
    %v11033 = vadd.f32 %v10936, %v11032
    %v11034 = vpop.f32.mrf.mxu0
    %v11035 = vpop.f32.mrf.mxu0
    %v11036 = vadd.f32 %v10939, %v11035
    %v11037 = vpop.f32.mrf.mxu0
    %11038 = vdwg.mxu0
    %v11039 = vld [vmem:[%s5] sm:$0x1]
    %v11040 = vld [vmem:[%s6] sm:$0x1]
    %v11041 = vadd.f32 %v10977, %v10980
    %v11042 = vadd.f32 %v11041, %v10985
    %v11043 = vadd.f32 %v11042, %v10988
    %v11044 = vadd.f32 %v11043, %v10993
    %v11045 = vadd.f32 %v11044, %v10996
    %v11046 = vadd.f32 %v11045, %v11001
    %v11047 = vadd.f32 %v11046, %v11004
    %v11048 = vadd.f32 %v11047, %v11009
    %v11049 = vadd.f32 %v11048, %v11012
    %v11050 = vadd.f32 %v11049, %v11017
    %v11051 = vadd.f32 %v11050, %v11020
    %v11052 = vadd.f32 %v11051, %v11025
    %v11053 = vadd.f32 %v11052, %v11028
    %v11054 = vadd.f32 %v11053, %v11033
    %v11055 = vadd.f32 %v11054, %v11036
    %v11056 = vrot.slane %v11055, 4
    %v11057 = vadd.f32 %v11055, %v11056
    %v11058 = vrot.slane %v11057, 2
    %v11059 = vadd.f32 %v11057, %v11058
    %v11060 = vrot.slane %v11059, 1
    %v11061 = vadd.f32 %v11059, %v11060
    %v11062 = vmul.f32 %v10977, %v10977
    %v11063 = vmul.f32 %v10980, %v10980
    %v11064 = vmul.f32 %v10985, %v10985
    %v11065 = vmul.f32 %v10988, %v10988
    %v11066 = vmul.f32 %v10993, %v10993
    %v11067 = vmul.f32 %v10996, %v10996
    %v11068 = vmul.f32 %v11001, %v11001
    %v11069 = vmul.f32 %v11004, %v11004
    %v11070 = vmul.f32 %v11009, %v11009
    %v11071 = vmul.f32 %v11012, %v11012
    %v11072 = vmul.f32 %v11017, %v11017
    %v11073 = vmul.f32 %v11020, %v11020
    %v11074 = vmul.f32 %v11025, %v11025
    %v11075 = vmul.f32 %v11028, %v11028
    %v11076 = vmul.f32 %v11033, %v11033
    %v11077 = vmul.f32 %v11036, %v11036
    %v11078 = vadd.f32 %v11062, %v11063
    %v11079 = vadd.f32 %v11078, %v11064
    %v11080 = vadd.f32 %v11079, %v11065
    %v11081 = vadd.f32 %v11080, %v11066
    %v11082 = vadd.f32 %v11081, %v11067
    %v11083 = vadd.f32 %v11082, %v11068
    %v11084 = vadd.f32 %v11083, %v11069
    %v11085 = vadd.f32 %v11084, %v11070
    %v11086 = vadd.f32 %v11085, %v11071
    %v11087 = vadd.f32 %v11086, %v11072
    %v11088 = vadd.f32 %v11087, %v11073
    %v11089 = vadd.f32 %v11088, %v11074
    %v11090 = vadd.f32 %v11089, %v11075
    %v11091 = vadd.f32 %v11090, %v11076
    %v11092 = vadd.f32 %v11091, %v11077
    %v11093 = vrot.slane %v11092, 4
    %v11094 = vadd.f32 %v11092, %v11093
    %v11095 = vrot.slane %v11094, 2
    %v11096 = vadd.f32 %v11094, %v11095
    %v11097 = vrot.slane %v11096, 1
    %v11098 = vadd.f32 %v11096, %v11097
    %v11099 = vmul.f32 %v11061, 0.0078125
    %v11100 = vmul.f32 %v11098, 0.0078125
    %v11101 = vmul.f32 %v11099, %v11099
    %v11102 = vsub.f32 %v11100, %v11101
    %v11103 = vsub.f32 %v10977, %v11099
    %v11104 = vsub.f32 %v10980, %v11099
    %v11105 = vsub.f32 %v10985, %v11099
    %v11106 = vsub.f32 %v10988, %v11099
    %v11107 = vsub.f32 %v10993, %v11099
    %v11108 = vsub.f32 %v10996, %v11099
    %v11109 = vsub.f32 %v11001, %v11099
    %v11110 = vsub.f32 %v11004, %v11099
    %v11111 = vsub.f32 %v11009, %v11099
    %v11112 = vsub.f32 %v11012, %v11099
    %v11113 = vsub.f32 %v11017, %v11099
    %v11114 = vsub.f32 %v11020, %v11099
    %v11115 = vsub.f32 %v11025, %v11099
    %v11116 = vsub.f32 %v11028, %v11099
    %v11117 = vsub.f32 %v11033, %v11099
    %v11118 = vsub.f32 %v11036, %v11099
    %v11119 = vadd.f32 %v11102, 1e-05
    %v11120 = vrsqrt.pop %v11119
    %v11121 = vmul.f32 %v11103, %v11120
    %v11122 = vmul.f32 %v11104, %v11120
    %v11123 = vmul.f32 %v11105, %v11120
    %v11124 = vmul.f32 %v11106, %v11120
    %v11125 = vmul.f32 %v11107, %v11120
    %v11126 = vmul.f32 %v11108, %v11120
    %v11127 = vmul.f32 %v11109, %v11120
    %v11128 = vmul.f32 %v11110, %v11120
    %v11129 = vmul.f32 %v11111, %v11120
    %v11130 = vmul.f32 %v11112, %v11120
    %v11131 = vmul.f32 %v11113, %v11120
    %v11132 = vmul.f32 %v11114, %v11120
    %v11133 = vmul.f32 %v11115, %v11120
    %v11134 = vmul.f32 %v11116, %v11120
    %v11135 = vmul.f32 %v11117, %v11120
    %v11136 = vmul.f32 %v11118, %v11120
    %v11138 = vlaneseq
    %v11139 = vshrl.u32 %v11138, 7
    %v11140 = vsub.s32 0, %v11139
    %v11141 = vrot.slane %v11039, %v11140
    %v11143 = vmul.f32 %v11121, %v11141
    %v11144 = vmul.f32 %v11122, %v11141
    %v11145 = vmul.f32 %v11123, %v11141
    %v11146 = vmul.f32 %v11124, %v11141
    %v11147 = vmul.f32 %v11125, %v11141
    %v11148 = vmul.f32 %v11126, %v11141
    %v11149 = vmul.f32 %v11127, %v11141
    %v11150 = vmul.f32 %v11128, %v11141
    %v11151 = vmul.f32 %v11129, %v11141
    %v11152 = vmul.f32 %v11130, %v11141
    %v11153 = vmul.f32 %v11131, %v11141
    %v11154 = vmul.f32 %v11132, %v11141
    %v11155 = vmul.f32 %v11133, %v11141
    %v11156 = vmul.f32 %v11134, %v11141
    %v11157 = vmul.f32 %v11135, %v11141
    %v11158 = vmul.f32 %v11136, %v11141
    %v11160 = vlaneseq
    %v11161 = vshrl.u32 %v11160, 7
    %v11162 = vsub.s32 0, %v11161
    %v11163 = vrot.slane %v11040, %v11162
    %v11165 = vadd.f32 %v11143, %v11163
    %v11166 = vadd.f32 %v11144, %v11163
    %v11167 = vadd.f32 %v11145, %v11163
    %v11168 = vadd.f32 %v11146, %v11163
    %v11169 = vadd.f32 %v11147, %v11163
    %v11170 = vadd.f32 %v11148, %v11163
    %v11171 = vadd.f32 %v11149, %v11163
    %v11172 = vadd.f32 %v11150, %v11163
    %v11173 = vadd.f32 %v11151, %v11163
    %v11174 = vadd.f32 %v11152, %v11163
    %v11175 = vadd.f32 %v11153, %v11163
    %v11176 = vadd.f32 %v11154, %v11163
    %v11177 = vadd.f32 %v11155, %v11163
    %v11178 = vadd.f32 %v11156, %v11163
    %v11179 = vadd.f32 %v11157, %v11163
    %v11180 = vadd.f32 %v11158, %v11163
    %v11181 = vmax.f32 %v11165, 0.0
    %v11182 = vmax.f32 %v11166, 0.0
    %v11183 = vmax.f32 %v11167, 0.0
    %v11184 = vmax.f32 %v11168, 0.0
    %v11185 = vmax.f32 %v11169, 0.0
    %v11186 = vmax.f32 %v11170, 0.0
    %v11187 = vmax.f32 %v11171, 0.0
    %v11188 = vmax.f32 %v11172, 0.0
    %v11189 = vmax.f32 %v11173, 0.0
    %v11190 = vmax.f32 %v11174, 0.0
    %v11191 = vmax.f32 %v11175, 0.0
    %v11192 = vmax.f32 %v11176, 0.0
    %v11193 = vmax.f32 %v11177, 0.0
    %v11194 = vmax.f32 %v11178, 0.0
    %v11195 = vmax.f32 %v11179, 0.0
    %v11196 = vmax.f32 %v11180, 0.0
    %v11197 = vmax.f32 %v11181, %v11182
    %v11198 = vmax.f32 %v11183, %v11184
    %v11199 = vmax.f32 %v11185, %v11186
    %v11200 = vmax.f32 %v11187, %v11188
    %v11201 = vmax.f32 %v11189, %v11190
    %v11202 = vmax.f32 %v11191, %v11192
    %v11203 = vmax.f32 %v11193, %v11194
    %v11204 = vmax.f32 %v11195, %v11196
    %v11213 = vcombine.high %v11197, %v11197
    %v11215 = vunpack.c.l.s4 1983009808
    %v11216 = vunpack.c.0.s8 %v11215
    %v11217 = vlaneseq
    %v11218 = vshrl.u32 %v11217, 7
    %v11219 = vsub.s32 %v11216, %v11218
    %v11220 = vrot.slane %v11197, %v11219
    %v11222 = vunpack.c.l.s4 1983009808
    %v11223 = vunpack.c.0.s8 %v11222
    %v11224 = vlaneseq
    %v11225 = vshrl.u32 %v11224, 7
    %v11226 = vsub.s32 %v11223, %v11225
    %v11227 = vrot.slane %v11213, %v11226
    %v11228 = vcombine.high %v11220, %v11220
    %v11229 = vcombine.high %v11227, %v11227
    %v11230 = vcombine.high %v11198, %v11198
    %v11232 = vunpack.c.l.s4 1983009808
    %v11233 = vunpack.c.0.s8 %v11232
    %v11234 = vlaneseq
    %v11235 = vshrl.u32 %v11234, 7
    %v11236 = vsub.s32 %v11233, %v11235
    %v11237 = vrot.slane %v11198, %v11236
    %v11239 = vunpack.c.l.s4 1983009808
    %v11240 = vunpack.c.0.s8 %v11239
    %v11241 = vlaneseq
    %v11242 = vshrl.u32 %v11241, 7
    %v11243 = vsub.s32 %v11240, %v11242
    %v11244 = vrot.slane %v11230, %v11243
    %v11245 = vcombine.high %v11237, %v11237
    %v11246 = vcombine.high %v11244, %v11244
    %v11247 = vcombine.high %v11199, %v11199
    %v11249 = vunpack.c.l.s4 1983009808
    %v11250 = vunpack.c.0.s8 %v11249
    %v11251 = vlaneseq
    %v11252 = vshrl.u32 %v11251, 7
    %v11253 = vsub.s32 %v11250, %v11252
    %v11254 = vrot.slane %v11199, %v11253
    %v11256 = vunpack.c.l.s4 1983009808
    %v11257 = vunpack.c.0.s8 %v11256
    %v11258 = vlaneseq
    %v11259 = vshrl.u32 %v11258, 7
    %v11260 = vsub.s32 %v11257, %v11259
    %v11261 = vrot.slane %v11247, %v11260
    %v11262 = vcombine.high %v11254, %v11254
    %v11263 = vcombine.high %v11261, %v11261
    %v11264 = vcombine.high %v11200, %v11200
    %v11266 = vunpack.c.l.s4 1983009808
    %v11267 = vunpack.c.0.s8 %v11266
    %v11268 = vlaneseq
    %v11269 = vshrl.u32 %v11268, 7
    %v11270 = vsub.s32 %v11267, %v11269
    %v11271 = vrot.slane %v11200, %v11270
    %v11273 = vunpack.c.l.s4 1983009808
    %v11274 = vunpack.c.0.s8 %v11273
    %v11275 = vlaneseq
    %v11276 = vshrl.u32 %v11275, 7
    %v11277 = vsub.s32 %v11274, %v11276
    %v11278 = vrot.slane %v11264, %v11277
    %v11279 = vcombine.high %v11271, %v11271
    %v11280 = vcombine.high %v11278, %v11278
    %v11281 = vcombine.high %v11201, %v11201
    %v11283 = vunpack.c.l.s4 1983009808
    %v11284 = vunpack.c.0.s8 %v11283
    %v11285 = vlaneseq
    %v11286 = vshrl.u32 %v11285, 7
    %v11287 = vsub.s32 %v11284, %v11286
    %v11288 = vrot.slane %v11201, %v11287
    %v11290 = vunpack.c.l.s4 1983009808
    %v11291 = vunpack.c.0.s8 %v11290
    %v11292 = vlaneseq
    %v11293 = vshrl.u32 %v11292, 7
    %v11294 = vsub.s32 %v11291, %v11293
    %v11295 = vrot.slane %v11281, %v11294
    %v11296 = vcombine.high %v11288, %v11288
    %v11297 = vcombine.high %v11295, %v11295
    %v11298 = vcombine.high %v11202, %v11202
    %v11300 = vunpack.c.l.s4 1983009808
    %v11301 = vunpack.c.0.s8 %v11300
    %v11302 = vlaneseq
    %v11303 = vshrl.u32 %v11302, 7
    %v11304 = vsub.s32 %v11301, %v11303
    %v11305 = vrot.slane %v11202, %v11304
    %v11307 = vunpack.c.l.s4 1983009808
    %v11308 = vunpack.c.0.s8 %v11307
    %v11309 = vlaneseq
    %v11310 = vshrl.u32 %v11309, 7
    %v11311 = vsub.s32 %v11308, %v11310
    %v11312 = vrot.slane %v11298, %v11311
    %v11313 = vcombine.high %v11305, %v11305
    %v11314 = vcombine.high %v11312, %v11312
    %v11315 = vcombine.high %v11203, %v11203
    %v11317 = vunpack.c.l.s4 1983009808
    %v11318 = vunpack.c.0.s8 %v11317
    %v11319 = vlaneseq
    %v11320 = vshrl.u32 %v11319, 7
    %v11321 = vsub.s32 %v11318, %v11320
    %v11322 = vrot.slane %v11203, %v11321
    %v11324 = vunpack.c.l.s4 1983009808
    %v11325 = vunpack.c.0.s8 %v11324
    %v11326 = vlaneseq
    %v11327 = vshrl.u32 %v11326, 7
    %v11328 = vsub.s32 %v11325, %v11327
    %v11329 = vrot.slane %v11315, %v11328
    %v11330 = vcombine.high %v11322, %v11322
    %v11331 = vcombine.high %v11329, %v11329
    %v11332 = vcombine.high %v11204, %v11204
    %v11334 = vunpack.c.l.s4 1983009808
    %v11335 = vunpack.c.0.s8 %v11334
    %v11336 = vlaneseq
    %v11337 = vshrl.u32 %v11336, 7
    %v11338 = vsub.s32 %v11335, %v11337
    %v11339 = vrot.slane %v11204, %v11338
    %v11341 = vunpack.c.l.s4 1983009808
    %v11342 = vunpack.c.0.s8 %v11341
    %v11343 = vlaneseq
    %v11344 = vshrl.u32 %v11343, 7
    %v11345 = vsub.s32 %v11342, %v11344
    %v11346 = vrot.slane %v11332, %v11345
    %v11347 = vcombine.high %v11339, %v11339
    %v11348 = vcombine.high %v11346, %v11346
    %v11381 = vsel %vm4230, %v11220, -inf
    %v11382 = vrot.slane %v11381, 4
    %v11383 = vmax.f32 %v11381, %v11382
    %v11384 = vrot.slane %v11383, 2
    %v11385 = vmax.f32 %v11383, %v11384
    %v11386 = vrot.slane %v11385, 1
    %v11387 = vmax.f32 %v11385, %v11386
    %v11388 = vsel %vm4230, %v11228, -inf
    %v11389 = vrot.slane %v11388, 4
    %v11390 = vmax.f32 %v11388, %v11389
    %v11391 = vrot.slane %v11390, 2
    %v11392 = vmax.f32 %v11390, %v11391
    %v11393 = vrot.slane %v11392, 1
    %v11394 = vmax.f32 %v11392, %v11393
    %v11395 = vsel %vm4230, %v11227, -inf
    %v11396 = vrot.slane %v11395, 4
    %v11397 = vmax.f32 %v11395, %v11396
    %v11398 = vrot.slane %v11397, 2
    %v11399 = vmax.f32 %v11397, %v11398
    %v11400 = vrot.slane %v11399, 1
    %v11401 = vmax.f32 %v11399, %v11400
    %v11402 = vsel %vm4230, %v11229, -inf
    %v11403 = vrot.slane %v11402, 4
    %v11404 = vmax.f32 %v11402, %v11403
    %v11405 = vrot.slane %v11404, 2
    %v11406 = vmax.f32 %v11404, %v11405
    %v11407 = vrot.slane %v11406, 1
    %v11408 = vmax.f32 %v11406, %v11407
    %v11409 = vsel %vm4230, %v11237, -inf
    %v11410 = vrot.slane %v11409, 4
    %v11411 = vmax.f32 %v11409, %v11410
    %v11412 = vrot.slane %v11411, 2
    %v11413 = vmax.f32 %v11411, %v11412
    %v11414 = vrot.slane %v11413, 1
    %v11415 = vmax.f32 %v11413, %v11414
    %v11416 = vsel %vm4230, %v11245, -inf
    %v11417 = vrot.slane %v11416, 4
    %v11418 = vmax.f32 %v11416, %v11417
    %v11419 = vrot.slane %v11418, 2
    %v11420 = vmax.f32 %v11418, %v11419
    %v11421 = vrot.slane %v11420, 1
    %v11422 = vmax.f32 %v11420, %v11421
    %v11423 = vsel %vm4230, %v11244, -inf
    %v11424 = vrot.slane %v11423, 4
    %v11425 = vmax.f32 %v11423, %v11424
    %v11426 = vrot.slane %v11425, 2
    %v11427 = vmax.f32 %v11425, %v11426
    %v11428 = vrot.slane %v11427, 1
    %v11429 = vmax.f32 %v11427, %v11428
    %v11430 = vsel %vm4230, %v11246, -inf
    %v11431 = vrot.slane %v11430, 4
    %v11432 = vmax.f32 %v11430, %v11431
    %v11433 = vrot.slane %v11432, 2
    %v11434 = vmax.f32 %v11432, %v11433
    %v11435 = vrot.slane %v11434, 1
    %v11436 = vmax.f32 %v11434, %v11435
    %v11437 = vsel %vm4230, %v11254, -inf
    %v11438 = vrot.slane %v11437, 4
    %v11439 = vmax.f32 %v11437, %v11438
    %v11440 = vrot.slane %v11439, 2
    %v11441 = vmax.f32 %v11439, %v11440
    %v11442 = vrot.slane %v11441, 1
    %v11443 = vmax.f32 %v11441, %v11442
    %v11444 = vsel %vm4230, %v11262, -inf
    %v11445 = vrot.slane %v11444, 4
    %v11446 = vmax.f32 %v11444, %v11445
    %v11447 = vrot.slane %v11446, 2
    %v11448 = vmax.f32 %v11446, %v11447
    %v11449 = vrot.slane %v11448, 1
    %v11450 = vmax.f32 %v11448, %v11449
    %v11451 = vsel %vm4230, %v11261, -inf
    %v11452 = vrot.slane %v11451, 4
    %v11453 = vmax.f32 %v11451, %v11452
    %v11454 = vrot.slane %v11453, 2
    %v11455 = vmax.f32 %v11453, %v11454
    %v11456 = vrot.slane %v11455, 1
    %v11457 = vmax.f32 %v11455, %v11456
    %v11458 = vsel %vm4230, %v11263, -inf
    %v11459 = vrot.slane %v11458, 4
    %v11460 = vmax.f32 %v11458, %v11459
    %v11461 = vrot.slane %v11460, 2
    %v11462 = vmax.f32 %v11460, %v11461
    %v11463 = vrot.slane %v11462, 1
    %v11464 = vmax.f32 %v11462, %v11463
    %v11465 = vsel %vm4230, %v11271, -inf
    %v11466 = vrot.slane %v11465, 4
    %v11467 = vmax.f32 %v11465, %v11466
    %v11468 = vrot.slane %v11467, 2
    %v11469 = vmax.f32 %v11467, %v11468
    %v11470 = vrot.slane %v11469, 1
    %v11471 = vmax.f32 %v11469, %v11470
    %v11472 = vsel %vm4230, %v11279, -inf
    %v11473 = vrot.slane %v11472, 4
    %v11474 = vmax.f32 %v11472, %v11473
    %v11475 = vrot.slane %v11474, 2
    %v11476 = vmax.f32 %v11474, %v11475
    %v11477 = vrot.slane %v11476, 1
    %v11478 = vmax.f32 %v11476, %v11477
    %v11479 = vsel %vm4230, %v11278, -inf
    %v11480 = vrot.slane %v11479, 4
    %v11481 = vmax.f32 %v11479, %v11480
    %v11482 = vrot.slane %v11481, 2
    %v11483 = vmax.f32 %v11481, %v11482
    %v11484 = vrot.slane %v11483, 1
    %v11485 = vmax.f32 %v11483, %v11484
    %v11486 = vsel %vm4230, %v11280, -inf
    %v11487 = vrot.slane %v11486, 4
    %v11488 = vmax.f32 %v11486, %v11487
    %v11489 = vrot.slane %v11488, 2
    %v11490 = vmax.f32 %v11488, %v11489
    %v11491 = vrot.slane %v11490, 1
    %v11492 = vmax.f32 %v11490, %v11491
    %v11493 = vsel %vm4230, %v11288, -inf
    %v11494 = vrot.slane %v11493, 4
    %v11495 = vmax.f32 %v11493, %v11494
    %v11496 = vrot.slane %v11495, 2
    %v11497 = vmax.f32 %v11495, %v11496
    %v11498 = vrot.slane %v11497, 1
    %v11499 = vmax.f32 %v11497, %v11498
    %v11500 = vsel %vm4230, %v11296, -inf
    %v11501 = vrot.slane %v11500, 4
    %v11502 = vmax.f32 %v11500, %v11501
    %v11503 = vrot.slane %v11502, 2
    %v11504 = vmax.f32 %v11502, %v11503
    %v11505 = vrot.slane %v11504, 1
    %v11506 = vmax.f32 %v11504, %v11505
    %v11507 = vsel %vm4230, %v11295, -inf
    %v11508 = vrot.slane %v11507, 4
    %v11509 = vmax.f32 %v11507, %v11508
    %v11510 = vrot.slane %v11509, 2
    %v11511 = vmax.f32 %v11509, %v11510
    %v11512 = vrot.slane %v11511, 1
    %v11513 = vmax.f32 %v11511, %v11512
    %v11514 = vsel %vm4230, %v11297, -inf
    %v11515 = vrot.slane %v11514, 4
    %v11516 = vmax.f32 %v11514, %v11515
    %v11517 = vrot.slane %v11516, 2
    %v11518 = vmax.f32 %v11516, %v11517
    %v11519 = vrot.slane %v11518, 1
    %v11520 = vmax.f32 %v11518, %v11519
    %v11521 = vsel %vm4230, %v11305, -inf
    %v11522 = vrot.slane %v11521, 4
    %v11523 = vmax.f32 %v11521, %v11522
    %v11524 = vrot.slane %v11523, 2
    %v11525 = vmax.f32 %v11523, %v11524
    %v11526 = vrot.slane %v11525, 1
    %v11527 = vmax.f32 %v11525, %v11526
    %v11528 = vsel %vm4230, %v11313, -inf
    %v11529 = vrot.slane %v11528, 4
    %v11530 = vmax.f32 %v11528, %v11529
    %v11531 = vrot.slane %v11530, 2
    %v11532 = vmax.f32 %v11530, %v11531
    %v11533 = vrot.slane %v11532, 1
    %v11534 = vmax.f32 %v11532, %v11533
    %v11535 = vsel %vm4230, %v11312, -inf
    %v11536 = vrot.slane %v11535, 4
    %v11537 = vmax.f32 %v11535, %v11536
    %v11538 = vrot.slane %v11537, 2
    %v11539 = vmax.f32 %v11537, %v11538
    %v11540 = vrot.slane %v11539, 1
    %v11541 = vmax.f32 %v11539, %v11540
    %v11542 = vsel %vm4230, %v11314, -inf
    %v11543 = vrot.slane %v11542, 4
    %v11544 = vmax.f32 %v11542, %v11543
    %v11545 = vrot.slane %v11544, 2
    %v11546 = vmax.f32 %v11544, %v11545
    %v11547 = vrot.slane %v11546, 1
    %v11548 = vmax.f32 %v11546, %v11547
    %v11549 = vsel %vm4230, %v11322, -inf
    %v11550 = vrot.slane %v11549, 4
    %v11551 = vmax.f32 %v11549, %v11550
    %v11552 = vrot.slane %v11551, 2
    %v11553 = vmax.f32 %v11551, %v11552
    %v11554 = vrot.slane %v11553, 1
    %v11555 = vmax.f32 %v11553, %v11554
    %v11556 = vsel %vm4230, %v11330, -inf
    %v11557 = vrot.slane %v11556, 4
    %v11558 = vmax.f32 %v11556, %v11557
    %v11559 = vrot.slane %v11558, 2
    %v11560 = vmax.f32 %v11558, %v11559
    %v11561 = vrot.slane %v11560, 1
    %v11562 = vmax.f32 %v11560, %v11561
    %v11563 = vsel %vm4230, %v11329, -inf
    %v11564 = vrot.slane %v11563, 4
    %v11565 = vmax.f32 %v11563, %v11564
    %v11566 = vrot.slane %v11565, 2
    %v11567 = vmax.f32 %v11565, %v11566
    %v11568 = vrot.slane %v11567, 1
    %v11569 = vmax.f32 %v11567, %v11568
    %v11570 = vsel %vm4230, %v11331, -inf
    %v11571 = vrot.slane %v11570, 4
    %v11572 = vmax.f32 %v11570, %v11571
    %v11573 = vrot.slane %v11572, 2
    %v11574 = vmax.f32 %v11572, %v11573
    %v11575 = vrot.slane %v11574, 1
    %v11576 = vmax.f32 %v11574, %v11575
    %v11577 = vsel %vm4230, %v11339, -inf
    %v11578 = vrot.slane %v11577, 4
    %v11579 = vmax.f32 %v11577, %v11578
    %v11580 = vrot.slane %v11579, 2
    %v11581 = vmax.f32 %v11579, %v11580
    %v11582 = vrot.slane %v11581, 1
    %v11583 = vmax.f32 %v11581, %v11582
    %v11584 = vsel %vm4230, %v11347, -inf
    %v11585 = vrot.slane %v11584, 4
    %v11586 = vmax.f32 %v11584, %v11585
    %v11587 = vrot.slane %v11586, 2
    %v11588 = vmax.f32 %v11586, %v11587
    %v11589 = vrot.slane %v11588, 1
    %v11590 = vmax.f32 %v11588, %v11589
    %v11591 = vsel %vm4230, %v11346, -inf
    %v11592 = vrot.slane %v11591, 4
    %v11593 = vmax.f32 %v11591, %v11592
    %v11594 = vrot.slane %v11593, 2
    %v11595 = vmax.f32 %v11593, %v11594
    %v11596 = vrot.slane %v11595, 1
    %v11597 = vmax.f32 %v11595, %v11596
    %v11598 = vsel %vm4230, %v11348, -inf
    %v11599 = vrot.slane %v11598, 4
    %v11600 = vmax.f32 %v11598, %v11599
    %v11601 = vrot.slane %v11600, 2
    %v11602 = vmax.f32 %v11600, %v11601
    %v11603 = vrot.slane %v11602, 1
    %v11604 = vmax.f32 %v11602, %v11603
    %v11637 = vsel %vm6791, %v11394, %v11387
    %v11638 = vsel %vm6793, %v11401, %v11637
    %v11639 = vsel %vm6795, %v11408, %v11638
    %v11640 = vsel %vm6791, %v11422, %v11415
    %v11641 = vsel %vm6793, %v11429, %v11640
    %v11642 = vsel %vm6795, %v11436, %v11641
    %v11643 = vsel %vm6791, %v11450, %v11443
    %v11644 = vsel %vm6793, %v11457, %v11643
    %v11645 = vsel %vm6795, %v11464, %v11644
    %v11646 = vsel %vm6791, %v11478, %v11471
    %v11647 = vsel %vm6793, %v11485, %v11646
    %v11648 = vsel %vm6795, %v11492, %v11647
    %v11649 = vsel %vm6791, %v11506, %v11499
    %v11650 = vsel %vm6793, %v11513, %v11649
    %v11651 = vsel %vm6795, %v11520, %v11650
    %v11652 = vsel %vm6791, %v11534, %v11527
    %v11653 = vsel %vm6793, %v11541, %v11652
    %v11654 = vsel %vm6795, %v11548, %v11653
    %v11655 = vsel %vm6791, %v11562, %v11555
    %v11656 = vsel %vm6793, %v11569, %v11655
    %v11657 = vsel %vm6795, %v11576, %v11656
    %v11658 = vsel %vm6791, %v11590, %v11583
    %v11659 = vsel %vm6793, %v11597, %v11658
    %v11660 = vsel %vm6795, %v11604, %v11659
    %vm11669 = vcmask 1040384
    %v11670 = vsel %vm11669, %v11639, 0.0
    %v11671 = vrot.slane %v11651, 7
    %v11672 = vsel %vm6791, %v11671, %v11670
    %v11673 = vrot.slane %v11639, 1
    %v11674 = vsel %vm11669, %v11673, 0.0
    %v11675 = vsel %vm6791, %v11651, %v11674
    %v11676 = vrot.slane %v11639, 2
    %v11677 = vsel %vm11669, %v11676, 0.0
    %v11678 = vrot.slane %v11651, 1
    %v11679 = vsel %vm6791, %v11678, %v11677
    %v11680 = vrot.slane %v11639, 3
    %v11681 = vsel %vm11669, %v11680, 0.0
    %v11682 = vrot.slane %v11651, 2
    %v11683 = vsel %vm6791, %v11682, %v11681
    %v11684 = vsel %vm11669, %v11642, 0.0
    %v11685 = vrot.slane %v11654, 7
    %v11686 = vsel %vm6791, %v11685, %v11684
    %v11687 = vrot.slane %v11642, 1
    %v11688 = vsel %vm11669, %v11687, 0.0
    %v11689 = vsel %vm6791, %v11654, %v11688
    %v11690 = vrot.slane %v11642, 2
    %v11691 = vsel %vm11669, %v11690, 0.0
    %v11692 = vrot.slane %v11654, 1
    %v11693 = vsel %vm6791, %v11692, %v11691
    %v11694 = vrot.slane %v11642, 3
    %v11695 = vsel %vm11669, %v11694, 0.0
    %v11696 = vrot.slane %v11654, 2
    %v11697 = vsel %vm6791, %v11696, %v11695
    %v11698 = vsel %vm11669, %v11645, 0.0
    %v11699 = vrot.slane %v11657, 7
    %v11700 = vsel %vm6791, %v11699, %v11698
    %v11701 = vrot.slane %v11645, 1
    %v11702 = vsel %vm11669, %v11701, 0.0
    %v11703 = vsel %vm6791, %v11657, %v11702
    %v11704 = vrot.slane %v11645, 2
    %v11705 = vsel %vm11669, %v11704, 0.0
    %v11706 = vrot.slane %v11657, 1
    %v11707 = vsel %vm6791, %v11706, %v11705
    %v11708 = vrot.slane %v11645, 3
    %v11709 = vsel %vm11669, %v11708, 0.0
    %v11710 = vrot.slane %v11657, 2
    %v11711 = vsel %vm6791, %v11710, %v11709
    %v11712 = vsel %vm11669, %v11648, 0.0
    %v11713 = vrot.slane %v11660, 7
    %v11714 = vsel %vm6791, %v11713, %v11712
    %v11715 = vrot.slane %v11648, 1
    %v11716 = vsel %vm11669, %v11715, 0.0
    %v11717 = vsel %vm6791, %v11660, %v11716
    %v11718 = vrot.slane %v11648, 2
    %v11719 = vsel %vm11669, %v11718, 0.0
    %v11720 = vrot.slane %v11660, 1
    %v11721 = vsel %vm6791, %v11720, %v11719
    %v11722 = vrot.slane %v11648, 3
    %v11723 = vsel %vm11669, %v11722, 0.0
    %v11724 = vrot.slane %v11660, 2
    %v11725 = vsel %vm6791, %v11724, %v11723
    %v11726 = vpack.c.bf16 %v11672, %v11672
    %v11727 = vpack.c.bf16 %v11675, %v11675
    %v11728 = vpack.c.bf16 %v11679, %v11679
    %v11729 = vpack.c.bf16 %v11683, %v11683
    %v11730 = vpack.c.bf16 %v11686, %v11686
    %v11731 = vpack.c.bf16 %v11689, %v11689
    %v11732 = vpack.c.bf16 %v11693, %v11693
    %v11733 = vpack.c.bf16 %v11697, %v11697
    %v11734 = vpack.c.bf16 %v11700, %v11700
    %v11735 = vpack.c.bf16 %v11703, %v11703
    %v11736 = vpack.c.bf16 %v11707, %v11707
    %v11737 = vpack.c.bf16 %v11711, %v11711
    %v11738 = vpack.c.bf16 %v11714, %v11714
    %v11739 = vpack.c.bf16 %v11717, %v11717
    %v11740 = vpack.c.bf16 %v11721, %v11721
    %v11741 = vpack.c.bf16 %v11725, %v11725
    %v11742 = vld [vmem:[%s7] sm:$0xff]
    %v11743 = vld [vmem:[%s7 + $0x8] sm:$0xff]
    %v11744 = vld [vmem:[%s7 + $0x10] sm:$0xff]
    %v11745 = vld [vmem:[%s7 + $0x18] sm:$0xff]
    %v11746 = vld [vmem:[%s7 + $0x20] sm:$0xff]
    %v11747 = vld [vmem:[%s7 + $0x28] sm:$0xff]
    %v11748 = vld [vmem:[%s7 + $0x30] sm:$0xff]
    %v11749 = vld [vmem:[%s7 + $0x38] sm:$0xff]
    %v11750 = vld [vmem:[%s7 + $0x40] sm:$0xff]
    %v11751 = vld [vmem:[%s7 + $0x48] sm:$0xff]
    %v11752 = vld [vmem:[%s7 + $0x50] sm:$0xff]
    %v11753 = vld [vmem:[%s7 + $0x58] sm:$0xff]
    %v11754 = vld [vmem:[%s7 + $0x60] sm:$0xff]
    %v11755 = vld [vmem:[%s7 + $0x68] sm:$0xff]
    %v11756 = vld [vmem:[%s7 + $0x70] sm:$0xff]
    %v11757 = vld [vmem:[%s7 + $0x78] sm:$0xff]
    %v11758 = vld [vmem:[%s7 + $0x80] sm:$0xff]
    %v11759 = vld [vmem:[%s7 + $0x88] sm:$0xff]
    %v11760 = vld [vmem:[%s7 + $0x90] sm:$0xff]
    %v11761 = vld [vmem:[%s7 + $0x98] sm:$0xff]
    %v11762 = vld [vmem:[%s7 + $0xa0] sm:$0xff]
    %v11763 = vld [vmem:[%s7 + $0xa8] sm:$0xff]
    %v11764 = vld [vmem:[%s7 + $0xb0] sm:$0xff]
    %v11765 = vld [vmem:[%s7 + $0xb8] sm:$0xff]
    %v11766 = vld [vmem:[%s7 + $0xc0] sm:$0xff]
    %v11767 = vld [vmem:[%s7 + $0xc8] sm:$0xff]
    %v11768 = vld [vmem:[%s7 + $0xd0] sm:$0xff]
    %v11769 = vld [vmem:[%s7 + $0xd8] sm:$0xff]
    %v11770 = vld [vmem:[%s7 + $0xe0] sm:$0xff]
    %v11771 = vld [vmem:[%s7 + $0xe8] sm:$0xff]
    %v11772 = vld [vmem:[%s7 + $0xf0] sm:$0xff]
    %v11773 = vld [vmem:[%s7 + $0xf8] sm:$0xff]
    %v11774 = vld [vmem:[%s7 + $0x100] sm:$0xff]
    %v11775 = vld [vmem:[%s7 + $0x108] sm:$0xff]
    %v11776 = vld [vmem:[%s7 + $0x110] sm:$0xff]
    %v11777 = vld [vmem:[%s7 + $0x118] sm:$0xff]
    %v11778 = vld [vmem:[%s7 + $0x120] sm:$0xff]
    %v11779 = vld [vmem:[%s7 + $0x128] sm:$0xff]
    %v11780 = vld [vmem:[%s7 + $0x130] sm:$0xff]
    %v11781 = vld [vmem:[%s7 + $0x138] sm:$0xff]
    %v11782 = vld [vmem:[%s7 + $0x140] sm:$0xff]
    %v11783 = vld [vmem:[%s7 + $0x148] sm:$0xff]
    %v11784 = vld [vmem:[%s7 + $0x150] sm:$0xff]
    %v11785 = vld [vmem:[%s7 + $0x158] sm:$0xff]
    %v11786 = vld [vmem:[%s7 + $0x160] sm:$0xff]
    %v11787 = vld [vmem:[%s7 + $0x168] sm:$0xff]
    %v11788 = vld [vmem:[%s7 + $0x170] sm:$0xff]
    %v11789 = vld [vmem:[%s7 + $0x178] sm:$0xff]
    %v11790 = vld [vmem:[%s7 + $0x180] sm:$0xff]
    %v11791 = vld [vmem:[%s7 + $0x188] sm:$0xff]
    %v11792 = vld [vmem:[%s7 + $0x190] sm:$0xff]
    %v11793 = vld [vmem:[%s7 + $0x198] sm:$0xff]
    %v11794 = vld [vmem:[%s7 + $0x1a0] sm:$0xff]
    %v11795 = vld [vmem:[%s7 + $0x1a8] sm:$0xff]
    %v11796 = vld [vmem:[%s7 + $0x1b0] sm:$0xff]
    %v11797 = vld [vmem:[%s7 + $0x1b8] sm:$0xff]
    %v11798 = vld [vmem:[%s7 + $0x1c0] sm:$0xff]
    %v11799 = vld [vmem:[%s7 + $0x1c8] sm:$0xff]
    %v11800 = vld [vmem:[%s7 + $0x1d0] sm:$0xff]
    %v11801 = vld [vmem:[%s7 + $0x1d8] sm:$0xff]
    %v11802 = vld [vmem:[%s7 + $0x1e0] sm:$0xff]
    %v11803 = vld [vmem:[%s7 + $0x1e8] sm:$0xff]
    %v11804 = vld [vmem:[%s7 + $0x1f0] sm:$0xff]
    %v11805 = vld [vmem:[%s7 + $0x1f8] sm:$0xff]
    %v11806 = vld [vmem:[%s7 + $0x200] sm:$0xff]
    %v11807 = vld [vmem:[%s7 + $0x208] sm:$0xff]
    %v11808 = vld [vmem:[%s7 + $0x210] sm:$0xff]
    %v11809 = vld [vmem:[%s7 + $0x218] sm:$0xff]
    %v11810 = vld [vmem:[%s7 + $0x220] sm:$0xff]
    %v11811 = vld [vmem:[%s7 + $0x228] sm:$0xff]
    %v11812 = vld [vmem:[%s7 + $0x230] sm:$0xff]
    %v11813 = vld [vmem:[%s7 + $0x238] sm:$0xff]
    %v11814 = vld [vmem:[%s7 + $0x240] sm:$0xff]
    %v11815 = vld [vmem:[%s7 + $0x248] sm:$0xff]
    %v11816 = vld [vmem:[%s7 + $0x250] sm:$0xff]
    %v11817 = vld [vmem:[%s7 + $0x258] sm:$0xff]
    %v11818 = vld [vmem:[%s7 + $0x260] sm:$0xff]
    %v11819 = vld [vmem:[%s7 + $0x268] sm:$0xff]
    %v11820 = vld [vmem:[%s7 + $0x270] sm:$0xff]
    %v11821 = vld [vmem:[%s7 + $0x278] sm:$0xff]
    %v11822 = vld [vmem:[%s7 + $0x280] sm:$0xff]
    %v11823 = vld [vmem:[%s7 + $0x288] sm:$0xff]
    %v11824 = vld [vmem:[%s7 + $0x290] sm:$0xff]
    %v11825 = vld [vmem:[%s7 + $0x298] sm:$0xff]
    %v11826 = vld [vmem:[%s7 + $0x2a0] sm:$0xff]
    %v11827 = vld [vmem:[%s7 + $0x2a8] sm:$0xff]
    %v11828 = vld [vmem:[%s7 + $0x2b0] sm:$0xff]
    %v11829 = vld [vmem:[%s7 + $0x2b8] sm:$0xff]
    %v11830 = vld [vmem:[%s7 + $0x2c0] sm:$0xff]
    %v11831 = vld [vmem:[%s7 + $0x2c8] sm:$0xff]
    %v11832 = vld [vmem:[%s7 + $0x2d0] sm:$0xff]
    %v11833 = vld [vmem:[%s7 + $0x2d8] sm:$0xff]
    %v11834 = vld [vmem:[%s7 + $0x2e0] sm:$0xff]
    %v11835 = vld [vmem:[%s7 + $0x2e8] sm:$0xff]
    %v11836 = vld [vmem:[%s7 + $0x2f0] sm:$0xff]
    %v11837 = vld [vmem:[%s7 + $0x2f8] sm:$0xff]
    %v11838 = vld [vmem:[%s7 + $0x300] sm:$0xff]
    %v11839 = vld [vmem:[%s7 + $0x308] sm:$0xff]
    %v11840 = vld [vmem:[%s7 + $0x310] sm:$0xff]
    %v11841 = vld [vmem:[%s7 + $0x318] sm:$0xff]
    %v11842 = vld [vmem:[%s7 + $0x320] sm:$0xff]
    %v11843 = vld [vmem:[%s7 + $0x328] sm:$0xff]
    %v11844 = vld [vmem:[%s7 + $0x330] sm:$0xff]
    %v11845 = vld [vmem:[%s7 + $0x338] sm:$0xff]
    %v11846 = vld [vmem:[%s7 + $0x340] sm:$0xff]
    %v11847 = vld [vmem:[%s7 + $0x348] sm:$0xff]
    %v11848 = vld [vmem:[%s7 + $0x350] sm:$0xff]
    %v11849 = vld [vmem:[%s7 + $0x358] sm:$0xff]
    %v11850 = vld [vmem:[%s7 + $0x360] sm:$0xff]
    %v11851 = vld [vmem:[%s7 + $0x368] sm:$0xff]
    %v11852 = vld [vmem:[%s7 + $0x370] sm:$0xff]
    %v11853 = vld [vmem:[%s7 + $0x378] sm:$0xff]
    %v11854 = vld [vmem:[%s7 + $0x380] sm:$0xff]
    %v11855 = vld [vmem:[%s7 + $0x388] sm:$0xff]
    %v11856 = vld [vmem:[%s7 + $0x390] sm:$0xff]
    %v11857 = vld [vmem:[%s7 + $0x398] sm:$0xff]
    %v11858 = vld [vmem:[%s7 + $0x3a0] sm:$0xff]
    %v11859 = vld [vmem:[%s7 + $0x3a8] sm:$0xff]
    %v11860 = vld [vmem:[%s7 + $0x3b0] sm:$0xff]
    %v11861 = vld [vmem:[%s7 + $0x3b8] sm:$0xff]
    %v11862 = vld [vmem:[%s7 + $0x3c0] sm:$0xff]
    %v11863 = vld [vmem:[%s7 + $0x3c8] sm:$0xff]
    %v11864 = vld [vmem:[%s7 + $0x3d0] sm:$0xff]
    %v11865 = vld [vmem:[%s7 + $0x3d8] sm:$0xff]
    %v11866 = vld [vmem:[%s7 + $0x3e0] sm:$0xff]
    %v11867 = vld [vmem:[%s7 + $0x3e8] sm:$0xff]
    %v11868 = vld [vmem:[%s7 + $0x3f0] sm:$0xff]
    %v11869 = vld [vmem:[%s7 + $0x3f8] sm:$0xff]
    %v11870 = vld [vmem:[%s7 + $0x400] sm:$0xff]
    %v11871 = vld [vmem:[%s7 + $0x408] sm:$0xff]
    %v11872 = vld [vmem:[%s7 + $0x410] sm:$0xff]
    %v11873 = vld [vmem:[%s7 + $0x418] sm:$0xff]
    %v11874 = vld [vmem:[%s7 + $0x420] sm:$0xff]
    %v11875 = vld [vmem:[%s7 + $0x428] sm:$0xff]
    %v11876 = vld [vmem:[%s7 + $0x430] sm:$0xff]
    %v11877 = vld [vmem:[%s7 + $0x438] sm:$0xff]
    %v11878 = vld [vmem:[%s7 + $0x440] sm:$0xff]
    %v11879 = vld [vmem:[%s7 + $0x448] sm:$0xff]
    %v11880 = vld [vmem:[%s7 + $0x450] sm:$0xff]
    %v11881 = vld [vmem:[%s7 + $0x458] sm:$0xff]
    %v11882 = vld [vmem:[%s7 + $0x460] sm:$0xff]
    %v11883 = vld [vmem:[%s7 + $0x468] sm:$0xff]
    %v11884 = vld [vmem:[%s7 + $0x470] sm:$0xff]
    %v11885 = vld [vmem:[%s7 + $0x478] sm:$0xff]
    %v11886 = vld [vmem:[%s7 + $0x480] sm:$0xff]
    %v11887 = vld [vmem:[%s7 + $0x488] sm:$0xff]
    %v11888 = vld [vmem:[%s7 + $0x490] sm:$0xff]
    %v11889 = vld [vmem:[%s7 + $0x498] sm:$0xff]
    %v11890 = vld [vmem:[%s7 + $0x4a0] sm:$0xff]
    %v11891 = vld [vmem:[%s7 + $0x4a8] sm:$0xff]
    %v11892 = vld [vmem:[%s7 + $0x4b0] sm:$0xff]
    %v11893 = vld [vmem:[%s7 + $0x4b8] sm:$0xff]
    %v11894 = vld [vmem:[%s7 + $0x4c0] sm:$0xff]
    %v11895 = vld [vmem:[%s7 + $0x4c8] sm:$0xff]
    %v11896 = vld [vmem:[%s7 + $0x4d0] sm:$0xff]
    %v11897 = vld [vmem:[%s7 + $0x4d8] sm:$0xff]
    %v11898 = vld [vmem:[%s7 + $0x4e0] sm:$0xff]
    %v11899 = vld [vmem:[%s7 + $0x4e8] sm:$0xff]
    %v11900 = vld [vmem:[%s7 + $0x4f0] sm:$0xff]
    %v11901 = vld [vmem:[%s7 + $0x4f8] sm:$0xff]
    %v11902 = vld [vmem:[%s7 + $0x500] sm:$0xff]
    %v11903 = vld [vmem:[%s7 + $0x508] sm:$0xff]
    %v11904 = vld [vmem:[%s7 + $0x510] sm:$0xff]
    %v11905 = vld [vmem:[%s7 + $0x518] sm:$0xff]
    %v11906 = vld [vmem:[%s7 + $0x520] sm:$0xff]
    %v11907 = vld [vmem:[%s7 + $0x528] sm:$0xff]
    %v11908 = vld [vmem:[%s7 + $0x530] sm:$0xff]
    %v11909 = vld [vmem:[%s7 + $0x538] sm:$0xff]
    %v11910 = vld [vmem:[%s7 + $0x540] sm:$0xff]
    %v11911 = vld [vmem:[%s7 + $0x548] sm:$0xff]
    %v11912 = vld [vmem:[%s7 + $0x550] sm:$0xff]
    %v11913 = vld [vmem:[%s7 + $0x558] sm:$0xff]
    %v11914 = vld [vmem:[%s7 + $0x560] sm:$0xff]
    %v11915 = vld [vmem:[%s7 + $0x568] sm:$0xff]
    %v11916 = vld [vmem:[%s7 + $0x570] sm:$0xff]
    %v11917 = vld [vmem:[%s7 + $0x578] sm:$0xff]
    %v11918 = vld [vmem:[%s7 + $0x580] sm:$0xff]
    %v11919 = vld [vmem:[%s7 + $0x588] sm:$0xff]
    %v11920 = vld [vmem:[%s7 + $0x590] sm:$0xff]
    %v11921 = vld [vmem:[%s7 + $0x598] sm:$0xff]
    %v11922 = vld [vmem:[%s7 + $0x5a0] sm:$0xff]
    %v11923 = vld [vmem:[%s7 + $0x5a8] sm:$0xff]
    %v11924 = vld [vmem:[%s7 + $0x5b0] sm:$0xff]
    %v11925 = vld [vmem:[%s7 + $0x5b8] sm:$0xff]
    %v11926 = vld [vmem:[%s7 + $0x5c0] sm:$0xff]
    %v11927 = vld [vmem:[%s7 + $0x5c8] sm:$0xff]
    %v11928 = vld [vmem:[%s7 + $0x5d0] sm:$0xff]
    %v11929 = vld [vmem:[%s7 + $0x5d8] sm:$0xff]
    %v11930 = vld [vmem:[%s7 + $0x5e0] sm:$0xff]
    %v11931 = vld [vmem:[%s7 + $0x5e8] sm:$0xff]
    %v11932 = vld [vmem:[%s7 + $0x5f0] sm:$0xff]
    %v11933 = vld [vmem:[%s7 + $0x5f8] sm:$0xff]
    %v11934 = vld [vmem:[%s7 + $0x600] sm:$0xff]
    %v11935 = vld [vmem:[%s7 + $0x608] sm:$0xff]
    %v11936 = vld [vmem:[%s7 + $0x610] sm:$0xff]
    %v11937 = vld [vmem:[%s7 + $0x618] sm:$0xff]
    %v11938 = vld [vmem:[%s7 + $0x620] sm:$0xff]
    %v11939 = vld [vmem:[%s7 + $0x628] sm:$0xff]
    %v11940 = vld [vmem:[%s7 + $0x630] sm:$0xff]
    %v11941 = vld [vmem:[%s7 + $0x638] sm:$0xff]
    %v11942 = vld [vmem:[%s7 + $0x640] sm:$0xff]
    %v11943 = vld [vmem:[%s7 + $0x648] sm:$0xff]
    %v11944 = vld [vmem:[%s7 + $0x650] sm:$0xff]
    %v11945 = vld [vmem:[%s7 + $0x658] sm:$0xff]
    %v11946 = vld [vmem:[%s7 + $0x660] sm:$0xff]
    %v11947 = vld [vmem:[%s7 + $0x668] sm:$0xff]
    %v11948 = vld [vmem:[%s7 + $0x670] sm:$0xff]
    %v11949 = vld [vmem:[%s7 + $0x678] sm:$0xff]
    %v11950 = vld [vmem:[%s7 + $0x680] sm:$0xff]
    %v11951 = vld [vmem:[%s7 + $0x688] sm:$0xff]
    %v11952 = vld [vmem:[%s7 + $0x690] sm:$0xff]
    %v11953 = vld [vmem:[%s7 + $0x698] sm:$0xff]
    %v11954 = vld [vmem:[%s7 + $0x6a0] sm:$0xff]
    %v11955 = vld [vmem:[%s7 + $0x6a8] sm:$0xff]
    %v11956 = vld [vmem:[%s7 + $0x6b0] sm:$0xff]
    %v11957 = vld [vmem:[%s7 + $0x6b8] sm:$0xff]
    %v11958 = vld [vmem:[%s7 + $0x6c0] sm:$0xff]
    %v11959 = vld [vmem:[%s7 + $0x6c8] sm:$0xff]
    %v11960 = vld [vmem:[%s7 + $0x6d0] sm:$0xff]
    %v11961 = vld [vmem:[%s7 + $0x6d8] sm:$0xff]
    %v11962 = vld [vmem:[%s7 + $0x6e0] sm:$0xff]
    %v11963 = vld [vmem:[%s7 + $0x6e8] sm:$0xff]
    %v11964 = vld [vmem:[%s7 + $0x6f0] sm:$0xff]
    %v11965 = vld [vmem:[%s7 + $0x6f8] sm:$0xff]
    %v11966 = vld [vmem:[%s7 + $0x700] sm:$0xff]
    %v11967 = vld [vmem:[%s7 + $0x708] sm:$0xff]
    %v11968 = vld [vmem:[%s7 + $0x710] sm:$0xff]
    %v11969 = vld [vmem:[%s7 + $0x718] sm:$0xff]
    %v11970 = vld [vmem:[%s7 + $0x720] sm:$0xff]
    %v11971 = vld [vmem:[%s7 + $0x728] sm:$0xff]
    %v11972 = vld [vmem:[%s7 + $0x730] sm:$0xff]
    %v11973 = vld [vmem:[%s7 + $0x738] sm:$0xff]
    %v11974 = vld [vmem:[%s7 + $0x740] sm:$0xff]
    %v11975 = vld [vmem:[%s7 + $0x748] sm:$0xff]
    %v11976 = vld [vmem:[%s7 + $0x750] sm:$0xff]
    %v11977 = vld [vmem:[%s7 + $0x758] sm:$0xff]
    %v11978 = vld [vmem:[%s7 + $0x760] sm:$0xff]
    %v11979 = vld [vmem:[%s7 + $0x768] sm:$0xff]
    %v11980 = vld [vmem:[%s7 + $0x770] sm:$0xff]
    %v11981 = vld [vmem:[%s7 + $0x778] sm:$0xff]
    %v11982 = vld [vmem:[%s7 + $0x780] sm:$0xff]
    %v11983 = vld [vmem:[%s7 + $0x788] sm:$0xff]
    %v11984 = vld [vmem:[%s7 + $0x790] sm:$0xff]
    %v11985 = vld [vmem:[%s7 + $0x798] sm:$0xff]
    %v11986 = vld [vmem:[%s7 + $0x7a0] sm:$0xff]
    %v11987 = vld [vmem:[%s7 + $0x7a8] sm:$0xff]
    %v11988 = vld [vmem:[%s7 + $0x7b0] sm:$0xff]
    %v11989 = vld [vmem:[%s7 + $0x7b8] sm:$0xff]
    %v11990 = vld [vmem:[%s7 + $0x7c0] sm:$0xff]
    %v11991 = vld [vmem:[%s7 + $0x7c8] sm:$0xff]
    %v11992 = vld [vmem:[%s7 + $0x7d0] sm:$0xff]
    %v11993 = vld [vmem:[%s7 + $0x7d8] sm:$0xff]
    %v11994 = vld [vmem:[%s7 + $0x7e0] sm:$0xff]
    %v11995 = vld [vmem:[%s7 + $0x7e8] sm:$0xff]
    %v11996 = vld [vmem:[%s7 + $0x7f0] sm:$0xff]
    %v11997 = vld [vmem:[%s7 + $0x7f8] sm:$0xff]
    %v11998 = vld [vmem:[%s8] sm:$0x3]
    %v12000 = vlaneseq
    %v12001 = vshrl.u32 %v12000, 7
    %v12002 = vsub.s32 0, %v12001
    %v12003 = vrot.slane %v11998, %v12002
    %v12004 = vlaneseq
    %v12005 = vshrl.u32 %v12004, 7
    %v12006 = vsub.s32 1, %v12005
    %v12007 = vrot.slane %v11998, %v12006
    %v12266 = vunpack.c.l.b16 %v11742
    %v12267 = vunpack.c.h.b16 %v11742
    %v12268 = vunpack.c.l.b16 %v11743
    %v12269 = vunpack.c.h.b16 %v11743
    %v12270 = vunpack.c.l.b16 %v11744
    %v12271 = vunpack.c.h.b16 %v11744
    %v12272 = vunpack.c.l.b16 %v11745
    %v12273 = vunpack.c.h.b16 %v11745
    %v12274 = vunpack.c.l.b16 %v11746
    %v12275 = vunpack.c.h.b16 %v11746
    %v12276 = vunpack.c.l.b16 %v11747
    %v12277 = vunpack.c.h.b16 %v11747
    %v12278 = vunpack.c.l.b16 %v11748
    %v12279 = vunpack.c.h.b16 %v11748
    %v12280 = vunpack.c.l.b16 %v11749
    %v12281 = vunpack.c.h.b16 %v11749
    %v12282 = vunpack.c.l.b16 %v11750
    %v12283 = vunpack.c.h.b16 %v11750
    %v12284 = vunpack.c.l.b16 %v11751
    %v12285 = vunpack.c.h.b16 %v11751
    %v12286 = vunpack.c.l.b16 %v11752
    %v12287 = vunpack.c.h.b16 %v11752
    %v12288 = vunpack.c.l.b16 %v11753
    %v12289 = vunpack.c.h.b16 %v11753
    %v12290 = vunpack.c.l.b16 %v11754
    %v12291 = vunpack.c.h.b16 %v11754
    %v12292 = vunpack.c.l.b16 %v11755
    %v12293 = vunpack.c.h.b16 %v11755
    %v12294 = vunpack.c.l.b16 %v11756
    %v12295 = vunpack.c.h.b16 %v11756
    %v12296 = vunpack.c.l.b16 %v11757
    %v12297 = vunpack.c.h.b16 %v11757
    %v12298 = vunpack.c.l.b16 %v11758
    %v12299 = vunpack.c.h.b16 %v11758
    %v12300 = vunpack.c.l.b16 %v11759
    %v12301 = vunpack.c.h.b16 %v11759
    %v12302 = vunpack.c.l.b16 %v11760
    %v12303 = vunpack.c.h.b16 %v11760
    %v12304 = vunpack.c.l.b16 %v11761
    %v12305 = vunpack.c.h.b16 %v11761
    %v12306 = vunpack.c.l.b16 %v11762
    %v12307 = vunpack.c.h.b16 %v11762
    %v12308 = vunpack.c.l.b16 %v11763
    %v12309 = vunpack.c.h.b16 %v11763
    %v12310 = vunpack.c.l.b16 %v11764
    %v12311 = vunpack.c.h.b16 %v11764
    %v12312 = vunpack.c.l.b16 %v11765
    %v12313 = vunpack.c.h.b16 %v11765
    %v12314 = vunpack.c.l.b16 %v11766
    %v12315 = vunpack.c.h.b16 %v11766
    %v12316 = vunpack.c.l.b16 %v11767
    %v12317 = vunpack.c.h.b16 %v11767
    %v12318 = vunpack.c.l.b16 %v11768
    %v12319 = vunpack.c.h.b16 %v11768
    %v12320 = vunpack.c.l.b16 %v11769
    %v12321 = vunpack.c.h.b16 %v11769
    %v12322 = vunpack.c.l.b16 %v11770
    %v12323 = vunpack.c.h.b16 %v11770
    %v12324 = vunpack.c.l.b16 %v11771
    %v12325 = vunpack.c.h.b16 %v11771
    %v12326 = vunpack.c.l.b16 %v11772
    %v12327 = vunpack.c.h.b16 %v11772
    %v12328 = vunpack.c.l.b16 %v11773
    %v12329 = vunpack.c.h.b16 %v11773
    %v12330 = vunpack.c.l.b16 %v11774
    %v12331 = vunpack.c.h.b16 %v11774
    %v12332 = vunpack.c.l.b16 %v11775
    %v12333 = vunpack.c.h.b16 %v11775
    %v12334 = vunpack.c.l.b16 %v11776
    %v12335 = vunpack.c.h.b16 %v11776
    %v12336 = vunpack.c.l.b16 %v11777
    %v12337 = vunpack.c.h.b16 %v11777
    %v12338 = vunpack.c.l.b16 %v11778
    %v12339 = vunpack.c.h.b16 %v11778
    %v12340 = vunpack.c.l.b16 %v11779
    %v12341 = vunpack.c.h.b16 %v11779
    %v12342 = vunpack.c.l.b16 %v11780
    %v12343 = vunpack.c.h.b16 %v11780
    %v12344 = vunpack.c.l.b16 %v11781
    %v12345 = vunpack.c.h.b16 %v11781
    %v12346 = vunpack.c.l.b16 %v11782
    %v12347 = vunpack.c.h.b16 %v11782
    %v12348 = vunpack.c.l.b16 %v11783
    %v12349 = vunpack.c.h.b16 %v11783
    %v12350 = vunpack.c.l.b16 %v11784
    %v12351 = vunpack.c.h.b16 %v11784
    %v12352 = vunpack.c.l.b16 %v11785
    %v12353 = vunpack.c.h.b16 %v11785
    %v12354 = vunpack.c.l.b16 %v11786
    %v12355 = vunpack.c.h.b16 %v11786
    %v12356 = vunpack.c.l.b16 %v11787
    %v12357 = vunpack.c.h.b16 %v11787
    %v12358 = vunpack.c.l.b16 %v11788
    %v12359 = vunpack.c.h.b16 %v11788
    %v12360 = vunpack.c.l.b16 %v11789
    %v12361 = vunpack.c.h.b16 %v11789
    %v12362 = vunpack.c.l.b16 %v11790
    %v12363 = vunpack.c.h.b16 %v11790
    %v12364 = vunpack.c.l.b16 %v11791
    %v12365 = vunpack.c.h.b16 %v11791
    %v12366 = vunpack.c.l.b16 %v11792
    %v12367 = vunpack.c.h.b16 %v11792
    %v12368 = vunpack.c.l.b16 %v11793
    %v12369 = vunpack.c.h.b16 %v11793
    %v12370 = vunpack.c.l.b16 %v11794
    %v12371 = vunpack.c.h.b16 %v11794
    %v12372 = vunpack.c.l.b16 %v11795
    %v12373 = vunpack.c.h.b16 %v11795
    %v12374 = vunpack.c.l.b16 %v11796
    %v12375 = vunpack.c.h.b16 %v11796
    %v12376 = vunpack.c.l.b16 %v11797
    %v12377 = vunpack.c.h.b16 %v11797
    %v12378 = vunpack.c.l.b16 %v11798
    %v12379 = vunpack.c.h.b16 %v11798
    %v12380 = vunpack.c.l.b16 %v11799
    %v12381 = vunpack.c.h.b16 %v11799
    %v12382 = vunpack.c.l.b16 %v11800
    %v12383 = vunpack.c.h.b16 %v11800
    %v12384 = vunpack.c.l.b16 %v11801
    %v12385 = vunpack.c.h.b16 %v11801
    %v12386 = vunpack.c.l.b16 %v11802
    %v12387 = vunpack.c.h.b16 %v11802
    %v12388 = vunpack.c.l.b16 %v11803
    %v12389 = vunpack.c.h.b16 %v11803
    %v12390 = vunpack.c.l.b16 %v11804
    %v12391 = vunpack.c.h.b16 %v11804
    %v12392 = vunpack.c.l.b16 %v11805
    %v12393 = vunpack.c.h.b16 %v11805
    %v12394 = vunpack.c.l.b16 %v11806
    %v12395 = vunpack.c.h.b16 %v11806
    %v12396 = vunpack.c.l.b16 %v11807
    %v12397 = vunpack.c.h.b16 %v11807
    %v12398 = vunpack.c.l.b16 %v11808
    %v12399 = vunpack.c.h.b16 %v11808
    %v12400 = vunpack.c.l.b16 %v11809
    %v12401 = vunpack.c.h.b16 %v11809
    %v12402 = vunpack.c.l.b16 %v11810
    %v12403 = vunpack.c.h.b16 %v11810
    %v12404 = vunpack.c.l.b16 %v11811
    %v12405 = vunpack.c.h.b16 %v11811
    %v12406 = vunpack.c.l.b16 %v11812
    %v12407 = vunpack.c.h.b16 %v11812
    %v12408 = vunpack.c.l.b16 %v11813
    %v12409 = vunpack.c.h.b16 %v11813
    %v12410 = vunpack.c.l.b16 %v11814
    %v12411 = vunpack.c.h.b16 %v11814
    %v12412 = vunpack.c.l.b16 %v11815
    %v12413 = vunpack.c.h.b16 %v11815
    %v12414 = vunpack.c.l.b16 %v11816
    %v12415 = vunpack.c.h.b16 %v11816
    %v12416 = vunpack.c.l.b16 %v11817
    %v12417 = vunpack.c.h.b16 %v11817
    %v12418 = vunpack.c.l.b16 %v11818
    %v12419 = vunpack.c.h.b16 %v11818
    %v12420 = vunpack.c.l.b16 %v11819
    %v12421 = vunpack.c.h.b16 %v11819
    %v12422 = vunpack.c.l.b16 %v11820
    %v12423 = vunpack.c.h.b16 %v11820
    %v12424 = vunpack.c.l.b16 %v11821
    %v12425 = vunpack.c.h.b16 %v11821
    %v12426 = vunpack.c.l.b16 %v11822
    %v12427 = vunpack.c.h.b16 %v11822
    %v12428 = vunpack.c.l.b16 %v11823
    %v12429 = vunpack.c.h.b16 %v11823
    %v12430 = vunpack.c.l.b16 %v11824
    %v12431 = vunpack.c.h.b16 %v11824
    %v12432 = vunpack.c.l.b16 %v11825
    %v12433 = vunpack.c.h.b16 %v11825
    %v12434 = vunpack.c.l.b16 %v11826
    %v12435 = vunpack.c.h.b16 %v11826
    %v12436 = vunpack.c.l.b16 %v11827
    %v12437 = vunpack.c.h.b16 %v11827
    %v12438 = vunpack.c.l.b16 %v11828
    %v12439 = vunpack.c.h.b16 %v11828
    %v12440 = vunpack.c.l.b16 %v11829
    %v12441 = vunpack.c.h.b16 %v11829
    %v12442 = vunpack.c.l.b16 %v11830
    %v12443 = vunpack.c.h.b16 %v11830
    %v12444 = vunpack.c.l.b16 %v11831
    %v12445 = vunpack.c.h.b16 %v11831
    %v12446 = vunpack.c.l.b16 %v11832
    %v12447 = vunpack.c.h.b16 %v11832
    %v12448 = vunpack.c.l.b16 %v11833
    %v12449 = vunpack.c.h.b16 %v11833
    %v12450 = vunpack.c.l.b16 %v11834
    %v12451 = vunpack.c.h.b16 %v11834
    %v12452 = vunpack.c.l.b16 %v11835
    %v12453 = vunpack.c.h.b16 %v11835
    %v12454 = vunpack.c.l.b16 %v11836
    %v12455 = vunpack.c.h.b16 %v11836
    %v12456 = vunpack.c.l.b16 %v11837
    %v12457 = vunpack.c.h.b16 %v11837
    %v12458 = vunpack.c.l.b16 %v11838
    %v12459 = vunpack.c.h.b16 %v11838
    %v12460 = vunpack.c.l.b16 %v11839
    %v12461 = vunpack.c.h.b16 %v11839
    %v12462 = vunpack.c.l.b16 %v11840
    %v12463 = vunpack.c.h.b16 %v11840
    %v12464 = vunpack.c.l.b16 %v11841
    %v12465 = vunpack.c.h.b16 %v11841
    %v12466 = vunpack.c.l.b16 %v11842
    %v12467 = vunpack.c.h.b16 %v11842
    %v12468 = vunpack.c.l.b16 %v11843
    %v12469 = vunpack.c.h.b16 %v11843
    %v12470 = vunpack.c.l.b16 %v11844
    %v12471 = vunpack.c.h.b16 %v11844
    %v12472 = vunpack.c.l.b16 %v11845
    %v12473 = vunpack.c.h.b16 %v11845
    %v12474 = vunpack.c.l.b16 %v11846
    %v12475 = vunpack.c.h.b16 %v11846
    %v12476 = vunpack.c.l.b16 %v11847
    %v12477 = vunpack.c.h.b16 %v11847
    %v12478 = vunpack.c.l.b16 %v11848
    %v12479 = vunpack.c.h.b16 %v11848
    %v12480 = vunpack.c.l.b16 %v11849
    %v12481 = vunpack.c.h.b16 %v11849
    %v12482 = vunpack.c.l.b16 %v11850
    %v12483 = vunpack.c.h.b16 %v11850
    %v12484 = vunpack.c.l.b16 %v11851
    %v12485 = vunpack.c.h.b16 %v11851
    %v12486 = vunpack.c.l.b16 %v11852
    %v12487 = vunpack.c.h.b16 %v11852
    %v12488 = vunpack.c.l.b16 %v11853
    %v12489 = vunpack.c.h.b16 %v11853
    %v12490 = vunpack.c.l.b16 %v11854
    %v12491 = vunpack.c.h.b16 %v11854
    %v12492 = vunpack.c.l.b16 %v11855
    %v12493 = vunpack.c.h.b16 %v11855
    %v12494 = vunpack.c.l.b16 %v11856
    %v12495 = vunpack.c.h.b16 %v11856
    %v12496 = vunpack.c.l.b16 %v11857
    %v12497 = vunpack.c.h.b16 %v11857
    %v12498 = vunpack.c.l.b16 %v11858
    %v12499 = vunpack.c.h.b16 %v11858
    %v12500 = vunpack.c.l.b16 %v11859
    %v12501 = vunpack.c.h.b16 %v11859
    %v12502 = vunpack.c.l.b16 %v11860
    %v12503 = vunpack.c.h.b16 %v11860
    %v12504 = vunpack.c.l.b16 %v11861
    %v12505 = vunpack.c.h.b16 %v11861
    %v12506 = vunpack.c.l.b16 %v11862
    %v12507 = vunpack.c.h.b16 %v11862
    %v12508 = vunpack.c.l.b16 %v11863
    %v12509 = vunpack.c.h.b16 %v11863
    %v12510 = vunpack.c.l.b16 %v11864
    %v12511 = vunpack.c.h.b16 %v11864
    %v12512 = vunpack.c.l.b16 %v11865
    %v12513 = vunpack.c.h.b16 %v11865
    %v12514 = vunpack.c.l.b16 %v11866
    %v12515 = vunpack.c.h.b16 %v11866
    %v12516 = vunpack.c.l.b16 %v11867
    %v12517 = vunpack.c.h.b16 %v11867
    %v12518 = vunpack.c.l.b16 %v11868
    %v12519 = vunpack.c.h.b16 %v11868
    %v12520 = vunpack.c.l.b16 %v11869
    %v12521 = vunpack.c.h.b16 %v11869
    %v12522 = vunpack.c.l.b16 %v11870
    %v12523 = vunpack.c.h.b16 %v11870
    %v12524 = vunpack.c.l.b16 %v11871
    %v12525 = vunpack.c.h.b16 %v11871
    %v12526 = vunpack.c.l.b16 %v11872
    %v12527 = vunpack.c.h.b16 %v11872
    %v12528 = vunpack.c.l.b16 %v11873
    %v12529 = vunpack.c.h.b16 %v11873
    %v12530 = vunpack.c.l.b16 %v11874
    %v12531 = vunpack.c.h.b16 %v11874
    %v12532 = vunpack.c.l.b16 %v11875
    %v12533 = vunpack.c.h.b16 %v11875
    %v12534 = vunpack.c.l.b16 %v11876
    %v12535 = vunpack.c.h.b16 %v11876
    %v12536 = vunpack.c.l.b16 %v11877
    %v12537 = vunpack.c.h.b16 %v11877
    %v12538 = vunpack.c.l.b16 %v11878
    %v12539 = vunpack.c.h.b16 %v11878
    %v12540 = vunpack.c.l.b16 %v11879
    %v12541 = vunpack.c.h.b16 %v11879
    %v12542 = vunpack.c.l.b16 %v11880
    %v12543 = vunpack.c.h.b16 %v11880
    %v12544 = vunpack.c.l.b16 %v11881
    %v12545 = vunpack.c.h.b16 %v11881
    %v12546 = vunpack.c.l.b16 %v11882
    %v12547 = vunpack.c.h.b16 %v11882
    %v12548 = vunpack.c.l.b16 %v11883
    %v12549 = vunpack.c.h.b16 %v11883
    %v12550 = vunpack.c.l.b16 %v11884
    %v12551 = vunpack.c.h.b16 %v11884
    %v12552 = vunpack.c.l.b16 %v11885
    %v12553 = vunpack.c.h.b16 %v11885
    %v12554 = vunpack.c.l.b16 %v11886
    %v12555 = vunpack.c.h.b16 %v11886
    %v12556 = vunpack.c.l.b16 %v11887
    %v12557 = vunpack.c.h.b16 %v11887
    %v12558 = vunpack.c.l.b16 %v11888
    %v12559 = vunpack.c.h.b16 %v11888
    %v12560 = vunpack.c.l.b16 %v11889
    %v12561 = vunpack.c.h.b16 %v11889
    %v12562 = vunpack.c.l.b16 %v11890
    %v12563 = vunpack.c.h.b16 %v11890
    %v12564 = vunpack.c.l.b16 %v11891
    %v12565 = vunpack.c.h.b16 %v11891
    %v12566 = vunpack.c.l.b16 %v11892
    %v12567 = vunpack.c.h.b16 %v11892
    %v12568 = vunpack.c.l.b16 %v11893
    %v12569 = vunpack.c.h.b16 %v11893
    %v12570 = vunpack.c.l.b16 %v11894
    %v12571 = vunpack.c.h.b16 %v11894
    %v12572 = vunpack.c.l.b16 %v11895
    %v12573 = vunpack.c.h.b16 %v11895
    %v12574 = vunpack.c.l.b16 %v11896
    %v12575 = vunpack.c.h.b16 %v11896
    %v12576 = vunpack.c.l.b16 %v11897
    %v12577 = vunpack.c.h.b16 %v11897
    %v12578 = vunpack.c.l.b16 %v11898
    %v12579 = vunpack.c.h.b16 %v11898
    %v12580 = vunpack.c.l.b16 %v11899
    %v12581 = vunpack.c.h.b16 %v11899
    %v12582 = vunpack.c.l.b16 %v11900
    %v12583 = vunpack.c.h.b16 %v11900
    %v12584 = vunpack.c.l.b16 %v11901
    %v12585 = vunpack.c.h.b16 %v11901
    %v12586 = vunpack.c.l.b16 %v11902
    %v12587 = vunpack.c.h.b16 %v11902
    %v12588 = vunpack.c.l.b16 %v11903
    %v12589 = vunpack.c.h.b16 %v11903
    %v12590 = vunpack.c.l.b16 %v11904
    %v12591 = vunpack.c.h.b16 %v11904
    %v12592 = vunpack.c.l.b16 %v11905
    %v12593 = vunpack.c.h.b16 %v11905
    %v12594 = vunpack.c.l.b16 %v11906
    %v12595 = vunpack.c.h.b16 %v11906
    %v12596 = vunpack.c.l.b16 %v11907
    %v12597 = vunpack.c.h.b16 %v11907
    %v12598 = vunpack.c.l.b16 %v11908
    %v12599 = vunpack.c.h.b16 %v11908
    %v12600 = vunpack.c.l.b16 %v11909
    %v12601 = vunpack.c.h.b16 %v11909
    %v12602 = vunpack.c.l.b16 %v11910
    %v12603 = vunpack.c.h.b16 %v11910
    %v12604 = vunpack.c.l.b16 %v11911
    %v12605 = vunpack.c.h.b16 %v11911
    %v12606 = vunpack.c.l.b16 %v11912
    %v12607 = vunpack.c.h.b16 %v11912
    %v12608 = vunpack.c.l.b16 %v11913
    %v12609 = vunpack.c.h.b16 %v11913
    %v12610 = vunpack.c.l.b16 %v11914
    %v12611 = vunpack.c.h.b16 %v11914
    %v12612 = vunpack.c.l.b16 %v11915
    %v12613 = vunpack.c.h.b16 %v11915
    %v12614 = vunpack.c.l.b16 %v11916
    %v12615 = vunpack.c.h.b16 %v11916
    %v12616 = vunpack.c.l.b16 %v11917
    %v12617 = vunpack.c.h.b16 %v11917
    %v12618 = vunpack.c.l.b16 %v11918
    %v12619 = vunpack.c.h.b16 %v11918
    %v12620 = vunpack.c.l.b16 %v11919
    %v12621 = vunpack.c.h.b16 %v11919
    %v12622 = vunpack.c.l.b16 %v11920
    %v12623 = vunpack.c.h.b16 %v11920
    %v12624 = vunpack.c.l.b16 %v11921
    %v12625 = vunpack.c.h.b16 %v11921
    %v12626 = vunpack.c.l.b16 %v11922
    %v12627 = vunpack.c.h.b16 %v11922
    %v12628 = vunpack.c.l.b16 %v11923
    %v12629 = vunpack.c.h.b16 %v11923
    %v12630 = vunpack.c.l.b16 %v11924
    %v12631 = vunpack.c.h.b16 %v11924
    %v12632 = vunpack.c.l.b16 %v11925
    %v12633 = vunpack.c.h.b16 %v11925
    %v12634 = vunpack.c.l.b16 %v11926
    %v12635 = vunpack.c.h.b16 %v11926
    %v12636 = vunpack.c.l.b16 %v11927
    %v12637 = vunpack.c.h.b16 %v11927
    %v12638 = vunpack.c.l.b16 %v11928
    %v12639 = vunpack.c.h.b16 %v11928
    %v12640 = vunpack.c.l.b16 %v11929
    %v12641 = vunpack.c.h.b16 %v11929
    %v12642 = vunpack.c.l.b16 %v11930
    %v12643 = vunpack.c.h.b16 %v11930
    %v12644 = vunpack.c.l.b16 %v11931
    %v12645 = vunpack.c.h.b16 %v11931
    %v12646 = vunpack.c.l.b16 %v11932
    %v12647 = vunpack.c.h.b16 %v11932
    %v12648 = vunpack.c.l.b16 %v11933
    %v12649 = vunpack.c.h.b16 %v11933
    %v12650 = vunpack.c.l.b16 %v11934
    %v12651 = vunpack.c.h.b16 %v11934
    %v12652 = vunpack.c.l.b16 %v11935
    %v12653 = vunpack.c.h.b16 %v11935
    %v12654 = vunpack.c.l.b16 %v11936
    %v12655 = vunpack.c.h.b16 %v11936
    %v12656 = vunpack.c.l.b16 %v11937
    %v12657 = vunpack.c.h.b16 %v11937
    %v12658 = vunpack.c.l.b16 %v11938
    %v12659 = vunpack.c.h.b16 %v11938
    %v12660 = vunpack.c.l.b16 %v11939
    %v12661 = vunpack.c.h.b16 %v11939
    %v12662 = vunpack.c.l.b16 %v11940
    %v12663 = vunpack.c.h.b16 %v11940
    %v12664 = vunpack.c.l.b16 %v11941
    %v12665 = vunpack.c.h.b16 %v11941
    %v12666 = vunpack.c.l.b16 %v11942
    %v12667 = vunpack.c.h.b16 %v11942
    %v12668 = vunpack.c.l.b16 %v11943
    %v12669 = vunpack.c.h.b16 %v11943
    %v12670 = vunpack.c.l.b16 %v11944
    %v12671 = vunpack.c.h.b16 %v11944
    %v12672 = vunpack.c.l.b16 %v11945
    %v12673 = vunpack.c.h.b16 %v11945
    %v12674 = vunpack.c.l.b16 %v11946
    %v12675 = vunpack.c.h.b16 %v11946
    %v12676 = vunpack.c.l.b16 %v11947
    %v12677 = vunpack.c.h.b16 %v11947
    %v12678 = vunpack.c.l.b16 %v11948
    %v12679 = vunpack.c.h.b16 %v11948
    %v12680 = vunpack.c.l.b16 %v11949
    %v12681 = vunpack.c.h.b16 %v11949
    %v12682 = vunpack.c.l.b16 %v11950
    %v12683 = vunpack.c.h.b16 %v11950
    %v12684 = vunpack.c.l.b16 %v11951
    %v12685 = vunpack.c.h.b16 %v11951
    %v12686 = vunpack.c.l.b16 %v11952
    %v12687 = vunpack.c.h.b16 %v11952
    %v12688 = vunpack.c.l.b16 %v11953
    %v12689 = vunpack.c.h.b16 %v11953
    %v12690 = vunpack.c.l.b16 %v11954
    %v12691 = vunpack.c.h.b16 %v11954
    %v12692 = vunpack.c.l.b16 %v11955
    %v12693 = vunpack.c.h.b16 %v11955
    %v12694 = vunpack.c.l.b16 %v11956
    %v12695 = vunpack.c.h.b16 %v11956
    %v12696 = vunpack.c.l.b16 %v11957
    %v12697 = vunpack.c.h.b16 %v11957
    %v12698 = vunpack.c.l.b16 %v11958
    %v12699 = vunpack.c.h.b16 %v11958
    %v12700 = vunpack.c.l.b16 %v11959
    %v12701 = vunpack.c.h.b16 %v11959
    %v12702 = vunpack.c.l.b16 %v11960
    %v12703 = vunpack.c.h.b16 %v11960
    %v12704 = vunpack.c.l.b16 %v11961
    %v12705 = vunpack.c.h.b16 %v11961
    %v12706 = vunpack.c.l.b16 %v11962
    %v12707 = vunpack.c.h.b16 %v11962
    %v12708 = vunpack.c.l.b16 %v11963
    %v12709 = vunpack.c.h.b16 %v11963
    %v12710 = vunpack.c.l.b16 %v11964
    %v12711 = vunpack.c.h.b16 %v11964
    %v12712 = vunpack.c.l.b16 %v11965
    %v12713 = vunpack.c.h.b16 %v11965
    %v12714 = vunpack.c.l.b16 %v11966
    %v12715 = vunpack.c.h.b16 %v11966
    %v12716 = vunpack.c.l.b16 %v11967
    %v12717 = vunpack.c.h.b16 %v11967
    %v12718 = vunpack.c.l.b16 %v11968
    %v12719 = vunpack.c.h.b16 %v11968
    %v12720 = vunpack.c.l.b16 %v11969
    %v12721 = vunpack.c.h.b16 %v11969
    %v12722 = vunpack.c.l.b16 %v11970
    %v12723 = vunpack.c.h.b16 %v11970
    %v12724 = vunpack.c.l.b16 %v11971
    %v12725 = vunpack.c.h.b16 %v11971
    %v12726 = vunpack.c.l.b16 %v11972
    %v12727 = vunpack.c.h.b16 %v11972
    %v12728 = vunpack.c.l.b16 %v11973
    %v12729 = vunpack.c.h.b16 %v11973
    %v12730 = vunpack.c.l.b16 %v11974
    %v12731 = vunpack.c.h.b16 %v11974
    %v12732 = vunpack.c.l.b16 %v11975
    %v12733 = vunpack.c.h.b16 %v11975
    %v12734 = vunpack.c.l.b16 %v11976
    %v12735 = vunpack.c.h.b16 %v11976
    %v12736 = vunpack.c.l.b16 %v11977
    %v12737 = vunpack.c.h.b16 %v11977
    %v12738 = vunpack.c.l.b16 %v11978
    %v12739 = vunpack.c.h.b16 %v11978
    %v12740 = vunpack.c.l.b16 %v11979
    %v12741 = vunpack.c.h.b16 %v11979
    %v12742 = vunpack.c.l.b16 %v11980
    %v12743 = vunpack.c.h.b16 %v11980
    %v12744 = vunpack.c.l.b16 %v11981
    %v12745 = vunpack.c.h.b16 %v11981
    %v12746 = vunpack.c.l.b16 %v11982
    %v12747 = vunpack.c.h.b16 %v11982
    %v12748 = vunpack.c.l.b16 %v11983
    %v12749 = vunpack.c.h.b16 %v11983
    %v12750 = vunpack.c.l.b16 %v11984
    %v12751 = vunpack.c.h.b16 %v11984
    %v12752 = vunpack.c.l.b16 %v11985
    %v12753 = vunpack.c.h.b16 %v11985
    %v12754 = vunpack.c.l.b16 %v11986
    %v12755 = vunpack.c.h.b16 %v11986
    %v12756 = vunpack.c.l.b16 %v11987
    %v12757 = vunpack.c.h.b16 %v11987
    %v12758 = vunpack.c.l.b16 %v11988
    %v12759 = vunpack.c.h.b16 %v11988
    %v12760 = vunpack.c.l.b16 %v11989
    %v12761 = vunpack.c.h.b16 %v11989
    %v12762 = vunpack.c.l.b16 %v11990
    %v12763 = vunpack.c.h.b16 %v11990
    %v12764 = vunpack.c.l.b16 %v11991
    %v12765 = vunpack.c.h.b16 %v11991
    %v12766 = vunpack.c.l.b16 %v11992
    %v12767 = vunpack.c.h.b16 %v11992
    %v12768 = vunpack.c.l.b16 %v11993
    %v12769 = vunpack.c.h.b16 %v11993
    %v12770 = vunpack.c.l.b16 %v11994
    %v12771 = vunpack.c.h.b16 %v11994
    %v12772 = vunpack.c.l.b16 %v11995
    %v12773 = vunpack.c.h.b16 %v11995
    %v12774 = vunpack.c.l.b16 %v11996
    %v12775 = vunpack.c.h.b16 %v11996
    %v12776 = vunpack.c.l.b16 %v11997
    %v12777 = vunpack.c.h.b16 %v11997
    %v12778 = vpack.c.b16 %v12268, %v12266
    %v12779 = vpack.c.b16 %v12269, %v12267
    %v12780 = vpack.c.b16 %v12272, %v12270
    %v12781 = vpack.c.b16 %v12273, %v12271
    %v12782 = vpack.c.b16 %v12276, %v12274
    %v12783 = vpack.c.b16 %v12277, %v12275
    %v12784 = vpack.c.b16 %v12280, %v12278
    %v12785 = vpack.c.b16 %v12281, %v12279
    %v12786 = vpack.c.b16 %v12284, %v12282
    %v12787 = vpack.c.b16 %v12285, %v12283
    %v12788 = vpack.c.b16 %v12288, %v12286
    %v12789 = vpack.c.b16 %v12289, %v12287
    %v12790 = vpack.c.b16 %v12292, %v12290
    %v12791 = vpack.c.b16 %v12293, %v12291
    %v12792 = vpack.c.b16 %v12296, %v12294
    %v12793 = vpack.c.b16 %v12297, %v12295
    %v12794 = vpack.c.b16 %v12300, %v12298
    %v12795 = vpack.c.b16 %v12301, %v12299
    %v12796 = vpack.c.b16 %v12304, %v12302
    %v12797 = vpack.c.b16 %v12305, %v12303
    %v12798 = vpack.c.b16 %v12308, %v12306
    %v12799 = vpack.c.b16 %v12309, %v12307
    %v12800 = vpack.c.b16 %v12312, %v12310
    %v12801 = vpack.c.b16 %v12313, %v12311
    %v12802 = vpack.c.b16 %v12316, %v12314
    %v12803 = vpack.c.b16 %v12317, %v12315
    %v12804 = vpack.c.b16 %v12320, %v12318
    %v12805 = vpack.c.b16 %v12321, %v12319
    %v12806 = vpack.c.b16 %v12324, %v12322
    %v12807 = vpack.c.b16 %v12325, %v12323
    %v12808 = vpack.c.b16 %v12328, %v12326
    %v12809 = vpack.c.b16 %v12329, %v12327
    %v12810 = vpack.c.b16 %v12332, %v12330
    %v12811 = vpack.c.b16 %v12333, %v12331
    %v12812 = vpack.c.b16 %v12336, %v12334
    %v12813 = vpack.c.b16 %v12337, %v12335
    %v12814 = vpack.c.b16 %v12340, %v12338
    %v12815 = vpack.c.b16 %v12341, %v12339
    %v12816 = vpack.c.b16 %v12344, %v12342
    %v12817 = vpack.c.b16 %v12345, %v12343
    %v12818 = vpack.c.b16 %v12348, %v12346
    %v12819 = vpack.c.b16 %v12349, %v12347
    %v12820 = vpack.c.b16 %v12352, %v12350
    %v12821 = vpack.c.b16 %v12353, %v12351
    %v12822 = vpack.c.b16 %v12356, %v12354
    %v12823 = vpack.c.b16 %v12357, %v12355
    %v12824 = vpack.c.b16 %v12360, %v12358
    %v12825 = vpack.c.b16 %v12361, %v12359
    %v12826 = vpack.c.b16 %v12364, %v12362
    %v12827 = vpack.c.b16 %v12365, %v12363
    %v12828 = vpack.c.b16 %v12368, %v12366
    %v12829 = vpack.c.b16 %v12369, %v12367
    %v12830 = vpack.c.b16 %v12372, %v12370
    %v12831 = vpack.c.b16 %v12373, %v12371
    %v12832 = vpack.c.b16 %v12376, %v12374
    %v12833 = vpack.c.b16 %v12377, %v12375
    %v12834 = vpack.c.b16 %v12380, %v12378
    %v12835 = vpack.c.b16 %v12381, %v12379
    %v12836 = vpack.c.b16 %v12384, %v12382
    %v12837 = vpack.c.b16 %v12385, %v12383
    %v12838 = vpack.c.b16 %v12388, %v12386
    %v12839 = vpack.c.b16 %v12389, %v12387
    %v12840 = vpack.c.b16 %v12392, %v12390
    %v12841 = vpack.c.b16 %v12393, %v12391
    %v12842 = vpack.c.b16 %v12396, %v12394
    %v12843 = vpack.c.b16 %v12397, %v12395
    %v12844 = vpack.c.b16 %v12400, %v12398
    %v12845 = vpack.c.b16 %v12401, %v12399
    %v12846 = vpack.c.b16 %v12404, %v12402
    %v12847 = vpack.c.b16 %v12405, %v12403
    %v12848 = vpack.c.b16 %v12408, %v12406
    %v12849 = vpack.c.b16 %v12409, %v12407
    %v12850 = vpack.c.b16 %v12412, %v12410
    %v12851 = vpack.c.b16 %v12413, %v12411
    %v12852 = vpack.c.b16 %v12416, %v12414
    %v12853 = vpack.c.b16 %v12417, %v12415
    %v12854 = vpack.c.b16 %v12420, %v12418
    %v12855 = vpack.c.b16 %v12421, %v12419
    %v12856 = vpack.c.b16 %v12424, %v12422
    %v12857 = vpack.c.b16 %v12425, %v12423
    %v12858 = vpack.c.b16 %v12428, %v12426
    %v12859 = vpack.c.b16 %v12429, %v12427
    %v12860 = vpack.c.b16 %v12432, %v12430
    %v12861 = vpack.c.b16 %v12433, %v12431
    %v12862 = vpack.c.b16 %v12436, %v12434
    %v12863 = vpack.c.b16 %v12437, %v12435
    %v12864 = vpack.c.b16 %v12440, %v12438
    %v12865 = vpack.c.b16 %v12441, %v12439
    %v12866 = vpack.c.b16 %v12444, %v12442
    %v12867 = vpack.c.b16 %v12445, %v12443
    %v12868 = vpack.c.b16 %v12448, %v12446
    %v12869 = vpack.c.b16 %v12449, %v12447
    %v12870 = vpack.c.b16 %v12452, %v12450
    %v12871 = vpack.c.b16 %v12453, %v12451
    %v12872 = vpack.c.b16 %v12456, %v12454
    %v12873 = vpack.c.b16 %v12457, %v12455
    %v12874 = vpack.c.b16 %v12460, %v12458
    %v12875 = vpack.c.b16 %v12461, %v12459
    %v12876 = vpack.c.b16 %v12464, %v12462
    %v12877 = vpack.c.b16 %v12465, %v12463
    %v12878 = vpack.c.b16 %v12468, %v12466
    %v12879 = vpack.c.b16 %v12469, %v12467
    %v12880 = vpack.c.b16 %v12472, %v12470
    %v12881 = vpack.c.b16 %v12473, %v12471
    %v12882 = vpack.c.b16 %v12476, %v12474
    %v12883 = vpack.c.b16 %v12477, %v12475
    %v12884 = vpack.c.b16 %v12480, %v12478
    %v12885 = vpack.c.b16 %v12481, %v12479
    %v12886 = vpack.c.b16 %v12484, %v12482
    %v12887 = vpack.c.b16 %v12485, %v12483
    %v12888 = vpack.c.b16 %v12488, %v12486
    %v12889 = vpack.c.b16 %v12489, %v12487
    %v12890 = vpack.c.b16 %v12492, %v12490
    %v12891 = vpack.c.b16 %v12493, %v12491
    %v12892 = vpack.c.b16 %v12496, %v12494
    %v12893 = vpack.c.b16 %v12497, %v12495
    %v12894 = vpack.c.b16 %v12500, %v12498
    %v12895 = vpack.c.b16 %v12501, %v12499
    %v12896 = vpack.c.b16 %v12504, %v12502
    %v12897 = vpack.c.b16 %v12505, %v12503
    %v12898 = vpack.c.b16 %v12508, %v12506
    %v12899 = vpack.c.b16 %v12509, %v12507
    %v12900 = vpack.c.b16 %v12512, %v12510
    %v12901 = vpack.c.b16 %v12513, %v12511
    %v12902 = vpack.c.b16 %v12516, %v12514
    %v12903 = vpack.c.b16 %v12517, %v12515
    %v12904 = vpack.c.b16 %v12520, %v12518
    %v12905 = vpack.c.b16 %v12521, %v12519
    %v12906 = vpack.c.b16 %v12524, %v12522
    %v12907 = vpack.c.b16 %v12525, %v12523
    %v12908 = vpack.c.b16 %v12528, %v12526
    %v12909 = vpack.c.b16 %v12529, %v12527
    %v12910 = vpack.c.b16 %v12532, %v12530
    %v12911 = vpack.c.b16 %v12533, %v12531
    %v12912 = vpack.c.b16 %v12536, %v12534
    %v12913 = vpack.c.b16 %v12537, %v12535
    %v12914 = vpack.c.b16 %v12540, %v12538
    %v12915 = vpack.c.b16 %v12541, %v12539
    %v12916 = vpack.c.b16 %v12544, %v12542
    %v12917 = vpack.c.b16 %v12545, %v12543
    %v12918 = vpack.c.b16 %v12548, %v12546
    %v12919 = vpack.c.b16 %v12549, %v12547
    %v12920 = vpack.c.b16 %v12552, %v12550
    %v12921 = vpack.c.b16 %v12553, %v12551
    %v12922 = vpack.c.b16 %v12556, %v12554
    %v12923 = vpack.c.b16 %v12557, %v12555
    %v12924 = vpack.c.b16 %v12560, %v12558
    %v12925 = vpack.c.b16 %v12561, %v12559
    %v12926 = vpack.c.b16 %v12564, %v12562
    %v12927 = vpack.c.b16 %v12565, %v12563
    %v12928 = vpack.c.b16 %v12568, %v12566
    %v12929 = vpack.c.b16 %v12569, %v12567
    %v12930 = vpack.c.b16 %v12572, %v12570
    %v12931 = vpack.c.b16 %v12573, %v12571
    %v12932 = vpack.c.b16 %v12576, %v12574
    %v12933 = vpack.c.b16 %v12577, %v12575
    %v12934 = vpack.c.b16 %v12580, %v12578
    %v12935 = vpack.c.b16 %v12581, %v12579
    %v12936 = vpack.c.b16 %v12584, %v12582
    %v12937 = vpack.c.b16 %v12585, %v12583
    %v12938 = vpack.c.b16 %v12588, %v12586
    %v12939 = vpack.c.b16 %v12589, %v12587
    %v12940 = vpack.c.b16 %v12592, %v12590
    %v12941 = vpack.c.b16 %v12593, %v12591
    %v12942 = vpack.c.b16 %v12596, %v12594
    %v12943 = vpack.c.b16 %v12597, %v12595
    %v12944 = vpack.c.b16 %v12600, %v12598
    %v12945 = vpack.c.b16 %v12601, %v12599
    %v12946 = vpack.c.b16 %v12604, %v12602
    %v12947 = vpack.c.b16 %v12605, %v12603
    %v12948 = vpack.c.b16 %v12608, %v12606
    %v12949 = vpack.c.b16 %v12609, %v12607
    %v12950 = vpack.c.b16 %v12612, %v12610
    %v12951 = vpack.c.b16 %v12613, %v12611
    %v12952 = vpack.c.b16 %v12616, %v12614
    %v12953 = vpack.c.b16 %v12617, %v12615
    %v12954 = vpack.c.b16 %v12620, %v12618
    %v12955 = vpack.c.b16 %v12621, %v12619
    %v12956 = vpack.c.b16 %v12624, %v12622
    %v12957 = vpack.c.b16 %v12625, %v12623
    %v12958 = vpack.c.b16 %v12628, %v12626
    %v12959 = vpack.c.b16 %v12629, %v12627
    %v12960 = vpack.c.b16 %v12632, %v12630
    %v12961 = vpack.c.b16 %v12633, %v12631
    %v12962 = vpack.c.b16 %v12636, %v12634
    %v12963 = vpack.c.b16 %v12637, %v12635
    %v12964 = vpack.c.b16 %v12640, %v12638
    %v12965 = vpack.c.b16 %v12641, %v12639
    %v12966 = vpack.c.b16 %v12644, %v12642
    %v12967 = vpack.c.b16 %v12645, %v12643
    %v12968 = vpack.c.b16 %v12648, %v12646
    %v12969 = vpack.c.b16 %v12649, %v12647
    %v12970 = vpack.c.b16 %v12652, %v12650
    %v12971 = vpack.c.b16 %v12653, %v12651
    %v12972 = vpack.c.b16 %v12656, %v12654
    %v12973 = vpack.c.b16 %v12657, %v12655
    %v12974 = vpack.c.b16 %v12660, %v12658
    %v12975 = vpack.c.b16 %v12661, %v12659
    %v12976 = vpack.c.b16 %v12664, %v12662
    %v12977 = vpack.c.b16 %v12665, %v12663
    %v12978 = vpack.c.b16 %v12668, %v12666
    %v12979 = vpack.c.b16 %v12669, %v12667
    %v12980 = vpack.c.b16 %v12672, %v12670
    %v12981 = vpack.c.b16 %v12673, %v12671
    %v12982 = vpack.c.b16 %v12676, %v12674
    %v12983 = vpack.c.b16 %v12677, %v12675
    %v12984 = vpack.c.b16 %v12680, %v12678
    %v12985 = vpack.c.b16 %v12681, %v12679
    %v12986 = vpack.c.b16 %v12684, %v12682
    %v12987 = vpack.c.b16 %v12685, %v12683
    %v12988 = vpack.c.b16 %v12688, %v12686
    %v12989 = vpack.c.b16 %v12689, %v12687
    %v12990 = vpack.c.b16 %v12692, %v12690
    %v12991 = vpack.c.b16 %v12693, %v12691
    %v12992 = vpack.c.b16 %v12696, %v12694
    %v12993 = vpack.c.b16 %v12697, %v12695
    %v12994 = vpack.c.b16 %v12700, %v12698
    %v12995 = vpack.c.b16 %v12701, %v12699
    %v12996 = vpack.c.b16 %v12704, %v12702
    %v12997 = vpack.c.b16 %v12705, %v12703
    %v12998 = vpack.c.b16 %v12708, %v12706
    %v12999 = vpack.c.b16 %v12709, %v12707
    %v13000 = vpack.c.b16 %v12712, %v12710
    %v13001 = vpack.c.b16 %v12713, %v12711
    %v13002 = vpack.c.b16 %v12716, %v12714
    %v13003 = vpack.c.b16 %v12717, %v12715
    %v13004 = vpack.c.b16 %v12720, %v12718
    %v13005 = vpack.c.b16 %v12721, %v12719
    %v13006 = vpack.c.b16 %v12724, %v12722
    %v13007 = vpack.c.b16 %v12725, %v12723
    %v13008 = vpack.c.b16 %v12728, %v12726
    %v13009 = vpack.c.b16 %v12729, %v12727
    %v13010 = vpack.c.b16 %v12732, %v12730
    %v13011 = vpack.c.b16 %v12733, %v12731
    %v13012 = vpack.c.b16 %v12736, %v12734
    %v13013 = vpack.c.b16 %v12737, %v12735
    %v13014 = vpack.c.b16 %v12740, %v12738
    %v13015 = vpack.c.b16 %v12741, %v12739
    %v13016 = vpack.c.b16 %v12744, %v12742
    %v13017 = vpack.c.b16 %v12745, %v12743
    %v13018 = vpack.c.b16 %v12748, %v12746
    %v13019 = vpack.c.b16 %v12749, %v12747
    %v13020 = vpack.c.b16 %v12752, %v12750
    %v13021 = vpack.c.b16 %v12753, %v12751
    %v13022 = vpack.c.b16 %v12756, %v12754
    %v13023 = vpack.c.b16 %v12757, %v12755
    %v13024 = vpack.c.b16 %v12760, %v12758
    %v13025 = vpack.c.b16 %v12761, %v12759
    %v13026 = vpack.c.b16 %v12764, %v12762
    %v13027 = vpack.c.b16 %v12765, %v12763
    %v13028 = vpack.c.b16 %v12768, %v12766
    %v13029 = vpack.c.b16 %v12769, %v12767
    %v13030 = vpack.c.b16 %v12772, %v12770
    %v13031 = vpack.c.b16 %v12773, %v12771
    %v13032 = vpack.c.b16 %v12776, %v12774
    %v13033 = vpack.c.b16 %v12777, %v12775
    %13290 = vmatprep.subr.bf16.mxu0 %v12793
    %13291 = vmatpush1.bf16.msra.mxu0 %v12792
    %13292 = vmatprep.subr.bf16.mxu0 %v12791
    %13293 = vmatpush1.bf16.msra.mxu0 %v12790
    %13294 = vmatprep.subr.bf16.mxu0 %v12789
    %13295 = vmatpush1.bf16.msra.mxu0 %v12788
    %13296 = vmatprep.subr.bf16.mxu0 %v12787
    %13297 = vmatpush1.bf16.msra.mxu0 %v12786
    %13298 = vmatprep.subr.bf16.mxu0 %v12785
    %13299 = vmatpush1.bf16.msra.mxu0 %v12784
    %13300 = vmatprep.subr.bf16.mxu0 %v12783
    %13301 = vmatpush1.bf16.msra.mxu0 %v12782
    %13302 = vmatprep.subr.bf16.mxu0 %v12781
    %13303 = vmatpush1.bf16.msra.mxu0 %v12780
    %13304 = vmatprep.subr.bf16.mxu0 %v12779
    %13305 = vmatpush1.bf16.msra.mxu0 %v12778
    %13306 = vmatprep.subr.bf16.mxu0 %v12809
    %13307 = vmatpush2.bf16.msra.mxu0 %v12808
    %13308 = vmatprep.subr.bf16.mxu0 %v12807
    %13309 = vmatpush2.bf16.msra.mxu0 %v12806
    %13310 = vmatprep.subr.bf16.mxu0 %v12805
    %13311 = vmatpush2.bf16.msra.mxu0 %v12804
    %13312 = vmatprep.subr.bf16.mxu0 %v12803
    %13313 = vmatpush2.bf16.msra.mxu0 %v12802
    %13314 = vmatprep.subr.bf16.mxu0 %v12801
    %13315 = vmatpush2.bf16.msra.mxu0 %v12800
    %13316 = vmatprep.subr.bf16.mxu0 %v12799
    %13317 = vmatpush2.bf16.msra.mxu0 %v12798
    %13318 = vmatprep.subr.bf16.mxu0 %v12797
    %13319 = vmatpush2.bf16.msra.mxu0 %v12796
    %13320 = vmatprep.subr.bf16.mxu0 %v12795
    %13321 = vmatpush2.bf16.msra.mxu0 %v12794
    %13322 = vmatprep.mubr.bf16.mxu0 %v11727
    %13323 = vmatmul.mubr.bf16.gmra.mxu0 %v11726
    %v13324 = vpop.f32.mrf.mxu0
    %v13325 = vadd.f32 %v12003, %v13324
    %v13326 = vpop.f32.mrf.mxu0
    %v13327 = vadd.f32 %v12007, %v13326
    %v13328 = vpop.f32.mrf.mxu0
    %v13329 = vpop.f32.mrf.mxu0
    %13330 = vdwg.mxu0
    %13331 = vmatprep.subr.bf16.mxu0 %v12825
    %13332 = vmatpush1.bf16.msra.mxu0 %v12824
    %13333 = vmatprep.subr.bf16.mxu0 %v12823
    %13334 = vmatpush1.bf16.msra.mxu0 %v12822
    %13335 = vmatprep.subr.bf16.mxu0 %v12821
    %13336 = vmatpush1.bf16.msra.mxu0 %v12820
    %13337 = vmatprep.subr.bf16.mxu0 %v12819
    %13338 = vmatpush1.bf16.msra.mxu0 %v12818
    %13339 = vmatprep.subr.bf16.mxu0 %v12817
    %13340 = vmatpush1.bf16.msra.mxu0 %v12816
    %13341 = vmatprep.subr.bf16.mxu0 %v12815
    %13342 = vmatpush1.bf16.msra.mxu0 %v12814
    %13343 = vmatprep.subr.bf16.mxu0 %v12813
    %13344 = vmatpush1.bf16.msra.mxu0 %v12812
    %13345 = vmatprep.subr.bf16.mxu0 %v12811
    %13346 = vmatpush1.bf16.msra.mxu0 %v12810
    %13347 = vmatprep.subr.bf16.mxu0 %v12841
    %13348 = vmatpush2.bf16.msra.mxu0 %v12840
    %13349 = vmatprep.subr.bf16.mxu0 %v12839
    %13350 = vmatpush2.bf16.msra.mxu0 %v12838
    %13351 = vmatprep.subr.bf16.mxu0 %v12837
    %13352 = vmatpush2.bf16.msra.mxu0 %v12836
    %13353 = vmatprep.subr.bf16.mxu0 %v12835
    %13354 = vmatpush2.bf16.msra.mxu0 %v12834
    %13355 = vmatprep.subr.bf16.mxu0 %v12833
    %13356 = vmatpush2.bf16.msra.mxu0 %v12832
    %13357 = vmatprep.subr.bf16.mxu0 %v12831
    %13358 = vmatpush2.bf16.msra.mxu0 %v12830
    %13359 = vmatprep.subr.bf16.mxu0 %v12829
    %13360 = vmatpush2.bf16.msra.mxu0 %v12828
    %13361 = vmatprep.subr.bf16.mxu0 %v12827
    %13362 = vmatpush2.bf16.msra.mxu0 %v12826
    %13363 = vmatprep.mubr.bf16.mxu0 %v11729
    %13364 = vmatmul.mubr.bf16.gmra.mxu0 %v11728
    %v13365 = vpop.f32.mrf.mxu0
    %v13366 = vadd.f32 %v13325, %v13365
    %v13367 = vpop.f32.mrf.mxu0
    %v13368 = vadd.f32 %v13327, %v13367
    %v13369 = vpop.f32.mrf.mxu0
    %v13370 = vpop.f32.mrf.mxu0
    %13371 = vdwg.mxu0
    %13372 = vmatprep.subr.bf16.mxu0 %v12857
    %13373 = vmatpush1.bf16.msra.mxu0 %v12856
    %13374 = vmatprep.subr.bf16.mxu0 %v12855
    %13375 = vmatpush1.bf16.msra.mxu0 %v12854
    %13376 = vmatprep.subr.bf16.mxu0 %v12853
    %13377 = vmatpush1.bf16.msra.mxu0 %v12852
    %13378 = vmatprep.subr.bf16.mxu0 %v12851
    %13379 = vmatpush1.bf16.msra.mxu0 %v12850
    %13380 = vmatprep.subr.bf16.mxu0 %v12849
    %13381 = vmatpush1.bf16.msra.mxu0 %v12848
    %13382 = vmatprep.subr.bf16.mxu0 %v12847
    %13383 = vmatpush1.bf16.msra.mxu0 %v12846
    %13384 = vmatprep.subr.bf16.mxu0 %v12845
    %13385 = vmatpush1.bf16.msra.mxu0 %v12844
    %13386 = vmatprep.subr.bf16.mxu0 %v12843
    %13387 = vmatpush1.bf16.msra.mxu0 %v12842
    %13388 = vmatprep.subr.bf16.mxu0 %v12873
    %13389 = vmatpush2.bf16.msra.mxu0 %v12872
    %13390 = vmatprep.subr.bf16.mxu0 %v12871
    %13391 = vmatpush2.bf16.msra.mxu0 %v12870
    %13392 = vmatprep.subr.bf16.mxu0 %v12869
    %13393 = vmatpush2.bf16.msra.mxu0 %v12868
    %13394 = vmatprep.subr.bf16.mxu0 %v12867
    %13395 = vmatpush2.bf16.msra.mxu0 %v12866
    %13396 = vmatprep.subr.bf16.mxu0 %v12865
    %13397 = vmatpush2.bf16.msra.mxu0 %v12864
    %13398 = vmatprep.subr.bf16.mxu0 %v12863
    %13399 = vmatpush2.bf16.msra.mxu0 %v12862
    %13400 = vmatprep.subr.bf16.mxu0 %v12861
    %13401 = vmatpush2.bf16.msra.mxu0 %v12860
    %13402 = vmatprep.subr.bf16.mxu0 %v12859
    %13403 = vmatpush2.bf16.msra.mxu0 %v12858
    %13404 = vmatprep.mubr.bf16.mxu0 %v11731
    %13405 = vmatmul.mubr.bf16.gmra.mxu0 %v11730
    %v13406 = vpop.f32.mrf.mxu0
    %v13407 = vadd.f32 %v13366, %v13406
    %v13408 = vpop.f32.mrf.mxu0
    %v13409 = vadd.f32 %v13368, %v13408
    %v13410 = vpop.f32.mrf.mxu0
    %v13411 = vpop.f32.mrf.mxu0
    %13412 = vdwg.mxu0
    %13413 = vmatprep.subr.bf16.mxu0 %v12889
    %13414 = vmatpush1.bf16.msra.mxu0 %v12888
    %13415 = vmatprep.subr.bf16.mxu0 %v12887
    %13416 = vmatpush1.bf16.msra.mxu0 %v12886
    %13417 = vmatprep.subr.bf16.mxu0 %v12885
    %13418 = vmatpush1.bf16.msra.mxu0 %v12884
    %13419 = vmatprep.subr.bf16.mxu0 %v12883
    %13420 = vmatpush1.bf16.msra.mxu0 %v12882
    %13421 = vmatprep.subr.bf16.mxu0 %v12881
    %13422 = vmatpush1.bf16.msra.mxu0 %v12880
    %13423 = vmatprep.subr.bf16.mxu0 %v12879
    %13424 = vmatpush1.bf16.msra.mxu0 %v12878
    %13425 = vmatprep.subr.bf16.mxu0 %v12877
    %13426 = vmatpush1.bf16.msra.mxu0 %v12876
    %13427 = vmatprep.subr.bf16.mxu0 %v12875
    %13428 = vmatpush1.bf16.msra.mxu0 %v12874
    %13429 = vmatprep.subr.bf16.mxu0 %v12905
    %13430 = vmatpush2.bf16.msra.mxu0 %v12904
    %13431 = vmatprep.subr.bf16.mxu0 %v12903
    %13432 = vmatpush2.bf16.msra.mxu0 %v12902
    %13433 = vmatprep.subr.bf16.mxu0 %v12901
    %13434 = vmatpush2.bf16.msra.mxu0 %v12900
    %13435 = vmatprep.subr.bf16.mxu0 %v12899
    %13436 = vmatpush2.bf16.msra.mxu0 %v12898
    %13437 = vmatprep.subr.bf16.mxu0 %v12897
    %13438 = vmatpush2.bf16.msra.mxu0 %v12896
    %13439 = vmatprep.subr.bf16.mxu0 %v12895
    %13440 = vmatpush2.bf16.msra.mxu0 %v12894
    %13441 = vmatprep.subr.bf16.mxu0 %v12893
    %13442 = vmatpush2.bf16.msra.mxu0 %v12892
    %13443 = vmatprep.subr.bf16.mxu0 %v12891
    %13444 = vmatpush2.bf16.msra.mxu0 %v12890
    %13445 = vmatprep.mubr.bf16.mxu0 %v11733
    %13446 = vmatmul.mubr.bf16.gmra.mxu0 %v11732
    %v13447 = vpop.f32.mrf.mxu0
    %v13448 = vadd.f32 %v13407, %v13447
    %v13449 = vpop.f32.mrf.mxu0
    %v13450 = vadd.f32 %v13409, %v13449
    %v13451 = vpop.f32.mrf.mxu0
    %v13452 = vpop.f32.mrf.mxu0
    %13453 = vdwg.mxu0
    %13454 = vmatprep.subr.bf16.mxu0 %v12921
    %13455 = vmatpush1.bf16.msra.mxu0 %v12920
    %13456 = vmatprep.subr.bf16.mxu0 %v12919
    %13457 = vmatpush1.bf16.msra.mxu0 %v12918
    %13458 = vmatprep.subr.bf16.mxu0 %v12917
    %13459 = vmatpush1.bf16.msra.mxu0 %v12916
    %13460 = vmatprep.subr.bf16.mxu0 %v12915
    %13461 = vmatpush1.bf16.msra.mxu0 %v12914
    %13462 = vmatprep.subr.bf16.mxu0 %v12913
    %13463 = vmatpush1.bf16.msra.mxu0 %v12912
    %13464 = vmatprep.subr.bf16.mxu0 %v12911
    %13465 = vmatpush1.bf16.msra.mxu0 %v12910
    %13466 = vmatprep.subr.bf16.mxu0 %v12909
    %13467 = vmatpush1.bf16.msra.mxu0 %v12908
    %13468 = vmatprep.subr.bf16.mxu0 %v12907
    %13469 = vmatpush1.bf16.msra.mxu0 %v12906
    %13470 = vmatprep.subr.bf16.mxu0 %v12937
    %13471 = vmatpush2.bf16.msra.mxu0 %v12936
    %13472 = vmatprep.subr.bf16.mxu0 %v12935
    %13473 = vmatpush2.bf16.msra.mxu0 %v12934
    %13474 = vmatprep.subr.bf16.mxu0 %v12933
    %13475 = vmatpush2.bf16.msra.mxu0 %v12932
    %13476 = vmatprep.subr.bf16.mxu0 %v12931
    %13477 = vmatpush2.bf16.msra.mxu0 %v12930
    %13478 = vmatprep.subr.bf16.mxu0 %v12929
    %13479 = vmatpush2.bf16.msra.mxu0 %v12928
    %13480 = vmatprep.subr.bf16.mxu0 %v12927
    %13481 = vmatpush2.bf16.msra.mxu0 %v12926
    %13482 = vmatprep.subr.bf16.mxu0 %v12925
    %13483 = vmatpush2.bf16.msra.mxu0 %v12924
    %13484 = vmatprep.subr.bf16.mxu0 %v12923
    %13485 = vmatpush2.bf16.msra.mxu0 %v12922
    %13486 = vmatprep.mubr.bf16.mxu0 %v11735
    %13487 = vmatmul.mubr.bf16.gmra.mxu0 %v11734
    %v13488 = vpop.f32.mrf.mxu0
    %v13489 = vadd.f32 %v13448, %v13488
    %v13490 = vpop.f32.mrf.mxu0
    %v13491 = vadd.f32 %v13450, %v13490
    %v13492 = vpop.f32.mrf.mxu0
    %v13493 = vpop.f32.mrf.mxu0
    %13494 = vdwg.mxu0
    %13495 = vmatprep.subr.bf16.mxu0 %v12953
    %13496 = vmatpush1.bf16.msra.mxu0 %v12952
    %13497 = vmatprep.subr.bf16.mxu0 %v12951
    %13498 = vmatpush1.bf16.msra.mxu0 %v12950
    %13499 = vmatprep.subr.bf16.mxu0 %v12949
    %13500 = vmatpush1.bf16.msra.mxu0 %v12948
    %13501 = vmatprep.subr.bf16.mxu0 %v12947
    %13502 = vmatpush1.bf16.msra.mxu0 %v12946
    %13503 = vmatprep.subr.bf16.mxu0 %v12945
    %13504 = vmatpush1.bf16.msra.mxu0 %v12944
    %13505 = vmatprep.subr.bf16.mxu0 %v12943
    %13506 = vmatpush1.bf16.msra.mxu0 %v12942
    %13507 = vmatprep.subr.bf16.mxu0 %v12941
    %13508 = vmatpush1.bf16.msra.mxu0 %v12940
    %13509 = vmatprep.subr.bf16.mxu0 %v12939
    %13510 = vmatpush1.bf16.msra.mxu0 %v12938
    %13511 = vmatprep.subr.bf16.mxu0 %v12969
    %13512 = vmatpush2.bf16.msra.mxu0 %v12968
    %13513 = vmatprep.subr.bf16.mxu0 %v12967
    %13514 = vmatpush2.bf16.msra.mxu0 %v12966
    %13515 = vmatprep.subr.bf16.mxu0 %v12965
    %13516 = vmatpush2.bf16.msra.mxu0 %v12964
    %13517 = vmatprep.subr.bf16.mxu0 %v12963
    %13518 = vmatpush2.bf16.msra.mxu0 %v12962
    %13519 = vmatprep.subr.bf16.mxu0 %v12961
    %13520 = vmatpush2.bf16.msra.mxu0 %v12960
    %13521 = vmatprep.subr.bf16.mxu0 %v12959
    %13522 = vmatpush2.bf16.msra.mxu0 %v12958
    %13523 = vmatprep.subr.bf16.mxu0 %v12957
    %13524 = vmatpush2.bf16.msra.mxu0 %v12956
    %13525 = vmatprep.subr.bf16.mxu0 %v12955
    %13526 = vmatpush2.bf16.msra.mxu0 %v12954
    %13527 = vmatprep.mubr.bf16.mxu0 %v11737
    %13528 = vmatmul.mubr.bf16.gmra.mxu0 %v11736
    %v13529 = vpop.f32.mrf.mxu0
    %v13530 = vadd.f32 %v13489, %v13529
    %v13531 = vpop.f32.mrf.mxu0
    %v13532 = vadd.f32 %v13491, %v13531
    %v13533 = vpop.f32.mrf.mxu0
    %v13534 = vpop.f32.mrf.mxu0
    %13535 = vdwg.mxu0
    %13536 = vmatprep.subr.bf16.mxu0 %v12985
    %13537 = vmatpush1.bf16.msra.mxu0 %v12984
    %13538 = vmatprep.subr.bf16.mxu0 %v12983
    %13539 = vmatpush1.bf16.msra.mxu0 %v12982
    %13540 = vmatprep.subr.bf16.mxu0 %v12981
    %13541 = vmatpush1.bf16.msra.mxu0 %v12980
    %13542 = vmatprep.subr.bf16.mxu0 %v12979
    %13543 = vmatpush1.bf16.msra.mxu0 %v12978
    %13544 = vmatprep.subr.bf16.mxu0 %v12977
    %13545 = vmatpush1.bf16.msra.mxu0 %v12976
    %13546 = vmatprep.subr.bf16.mxu0 %v12975
    %13547 = vmatpush1.bf16.msra.mxu0 %v12974
    %13548 = vmatprep.subr.bf16.mxu0 %v12973
    %13549 = vmatpush1.bf16.msra.mxu0 %v12972
    %13550 = vmatprep.subr.bf16.mxu0 %v12971
    %13551 = vmatpush1.bf16.msra.mxu0 %v12970
    %13552 = vmatprep.subr.bf16.mxu0 %v13001
    %13553 = vmatpush2.bf16.msra.mxu0 %v13000
    %13554 = vmatprep.subr.bf16.mxu0 %v12999
    %13555 = vmatpush2.bf16.msra.mxu0 %v12998
    %13556 = vmatprep.subr.bf16.mxu0 %v12997
    %13557 = vmatpush2.bf16.msra.mxu0 %v12996
    %13558 = vmatprep.subr.bf16.mxu0 %v12995
    %13559 = vmatpush2.bf16.msra.mxu0 %v12994
    %13560 = vmatprep.subr.bf16.mxu0 %v12993
    %13561 = vmatpush2.bf16.msra.mxu0 %v12992
    %13562 = vmatprep.subr.bf16.mxu0 %v12991
    %13563 = vmatpush2.bf16.msra.mxu0 %v12990
    %13564 = vmatprep.subr.bf16.mxu0 %v12989
    %13565 = vmatpush2.bf16.msra.mxu0 %v12988
    %13566 = vmatprep.subr.bf16.mxu0 %v12987
    %13567 = vmatpush2.bf16.msra.mxu0 %v12986
    %13568 = vmatprep.mubr.bf16.mxu0 %v11739
    %13569 = vmatmul.mubr.bf16.gmra.mxu0 %v11738
    %v13570 = vpop.f32.mrf.mxu0
    %v13571 = vadd.f32 %v13530, %v13570
    %v13572 = vpop.f32.mrf.mxu0
    %v13573 = vadd.f32 %v13532, %v13572
    %v13574 = vpop.f32.mrf.mxu0
    %v13575 = vpop.f32.mrf.mxu0
    %13576 = vdwg.mxu0
    %13577 = vmatprep.subr.bf16.mxu0 %v13017
    %13578 = vmatpush1.bf16.msra.mxu0 %v13016
    %13579 = vmatprep.subr.bf16.mxu0 %v13015
    %13580 = vmatpush1.bf16.msra.mxu0 %v13014
    %13581 = vmatprep.subr.bf16.mxu0 %v13013
    %13582 = vmatpush1.bf16.msra.mxu0 %v13012
    %13583 = vmatprep.subr.bf16.mxu0 %v13011
    %13584 = vmatpush1.bf16.msra.mxu0 %v13010
    %13585 = vmatprep.subr.bf16.mxu0 %v13009
    %13586 = vmatpush1.bf16.msra.mxu0 %v13008
    %13587 = vmatprep.subr.bf16.mxu0 %v13007
    %13588 = vmatpush1.bf16.msra.mxu0 %v13006
    %13589 = vmatprep.subr.bf16.mxu0 %v13005
    %13590 = vmatpush1.bf16.msra.mxu0 %v13004
    %13591 = vmatprep.subr.bf16.mxu0 %v13003
    %13592 = vmatpush1.bf16.msra.mxu0 %v13002
    %13593 = vmatprep.subr.bf16.mxu0 %v13033
    %13594 = vmatpush2.bf16.msra.mxu0 %v13032
    %13595 = vmatprep.subr.bf16.mxu0 %v13031
    %13596 = vmatpush2.bf16.msra.mxu0 %v13030
    %13597 = vmatprep.subr.bf16.mxu0 %v13029
    %13598 = vmatpush2.bf16.msra.mxu0 %v13028
    %13599 = vmatprep.subr.bf16.mxu0 %v13027
    %13600 = vmatpush2.bf16.msra.mxu0 %v13026
    %13601 = vmatprep.subr.bf16.mxu0 %v13025
    %13602 = vmatpush2.bf16.msra.mxu0 %v13024
    %13603 = vmatprep.subr.bf16.mxu0 %v13023
    %13604 = vmatpush2.bf16.msra.mxu0 %v13022
    %13605 = vmatprep.subr.bf16.mxu0 %v13021
    %13606 = vmatpush2.bf16.msra.mxu0 %v13020
    %13607 = vmatprep.subr.bf16.mxu0 %v13019
    %13608 = vmatpush2.bf16.msra.mxu0 %v13018
    %13609 = vmatprep.mubr.bf16.mxu0 %v11741
    %13610 = vmatmul.mubr.bf16.gmra.mxu0 %v11740
    %v13611 = vpop.f32.mrf.mxu0
    %v13612 = vadd.f32 %v13571, %v13611
    %v13613 = vpop.f32.mrf.mxu0
    %v13614 = vadd.f32 %v13573, %v13613
    %v13615 = vpop.f32.mrf.mxu0
    %v13616 = vpop.f32.mrf.mxu0
    %13617 = vdwg.mxu0
    %v13618 = vmax.f32 %v13612, 0.0
    %v13619 = vmax.f32 %v13614, 0.0
    %v13620 = vpack.c.bf16 %v13618, %v13618
    %v13621 = vpack.c.bf16 %v13619, %v13619
    %v13622 = vld [vmem:[%s9] sm:$0xf]
    %v13623 = vld [vmem:[%s9 + $0x4] sm:$0xf]
    %v13624 = vld [vmem:[%s9 + $0x8] sm:$0xf]
    %v13625 = vld [vmem:[%s9 + $0xc] sm:$0xf]
    %v13626 = vld [vmem:[%s9 + $0x10] sm:$0xf]
    %v13627 = vld [vmem:[%s9 + $0x14] sm:$0xf]
    %v13628 = vld [vmem:[%s9 + $0x18] sm:$0xf]
    %v13629 = vld [vmem:[%s9 + $0x1c] sm:$0xf]
    %v13630 = vld [vmem:[%s9 + $0x20] sm:$0xf]
    %v13631 = vld [vmem:[%s9 + $0x24] sm:$0xf]
    %v13632 = vld [vmem:[%s9 + $0x28] sm:$0xf]
    %v13633 = vld [vmem:[%s9 + $0x2c] sm:$0xf]
    %v13634 = vld [vmem:[%s9 + $0x30] sm:$0xf]
    %v13635 = vld [vmem:[%s9 + $0x34] sm:$0xf]
    %v13636 = vld [vmem:[%s9 + $0x38] sm:$0xf]
    %v13637 = vld [vmem:[%s9 + $0x3c] sm:$0xf]
    %v13638 = vld [vmem:[%s9 + $0x40] sm:$0xf]
    %v13639 = vld [vmem:[%s9 + $0x44] sm:$0xf]
    %v13640 = vld [vmem:[%s9 + $0x48] sm:$0xf]
    %v13641 = vld [vmem:[%s9 + $0x4c] sm:$0xf]
    %v13642 = vld [vmem:[%s9 + $0x50] sm:$0xf]
    %v13643 = vld [vmem:[%s9 + $0x54] sm:$0xf]
    %v13644 = vld [vmem:[%s9 + $0x58] sm:$0xf]
    %v13645 = vld [vmem:[%s9 + $0x5c] sm:$0xf]
    %v13646 = vld [vmem:[%s9 + $0x60] sm:$0xf]
    %v13647 = vld [vmem:[%s9 + $0x64] sm:$0xf]
    %v13648 = vld [vmem:[%s9 + $0x68] sm:$0xf]
    %v13649 = vld [vmem:[%s9 + $0x6c] sm:$0xf]
    %v13650 = vld [vmem:[%s9 + $0x70] sm:$0xf]
    %v13651 = vld [vmem:[%s9 + $0x74] sm:$0xf]
    %v13652 = vld [vmem:[%s9 + $0x78] sm:$0xf]
    %v13653 = vld [vmem:[%s9 + $0x7c] sm:$0xf]
    %v13654 = vld [vmem:[%s10] sm:$0x1]
    %v13656 = vlaneseq
    %v13657 = vshrl.u32 %v13656, 7
    %v13658 = vsub.s32 0, %v13657
    %v13659 = vrot.slane %v13654, %v13658
    %v13693 = vunpack.c.l.b16 %v13622
    %v13694 = vunpack.c.l.b16 %v13623
    %v13695 = vunpack.c.l.b16 %v13624
    %v13696 = vunpack.c.l.b16 %v13625
    %v13697 = vunpack.c.l.b16 %v13626
    %v13698 = vunpack.c.l.b16 %v13627
    %v13699 = vunpack.c.l.b16 %v13628
    %v13700 = vunpack.c.l.b16 %v13629
    %v13701 = vunpack.c.l.b16 %v13630
    %v13702 = vunpack.c.l.b16 %v13631
    %v13703 = vunpack.c.l.b16 %v13632
    %v13704 = vunpack.c.l.b16 %v13633
    %v13705 = vunpack.c.l.b16 %v13634
    %v13706 = vunpack.c.l.b16 %v13635
    %v13707 = vunpack.c.l.b16 %v13636
    %v13708 = vunpack.c.l.b16 %v13637
    %v13709 = vunpack.c.l.b16 %v13638
    %v13710 = vunpack.c.l.b16 %v13639
    %v13711 = vunpack.c.l.b16 %v13640
    %v13712 = vunpack.c.l.b16 %v13641
    %v13713 = vunpack.c.l.b16 %v13642
    %v13714 = vunpack.c.l.b16 %v13643
    %v13715 = vunpack.c.l.b16 %v13644
    %v13716 = vunpack.c.l.b16 %v13645
    %v13717 = vunpack.c.l.b16 %v13646
    %v13718 = vunpack.c.l.b16 %v13647
    %v13719 = vunpack.c.l.b16 %v13648
    %v13720 = vunpack.c.l.b16 %v13649
    %v13721 = vunpack.c.l.b16 %v13650
    %v13722 = vunpack.c.l.b16 %v13651
    %v13723 = vunpack.c.l.b16 %v13652
    %v13724 = vunpack.c.l.b16 %v13653
    %v13725 = vpack.c.b16 %v13694, %v13693
    %v13726 = vpack.c.b16 %v13696, %v13695
    %v13727 = vpack.c.b16 %v13698, %v13697
    %v13728 = vpack.c.b16 %v13700, %v13699
    %v13729 = vpack.c.b16 %v13702, %v13701
    %v13730 = vpack.c.b16 %v13704, %v13703
    %v13731 = vpack.c.b16 %v13706, %v13705
    %v13732 = vpack.c.b16 %v13708, %v13707
    %v13733 = vpack.c.b16 %v13710, %v13709
    %v13734 = vpack.c.b16 %v13712, %v13711
    %v13735 = vpack.c.b16 %v13714, %v13713
    %v13736 = vpack.c.b16 %v13716, %v13715
    %v13737 = vpack.c.b16 %v13718, %v13717
    %v13738 = vpack.c.b16 %v13720, %v13719
    %v13739 = vpack.c.b16 %v13722, %v13721
    %v13740 = vpack.c.b16 %v13724, %v13723
    %13757 = vmatprep.subr.bf16.mxu0 0
    %13758 = vmatpush1.bf16.msra.mxu0 %v13732
    %13759 = vmatprep.subr.bf16.mxu0 0
    %13760 = vmatpush1.bf16.msra.mxu0 %v13731
    %13761 = vmatprep.subr.bf16.mxu0 0
    %13762 = vmatpush1.bf16.msra.mxu0 %v13730
    %13763 = vmatprep.subr.bf16.mxu0 0
    %13764 = vmatpush1.bf16.msra.mxu0 %v13729
    %13765 = vmatprep.subr.bf16.mxu0 0
    %13766 = vmatpush1.bf16.msra.mxu0 %v13728
    %13767 = vmatprep.subr.bf16.mxu0 0
    %13768 = vmatpush1.bf16.msra.mxu0 %v13727
    %13769 = vmatprep.subr.bf16.mxu0 0
    %13770 = vmatpush1.bf16.msra.mxu0 %v13726
    %13771 = vmatprep.subr.bf16.mxu0 0
    %13772 = vmatpush1.bf16.msra.mxu0 %v13725
    %13773 = vmatprep.subr.bf16.mxu0 0
    %13774 = vmatpush2.bf16.msra.mxu0 %v13740
    %13775 = vmatprep.subr.bf16.mxu0 0
    %13776 = vmatpush2.bf16.msra.mxu0 %v13739
    %13777 = vmatprep.subr.bf16.mxu0 0
    %13778 = vmatpush2.bf16.msra.mxu0 %v13738
    %13779 = vmatprep.subr.bf16.mxu0 0
    %13780 = vmatpush2.bf16.msra.mxu0 %v13737
    %13781 = vmatprep.subr.bf16.mxu0 0
    %13782 = vmatpush2.bf16.msra.mxu0 %v13736
    %13783 = vmatprep.subr.bf16.mxu0 0
    %13784 = vmatpush2.bf16.msra.mxu0 %v13735
    %13785 = vmatprep.subr.bf16.mxu0 0
    %13786 = vmatpush2.bf16.msra.mxu0 %v13734
    %13787 = vmatprep.subr.bf16.mxu0 0
    %13788 = vmatpush2.bf16.msra.mxu0 %v13733
    %13789 = vmatprep.mubr.bf16.mxu0 %v13621
    %13790 = vmatmul.mubr.bf16.gmra.mxu0 %v13620
    %v13791 = vpop.f32.mrf.mxu0
    %v13792 = vadd.f32 %v13659, %v13791
    %v13793 = vpop.f32.mrf.mxu0
    %v13794 = vpop.f32.mrf.mxu0
    %v13795 = vpop.f32.mrf.mxu0
    %13796 = vdwg.mxu0
    %v13797 = vlaneseq
    %v13798 = vand.u32 %v13797, 127
    %vm13799 = vcmp.lt.s32.totalorder %v13798, 25
    %v13800 = vsel %vm13799, %v13792, -1e+30
    %v13801 = vsel %vm4230, %v13800, -inf
    %13802 = vmax.xlane.f32.xlu0 %v13801
    %v13803 = vpop.xlane.xlu0 %13802
    %v13804 = vsub.f32 %v13800, %v13803
    %v13805 = vmul.f32 %v13804, 1.442695
    %v13806 = vpow.pop %v13805
    %v13807 = vsel %vm4230, %v13806, 0.0
    %13808 = vadd.xlane.f32.xlu0 %v13807
    %v13809 = vpop.xlane.xlu0 %13808
    %v13810 = vlog2.pop %v13809
    %v13811 = vmul.f32 %v13810, 0.6931472
    %v13812 = vadd.f32 %v13803, %v13811
    %v13813 = vsub.f32 %v13800, %v13812
    %13814 = vst [vmem:[#allocation2] sm:$0x3] %v13813
    // Predicated region
    $region46: #{net_forward.1} parent=1 // pred_check
      _
    $region47: #{net_forward.1} parent=1 // pred_check_branch
      %13816 = sbr.rel (0) target = $region49
    $region48: #{net_forward.1} parent=1 // pred_region
      %s13818 = ssub.s32 32, 32
      %13819 = vsyncadd [#allocation3], %s13818
      %s13821 = sshll.u32 [#allocation2], 4
      %s13822 = int_to_ptr.vmem [resolvable:$true] %s13821
      %13824 = dma.vmem_to_hbm [thread:$0]  %s13822, 32, %s11, [#allocation3]
    $region49: #{net_forward.1} parent=1 // pred_fallthru
      _
    // Predicated region
    $region50: #{net_forward.1} parent=1 // pred_check
      _
    $region51: #{net_forward.1} parent=1 // pred_check_branch
      %13826 = sbr.rel (0) target = $region53
    $region52: #{net_forward.1} parent=1 // pred_region
      %13827 = dma.done [#allocation3], 32
    $region53: #{net_forward.1} parent=1 // pred_fallthru
      _
    %13828 = vsyncpa [#allocation3], 1

</llo_original>
